<compile_context>
chip_gen: v6e
topology: v6e:2x2x1
jax: 0.10.0
libtpu: 0.0.40
codegen_flags: <defaults>
</compile_context>

<pallas_src>
import numpy as np
import jax
import jax.numpy as jnp
from jax import lax
from jax.experimental import pallas as pl
from jax.experimental.pallas import tpu as pltpu


# --------------------------------------------------------------------------
# Per-generation VMEM budget (v5e/v6e: 128 MiB, v7x: 64 MiB per core)
# --------------------------------------------------------------------------

def _vmem_budget():
    cap = None
    try:
        info = pltpu.get_tpu_info()
        for name in ("vmem_capacity_bytes", "vmem_size_bytes", "vmem_bytes"):
            v = getattr(info, name, None)
            if v:
                cap = int(v)
                break
    except Exception:
        cap = None
    if not cap:
        cap = 64 * 1024 * 1024              # conservative (v7x-sized) fallback
    return int(min(max(cap * 3 // 4, 32 * 1024 * 1024), 112 * 1024 * 1024))


VMEM_BUDGET = _vmem_budget()


def _cparams(ndim=1):
    return pltpu.CompilerParams(dimension_semantics=("parallel",) * ndim,
                                vmem_limit_bytes=VMEM_BUDGET)


def _choose_rows(m, cap, granularity=8, prefer_even=True):
    """Pick a row-block size for a pipelined 1-D grid.

    Returns (block, padded_m). `block` is a multiple of `granularity` (or the
    full dim when m <= cap) and divides padded_m.  Never returns a block larger
    than cap unless m itself fits.  Prefers an even grid count (v7x megacore)
    when that does not shrink the block pathologically.
    """
    m = int(m)
    cap = max(granularity, int(cap))
    cands = [b for b in range(granularity, min(m, cap) + 1, granularity)
             if m % b == 0]
    if m <= cap:
        cands.append(m)
    if cands:
        if prefer_even:
            even = [b for b in cands if (m // b) % 2 == 0]
            if even:
                return max(even), m
        return max(cands), m
    # No legal divisor <= cap: pad m up to a multiple of a cap-sized block.
    b = (cap // granularity) * granularity
    mp = ((m + b - 1) // b) * b
    return b, mp


def _pad_axis(x, axis, new_size):
    if x.shape[axis] == new_size:
        return x
    pad = [(0, 0)] * x.ndim
    pad[axis] = (0, new_size - x.shape[axis])
    return jnp.pad(x, pad)


def _prelu(y, a):
    # a: (1, 1) broadcastable PReLU slope (nn.PReLU(num_parameters=1))
    return jnp.where(y >= 0, y, a * y)


# --------------------------------------------------------------------------
# Plain linear kernels (row-tiled, pipelined)
# --------------------------------------------------------------------------

def _linear_kernel(x_ref, w_ref, b_ref, o_ref):
    o_ref[...] = (jnp.dot(x_ref[...], w_ref[...],
                          preferred_element_type=jnp.float32) + b_ref[...])


def pallas_linear(x, w, b):
    """(M, K) @ (K, N) + (N,) -> (M, N)."""
    M, K = x.shape
    N = w.shape[1]
    cap = max(256, min(4096, VMEM_BUDGET // (16 * (K + N))))
    bm, Mp = _choose_rows(M, cap, granularity=8, prefer_even=True)
    xp = _pad_axis(x, 0, Mp)
    out = pl.pallas_call(
        _linear_kernel,
        out_shape=jax.ShapeDtypeStruct((Mp, N), jnp.float32),
        grid=(Mp // bm,),
        in_specs=[pl.BlockSpec((bm, K), lambda i: (i, 0)),
                  pl.BlockSpec((K, N), lambda i: (0, 0)),
                  pl.BlockSpec((1, N), lambda i: (0, 0))],
        out_specs=pl.BlockSpec((bm, N), lambda i: (i, 0)),
        compiler_params=_cparams(1),
    )(xp, w, b.reshape(1, N))
    return out[:M] if Mp != M else out


def _linear_prelu_kernel(x_ref, w_ref, b_ref, a_ref, o_ref):
    y = (jnp.dot(x_ref[...], w_ref[...], preferred_element_type=jnp.float32)
         + b_ref[...])
    o_ref[...] = _prelu(y, a_ref[...])


def pallas_linear_prelu(x, w, b, a):
    M, K = x.shape
    N = w.shape[1]
    cap = max(256, min(4096, VMEM_BUDGET // (16 * (K + N))))
    bm, Mp = _choose_rows(M, cap, granularity=8, prefer_even=True)
    xp = _pad_axis(x, 0, Mp)
    out = pl.pallas_call(
        _linear_prelu_kernel,
        out_shape=jax.ShapeDtypeStruct((Mp, N), jnp.float32),
        grid=(Mp // bm,),
        in_specs=[pl.BlockSpec((bm, K), lambda i: (i, 0)),
                  pl.BlockSpec((K, N), lambda i: (0, 0)),
                  pl.BlockSpec((1, N), lambda i: (0, 0)),
                  pl.BlockSpec((1, 1), lambda i: (0, 0))],
        out_specs=pl.BlockSpec((bm, N), lambda i: (i, 0)),
        compiler_params=_cparams(1),
    )(xp, w, b.reshape(1, N), a.reshape(1, 1))
    return out[:M] if Mp != M else out


# --------------------------------------------------------------------------
# Bidirectional-aware linear: out[t] = [h_f(t) | h_b(t)] @ W + b
# hs is scan-aligned: hs[s] = [h_f(s) | h_b(T-1-s)], so the forward half is
# read at block t and the backward half at block T-1-t via the index_map.
# --------------------------------------------------------------------------

def _bidir_linear_kernel(ht_ref, hr_ref, w_ref, b_ref, o_ref):
    H = w_ref.shape[0] // 2
    ht = ht_ref[0]                      # hs[t]       -> fwd half time-aligned
    hr = hr_ref[0]                      # hs[T-1-t]   -> bwd half time-aligned
    h = jnp.concatenate([ht[:, :H], hr[:, H:]], axis=-1)
    o_ref[0] = (jnp.dot(h, w_ref[...], preferred_element_type=jnp.float32)
                + b_ref[...])


def pallas_bidir_linear(hs, w, b):
    T, Beff, H2 = hs.shape
    Nout = w.shape[1]
    cap = max(64, min(2048, (VMEM_BUDGET // 2) // (8 * (2 * H2 + Nout))))
    bb, Bp = _choose_rows(Beff, cap, granularity=8, prefer_even=False)
    hsp = _pad_axis(hs, 1, Bp)
    Tm1 = T - 1
    out = pl.pallas_call(
        _bidir_linear_kernel,
        out_shape=jax.ShapeDtypeStruct((T, Bp, Nout), jnp.float32),
        grid=(T, Bp // bb),
        in_specs=[pl.BlockSpec((1, bb, H2), lambda t, j: (t, j, 0)),
                  pl.BlockSpec((1, bb, H2), lambda t, j: (Tm1 - t, j, 0)),
                  pl.BlockSpec((H2, Nout), lambda t, j: (0, 0)),
                  pl.BlockSpec((1, Nout), lambda t, j: (0, 0))],
        out_specs=pl.BlockSpec((1, bb, Nout), lambda t, j: (t, j, 0)),
        compiler_params=_cparams(2),
    )(hsp, hsp, w, b.reshape(1, Nout))
    return out[:, :Beff] if Bp != Beff else out


# --------------------------------------------------------------------------
# Fused bidirectional LSTM time scan
# gx layout: (T, Beff, 8H); lanes [0,4H) = fwd gates [i f g o] for input x_t,
#                           lanes [4H,8H) = bwd gates [i f g o] for input x_t.
# whh: (2H, 8H) block-diagonal over [h_f | h_b].
# hs output is scan-aligned: hs[s] = [h_f(s) | h_b(T-1-s)].
# --------------------------------------------------------------------------

def _bilstm_scan_kernel(gx_ref, whh_ref, hs_ref, h_scr, c_scr):
    T = gx_ref.shape[0]
    H8 = gx_ref.shape[2]
    H4 = H8 // 2
    H = H8 // 8
    h_scr[...] = jnp.zeros(h_scr.shape, h_scr.dtype)
    c_scr[...] = jnp.zeros(c_scr.shape, c_scr.dtype)
    Tm1 = T - 1

    def body(t, carry):
        h = h_scr[...]                              # (bb, 2H) = [h_f | h_b]
        c = c_scr[...]
        gxf = gx_ref[t]                             # fwd half used
        gxb = gx_ref[Tm1 - t]                       # bwd half used
        gx = jnp.concatenate([gxf[:, :H4], gxb[:, H4:]], axis=-1)
        g = gx + jnp.dot(h, whh_ref[...], preferred_element_type=jnp.float32)
        sg = jax.nn.sigmoid(g)                      # one full-width EUP push
        u_f = jnp.tanh(g[:, 2 * H:3 * H])
        u_b = jnp.tanh(g[:, H4 + 2 * H:H4 + 3 * H])
        c_f = sg[:, H:2 * H] * c[:, :H] + sg[:, 0:H] * u_f
        c_b = sg[:, H4 + H:H4 + 2 * H] * c[:, H:] + sg[:, H4:H4 + H] * u_b
        c_new = jnp.concatenate([c_f, c_b], axis=-1)
        o_gate = jnp.concatenate([sg[:, 3 * H:4 * H],
                                  sg[:, H4 + 3 * H:H4 + 4 * H]], axis=-1)
        h_new = o_gate * jnp.tanh(c_new)
        c_scr[...] = c_new
        h_scr[...] = h_new
        hs_ref[t] = h_new
        return carry

    lax.fori_loop(0, T, body, 0, unroll=min(int(T), 8))


def pallas_bilstm_scan(gx, w_hh_blk):
    T, Beff, H8 = gx.shape
    H2 = H8 // 4
    H = H8 // 8
    # footprint: 2x gx block + 2x hs block (double buffered) ~= 80*T*H*bb bytes
    cap = max(8, min(1024, (VMEM_BUDGET * 3 // 4) // (80 * T * H)))
    bb, Bp = _choose_rows(Beff, cap, granularity=8, prefer_even=False)
    gxp = _pad_axis(gx, 1, Bp)
    hs = pl.pallas_call(
        _bilstm_scan_kernel,
        out_shape=jax.ShapeDtypeStruct((T, Bp, H2), jnp.float32),
        grid=(Bp // bb,),
        in_specs=[pl.BlockSpec((T, bb, H8), lambda j: (0, j, 0)),
                  pl.BlockSpec((H2, H8), lambda j: (0, 0))],
        out_specs=pl.BlockSpec((T, bb, H2), lambda j: (0, j, 0)),
        scratch_shapes=[pltpu.VMEM((bb, H2), jnp.float32),
                        pltpu.VMEM((bb, H2), jnp.float32)],
        compiler_params=_cparams(1),
    )(gxp, w_hh_blk)
    return hs[:, :Beff] if Bp != Beff else hs


# --------------------------------------------------------------------------
# GroupNorm(1, N, eps=1e-8) + residual add, lane-dense flattened layout
# --------------------------------------------------------------------------

def _gn_residual_kernel(y_ref, r_ref, w_ref, b_ref, o_ref):
    y = y_ref[...]
    mean = jnp.mean(y, axis=1, keepdims=True)
    cen = y - mean
    var = jnp.mean(cen * cen, axis=1, keepdims=True)
    o_ref[...] = r_ref[...] + cen * lax.rsqrt(var + 1e-8) * w_ref[...] + b_ref[...]


def pallas_groupnorm_residual(y, res, w, b):
    """Returns res + GroupNorm(1, N)(y).  y, res: (BCH, N, D1, D2)."""
    BCH, N, D1, D2 = y.shape
    S = N * D1 * D2
    w_full = jnp.broadcast_to(w.reshape(N, 1), (N, D1 * D2)).reshape(1, S)
    b_full = jnp.broadcast_to(b.reshape(N, 1), (N, D1 * D2)).reshape(1, S)
    # ~24*S bytes per row of double-buffered in/out blocks
    row_cap = max(8, min(2048, (VMEM_BUDGET // 2) // (24 * S)))
    bm, Mp = _choose_rows(BCH, row_cap, granularity=8, prefer_even=True)
    yp = _pad_axis(y.reshape(BCH, S), 0, Mp)
    rp = _pad_axis(res.reshape(BCH, S), 0, Mp)
    # TODO(synk): for very large N*D1*D2 a two-pass tiled reduction is needed.
    out = pl.pallas_call(
        _gn_residual_kernel,
        out_shape=jax.ShapeDtypeStruct((Mp, S), jnp.float32),
        grid=(Mp // bm,),
        in_specs=[pl.BlockSpec((bm, S), lambda i: (i, 0)),
                  pl.BlockSpec((bm, S), lambda i: (i, 0)),
                  pl.BlockSpec((1, S), lambda i: (0, 0)),
                  pl.BlockSpec((1, S), lambda i: (0, 0))],
        out_specs=pl.BlockSpec((bm, S), lambda i: (i, 0)),
        input_output_aliases={1: 0},            # reuse the residual buffer
        compiler_params=_cparams(1),
    )(yp, rp, w_full, b_full)
    out = out[:BCH] if Mp != BCH else out
    return out.reshape(BCH, N, D1, D2)


# --------------------------------------------------------------------------
# Fused TAC block (fixed-geometry branch, num_mic.max() == 0)
# --------------------------------------------------------------------------

def _make_tac_kernel(CH):
    def kernel(x_ref, wt_ref, bt_ref, wa_ref, ba_ref,
               wct_ref, wcb_ref, bc_ref, at_ref, aa_ref, ac_ref, o_ref):
        bp = x_ref.shape[1]
        N = x_ref.shape[2]
        # transform (shared weights per channel) + PReLU, stacked over channels
        x = x_ref[...].reshape(CH * bp, N)
        y = _prelu(jnp.dot(x, wt_ref[...], preferred_element_type=jnp.float32)
                   + bt_ref[...], at_ref[...])                  # (CH*bp, H3)
        # channel mean (static per-channel slices, VPU adds)
        m = y[0:bp]
        for c in range(1, CH):
            m = m + y[c * bp:(c + 1) * bp]
        m = m * (1.0 / CH)
        # average branch + PReLU
        m = _prelu(jnp.dot(m, wa_ref[...], preferred_element_type=jnp.float32)
                   + ba_ref[...], aa_ref[...])                  # (bp, H3)
        # concat branch: [y_c | m] @ cc_w == y_c @ cc_w_top + m @ cc_w_bot
        mc = (jnp.dot(m, wcb_ref[...], preferred_element_type=jnp.float32)
              + bc_ref[...])                                    # (bp, N)
        z = jnp.dot(y, wct_ref[...], preferred_element_type=jnp.float32)
        z = z.reshape(CH, bp, N) + mc[None, :, :]
        o_ref[...] = _prelu(z, ac_ref[...])
    return kernel


def pallas_tac_fused(x, p):
    """x: (CH, PIX, N) -> (CH, PIX, N).  Whole TAC chain in one pallas_call."""
    CH, PIX, N = x.shape
    H3 = p["tr_w"].shape[1]
    bp_cap = max(8, min(1024, (VMEM_BUDGET // 2) // (4 * CH * (4 * N + 2 * H3))))
    bp, Pp = _choose_rows(PIX, bp_cap, granularity=8, prefer_even=True)
    xp = _pad_axis(x, 1, Pp)
    out = pl.pallas_call(
        _make_tac_kernel(CH),
        out_shape=jax.ShapeDtypeStruct((CH, Pp, N), jnp.float32),
        grid=(Pp // bp,),
        in_specs=[pl.BlockSpec((CH, bp, N), lambda i: (0, i, 0)),
                  pl.BlockSpec((N, H3), lambda i: (0, 0)),
                  pl.BlockSpec((1, H3), lambda i: (0, 0)),
                  pl.BlockSpec((H3, H3), lambda i: (0, 0)),
                  pl.BlockSpec((1, H3), lambda i: (0, 0)),
                  pl.BlockSpec((H3, N), lambda i: (0, 0)),
                  pl.BlockSpec((H3, N), lambda i: (0, 0)),
                  pl.BlockSpec((1, N), lambda i: (0, 0)),
                  pl.BlockSpec((1, 1), lambda i: (0, 0)),
                  pl.BlockSpec((1, 1), lambda i: (0, 0)),
                  pl.BlockSpec((1, 1), lambda i: (0, 0))],
        out_specs=pl.BlockSpec((CH, bp, N), lambda i: (0, i, 0)),
        compiler_params=_cparams(1),
    )(xp, p["tr_w"], p["tr_b"].reshape(1, H3),
      p["av_w"], p["av_b"].reshape(1, H3),
      p["cc_w_top"], p["cc_w_bot"], p["cc_b"].reshape(1, N),
      p["tr_a"].reshape(1, 1), p["av_a"].reshape(1, 1), p["cc_a"].reshape(1, 1))
    return out[:, :PIX] if Pp != PIX else out


def tac_general(ch_x, num_mic, p):
    # Fallback for variable microphone geometry (num_mic.max() > 0): masked
    # per-batch channel mean done with XLA glue, linears still in Pallas.
    CH, PIXB, N = ch_x.shape
    nm = jnp.asarray(num_mic, jnp.float32)
    B = nm.shape[0]
    S = PIXB // B
    H3 = p["tr_w"].shape[1]
    y = pallas_linear_prelu(ch_x.reshape(CH * PIXB, N), p["tr_w"], p["tr_b"],
                            p["tr_a"]).reshape(CH, B, S, H3)
    mask = (jnp.arange(CH, dtype=jnp.float32)[:, None] < nm[None, :]).astype(jnp.float32)
    m = (y * mask[:, :, None, None]).sum(0) / nm[:, None, None]          # (B, S, H3)
    m = pallas_linear_prelu(m.reshape(B * S, H3), p["av_w"], p["av_b"], p["av_a"])
    m = jnp.broadcast_to(m.reshape(1, B * S, H3), (CH, B * S, H3))
    cat = jnp.concatenate([y.reshape(CH, B * S, H3), m], axis=-1).reshape(CH * PIXB, 2 * H3)
    out = pallas_linear_prelu(cat, p["cc_w"], p["cc_b"], p["cc_a"])
    return out.reshape(CH, PIXB, N)


# --------------------------------------------------------------------------
# Output head: PReLU + 1x1 Conv2d fused, channels-first, multi-batch blocks
# --------------------------------------------------------------------------

def _make_head_kernel(bg):
    def kernel(x_ref, w_ref, b_ref, a_ref, o_ref):
        w = w_ref[...]
        b = b_ref[...]
        a = a_ref[...]
        for i in range(bg):
            xp = _prelu(x_ref[i], a)                 # (N, S)
            o_ref[i] = (jnp.dot(w, xp, preferred_element_type=jnp.float32) + b)
    return kernel


def pallas_prelu_conv1x1(x, w, b, a):
    """x: (BCH, N, D1, D2), w: (OUT, N), b: (OUT,) -> (BCH, OUT, D1, D2)."""
    BCH, N, D1, D2 = x.shape
    S = D1 * D2
    OUT = w.shape[0]
    bg_cap = max(1, min(32, (VMEM_BUDGET // 2) // (8 * S * (N + OUT))))
    bg, Gp = _choose_rows(BCH, bg_cap, granularity=1, prefer_even=True)
    xp = _pad_axis(x.reshape(BCH, N, S), 0, Gp)
    out = pl.pallas_call(
        _make_head_kernel(bg),
        out_shape=jax.ShapeDtypeStruct((Gp, OUT, S), jnp.float32),
        grid=(Gp // bg,),
        in_specs=[pl.BlockSpec((bg, N, S), lambda i: (i, 0, 0)),
                  pl.BlockSpec((OUT, N), lambda i: (0, 0)),
                  pl.BlockSpec((OUT, 1), lambda i: (0, 0)),
                  pl.BlockSpec((1, 1), lambda i: (0, 0))],
        out_specs=pl.BlockSpec((bg, OUT, S), lambda i: (i, 0, 0)),
        compiler_params=_cparams(1),
    )(xp, w, b.reshape(OUT, 1), a.reshape(1, 1))
    out = out[:BCH] if Gp != BCH else out
    return out.reshape(BCH, OUT, D1, D2)


# --------------------------------------------------------------------------
# Model building blocks
# --------------------------------------------------------------------------

def single_rnn(x_tbd, p):
    """SingleRNN: 2-layer bidirectional LSTM + Linear proj, sequence-major.
    x_tbd: (T, Beff, D) -> (T, Beff, D)."""
    T, Beff, D = x_tbd.shape
    lstm = p["lstm"]
    # layer 0: dense gate GEMM straight from the input (no concat/flip, no
    # zero-padded weights): gx[t] = [fwd gates(x_t) | bwd gates(x_t)]
    gx = pallas_linear(x_tbd.reshape(T * Beff, D), lstm[0]["w_ih"], lstm[0]["b"])
    hs = pallas_bilstm_scan(gx.reshape(T, Beff, -1), lstm[0]["w_hh_blk"])
    # deeper layers and the projection fold the backward-time flip into the
    # consumer GEMM's index_map (no HBM reassembly pass over hs).
    for lp in lstm[1:]:
        gx = pallas_bidir_linear(hs, lp["w_ih"], lp["b"])
        hs = pallas_bilstm_scan(gx, lp["w_hh_blk"])
    return pallas_bidir_linear(hs, p["proj_w"], p["proj_b"])


def dprnn_tac_forward(x, num_mic, params):
    """x: (batch, ch, N, dim1, dim2) -> (batch*ch, output_size, dim1, dim2)."""
    B, CH, N, D1, D2 = x.shape
    BCH = B * CH
    output = x.reshape(BCH, N, D1, D2)
    fixed_geometry = int(np.max(np.asarray(num_mic))) == 0

    for p in params["layers"]:
        # ---- row RNN: sequence along dim1, independent over (B*CH, dim2) ----
        row_in = output.transpose(2, 0, 3, 1).reshape(D1, BCH * D2, N)
        row_out = single_rnn(row_in, p["row_rnn"])
        row_out = row_out.reshape(D1, BCH, D2, N).transpose(1, 3, 0, 2)   # (BCH,N,D1,D2)
        output = pallas_groupnorm_residual(row_out, output,
                                           p["row_norm_w"], p["row_norm_b"])

        # ---- col RNN: sequence along dim2, independent over (B*CH, dim1) ----
        col_in = output.transpose(3, 0, 2, 1).reshape(D2, BCH * D1, N)
        col_out = single_rnn(col_in, p["col_rnn"])
        col_out = col_out.reshape(D2, BCH, D1, N).transpose(1, 3, 2, 0)   # (BCH,N,D1,D2)
        output = pallas_groupnorm_residual(col_out, output,
                                           p["col_norm_w"], p["col_norm_b"])

        # ---- TAC across channels ----
        ch_x = (output.reshape(B, CH, N, D1, D2)
                .transpose(1, 0, 3, 4, 2)
                .reshape(CH, B * D1 * D2, N))
        if fixed_geometry:
            ch_out = pallas_tac_fused(ch_x, p)
        else:
            ch_out = tac_general(ch_x, num_mic, p)
        ch_out = (ch_out.reshape(CH, B, D1, D2, N)
                  .transpose(1, 0, 4, 2, 3)
                  .reshape(BCH, N, D1, D2))
        output = pallas_groupnorm_residual(ch_out, output,
                                           p["ch_norm_w"], p["ch_norm_b"])

    # ---- output head: PReLU + 1x1 Conv2d ----
    return pallas_prelu_conv1x1(output, params["out_w"], params["out_b"],
                                params["out_a"])


# --------------------------------------------------------------------------
# Parameter init (PyTorch-shaped) and packing into kernel-ready layout
# --------------------------------------------------------------------------

def _init_lstm(key, D, H, num_layers=2):
    layers = []
    for l in range(num_layers):
        din = D if l == 0 else 2 * H
        key, *ks = jax.random.split(key, 7)
        layers.append(dict(
            w_ih_f=0.1 * jax.random.normal(ks[0], (din, 4 * H), jnp.float32),
            w_hh_f=0.1 * jax.random.normal(ks[1], (H, 4 * H), jnp.float32),
            b_f=0.1 * jax.random.normal(ks[2], (4 * H,), jnp.float32),
            w_ih_b=0.1 * jax.random.normal(ks[3], (din, 4 * H), jnp.float32),
            w_hh_b=0.1 * jax.random.normal(ks[4], (H, 4 * H), jnp.float32),
            b_b=0.1 * jax.random.normal(ks[5], (4 * H,), jnp.float32),
        ))
    return key, layers


def init_params(key, N, H, out_size, num_layers):
    layers = []
    for _ in range(num_layers):
        key, row_lstm = _init_lstm(key, N, H)
        key, k1, k2 = jax.random.split(key, 3)
        row = dict(lstm=row_lstm,
                   proj_w=0.1 * jax.random.normal(k1, (2 * H, N), jnp.float32),
                   proj_b=0.1 * jax.random.normal(k2, (N,), jnp.float32))
        key, col_lstm = _init_lstm(key, N, H)
        key, k1, k2 = jax.random.split(key, 3)
        col = dict(lstm=col_lstm,
                   proj_w=0.1 * jax.random.normal(k1, (2 * H, N), jnp.float32),
                   proj_b=0.1 * jax.random.normal(k2, (N,), jnp.float32))
        key, *ks = jax.random.split(key, 7)
        layers.append(dict(
            row_rnn=row, col_rnn=col,
            tr_w=0.1 * jax.random.normal(ks[0], (N, 3 * H), jnp.float32),
            tr_b=0.1 * jax.random.normal(ks[1], (3 * H,), jnp.float32),
            tr_a=jnp.array([0.25], jnp.float32),
            av_w=0.1 * jax.random.normal(ks[2], (3 * H, 3 * H), jnp.float32),
            av_b=0.1 * jax.random.normal(ks[3], (3 * H,), jnp.float32),
            av_a=jnp.array([0.25], jnp.float32),
            cc_w=0.1 * jax.random.normal(ks[4], (6 * H, N), jnp.float32),
            cc_b=0.1 * jax.random.normal(ks[5], (N,), jnp.float32),
            cc_a=jnp.array([0.25], jnp.float32),
            row_norm_w=jnp.ones((N,), jnp.float32),
            row_norm_b=jnp.zeros((N,), jnp.float32),
            col_norm_w=jnp.ones((N,), jnp.float32),
            col_norm_b=jnp.zeros((N,), jnp.float32),
            ch_norm_w=jnp.ones((N,), jnp.float32),
            ch_norm_b=jnp.zeros((N,), jnp.float32),
        ))
    key, k1, k2 = jax.random.split(key, 3)
    return dict(layers=layers,
                out_a=jnp.array([0.25], jnp.float32),
                out_w=0.1 * jax.random.normal(k1, (out_size, N), jnp.float32),
                out_b=0.1 * jax.random.normal(k2, (out_size,), jnp.float32))


def _combine_bidir_lstm(lp):
    """Pack both directions of one LSTM layer (PyTorch gate order i,f,g,o):
      w_ih:     (Din, 8H)  dense = [fwd gates | bwd gates]   (no zero padding)
      w_hh_blk: (2H,  8H)  block-diagonal over [h_fwd | h_bwd]
      b:        (8H,)      = [b_fwd | b_bwd]
    """
    H = lp["w_hh_f"].shape[0]
    w_ih = jnp.concatenate([lp["w_ih_f"], lp["w_ih_b"]], axis=1)
    b = jnp.concatenate([lp["b_f"], lp["b_b"]], axis=0)
    w_hh_blk = jnp.zeros((2 * H, 8 * H), jnp.float32)
    w_hh_blk = w_hh_blk.at[:H, :4 * H].set(lp["w_hh_f"])
    w_hh_blk = w_hh_blk.at[H:, 4 * H:].set(lp["w_hh_b"])
    return dict(w_ih=w_ih, w_hh_blk=w_hh_blk, b=b)


def prepare_params(params):
    prepared = []
    for p in params["layers"]:
        H3 = p["tr_w"].shape[1]
        q = dict(p)
        q["row_rnn"] = dict(lstm=[_combine_bidir_lstm(lp) for lp in p["row_rnn"]["lstm"]],
                            proj_w=p["row_rnn"]["proj_w"], proj_b=p["row_rnn"]["proj_b"])
        q["col_rnn"] = dict(lstm=[_combine_bidir_lstm(lp) for lp in p["col_rnn"]["lstm"]],
                            proj_w=p["col_rnn"]["proj_w"], proj_b=p["col_rnn"]["proj_b"])
        q["cc_w_top"] = p["cc_w"][:H3]     # multiplies ch_out part of the concat
        q["cc_w_bot"] = p["cc_w"][H3:]     # multiplies ch_mean part of the concat
        prepared.append(q)
    return dict(layers=prepared, out_a=params["out_a"],
                out_w=params["out_w"], out_b=params["out_b"])


# --------------------------------------------------------------------------

if __name__ == "__main__":
    B, CH, N, D1, D2 = 2, 2, 16, 8, 8     # batch, mics, feature dim, chunk len, n chunks
    H = 16                                 # hidden size
    OUT = 16                               # output_size
    NUM_LAYERS = 1

    key = jax.random.PRNGKey(0)
    key, kx = jax.random.split(key)
    x = jax.random.normal(kx, (B, CH, N, D1, D2), jnp.float32)
    raw_params = init_params(key, N, H, OUT, NUM_LAYERS)
    params = prepare_params(raw_params)
    num_mic = np.zeros((B,), dtype=np.int32)   # fixed-geometry branch (mean over all channels)

    fwd = jax.jit(lambda xx, pp: dprnn_tac_forward(xx, num_mic, pp))
    out = fwd(x, params)
    out = jax.block_until_ready(out)
    assert out.shape == (B * CH, OUT, D1, D2)
    assert bool(jnp.all(jnp.isfinite(out)))
    print("KERNEL_OK")
</pallas_src>

<mosaic_0001>
module attributes {stable_mosaic.version = 11 : i64} {
  func.func @_bidir_linear_kernel(%arg0: i32, %arg1: i32, %arg2: memref<1x32x32xf32, #tpu.memory_space<vmem>>, %arg3: memref<1x32x32xf32, #tpu.memory_space<vmem>>, %arg4: memref<32x128xf32, #tpu.memory_space<vmem>>, %arg5: memref<1x128xf32, #tpu.memory_space<vmem>>, %arg6: memref<1x32x128xf32, #tpu.memory_space<vmem>>) attributes {dimension_semantics = [#tpu.dimension_semantics<parallel>, #tpu.dimension_semantics<parallel>], iteration_bounds = array<i64: 8, 1>, scalar_prefetch = 0 : i64, scratch_operands = 0 : i64, tpu.core_type = #tpu.core_type<tc>, window_params = [{transform_indices = @transform_0, window_bounds = array<i64: 1, 32, 32>}, {transform_indices = @transform_1, window_bounds = array<i64: 1, 32, 32>}, {pipeline_mode = #tpu.pipeline_mode<synchronous>, transform_indices = @transform_2, window_bounds = array<i64: 32, 128>}, {pipeline_mode = #tpu.pipeline_mode<synchronous>, transform_indices = @transform_3, window_bounds = array<i64: 1, 128>}, {transform_indices = @transform_4, window_bounds = array<i64: 1, 32, 128>}]} {
    %c0 = arith.constant 0 : index
    %c0_0 = arith.constant 0 : index
    %c0_1 = arith.constant 0 : index
    %0 = vector.load %arg2[%c0, %c0_0, %c0_1] : memref<1x32x32xf32, #tpu.memory_space<vmem>>, vector<1x32x32xf32>
    %1 = vector.shape_cast %0 : vector<1x32x32xf32> to vector<32x32xf32>
    %c0_2 = arith.constant 0 : index
    %c0_3 = arith.constant 0 : index
    %c0_4 = arith.constant 0 : index
    %2 = vector.load %arg3[%c0_2, %c0_3, %c0_4] : memref<1x32x32xf32, #tpu.memory_space<vmem>>, vector<1x32x32xf32>
    %3 = vector.shape_cast %2 : vector<1x32x32xf32> to vector<32x32xf32>
    %4 = vector.extract_strided_slice %1 {offsets = [0, 0], sizes = [32, 16], strides = [1, 1]} : vector<32x32xf32> to vector<32x16xf32>
    %5 = vector.extract_strided_slice %3 {offsets = [0, 16], sizes = [32, 16], strides = [1, 1]} : vector<32x32xf32> to vector<32x16xf32>
    %6 = tpu.concatenate %4, %5 in 1 : vector<32x16xf32>, vector<32x16xf32> -> vector<32x32xf32>
    %c0_5 = arith.constant 0 : index
    %c0_6 = arith.constant 0 : index
    %7 = vector.load %arg4[%c0_5, %c0_6] : memref<32x128xf32, #tpu.memory_space<vmem>>, vector<32x128xf32>
    %cst = arith.constant dense<0.000000e+00> : vector<32x128xf32>
    %8 = tpu.matmul %6, %7, %cst {dimension_numbers = #tpu.dot_dimension_numbers<[1], [0], [0], [1], [0, 0, 1, 1], [], []>} : vector<32x32xf32>, vector<32x128xf32>, vector<32x128xf32> -> vector<32x128xf32>
    %c0_7 = arith.constant 0 : index
    %c0_8 = arith.constant 0 : index
    %9 = vector.load %arg5[%c0_7, %c0_8] : memref<1x128xf32, #tpu.memory_space<vmem>>, vector<1x128xf32>
    %10 = vector.broadcast %9 : vector<1x128xf32> to vector<32x128xf32>
    %11 = arith.addf %8, %10 : vector<32x128xf32>
    %c0_9 = arith.constant 0 : index
    %c0_10 = arith.constant 0 : index
    %c0_11 = arith.constant 0 : index
    %12 = vector.load %arg6[%c0_9, %c0_10, %c0_11] : memref<1x32x128xf32, #tpu.memory_space<vmem>>, vector<1x32x128xf32>
    %13 = vector.shape_cast %12 : vector<1x32x128xf32> to vector<32x128xf32>
    %14 = vector.shape_cast %11 : vector<32x128xf32> to vector<1x32x128xf32>
    tpu.vector_store %arg6[%c0_9, %c0_10, %c0_11], %14 {strides = array<i32>} : memref<1x32x128xf32, #tpu.memory_space<vmem>>, vector<1x32x128xf32>,
    return
  }
  func.func @transform_0(%arg0: i32, %arg1: i32) -> (i32, i32, i32) {
    %c0_i32 = arith.constant 0 : i32
    %c0_i32_0 = arith.constant 0 : i32
    return %arg0, %arg1, %c0_i32 : i32, i32, i32
  }
  func.func @transform_1(%arg0: i32, %arg1: i32) -> (i32, i32, i32) {
    %c7_i32 = arith.constant 7 : i32
    %0 = arith.subi %c7_i32, %arg0 : i32
    %c0_i32 = arith.constant 0 : i32
    %c0_i32_0 = arith.constant 0 : i32
    return %0, %arg1, %c0_i32 : i32, i32, i32
  }
  func.func @transform_2(%arg0: i32, %arg1: i32) -> (i32, i32) {
    %c0_i32 = arith.constant 0 : i32
    %c0_i32_0 = arith.constant 0 : i32
    %c0_i32_1 = arith.constant 0 : i32
    return %c0_i32, %c0_i32_0 : i32, i32
  }
  func.func @transform_3(%arg0: i32, %arg1: i32) -> (i32, i32) {
    %c0_i32 = arith.constant 0 : i32
    %c0_i32_0 = arith.constant 0 : i32
    %c0_i32_1 = arith.constant 0 : i32
    return %c0_i32, %c0_i32_0 : i32, i32
  }
  func.func @transform_4(%arg0: i32, %arg1: i32) -> (i32, i32, i32) {
    %c0_i32 = arith.constant 0 : i32
    %c0_i32_0 = arith.constant 0 : i32
    return %arg0, %arg1, %c0_i32 : i32, i32, i32
  }
}

module attributes {stable_mosaic.version = 11 : i64} {
  func.func @_linear_kernel(%arg0: i32, %arg1: memref<128x16xf32, #tpu.memory_space<vmem>>, %arg2: memref<16x128xf32, #tpu.memory_space<vmem>>, %arg3: memref<1x128xf32, #tpu.memory_space<vmem>>, %arg4: memref<128x128xf32, #tpu.memory_space<vmem>>) attributes {dimension_semantics = [#tpu.dimension_semantics<parallel>], iteration_bounds = array<i64: 2>, scalar_prefetch = 0 : i64, scratch_operands = 0 : i64, tpu.core_type = #tpu.core_type<tc>, window_params = [{transform_indices = @transform_0, window_bounds = array<i64: 128, 16>}, {pipeline_mode = #tpu.pipeline_mode<synchronous>, transform_indices = @transform_1, window_bounds = array<i64: 16, 128>}, {pipeline_mode = #tpu.pipeline_mode<synchronous>, transform_indices = @transform_2, window_bounds = array<i64: 1, 128>}, {transform_indices = @transform_3, window_bounds = array<i64: 128, 128>}]} {
    %c0 = arith.constant 0 : index
    %c0_0 = arith.constant 0 : index
    %0 = vector.load %arg1[%c0, %c0_0] : memref<128x16xf32, #tpu.memory_space<vmem>>, vector<128x16xf32>
    %c0_1 = arith.constant 0 : index
    %c0_2 = arith.constant 0 : index
    %1 = vector.load %arg2[%c0_1, %c0_2] : memref<16x128xf32, #tpu.memory_space<vmem>>, vector<16x128xf32>
    %cst = arith.constant dense<0.000000e+00> : vector<128x128xf32>
    %2 = tpu.matmul %0, %1, %cst {dimension_numbers = #tpu.dot_dimension_numbers<[1], [0], [0], [1], [0, 0, 1, 1], [], []>} : vector<128x16xf32>, vector<16x128xf32>, vector<128x128xf32> -> vector<128x128xf32>
    %c0_3 = arith.constant 0 : index
    %c0_4 = arith.constant 0 : index
    %3 = vector.load %arg3[%c0_3, %c0_4] : memref<1x128xf32, #tpu.memory_space<vmem>>, vector<1x128xf32>
    %4 = vector.broadcast %3 : vector<1x128xf32> to vector<128x128xf32>
    %5 = arith.addf %2, %4 : vector<128x128xf32>
    %c0_5 = arith.constant 0 : index
    %c0_6 = arith.constant 0 : index
    %6 = vector.load %arg4[%c0_5, %c0_6] : memref<128x128xf32, #tpu.memory_space<vmem>>, vector<128x128xf32>
    tpu.vector_store %arg4[%c0_5, %c0_6], %5 {strides = array<i32>} : memref<128x128xf32, #tpu.memory_space<vmem>>, vector<128x128xf32>,
    return
  }
  func.func @transform_0(%arg0: i32) -> (i32, i32) {
    %c0_i32 = arith.constant 0 : i32
    %c0_i32_0 = arith.constant 0 : i32
    return %arg0, %c0_i32 : i32, i32
  }
  func.func @transform_1(%arg0: i32) -> (i32, i32) {
    %c0_i32 = arith.constant 0 : i32
    %c0_i32_0 = arith.constant 0 : i32
    %c0_i32_1 = arith.constant 0 : i32
    return %c0_i32, %c0_i32_0 : i32, i32
  }
  func.func @transform_2(%arg0: i32) -> (i32, i32) {
    %c0_i32 = arith.constant 0 : i32
    %c0_i32_0 = arith.constant 0 : i32
    %c0_i32_1 = arith.constant 0 : i32
    return %c0_i32, %c0_i32_0 : i32, i32
  }
  func.func @transform_3(%arg0: i32) -> (i32, i32) {
    %c0_i32 = arith.constant 0 : i32
    %c0_i32_0 = arith.constant 0 : i32
    return %arg0, %c0_i32 : i32, i32
  }
}

module attributes {stable_mosaic.version = 11 : i64} {
  func.func @_bilstm_scan_kernel(%arg0: i32, %arg1: memref<8x32x128xf32, #tpu.memory_space<vmem>>, %arg2: memref<32x128xf32, #tpu.memory_space<vmem>>, %arg3: memref<8x32x32xf32, #tpu.memory_space<vmem>>, %arg4: memref<32x32xf32, #tpu.memory_space<vmem>>, %arg5: memref<32x32xf32, #tpu.memory_space<vmem>>) attributes {dimension_semantics = [#tpu.dimension_semantics<parallel>], iteration_bounds = array<i64: 1>, scalar_prefetch = 0 : i64, scratch_operands = 2 : i64, tpu.core_type = #tpu.core_type<tc>, window_params = [{transform_indices = @transform_0, window_bounds = array<i64: 8, 32, 128>}, {pipeline_mode = #tpu.pipeline_mode<synchronous>, transform_indices = @transform_1, window_bounds = array<i64: 32, 128>}, {transform_indices = @transform_2, window_bounds = array<i64: 8, 32, 32>}]} {
    %cst = arith.constant 0.000000e+00 : f32
    %0 = vector.broadcast %cst : f32 to vector<32x32xf32>
    %c0 = arith.constant 0 : index
    %c0_0 = arith.constant 0 : index
    %1 = vector.load %arg4[%c0, %c0_0] : memref<32x32xf32, #tpu.memory_space<vmem>>, vector<32x32xf32>
    tpu.vector_store %arg4[%c0, %c0_0], %0 {strides = array<i32>} : memref<32x32xf32, #tpu.memory_space<vmem>>, vector<32x32xf32>,
    %cst_1 = arith.constant 0.000000e+00 : f32
    %2 = vector.broadcast %cst_1 : f32 to vector<32x32xf32>
    %c0_2 = arith.constant 0 : index
    %c0_3 = arith.constant 0 : index
    %3 = vector.load %arg5[%c0_2, %c0_3] : memref<32x32xf32, #tpu.memory_space<vmem>>, vector<32x32xf32>
    tpu.vector_store %arg5[%c0_2, %c0_3], %2 {strides = array<i32>} : memref<32x32xf32, #tpu.memory_space<vmem>>, vector<32x32xf32>,
    %c0_i32 = arith.constant 0 : i32
    %c0_4 = arith.constant 0 : index
    %c0_5 = arith.constant 0 : index
    %4 = vector.load %arg4[%c0_4, %c0_5] : memref<32x32xf32, #tpu.memory_space<vmem>>, vector<32x32xf32>
    %c0_6 = arith.constant 0 : index
    %c0_7 = arith.constant 0 : index
    %5 = vector.load %arg5[%c0_6, %c0_7] : memref<32x32xf32, #tpu.memory_space<vmem>>, vector<32x32xf32>
    %6 = arith.index_cast %c0_i32 : i32 to index
    %c0_8 = arith.constant 0 : index
    %c0_9 = arith.constant 0 : index
    %7 = vector.load %arg1[%6, %c0_8, %c0_9] : memref<8x32x128xf32, #tpu.memory_space<vmem>>, vector<1x32x128xf32>
    %8 = vector.shape_cast %7 : vector<1x32x128xf32> to vector<32x128xf32>
    %c7_i32 = arith.constant 7 : i32
    %9 = arith.subi %c7_i32, %c0_i32 : i32
    %10 = arith.index_cast %9 : i32 to index
    %c0_10 = arith.constant 0 : index
    %c0_11 = arith.constant 0 : index
    %11 = vector.load %arg1[%10, %c0_10, %c0_11] : memref<8x32x128xf32, #tpu.memory_space<vmem>>, vector<1x32x128xf32>
    %12 = vector.shape_cast %11 : vector<1x32x128xf32> to vector<32x128xf32>
    %13 = vector.extract_strided_slice %8 {offsets = [0, 0], sizes = [32, 64], strides = [1, 1]} : vector<32x128xf32> to vector<32x64xf32>
    %14 = vector.extract_strided_slice %12 {offsets = [0, 64], sizes = [32, 64], strides = [1, 1]} : vector<32x128xf32> to vector<32x64xf32>
    %15 = tpu.concatenate %13, %14 in 1 : vector<32x64xf32>, vector<32x64xf32> -> vector<32x128xf32>
    %c0_12 = arith.constant 0 : index
    %c0_13 = arith.constant 0 : index
    %16 = vector.load %arg2[%c0_12, %c0_13] : memref<32x128xf32, #tpu.memory_space<vmem>>, vector<32x128xf32>
    %cst_14 = arith.constant dense<0.000000e+00> : vector<32x128xf32>
    %17 = tpu.matmul %4, %16, %cst_14 {dimension_numbers = #tpu.dot_dimension_numbers<[1], [0], [0], [1], [0, 0, 1, 1], [], []>} : vector<32x32xf32>, vector<32x128xf32>, vector<32x128xf32> -> vector<32x128xf32>
    %18 = arith.addf %15, %17 : vector<32x128xf32>
    %19 = arith.negf %18 : vector<32x128xf32>
    %20 = math.exp %19 : vector<32x128xf32>
    %cst_15 = arith.constant 1.000000e+00 : f32
    %21 = vector.broadcast %cst_15 : f32 to vector<32x128xf32>
    %22 = arith.addf %21, %20 : vector<32x128xf32>
    %23 = arith.divf %21, %22 : vector<32x128xf32>
    %24 = vector.extract_strided_slice %18 {offsets = [0, 32], sizes = [32, 16], strides = [1, 1]} : vector<32x128xf32> to vector<32x16xf32>
    %25 = math.tanh %24 : vector<32x16xf32>
    %26 = vector.extract_strided_slice %18 {offsets = [0, 96], sizes = [32, 16], strides = [1, 1]} : vector<32x128xf32> to vector<32x16xf32>
    %27 = math.tanh %26 : vector<32x16xf32>
    %28 = vector.extract_strided_slice %23 {offsets = [0, 16], sizes = [32, 16], strides = [1, 1]} : vector<32x128xf32> to vector<32x16xf32>
    %29 = vector.extract_strided_slice %5 {offsets = [0, 0], sizes = [32, 16], strides = [1, 1]} : vector<32x32xf32> to vector<32x16xf32>
    %30 = arith.mulf %28, %29 : vector<32x16xf32>
    %31 = vector.extract_strided_slice %23 {offsets = [0, 0], sizes = [32, 16], strides = [1, 1]} : vector<32x128xf32> to vector<32x16xf32>
    %32 = arith.mulf %31, %25 : vector<32x16xf32>
    %33 = arith.addf %30, %32 : vector<32x16xf32>
    %34 = vector.extract_strided_slice %23 {offsets = [0, 80], sizes = [32, 16], strides = [1, 1]} : vector<32x128xf32> to vector<32x16xf32>
    %35 = vector.extract_strided_slice %5 {offsets = [0, 16], sizes = [32, 16], strides = [1, 1]} : vector<32x32xf32> to vector<32x16xf32>
    %36 = arith.mulf %34, %35 : vector<32x16xf32>
    %37 = vector.extract_strided_slice %23 {offsets = [0, 64], sizes = [32, 16], strides = [1, 1]} : vector<32x128xf32> to vector<32x16xf32>
    %38 = arith.mulf %37, %27 : vector<32x16xf32>
    %39 = arith.addf %36, %38 : vector<32x16xf32>
    %40 = tpu.concatenate %33, %39 in 1 : vector<32x16xf32>, vector<32x16xf32> -> vector<32x32xf32>
    %41 = vector.extract_strided_slice %23 {offsets = [0, 48], sizes = [32, 16], strides = [1, 1]} : vector<32x128xf32> to vector<32x16xf32>
    %42 = vector.extract_strided_slice %23 {offsets = [0, 112], sizes = [32, 16], strides = [1, 1]} : vector<32x128xf32> to vector<32x16xf32>
    %43 = tpu.concatenate %41, %42 in 1 : vector<32x16xf32>, vector<32x16xf32> -> vector<32x32xf32>
    %44 = math.tanh %40 : vector<32x32xf32>
    %45 = arith.mulf %43, %44 : vector<32x32xf32>
    %c0_16 = arith.constant 0 : index
    %c0_17 = arith.constant 0 : index
    %46 = vector.load %arg5[%c0_16, %c0_17] : memref<32x32xf32, #tpu.memory_space<vmem>>, vector<32x32xf32>
    tpu.vector_store %arg5[%c0_16, %c0_17], %40 {strides = array<i32>} : memref<32x32xf32, #tpu.memory_space<vmem>>, vector<32x32xf32>,
    %c0_18 = arith.constant 0 : index
    %c0_19 = arith.constant 0 : index
    %47 = vector.load %arg4[%c0_18, %c0_19] : memref<32x32xf32, #tpu.memory_space<vmem>>, vector<32x32xf32>
    tpu.vector_store %arg4[%c0_18, %c0_19], %45 {strides = array<i32>} : memref<32x32xf32, #tpu.memory_space<vmem>>, vector<32x32xf32>,
    %48 = arith.index_cast %c0_i32 : i32 to index
    %c0_20 = arith.constant 0 : index
    %c0_21 = arith.constant 0 : index
    %49 = vector.load %arg3[%48, %c0_20, %c0_21] : memref<8x32x32xf32, #tpu.memory_space<vmem>>, vector<1x32x32xf32>
    %50 = vector.shape_cast %49 : vector<1x32x32xf32> to vector<32x32xf32>
    %51 = vector.shape_cast %45 : vector<32x32xf32> to vector<1x32x32xf32>
    tpu.vector_store %arg3[%48, %c0_20, %c0_21], %51 {strides = array<i32>} : memref<8x32x32xf32, #tpu.memory_space<vmem>>, vector<1x32x32xf32>,
    %c1_i32 = arith.constant 1 : i32
    %c0_22 = arith.constant 0 : index
    %c0_23 = arith.constant 0 : index
    %52 = vector.load %arg4[%c0_22, %c0_23] : memref<32x32xf32, #tpu.memory_space<vmem>>, vector<32x32xf32>
    %c0_24 = arith.constant 0 : index
    %c0_25 = arith.constant 0 : index
    %53 = vector.load %arg5[%c0_24, %c0_25] : memref<32x32xf32, #tpu.memory_space<vmem>>, vector<32x32xf32>
    %54 = arith.index_cast %c1_i32 : i32 to index
    %c0_26 = arith.constant 0 : index
    %c0_27 = arith.constant 0 : index
    %55 = vector.load %arg1[%54, %c0_26, %c0_27] : memref<8x32x128xf32, #tpu.memory_space<vmem>>, vector<1x32x128xf32>
    %56 = vector.shape_cast %55 : vector<1x32x128xf32> to vector<32x128xf32>
    %c7_i32_28 = arith.constant 7 : i32
    %57 = arith.subi %c7_i32_28, %c1_i32 : i32
    %58 = arith.index_cast %57 : i32 to index
    %c0_29 = arith.constant 0 : index
    %c0_30 = arith.constant 0 : index
    %59 = vector.load %arg1[%58, %c0_29, %c0_30] : memref<8x32x128xf32, #tpu.memory_space<vmem>>, vector<1x32x128xf32>
    %60 = vector.shape_cast %59 : vector<1x32x128xf32> to vector<32x128xf32>
    %61 = vector.extract_strided_slice %56 {offsets = [0, 0], sizes = [32, 64], strides = [1, 1]} : vector<32x128xf32> to vector<32x64xf32>
    %62 = vector.extract_strided_slice %60 {offsets = [0, 64], sizes = [32, 64], strides = [1, 1]} : vector<32x128xf32> to vector<32x64xf32>
    %63 = tpu.concatenate %61, %62 in 1 : vector<32x64xf32>, vector<32x64xf32> -> vector<32x128xf32>
    %c0_31 = arith.constant 0 : index
    %c0_32 = arith.constant 0 : index
    %64 = vector.load %arg2[%c0_31, %c0_32] : memref<32x128xf32, #tpu.memory_space<vmem>>, vector<32x128xf32>
    %cst_33 = arith.constant dense<0.000000e+00> : vector<32x128xf32>
    %65 = tpu.matmul %52, %64, %cst_33 {dimension_numbers = #tpu.dot_dimension_numbers<[1], [0], [0], [1], [0, 0, 1, 1], [], []>} : vector<32x32xf32>, vector<32x128xf32>, vector<32x128xf32> -> vector<32x128xf32>
    %66 = arith.addf %63, %65 : vector<32x128xf32>
    %67 = arith.negf %66 : vector<32x128xf32>
    %68 = math.exp %67 : vector<32x128xf32>
    %cst_34 = arith.constant 1.000000e+00 : f32
    %69 = vector.broadcast %cst_34 : f32 to vector<32x128xf32>
    %70 = arith.addf %69, %68 : vector<32x128xf32>
    %71 = arith.divf %69, %70 : vector<32x128xf32>
    %72 = vector.extract_strided_slice %66 {offsets = [0, 32], sizes = [32, 16], strides = [1, 1]} : vector<32x128xf32> to vector<32x16xf32>
    %73 = math.tanh %72 : vector<32x16xf32>
    %74 = vector.extract_strided_slice %66 {offsets = [0, 96], sizes = [32, 16], strides = [1, 1]} : vector<32x128xf32> to vector<32x16xf32>
    %75 = math.tanh %74 : vector<32x16xf32>
    %76 = vector.extract_strided_slice %71 {offsets = [0, 16], sizes = [32, 16], strides = [1, 1]} : vector<32x128xf32> to vector<32x16xf32>
    %77 = vector.extract_strided_slice %53 {offsets = [0, 0], sizes = [32, 16], strides = [1, 1]} : vector<32x32xf32> to vector<32x16xf32>
    %78 = arith.mulf %76, %77 : vector<32x16xf32>
    %79 = vector.extract_strided_slice %71 {offsets = [0, 0], sizes = [32, 16], strides = [1, 1]} : vector<32x128xf32> to vector<32x16xf32>
    %80 = arith.mulf %79, %73 : vector<32x16xf32>
    %81 = arith.addf %78, %80 : vector<32x16xf32>
    %82 = vector.extract_strided_slice %71 {offsets = [0, 80], sizes = [32, 16], strides = [1, 1]} : vector<32x128xf32> to vector<32x16xf32>
    %83 = vector.extract_strided_slice %53 {offsets = [0, 16], sizes = [32, 16], strides = [1, 1]} : vector<32x32xf32> to vector<32x16xf32>
    %84 = arith.mulf %82, %83 : vector<32x16xf32>
    %85 = vector.extract_strided_slice %71 {offsets = [0, 64], sizes = [32, 16], strides = [1, 1]} : vector<32x128xf32> to vector<32x16xf32>
    %86 = arith.mulf %85, %75 : vector<32x16xf32>
    %87 = arith.addf %84, %86 : vector<32x16xf32>
    %88 = tpu.concatenate %81, %87 in 1 : vector<32x16xf32>, vector<32x16xf32> -> vector<32x32xf32>
    %89 = vector.extract_strided_slice %71 {offsets = [0, 48], sizes = [32, 16], strides = [1, 1]} : vector<32x128xf32> to vector<32x16xf32>
    %90 = vector.extract_strided_slice %71 {offsets = [0, 112], sizes = [32, 16], strides = [1, 1]} : vector<32x128xf32> to vector<32x16xf32>
    %91 = tpu.concatenate %89, %90 in 1 : vector<32x16xf32>, vector<32x16xf32> -> vector<32x32xf32>
    %92 = math.tanh %88 : vector<32x32xf32>
    %93 = arith.mulf %91, %92 : vector<32x32xf32>
    %c0_35 = arith.constant 0 : index
    %c0_36 = arith.constant 0 : index
    %94 = vector.load %arg5[%c0_35, %c0_36] : memref<32x32xf32, #tpu.memory_space<vmem>>, vector<32x32xf32>
    tpu.vector_store %arg5[%c0_35, %c0_36], %88 {strides = array<i32>} : memref<32x32xf32, #tpu.memory_space<vmem>>, vector<32x32xf32>,
    %c0_37 = arith.constant 0 : index
    %c0_38 = arith.constant 0 : index
    %95 = vector.load %arg4[%c0_37, %c0_38] : memref<32x32xf32, #tpu.memory_space<vmem>>, vector<32x32xf32>
    tpu.vector_store %arg4[%c0_37, %c0_38], %93 {strides = array<i32>} : memref<32x32xf32, #tpu.memory_space<vmem>>, vector<32x32xf32>,
    %96 = arith.index_cast %c1_i32 : i32 to index
    %c0_39 = arith.constant 0 : index
    %c0_40 = arith.constant 0 : index
    %97 = vector.load %arg3[%96, %c0_39, %c0_40] : memref<8x32x32xf32, #tpu.memory_space<vmem>>, vector<1x32x32xf32>
    %98 = vector.shape_cast %97 : vector<1x32x32xf32> to vector<32x32xf32>
    %99 = vector.shape_cast %93 : vector<32x32xf32> to vector<1x32x32xf32>
    tpu.vector_store %arg3[%96, %c0_39, %c0_40], %99 {strides = array<i32>} : memref<8x32x32xf32, #tpu.memory_space<vmem>>, vector<1x32x32xf32>,
    %c2_i32 = arith.constant 2 : i32
    %c0_41 = arith.constant 0 : index
    %c0_42 = arith.constant 0 : index
    %100 = vector.load %arg4[%c0_41, %c0_42] : memref<32x32xf32, #tpu.memory_space<vmem>>, vector<32x32xf32>
    %c0_43 = arith.constant 0 : index
    %c0_44 = arith.constant 0 : index
    %101 = vector.load %arg5[%c0_43, %c0_44] : memref<32x32xf32, #tpu.memory_space<vmem>>, vector<32x32xf32>
    %102 = arith.index_cast %c2_i32 : i32 to index
    %c0_45 = arith.constant 0 : index
    %c0_46 = arith.constant 0 : index
    %103 = vector.load %arg1[%102, %c0_45, %c0_46] : memref<8x32x128xf32, #tpu.memory_space<vmem>>, vector<1x32x128xf32>
    %104 = vector.shape_cast %103 : vector<1x32x128xf32> to vector<32x128xf32>
    %c7_i32_47 = arith.constant 7 : i32
    %105 = arith.subi %c7_i32_47, %c2_i32 : i32
    %106 = arith.index_cast %105 : i32 to index
    %c0_48 = arith.constant 0 : index
    %c0_49 = arith.constant 0 : index
    %107 = vector.load %arg1[%106, %c0_48, %c0_49] : memref<8x32x128xf32, #tpu.memory_space<vmem>>, vector<1x32x128xf32>
    %108 = vector.shape_cast %107 : vector<1x32x128xf32> to vector<32x128xf32>
    %109 = vector.extract_strided_slice %104 {offsets = [0, 0], sizes = [32, 64], strides = [1, 1]} : vector<32x128xf32> to vector<32x64xf32>
    %110 = vector.extract_strided_slice %108 {offsets = [0, 64], sizes = [32, 64], strides = [1, 1]} : vector<32x128xf32> to vector<32x64xf32>
    %111 = tpu.concatenate %109, %110 in 1 : vector<32x64xf32>, vector<32x64xf32> -> vector<32x128xf32>
    %c0_50 = arith.constant 0 : index
    %c0_51 = arith.constant 0 : index
    %112 = vector.load %arg2[%c0_50, %c0_51] : memref<32x128xf32, #tpu.memory_space<vmem>>, vector<32x128xf32>
    %cst_52 = arith.constant dense<0.000000e+00> : vector<32x128xf32>
    %113 = tpu.matmul %100, %112, %cst_52 {dimension_numbers = #tpu.dot_dimension_numbers<[1], [0], [0], [1], [0, 0, 1, 1], [], []>} : vector<32x32xf32>, vector<32x128xf32>, vector<32x128xf32> -> vector<32x128xf32>
    %114 = arith.addf %111, %113 : vector<32x128xf32>
    %115 = arith.negf %114 : vector<32x128xf32>
    %116 = math.exp %115 : vector<32x128xf32>
    %cst_53 = arith.constant 1.000000e+00 : f32
    %117 = vector.broadcast %cst_53 : f32 to vector<32x128xf32>
    %118 = arith.addf %117, %116 : vector<32x128xf32>
    %119 = arith.divf %117, %118 : vector<32x128xf32>
    %120 = vector.extract_strided_slice %114 {offsets = [0, 32], sizes = [32, 16], strides = [1, 1]} : vector<32x128xf32> to vector<32x16xf32>
    %121 = math.tanh %120 : vector<32x16xf32>
    %122 = vector.extract_strided_slice %114 {offsets = [0, 96], sizes = [32, 16], strides = [1, 1]} : vector<32x128xf32> to vector<32x16xf32>
    %123 = math.tanh %122 : vector<32x16xf32>
    %124 = vector.extract_strided_slice %119 {offsets = [0, 16], sizes = [32, 16], strides = [1, 1]} : vector<32x128xf32> to vector<32x16xf32>
    %125 = vector.extract_strided_slice %101 {offsets = [0, 0], sizes = [32, 16], strides = [1, 1]} : vector<32x32xf32> to vector<32x16xf32>
    %126 = arith.mulf %124, %125 : vector<32x16xf32>
    %127 = vector.extract_strided_slice %119 {offsets = [0, 0], sizes = [32, 16], strides = [1, 1]} : vector<32x128xf32> to vector<32x16xf32>
    %128 = arith.mulf %127, %121 : vector<32x16xf32>
    %129 = arith.addf %126, %128 : vector<32x16xf32>
    %130 = vector.extract_strided_slice %119 {offsets = [0, 80], sizes = [32, 16], strides = [1, 1]} : vector<32x128xf32> to vector<32x16xf32>
    %131 = vector.extract_strided_slice %101 {offsets = [0, 16], sizes = [32, 16], strides = [1, 1]} : vector<32x32xf32> to vector<32x16xf32>
    %132 = arith.mulf %130, %131 : vector<32x16xf32>
    %133 = vector.extract_strided_slice %119 {offsets = [0, 64], sizes = [32, 16], strides = [1, 1]} : vector<32x128xf32> to vector<32x16xf32>
    %134 = arith.mulf %133, %123 : vector<32x16xf32>
    %135 = arith.addf %132, %134 : vector<32x16xf32>
    %136 = tpu.concatenate %129, %135 in 1 : vector<32x16xf32>, vector<32x16xf32> -> vector<32x32xf32>
    %137 = vector.extract_strided_slice %119 {offsets = [0, 48], sizes = [32, 16], strides = [1, 1]} : vector<32x128xf32> to vector<32x16xf32>
    %138 = vector.extract_strided_slice %119 {offsets = [0, 112], sizes = [32, 16], strides = [1, 1]} : vector<32x128xf32> to vector<32x16xf32>
    %139 = tpu.concatenate %137, %138 in 1 : vector<32x16xf32>, vector<32x16xf32> -> vector<32x32xf32>
    %140 = math.tanh %136 : vector<32x32xf32>
    %141 = arith.mulf %139, %140 : vector<32x32xf32>
    %c0_54 = arith.constant 0 : index
    %c0_55 = arith.constant 0 : index
    %142 = vector.load %arg5[%c0_54, %c0_55] : memref<32x32xf32, #tpu.memory_space<vmem>>, vector<32x32xf32>
    tpu.vector_store %arg5[%c0_54, %c0_55], %136 {strides = array<i32>} : memref<32x32xf32, #tpu.memory_space<vmem>>, vector<32x32xf32>,
    %c0_56 = arith.constant 0 : index
    %c0_57 = arith.constant 0 : index
    %143 = vector.load %arg4[%c0_56, %c0_57] : memref<32x32xf32, #tpu.memory_space<vmem>>, vector<32x32xf32>
    tpu.vector_store %arg4[%c0_56, %c0_57], %141 {strides = array<i32>} : memref<32x32xf32, #tpu.memory_space<vmem>>, vector<32x32xf32>,
    %144 = arith.index_cast %c2_i32 : i32 to index
    %c0_58 = arith.constant 0 : index
    %c0_59 = arith.constant 0 : index
    %145 = vector.load %arg3[%144, %c0_58, %c0_59] : memref<8x32x32xf32, #tpu.memory_space<vmem>>, vector<1x32x32xf32>
    %146 = vector.shape_cast %145 : vector<1x32x32xf32> to vector<32x32xf32>
    %147 = vector.shape_cast %141 : vector<32x32xf32> to vector<1x32x32xf32>
    tpu.vector_store %arg3[%144, %c0_58, %c0_59], %147 {strides = array<i32>} : memref<8x32x32xf32, #tpu.memory_space<vmem>>, vector<1x32x32xf32>,
    %c3_i32 = arith.constant 3 : i32
    %c0_60 = arith.constant 0 : index
    %c0_61 = arith.constant 0 : index
    %148 = vector.load %arg4[%c0_60, %c0_61] : memref<32x32xf32, #tpu.memory_space<vmem>>, vector<32x32xf32>
    %c0_62 = arith.constant 0 : index
    %c0_63 = arith.constant 0 : index
    %149 = vector.load %arg5[%c0_62, %c0_63] : memref<32x32xf32, #tpu.memory_space<vmem>>, vector<32x32xf32>
    %150 = arith.index_cast %c3_i32 : i32 to index
    %c0_64 = arith.constant 0 : index
    %c0_65 = arith.constant 0 : index
    %151 = vector.load %arg1[%150, %c0_64, %c0_65] : memref<8x32x128xf32, #tpu.memory_space<vmem>>, vector<1x32x128xf32>
    %152 = vector.shape_cast %151 : vector<1x32x128xf32> to vector<32x128xf32>
    %c7_i32_66 = arith.constant 7 : i32
    %153 = arith.subi %c7_i32_66, %c3_i32 : i32
    %154 = arith.index_cast %153 : i32 to index
    %c0_67 = arith.constant 0 : index
    %c0_68 = arith.constant 0 : index
    %155 = vector.load %arg1[%154, %c0_67, %c0_68] : memref<8x32x128xf32, #tpu.memory_space<vmem>>, vector<1x32x128xf32>
    %156 = vector.shape_cast %155 : vector<1x32x128xf32> to vector<32x128xf32>
    %157 = vector.extract_strided_slice %152 {offsets = [0, 0], sizes = [32, 64], strides = [1, 1]} : vector<32x128xf32> to vector<32x64xf32>
    %158 = vector.extract_strided_slice %156 {offsets = [0, 64], sizes = [32, 64], strides = [1, 1]} : vector<32x128xf32> to vector<32x64xf32>
    %159 = tpu.concatenate %157, %158 in 1 : vector<32x64xf32>, vector<32x64xf32> -> vector<32x128xf32>
    %c0_69 = arith.constant 0 : index
    %c0_70 = arith.constant 0 : index
    %160 = vector.load %arg2[%c0_69, %c0_70] : memref<32x128xf32, #tpu.memory_space<vmem>>, vector<32x128xf32>
    %cst_71 = arith.constant dense<0.000000e+00> : vector<32x128xf32>
    %161 = tpu.matmul %148, %160, %cst_71 {dimension_numbers = #tpu.dot_dimension_numbers<[1], [0], [0], [1], [0, 0, 1, 1], [], []>} : vector<32x32xf32>, vector<32x128xf32>, vector<32x128xf32> -> vector<32x128xf32>
    %162 = arith.addf %159, %161 : vector<32x128xf32>
    %163 = arith.negf %162 : vector<32x128xf32>
    %164 = math.exp %163 : vector<32x128xf32>
    %cst_72 = arith.constant 1.000000e+00 : f32
    %165 = vector.broadcast %cst_72 : f32 to vector<32x128xf32>
    %166 = arith.addf %165, %164 : vector<32x128xf32>
    %167 = arith.divf %165, %166 : vector<32x128xf32>
    %168 = vector.extract_strided_slice %162 {offsets = [0, 32], sizes = [32, 16], strides = [1, 1]} : vector<32x128xf32> to vector<32x16xf32>
    %169 = math.tanh %168 : vector<32x16xf32>
    %170 = vector.extract_strided_slice %162 {offsets = [0, 96], sizes = [32, 16], strides = [1, 1]} : vector<32x128xf32> to vector<32x16xf32>
    %171 = math.tanh %170 : vector<32x16xf32>
    %172 = vector.extract_strided_slice %167 {offsets = [0, 16], sizes = [32, 16], strides = [1, 1]} : vector<32x128xf32> to vector<32x16xf32>
    %173 = vector.extract_strided_slice %149 {offsets = [0, 0], sizes = [32, 16], strides = [1, 1]} : vector<32x32xf32> to vector<32x16xf32>
    %174 = arith.mulf %172, %173 : vector<32x16xf32>
    %175 = vector.extract_strided_slice %167 {offsets = [0, 0], sizes = [32, 16], strides = [1, 1]} : vector<32x128xf32> to vector<32x16xf32>
    %176 = arith.mulf %175, %169 : vector<32x16xf32>
    %177 = arith.addf %174, %176 : vector<32x16xf32>
    %178 = vector.extract_strided_slice %167 {offsets = [0, 80], sizes = [32, 16], strides = [1, 1]} : vector<32x128xf32> to vector<32x16xf32>
    %179 = vector.extract_strided_slice %149 {offsets = [0, 16], sizes = [32, 16], strides = [1, 1]} : vector<32x32xf32> to vector<32x16xf32>
    %180 = arith.mulf %178, %179 : vector<32x16xf32>
    %181 = vector.extract_strided_slice %167 {offsets = [0, 64], sizes = [32, 16], strides = [1, 1]} : vector<32x128xf32> to vector<32x16xf32>
    %182 = arith.mulf %181, %171 : vector<32x16xf32>
    %183 = arith.addf %180, %182 : vector<32x16xf32>
    %184 = tpu.concatenate %177, %183 in 1 : vector<32x16xf32>, vector<32x16xf32> -> vector<32x32xf32>
    %185 = vector.extract_strided_slice %167 {offsets = [0, 48], sizes = [32, 16], strides = [1, 1]} : vector<32x128xf32> to vector<32x16xf32>
    %186 = vector.extract_strided_slice %167 {offsets = [0, 112], sizes = [32, 16], strides = [1, 1]} : vector<32x128xf32> to vector<32x16xf32>
    %187 = tpu.concatenate %185, %186 in 1 : vector<32x16xf32>, vector<32x16xf32> -> vector<32x32xf32>
    %188 = math.tanh %184 : vector<32x32xf32>
    %189 = arith.mulf %187, %188 : vector<32x32xf32>
    %c0_73 = arith.constant 0 : index
    %c0_74 = arith.constant 0 : index
    %190 = vector.load %arg5[%c0_73, %c0_74] : memref<32x32xf32, #tpu.memory_space<vmem>>, vector<32x32xf32>
    tpu.vector_store %arg5[%c0_73, %c0_74], %184 {strides = array<i32>} : memref<32x32xf32, #tpu.memory_space<vmem>>, vector<32x32xf32>,
    %c0_75 = arith.constant 0 : index
    %c0_76 = arith.constant 0 : index
    %191 = vector.load %arg4[%c0_75, %c0_76] : memref<32x32xf32, #tpu.memory_space<vmem>>, vector<32x32xf32>
    tpu.vector_store %arg4[%c0_75, %c0_76], %189 {strides = array<i32>} : memref<32x32xf32, #tpu.memory_space<vmem>>, vector<32x32xf32>,
    %192 = arith.index_cast %c3_i32 : i32 to index
    %c0_77 = arith.constant 0 : index
    %c0_78 = arith.constant 0 : index
    %193 = vector.load %arg3[%192, %c0_77, %c0_78] : memref<8x32x32xf32, #tpu.memory_space<vmem>>, vector<1x32x32xf32>
    %194 = vector.shape_cast %193 : vector<1x32x32xf32> to vector<32x32xf32>
    %195 = vector.shape_cast %189 : vector<32x32xf32> to vector<1x32x32xf32>
    tpu.vector_store %arg3[%192, %c0_77, %c0_78], %195 {strides = array<i32>} : memref<8x32x32xf32, #tpu.memory_space<vmem>>, vector<1x32x32xf32>,
    %c4_i32 = arith.constant 4 : i32
    %c0_79 = arith.constant 0 : index
    %c0_80 = arith.constant 0 : index
    %196 = vector.load %arg4[%c0_79, %c0_80] : memref<32x32xf32, #tpu.memory_space<vmem>>, vector<32x32xf32>
    %c0_81 = arith.constant 0 : index
    %c0_82 = arith.constant 0 : index
    %197 = vector.load %arg5[%c0_81, %c0_82] : memref<32x32xf32, #tpu.memory_space<vmem>>, vector<32x32xf32>
    %198 = arith.index_cast %c4_i32 : i32 to index
    %c0_83 = arith.constant 0 : index
    %c0_84 = arith.constant 0 : index
    %199 = vector.load %arg1[%198, %c0_83, %c0_84] : memref<8x32x128xf32, #tpu.memory_space<vmem>>, vector<1x32x128xf32>
    %200 = vector.shape_cast %199 : vector<1x32x128xf32> to vector<32x128xf32>
    %c7_i32_85 = arith.constant 7 : i32
    %201 = arith.subi %c7_i32_85, %c4_i32 : i32
    %202 = arith.index_cast %201 : i32 to index
    %c0_86 = arith.constant 0 : index
    %c0_87 = arith.constant 0 : index
    %203 = vector.load %arg1[%202, %c0_86, %c0_87] : memref<8x32x128xf32, #tpu.memory_space<vmem>>, vector<1x32x128xf32>
    %204 = vector.shape_cast %203 : vector<1x32x128xf32> to vector<32x128xf32>
    %205 = vector.extract_strided_slice %200 {offsets = [0, 0], sizes = [32, 64], strides = [1, 1]} : vector<32x128xf32> to vector<32x64xf32>
    %206 = vector.extract_strided_slice %204 {offsets = [0, 64], sizes = [32, 64], strides = [1, 1]} : vector<32x128xf32> to vector<32x64xf32>
    %207 = tpu.concatenate %205, %206 in 1 : vector<32x64xf32>, vector<32x64xf32> -> vector<32x128xf32>
    %c0_88 = arith.constant 0 : index
    %c0_89 = arith.constant 0 : index
    %208 = vector.load %arg2[%c0_88, %c0_89] : memref<32x128xf32, #tpu.memory_space<vmem>>, vector<32x128xf32>
    %cst_90 = arith.constant dense<0.000000e+00> : vector<32x128xf32>
    %209 = tpu.matmul %196, %208, %cst_90 {dimension_numbers = #tpu.dot_dimension_numbers<[1], [0], [0], [1], [0, 0, 1, 1], [], []>} : vector<32x32xf32>, vector<32x128xf32>, vector<32x128xf32> -> vector<32x128xf32>
    %210 = arith.addf %207, %209 : vector<32x128xf32>
    %211 = arith.negf %210 : vector<32x128xf32>
    %212 = math.exp %211 : vector<32x128xf32>
    %cst_91 = arith.constant 1.000000e+00 : f32
    %213 = vector.broadcast %cst_91 : f32 to vector<32x128xf32>
    %214 = arith.addf %213, %212 : vector<32x128xf32>
    %215 = arith.divf %213, %214 : vector<32x128xf32>
    %216 = vector.extract_strided_slice %210 {offsets = [0, 32], sizes = [32, 16], strides = [1, 1]} : vector<32x128xf32> to vector<32x16xf32>
    %217 = math.tanh %216 : vector<32x16xf32>
    %218 = vector.extract_strided_slice %210 {offsets = [0, 96], sizes = [32, 16], strides = [1, 1]} : vector<32x128xf32> to vector<32x16xf32>
    %219 = math.tanh %218 : vector<32x16xf32>
    %220 = vector.extract_strided_slice %215 {offsets = [0, 16], sizes = [32, 16], strides = [1, 1]} : vector<32x128xf32> to vector<32x16xf32>
    %221 = vector.extract_strided_slice %197 {offsets = [0, 0], sizes = [32, 16], strides = [1, 1]} : vector<32x32xf32> to vector<32x16xf32>
    %222 = arith.mulf %220, %221 : vector<32x16xf32>
    %223 = vector.extract_strided_slice %215 {offsets = [0, 0], sizes = [32, 16], strides = [1, 1]} : vector<32x128xf32> to vector<32x16xf32>
    %224 = arith.mulf %223, %217 : vector<32x16xf32>
    %225 = arith.addf %222, %224 : vector<32x16xf32>
    %226 = vector.extract_strided_slice %215 {offsets = [0, 80], sizes = [32, 16], strides = [1, 1]} : vector<32x128xf32> to vector<32x16xf32>
    %227 = vector.extract_strided_slice %197 {offsets = [0, 16], sizes = [32, 16], strides = [1, 1]} : vector<32x32xf32> to vector<32x16xf32>
    %228 = arith.mulf %226, %227 : vector<32x16xf32>
    %229 = vector.extract_strided_slice %215 {offsets = [0, 64], sizes = [32, 16], strides = [1, 1]} : vector<32x128xf32> to vector<32x16xf32>
    %230 = arith.mulf %229, %219 : vector<32x16xf32>
    %231 = arith.addf %228, %230 : vector<32x16xf32>
    %232 = tpu.concatenate %225, %231 in 1 : vector<32x16xf32>, vector<32x16xf32> -> vector<32x32xf32>
    %233 = vector.extract_strided_slice %215 {offsets = [0, 48], sizes = [32, 16], strides = [1, 1]} : vector<32x128xf32> to vector<32x16xf32>
    %234 = vector.extract_strided_slice %215 {offsets = [0, 112], sizes = [32, 16], strides = [1, 1]} : vector<32x128xf32> to vector<32x16xf32>
    %235 = tpu.concatenate %233, %234 in 1 : vector<32x16xf32>, vector<32x16xf32> -> vector<32x32xf32>
    %236 = math.tanh %232 : vector<32x32xf32>
    %237 = arith.mulf %235, %236 : vector<32x32xf32>
    %c0_92 = arith.constant 0 : index
    %c0_93 = arith.constant 0 : index
    %238 = vector.load %arg5[%c0_92, %c0_93] : memref<32x32xf32, #tpu.memory_space<vmem>>, vector<32x32xf32>
    tpu.vector_store %arg5[%c0_92, %c0_93], %232 {strides = array<i32>} : memref<32x32xf32, #tpu.memory_space<vmem>>, vector<32x32xf32>,
    %c0_94 = arith.constant 0 : index
    %c0_95 = arith.constant 0 : index
    %239 = vector.load %arg4[%c0_94, %c0_95] : memref<32x32xf32, #tpu.memory_space<vmem>>, vector<32x32xf32>
    tpu.vector_store %arg4[%c0_94, %c0_95], %237 {strides = array<i32>} : memref<32x32xf32, #tpu.memory_space<vmem>>, vector<32x32xf32>,
    %240 = arith.index_cast %c4_i32 : i32 to index
    %c0_96 = arith.constant 0 : index
    %c0_97 = arith.constant 0 : index
    %241 = vector.load %arg3[%240, %c0_96, %c0_97] : memref<8x32x32xf32, #tpu.memory_space<vmem>>, vector<1x32x32xf32>
    %242 = vector.shape_cast %241 : vector<1x32x32xf32> to vector<32x32xf32>
    %243 = vector.shape_cast %237 : vector<32x32xf32> to vector<1x32x32xf32>
    tpu.vector_store %arg3[%240, %c0_96, %c0_97], %243 {strides = array<i32>} : memref<8x32x32xf32, #tpu.memory_space<vmem>>, vector<1x32x32xf32>,
    %c5_i32 = arith.constant 5 : i32
    %c0_98 = arith.constant 0 : index
    %c0_99 = arith.constant 0 : index
    %244 = vector.load %arg4[%c0_98, %c0_99] : memref<32x32xf32, #tpu.memory_space<vmem>>, vector<32x32xf32>
    %c0_100 = arith.constant 0 : index
    %c0_101 = arith.constant 0 : index
    %245 = vector.load %arg5[%c0_100, %c0_101] : memref<32x32xf32, #tpu.memory_space<vmem>>, vector<32x32xf32>
    %246 = arith.index_cast %c5_i32 : i32 to index
    %c0_102 = arith.constant 0 : index
    %c0_103 = arith.constant 0 : index
    %247 = vector.load %arg1[%246, %c0_102, %c0_103] : memref<8x32x128xf32, #tpu.memory_space<vmem>>, vector<1x32x128xf32>
    %248 = vector.shape_cast %247 : vector<1x32x128xf32> to vector<32x128xf32>
    %c7_i32_104 = arith.constant 7 : i32
    %249 = arith.subi %c7_i32_104, %c5_i32 : i32
    %250 = arith.index_cast %249 : i32 to index
    %c0_105 = arith.constant 0 : index
    %c0_106 = arith.constant 0 : index
    %251 = vector.load %arg1[%250, %c0_105, %c0_106] : memref<8x32x128xf32, #tpu.memory_space<vmem>>, vector<1x32x128xf32>
    %252 = vector.shape_cast %251 : vector<1x32x128xf32> to vector<32x128xf32>
    %253 = vector.extract_strided_slice %248 {offsets = [0, 0], sizes = [32, 64], strides = [1, 1]} : vector<32x128xf32> to vector<32x64xf32>
    %254 = vector.extract_strided_slice %252 {offsets = [0, 64], sizes = [32, 64], strides = [1, 1]} : vector<32x128xf32> to vector<32x64xf32>
    %255 = tpu.concatenate %253, %254 in 1 : vector<32x64xf32>, vector<32x64xf32> -> vector<32x128xf32>
    %c0_107 = arith.constant 0 : index
    %c0_108 = arith.constant 0 : index
    %256 = vector.load %arg2[%c0_107, %c0_108] : memref<32x128xf32, #tpu.memory_space<vmem>>, vector<32x128xf32>
    %cst_109 = arith.constant dense<0.000000e+00> : vector<32x128xf32>
    %257 = tpu.matmul %244, %256, %cst_109 {dimension_numbers = #tpu.dot_dimension_numbers<[1], [0], [0], [1], [0, 0, 1, 1], [], []>} : vector<32x32xf32>, vector<32x128xf32>, vector<32x128xf32> -> vector<32x128xf32>
    %258 = arith.addf %255, %257 : vector<32x128xf32>
    %259 = arith.negf %258 : vector<32x128xf32>
    %260 = math.exp %259 : vector<32x128xf32>
    %cst_110 = arith.constant 1.000000e+00 : f32
    %261 = vector.broadcast %cst_110 : f32 to vector<32x128xf32>
    %262 = arith.addf %261, %260 : vector<32x128xf32>
    %263 = arith.divf %261, %262 : vector<32x128xf32>
    %264 = vector.extract_strided_slice %258 {offsets = [0, 32], sizes = [32, 16], strides = [1, 1]} : vector<32x128xf32> to vector<32x16xf32>
    %265 = math.tanh %264 : vector<32x16xf32>
    %266 = vector.extract_strided_slice %258 {offsets = [0, 96], sizes = [32, 16], strides = [1, 1]} : vector<32x128xf32> to vector<32x16xf32>
    %267 = math.tanh %266 : vector<32x16xf32>
    %268 = vector.extract_strided_slice %263 {offsets = [0, 16], sizes = [32, 16], strides = [1, 1]} : vector<32x128xf32> to vector<32x16xf32>
    %269 = vector.extract_strided_slice %245 {offsets = [0, 0], sizes = [32, 16], strides = [1, 1]} : vector<32x32xf32> to vector<32x16xf32>
    %270 = arith.mulf %268, %269 : vector<32x16xf32>
    %271 = vector.extract_strided_slice %263 {offsets = [0, 0], sizes = [32, 16], strides = [1, 1]} : vector<32x128xf32> to vector<32x16xf32>
    %272 = arith.mulf %271, %265 : vector<32x16xf32>
    %273 = arith.addf %270, %272 : vector<32x16xf32>
    %274 = vector.extract_strided_slice %263 {offsets = [0, 80], sizes = [32, 16], strides = [1, 1]} : vector<32x128xf32> to vector<32x16xf32>
    %275 = vector.extract_strided_slice %245 {offsets = [0, 16], sizes = [32, 16], strides = [1, 1]} : vector<32x32xf32> to vector<32x16xf32>
    %276 = arith.mulf %274, %275 : vector<32x16xf32>
    %277 = vector.extract_strided_slice %263 {offsets = [0, 64], sizes = [32, 16], strides = [1, 1]} : vector<32x128xf32> to vector<32x16xf32>
    %278 = arith.mulf %277, %267 : vector<32x16xf32>
    %279 = arith.addf %276, %278 : vector<32x16xf32>
    %280 = tpu.concatenate %273, %279 in 1 : vector<32x16xf32>, vector<32x16xf32> -> vector<32x32xf32>
    %281 = vector.extract_strided_slice %263 {offsets = [0, 48], sizes = [32, 16], strides = [1, 1]} : vector<32x128xf32> to vector<32x16xf32>
    %282 = vector.extract_strided_slice %263 {offsets = [0, 112], sizes = [32, 16], strides = [1, 1]} : vector<32x128xf32> to vector<32x16xf32>
    %283 = tpu.concatenate %281, %282 in 1 : vector<32x16xf32>, vector<32x16xf32> -> vector<32x32xf32>
    %284 = math.tanh %280 : vector<32x32xf32>
    %285 = arith.mulf %283, %284 : vector<32x32xf32>
    %c0_111 = arith.constant 0 : index
    %c0_112 = arith.constant 0 : index
    %286 = vector.load %arg5[%c0_111, %c0_112] : memref<32x32xf32, #tpu.memory_space<vmem>>, vector<32x32xf32>
    tpu.vector_store %arg5[%c0_111, %c0_112], %280 {strides = array<i32>} : memref<32x32xf32, #tpu.memory_space<vmem>>, vector<32x32xf32>,
    %c0_113 = arith.constant 0 : index
    %c0_114 = arith.constant 0 : index
    %287 = vector.load %arg4[%c0_113, %c0_114] : memref<32x32xf32, #tpu.memory_space<vmem>>, vector<32x32xf32>
    tpu.vector_store %arg4[%c0_113, %c0_114], %285 {strides = array<i32>} : memref<32x32xf32, #tpu.memory_space<vmem>>, vector<32x32xf32>,
    %288 = arith.index_cast %c5_i32 : i32 to index
    %c0_115 = arith.constant 0 : index
    %c0_116 = arith.constant 0 : index
    %289 = vector.load %arg3[%288, %c0_115, %c0_116] : memref<8x32x32xf32, #tpu.memory_space<vmem>>, vector<1x32x32xf32>
    %290 = vector.shape_cast %289 : vector<1x32x32xf32> to vector<32x32xf32>
    %291 = vector.shape_cast %285 : vector<32x32xf32> to vector<1x32x32xf32>
    tpu.vector_store %arg3[%288, %c0_115, %c0_116], %291 {strides = array<i32>} : memref<8x32x32xf32, #tpu.memory_space<vmem>>, vector<1x32x32xf32>,
    %c6_i32 = arith.constant 6 : i32
    %c0_117 = arith.constant 0 : index
    %c0_118 = arith.constant 0 : index
    %292 = vector.load %arg4[%c0_117, %c0_118] : memref<32x32xf32, #tpu.memory_space<vmem>>, vector<32x32xf32>
    %c0_119 = arith.constant 0 : index
    %c0_120 = arith.constant 0 : index
    %293 = vector.load %arg5[%c0_119, %c0_120] : memref<32x32xf32, #tpu.memory_space<vmem>>, vector<32x32xf32>
    %294 = arith.index_cast %c6_i32 : i32 to index
    %c0_121 = arith.constant 0 : index
    %c0_122 = arith.constant 0 : index
    %295 = vector.load %arg1[%294, %c0_121, %c0_122] : memref<8x32x128xf32, #tpu.memory_space<vmem>>, vector<1x32x128xf32>
    %296 = vector.shape_cast %295 : vector<1x32x128xf32> to vector<32x128xf32>
    %c7_i32_123 = arith.constant 7 : i32
    %297 = arith.subi %c7_i32_123, %c6_i32 : i32
    %298 = arith.index_cast %297 : i32 to index
    %c0_124 = arith.constant 0 : index
    %c0_125 = arith.constant 0 : index
    %299 = vector.load %arg1[%298, %c0_124, %c0_125] : memref<8x32x128xf32, #tpu.memory_space<vmem>>, vector<1x32x128xf32>
    %300 = vector.shape_cast %299 : vector<1x32x128xf32> to vector<32x128xf32>
    %301 = vector.extract_strided_slice %296 {offsets = [0, 0], sizes = [32, 64], strides = [1, 1]} : vector<32x128xf32> to vector<32x64xf32>
    %302 = vector.extract_strided_slice %300 {offsets = [0, 64], sizes = [32, 64], strides = [1, 1]} : vector<32x128xf32> to vector<32x64xf32>
    %303 = tpu.concatenate %301, %302 in 1 : vector<32x64xf32>, vector<32x64xf32> -> vector<32x128xf32>
    %c0_126 = arith.constant 0 : index
    %c0_127 = arith.constant 0 : index
    %304 = vector.load %arg2[%c0_126, %c0_127] : memref<32x128xf32, #tpu.memory_space<vmem>>, vector<32x128xf32>
    %cst_128 = arith.constant dense<0.000000e+00> : vector<32x128xf32>
    %305 = tpu.matmul %292, %304, %cst_128 {dimension_numbers = #tpu.dot_dimension_numbers<[1], [0], [0], [1], [0, 0, 1, 1], [], []>} : vector<32x32xf32>, vector<32x128xf32>, vector<32x128xf32> -> vector<32x128xf32>
    %306 = arith.addf %303, %305 : vector<32x128xf32>
    %307 = arith.negf %306 : vector<32x128xf32>
    %308 = math.exp %307 : vector<32x128xf32>
    %cst_129 = arith.constant 1.000000e+00 : f32
    %309 = vector.broadcast %cst_129 : f32 to vector<32x128xf32>
    %310 = arith.addf %309, %308 : vector<32x128xf32>
    %311 = arith.divf %309, %310 : vector<32x128xf32>
    %312 = vector.extract_strided_slice %306 {offsets = [0, 32], sizes = [32, 16], strides = [1, 1]} : vector<32x128xf32> to vector<32x16xf32>
    %313 = math.tanh %312 : vector<32x16xf32>
    %314 = vector.extract_strided_slice %306 {offsets = [0, 96], sizes = [32, 16], strides = [1, 1]} : vector<32x128xf32> to vector<32x16xf32>
    %315 = math.tanh %314 : vector<32x16xf32>
    %316 = vector.extract_strided_slice %311 {offsets = [0, 16], sizes = [32, 16], strides = [1, 1]} : vector<32x128xf32> to vector<32x16xf32>
    %317 = vector.extract_strided_slice %293 {offsets = [0, 0], sizes = [32, 16], strides = [1, 1]} : vector<32x32xf32> to vector<32x16xf32>
    %318 = arith.mulf %316, %317 : vector<32x16xf32>
    %319 = vector.extract_strided_slice %311 {offsets = [0, 0], sizes = [32, 16], strides = [1, 1]} : vector<32x128xf32> to vector<32x16xf32>
    %320 = arith.mulf %319, %313 : vector<32x16xf32>
    %321 = arith.addf %318, %320 : vector<32x16xf32>
    %322 = vector.extract_strided_slice %311 {offsets = [0, 80], sizes = [32, 16], strides = [1, 1]} : vector<32x128xf32> to vector<32x16xf32>
    %323 = vector.extract_strided_slice %293 {offsets = [0, 16], sizes = [32, 16], strides = [1, 1]} : vector<32x32xf32> to vector<32x16xf32>
    %324 = arith.mulf %322, %323 : vector<32x16xf32>
    %325 = vector.extract_strided_slice %311 {offsets = [0, 64], sizes = [32, 16], strides = [1, 1]} : vector<32x128xf32> to vector<32x16xf32>
    %326 = arith.mulf %325, %315 : vector<32x16xf32>
    %327 = arith.addf %324, %326 : vector<32x16xf32>
    %328 = tpu.concatenate %321, %327 in 1 : vector<32x16xf32>, vector<32x16xf32> -> vector<32x32xf32>
    %329 = vector.extract_strided_slice %311 {offsets = [0, 48], sizes = [32, 16], strides = [1, 1]} : vector<32x128xf32> to vector<32x16xf32>
    %330 = vector.extract_strided_slice %311 {offsets = [0, 112], sizes = [32, 16], strides = [1, 1]} : vector<32x128xf32> to vector<32x16xf32>
    %331 = tpu.concatenate %329, %330 in 1 : vector<32x16xf32>, vector<32x16xf32> -> vector<32x32xf32>
    %332 = math.tanh %328 : vector<32x32xf32>
    %333 = arith.mulf %331, %332 : vector<32x32xf32>
    %c0_130 = arith.constant 0 : index
    %c0_131 = arith.constant 0 : index
    %334 = vector.load %arg5[%c0_130, %c0_131] : memref<32x32xf32, #tpu.memory_space<vmem>>, vector<32x32xf32>
    tpu.vector_store %arg5[%c0_130, %c0_131], %328 {strides = array<i32>} : memref<32x32xf32, #tpu.memory_space<vmem>>, vector<32x32xf32>,
    %c0_132 = arith.constant 0 : index
    %c0_133 = arith.constant 0 : index
    %335 = vector.load %arg4[%c0_132, %c0_133] : memref<32x32xf32, #tpu.memory_space<vmem>>, vector<32x32xf32>
    tpu.vector_store %arg4[%c0_132, %c0_133], %333 {strides = array<i32>} : memref<32x32xf32, #tpu.memory_space<vmem>>, vector<32x32xf32>,
    %336 = arith.index_cast %c6_i32 : i32 to index
    %c0_134 = arith.constant 0 : index
    %c0_135 = arith.constant 0 : index
    %337 = vector.load %arg3[%336, %c0_134, %c0_135] : memref<8x32x32xf32, #tpu.memory_space<vmem>>, vector<1x32x32xf32>
    %338 = vector.shape_cast %337 : vector<1x32x32xf32> to vector<32x32xf32>
    %339 = vector.shape_cast %333 : vector<32x32xf32> to vector<1x32x32xf32>
    tpu.vector_store %arg3[%336, %c0_134, %c0_135], %339 {strides = array<i32>} : memref<8x32x32xf32, #tpu.memory_space<vmem>>, vector<1x32x32xf32>,
    %c7_i32_136 = arith.constant 7 : i32
    %c0_137 = arith.constant 0 : index
    %c0_138 = arith.constant 0 : index
    %340 = vector.load %arg4[%c0_137, %c0_138] : memref<32x32xf32, #tpu.memory_space<vmem>>, vector<32x32xf32>
    %c0_139 = arith.constant 0 : index
    %c0_140 = arith.constant 0 : index
    %341 = vector.load %arg5[%c0_139, %c0_140] : memref<32x32xf32, #tpu.memory_space<vmem>>, vector<32x32xf32>
    %342 = arith.index_cast %c7_i32_136 : i32 to index
    %c0_141 = arith.constant 0 : index
    %c0_142 = arith.constant 0 : index
    %343 = vector.load %arg1[%342, %c0_141, %c0_142] : memref<8x32x128xf32, #tpu.memory_space<vmem>>, vector<1x32x128xf32>
    %344 = vector.shape_cast %343 : vector<1x32x128xf32> to vector<32x128xf32>
    %c7_i32_143 = arith.constant 7 : i32
    %345 = arith.subi %c7_i32_143, %c7_i32_136 : i32
    %346 = arith.index_cast %345 : i32 to index
    %c0_144 = arith.constant 0 : index
    %c0_145 = arith.constant 0 : index
    %347 = vector.load %arg1[%346, %c0_144, %c0_145] : memref<8x32x128xf32, #tpu.memory_space<vmem>>, vector<1x32x128xf32>
    %348 = vector.shape_cast %347 : vector<1x32x128xf32> to vector<32x128xf32>
    %349 = vector.extract_strided_slice %344 {offsets = [0, 0], sizes = [32, 64], strides = [1, 1]} : vector<32x128xf32> to vector<32x64xf32>
    %350 = vector.extract_strided_slice %348 {offsets = [0, 64], sizes = [32, 64], strides = [1, 1]} : vector<32x128xf32> to vector<32x64xf32>
    %351 = tpu.concatenate %349, %350 in 1 : vector<32x64xf32>, vector<32x64xf32> -> vector<32x128xf32>
    %c0_146 = arith.constant 0 : index
    %c0_147 = arith.constant 0 : index
    %352 = vector.load %arg2[%c0_146, %c0_147] : memref<32x128xf32, #tpu.memory_space<vmem>>, vector<32x128xf32>
    %cst_148 = arith.constant dense<0.000000e+00> : vector<32x128xf32>
    %353 = tpu.matmul %340, %352, %cst_148 {dimension_numbers = #tpu.dot_dimension_numbers<[1], [0], [0], [1], [0, 0, 1, 1], [], []>} : vector<32x32xf32>, vector<32x128xf32>, vector<32x128xf32> -> vector<32x128xf32>
    %354 = arith.addf %351, %353 : vector<32x128xf32>
    %355 = arith.negf %354 : vector<32x128xf32>
    %356 = math.exp %355 : vector<32x128xf32>
    %cst_149 = arith.constant 1.000000e+00 : f32
    %357 = vector.broadcast %cst_149 : f32 to vector<32x128xf32>
    %358 = arith.addf %357, %356 : vector<32x128xf32>
    %359 = arith.divf %357, %358 : vector<32x128xf32>
    %360 = vector.extract_strided_slice %354 {offsets = [0, 32], sizes = [32, 16], strides = [1, 1]} : vector<32x128xf32> to vector<32x16xf32>
    %361 = math.tanh %360 : vector<32x16xf32>
    %362 = vector.extract_strided_slice %354 {offsets = [0, 96], sizes = [32, 16], strides = [1, 1]} : vector<32x128xf32> to vector<32x16xf32>
    %363 = math.tanh %362 : vector<32x16xf32>
    %364 = vector.extract_strided_slice %359 {offsets = [0, 16], sizes = [32, 16], strides = [1, 1]} : vector<32x128xf32> to vector<32x16xf32>
    %365 = vector.extract_strided_slice %341 {offsets = [0, 0], sizes = [32, 16], strides = [1, 1]} : vector<32x32xf32> to vector<32x16xf32>
    %366 = arith.mulf %364, %365 : vector<32x16xf32>
    %367 = vector.extract_strided_slice %359 {offsets = [0, 0], sizes = [32, 16], strides = [1, 1]} : vector<32x128xf32> to vector<32x16xf32>
    %368 = arith.mulf %367, %361 : vector<32x16xf32>
    %369 = arith.addf %366, %368 : vector<32x16xf32>
    %370 = vector.extract_strided_slice %359 {offsets = [0, 80], sizes = [32, 16], strides = [1, 1]} : vector<32x128xf32> to vector<32x16xf32>
    %371 = vector.extract_strided_slice %341 {offsets = [0, 16], sizes = [32, 16], strides = [1, 1]} : vector<32x32xf32> to vector<32x16xf32>
    %372 = arith.mulf %370, %371 : vector<32x16xf32>
    %373 = vector.extract_strided_slice %359 {offsets = [0, 64], sizes = [32, 16], strides = [1, 1]} : vector<32x128xf32> to vector<32x16xf32>
    %374 = arith.mulf %373, %363 : vector<32x16xf32>
    %375 = arith.addf %372, %374 : vector<32x16xf32>
    %376 = tpu.concatenate %369, %375 in 1 : vector<32x16xf32>, vector<32x16xf32> -> vector<32x32xf32>
    %377 = vector.extract_strided_slice %359 {offsets = [0, 48], sizes = [32, 16], strides = [1, 1]} : vector<32x128xf32> to vector<32x16xf32>
    %378 = vector.extract_strided_slice %359 {offsets = [0, 112], sizes = [32, 16], strides = [1, 1]} : vector<32x128xf32> to vector<32x16xf32>
    %379 = tpu.concatenate %377, %378 in 1 : vector<32x16xf32>, vector<32x16xf32> -> vector<32x32xf32>
    %380 = math.tanh %376 : vector<32x32xf32>
    %381 = arith.mulf %379, %380 : vector<32x32xf32>
    %c0_150 = arith.constant 0 : index
    %c0_151 = arith.constant 0 : index
    %382 = vector.load %arg5[%c0_150, %c0_151] : memref<32x32xf32, #tpu.memory_space<vmem>>, vector<32x32xf32>
    tpu.vector_store %arg5[%c0_150, %c0_151], %376 {strides = array<i32>} : memref<32x32xf32, #tpu.memory_space<vmem>>, vector<32x32xf32>,
    %c0_152 = arith.constant 0 : index
    %c0_153 = arith.constant 0 : index
    %383 = vector.load %arg4[%c0_152, %c0_153] : memref<32x32xf32, #tpu.memory_space<vmem>>, vector<32x32xf32>
    tpu.vector_store %arg4[%c0_152, %c0_153], %381 {strides = array<i32>} : memref<32x32xf32, #tpu.memory_space<vmem>>, vector<32x32xf32>,
    %384 = arith.index_cast %c7_i32_136 : i32 to index
    %c0_154 = arith.constant 0 : index
    %c0_155 = arith.constant 0 : index
    %385 = vector.load %arg3[%384, %c0_154, %c0_155] : memref<8x32x32xf32, #tpu.memory_space<vmem>>, vector<1x32x32xf32>
    %386 = vector.shape_cast %385 : vector<1x32x32xf32> to vector<32x32xf32>
    %387 = vector.shape_cast %381 : vector<32x32xf32> to vector<1x32x32xf32>
    tpu.vector_store %arg3[%384, %c0_154, %c0_155], %387 {strides = array<i32>} : memref<8x32x32xf32, #tpu.memory_space<vmem>>, vector<1x32x32xf32>,
    %c8_i32 = arith.constant 8 : i32
    return
  }
  func.func @transform_0(%arg0: i32) -> (i32, i32, i32) {
    %c0_i32 = arith.constant 0 : i32
    %c0_i32_0 = arith.constant 0 : i32
    %c0_i32_1 = arith.constant 0 : i32
    return %c0_i32, %arg0, %c0_i32_0 : i32, i32, i32
  }
  func.func @transform_1(%arg0: i32) -> (i32, i32) {
    %c0_i32 = arith.constant 0 : i32
    %c0_i32_0 = arith.constant 0 : i32
    %c0_i32_1 = arith.constant 0 : i32
    return %c0_i32, %c0_i32_0 : i32, i32
  }
  func.func @transform_2(%arg0: i32) -> (i32, i32, i32) {
    %c0_i32 = arith.constant 0 : i32
    %c0_i32_0 = arith.constant 0 : i32
    %c0_i32_1 = arith.constant 0 : i32
    return %c0_i32, %arg0, %c0_i32_0 : i32, i32, i32
  }
}

module attributes {stable_mosaic.version = 11 : i64} {
  func.func @_bidir_linear_kernel(%arg0: i32, %arg1: i32, %arg2: memref<1x32x32xf32, #tpu.memory_space<vmem>>, %arg3: memref<1x32x32xf32, #tpu.memory_space<vmem>>, %arg4: memref<32x16xf32, #tpu.memory_space<vmem>>, %arg5: memref<1x16xf32, #tpu.memory_space<vmem>>, %arg6: memref<1x32x16xf32, #tpu.memory_space<vmem>>) attributes {dimension_semantics = [#tpu.dimension_semantics<parallel>, #tpu.dimension_semantics<parallel>], iteration_bounds = array<i64: 8, 1>, scalar_prefetch = 0 : i64, scratch_operands = 0 : i64, tpu.core_type = #tpu.core_type<tc>, window_params = [{transform_indices = @transform_0, window_bounds = array<i64: 1, 32, 32>}, {transform_indices = @transform_1, window_bounds = array<i64: 1, 32, 32>}, {pipeline_mode = #tpu.pipeline_mode<synchronous>, transform_indices = @transform_2, window_bounds = array<i64: 32, 16>}, {pipeline_mode = #tpu.pipeline_mode<synchronous>, transform_indices = @transform_3, window_bounds = array<i64: 1, 16>}, {transform_indices = @transform_4, window_bounds = array<i64: 1, 32, 16>}]} {
    %c0 = arith.constant 0 : index
    %c0_0 = arith.constant 0 : index
    %c0_1 = arith.constant 0 : index
    %0 = vector.load %arg2[%c0, %c0_0, %c0_1] : memref<1x32x32xf32, #tpu.memory_space<vmem>>, vector<1x32x32xf32>
    %1 = vector.shape_cast %0 : vector<1x32x32xf32> to vector<32x32xf32>
    %c0_2 = arith.constant 0 : index
    %c0_3 = arith.constant 0 : index
    %c0_4 = arith.constant 0 : index
    %2 = vector.load %arg3[%c0_2, %c0_3, %c0_4] : memref<1x32x32xf32, #tpu.memory_space<vmem>>, vector<1x32x32xf32>
    %3 = vector.shape_cast %2 : vector<1x32x32xf32> to vector<32x32xf32>
    %4 = vector.extract_strided_slice %1 {offsets = [0, 0], sizes = [32, 16], strides = [1, 1]} : vector<32x32xf32> to vector<32x16xf32>
    %5 = vector.extract_strided_slice %3 {offsets = [0, 16], sizes = [32, 16], strides = [1, 1]} : vector<32x32xf32> to vector<32x16xf32>
    %6 = tpu.concatenate %4, %5 in 1 : vector<32x16xf32>, vector<32x16xf32> -> vector<32x32xf32>
    %c0_5 = arith.constant 0 : index
    %c0_6 = arith.constant 0 : index
    %7 = vector.load %arg4[%c0_5, %c0_6] : memref<32x16xf32, #tpu.memory_space<vmem>>, vector<32x16xf32>
    %cst = arith.constant dense<0.000000e+00> : vector<32x16xf32>
    %8 = tpu.matmul %6, %7, %cst {dimension_numbers = #tpu.dot_dimension_numbers<[1], [0], [0], [1], [0, 0, 1, 1], [], []>} : vector<32x32xf32>, vector<32x16xf32>, vector<32x16xf32> -> vector<32x16xf32>
    %c0_7 = arith.constant 0 : index
    %c0_8 = arith.constant 0 : index
    %9 = vector.load %arg5[%c0_7, %c0_8] : memref<1x16xf32, #tpu.memory_space<vmem>>, vector<1x16xf32>
    %10 = vector.broadcast %9 : vector<1x16xf32> to vector<32x16xf32>
    %11 = arith.addf %8, %10 : vector<32x16xf32>
    %c0_9 = arith.constant 0 : index
    %c0_10 = arith.constant 0 : index
    %c0_11 = arith.constant 0 : index
    %12 = vector.load %arg6[%c0_9, %c0_10, %c0_11] : memref<1x32x16xf32, #tpu.memory_space<vmem>>, vector<1x32x16xf32>
    %13 = vector.shape_cast %12 : vector<1x32x16xf32> to vector<32x16xf32>
    %14 = vector.shape_cast %11 : vector<32x16xf32> to vector<1x32x16xf32>
    tpu.vector_store %arg6[%c0_9, %c0_10, %c0_11], %14 {strides = array<i32>} : memref<1x32x16xf32, #tpu.memory_space<vmem>>, vector<1x32x16xf32>,
    return
  }
  func.func @transform_0(%arg0: i32, %arg1: i32) -> (i32, i32, i32) {
    %c0_i32 = arith.constant 0 : i32
    %c0_i32_0 = arith.constant 0 : i32
    return %arg0, %arg1, %c0_i32 : i32, i32, i32
  }
  func.func @transform_1(%arg0: i32, %arg1: i32) -> (i32, i32, i32) {
    %c7_i32 = arith.constant 7 : i32
    %0 = arith.subi %c7_i32, %arg0 : i32
    %c0_i32 = arith.constant 0 : i32
    %c0_i32_0 = arith.constant 0 : i32
    return %0, %arg1, %c0_i32 : i32, i32, i32
  }
  func.func @transform_2(%arg0: i32, %arg1: i32) -> (i32, i32) {
    %c0_i32 = arith.constant 0 : i32
    %c0_i32_0 = arith.constant 0 : i32
    %c0_i32_1 = arith.constant 0 : i32
    return %c0_i32, %c0_i32_0 : i32, i32
  }
  func.func @transform_3(%arg0: i32, %arg1: i32) -> (i32, i32) {
    %c0_i32 = arith.constant 0 : i32
    %c0_i32_0 = arith.constant 0 : i32
    %c0_i32_1 = arith.constant 0 : i32
    return %c0_i32, %c0_i32_0 : i32, i32
  }
  func.func @transform_4(%arg0: i32, %arg1: i32) -> (i32, i32, i32) {
    %c0_i32 = arith.constant 0 : i32
    %c0_i32_0 = arith.constant 0 : i32
    return %arg0, %arg1, %c0_i32 : i32, i32, i32
  }
}

module attributes {stable_mosaic.version = 11 : i64} {
  func.func @_gn_residual_kernel(%arg0: i32, %arg1: memref<4x1024xf32, #tpu.memory_space<vmem>>, %arg2: memref<4x1024xf32, #tpu.memory_space<vmem>>, %arg3: memref<1x1024xf32, #tpu.memory_space<vmem>>, %arg4: memref<1x1024xf32, #tpu.memory_space<vmem>>, %arg5: memref<4x1024xf32, #tpu.memory_space<vmem>>) attributes {dimension_semantics = [#tpu.dimension_semantics<parallel>], iteration_bounds = array<i64: 1>, scalar_prefetch = 0 : i64, scratch_operands = 0 : i64, tpu.core_type = #tpu.core_type<tc>, window_params = [{transform_indices = @transform_0, window_bounds = array<i64: 4, 1024>}, {transform_indices = @transform_1, window_bounds = array<i64: 4, 1024>}, {pipeline_mode = #tpu.pipeline_mode<synchronous>, transform_indices = @transform_2, window_bounds = array<i64: 1, 1024>}, {pipeline_mode = #tpu.pipeline_mode<synchronous>, transform_indices = @transform_3, window_bounds = array<i64: 1, 1024>}, {transform_indices = @transform_4, window_bounds = array<i64: 4, 1024>}]} {
    %c0 = arith.constant 0 : index
    %c0_0 = arith.constant 0 : index
    %0 = vector.load %arg1[%c0, %c0_0] : memref<4x1024xf32, #tpu.memory_space<vmem>>, vector<4x1024xf32>
    %cst = arith.constant dense<0.000000e+00> : vector<4xf32>
    %1 = vector.multi_reduction <add>, %0, %cst [1] : vector<4x1024xf32> to vector<4xf32>
    %2 = vector.shape_cast %1 : vector<4xf32> to vector<4x1xf32>
    %cst_1 = arith.constant 1.024000e+03 : f32
    %3 = vector.broadcast %cst_1 : f32 to vector<4x1xf32>
    %4 = arith.divf %2, %3 : vector<4x1xf32>
    %5 = vector.broadcast %4 : vector<4x1xf32> to vector<4x1024xf32>
    %6 = arith.subf %0, %5 : vector<4x1024xf32>
    %7 = arith.mulf %6, %6 : vector<4x1024xf32>
    %cst_2 = arith.constant dense<0.000000e+00> : vector<4xf32>
    %8 = vector.multi_reduction <add>, %7, %cst_2 [1] : vector<4x1024xf32> to vector<4xf32>
    %9 = vector.shape_cast %8 : vector<4xf32> to vector<4x1xf32>
    %cst_3 = arith.constant 1.024000e+03 : f32
    %10 = vector.broadcast %cst_3 : f32 to vector<4x1xf32>
    %11 = arith.divf %9, %10 : vector<4x1xf32>
    %c0_4 = arith.constant 0 : index
    %c0_5 = arith.constant 0 : index
    %12 = vector.load %arg2[%c0_4, %c0_5] : memref<4x1024xf32, #tpu.memory_space<vmem>>, vector<4x1024xf32>
    %cst_6 = arith.constant 9.99999993E-9 : f32
    %13 = vector.broadcast %cst_6 : f32 to vector<4x1xf32>
    %14 = arith.addf %11, %13 : vector<4x1xf32>
    %15 = math.rsqrt %14 : vector<4x1xf32>
    %16 = vector.broadcast %15 : vector<4x1xf32> to vector<4x1024xf32>
    %17 = arith.mulf %6, %16 : vector<4x1024xf32>
    %c0_7 = arith.constant 0 : index
    %c0_8 = arith.constant 0 : index
    %18 = vector.load %arg3[%c0_7, %c0_8] : memref<1x1024xf32, #tpu.memory_space<vmem>>, vector<1x1024xf32>
    %19 = vector.broadcast %18 : vector<1x1024xf32> to vector<4x1024xf32>
    %20 = arith.mulf %17, %19 : vector<4x1024xf32>
    %21 = arith.addf %12, %20 : vector<4x1024xf32>
    %c0_9 = arith.constant 0 : index
    %c0_10 = arith.constant 0 : index
    %22 = vector.load %arg4[%c0_9, %c0_10] : memref<1x1024xf32, #tpu.memory_space<vmem>>, vector<1x1024xf32>
    %23 = vector.broadcast %22 : vector<1x1024xf32> to vector<4x1024xf32>
    %24 = arith.addf %21, %23 : vector<4x1024xf32>
    %c0_11 = arith.constant 0 : index
    %c0_12 = arith.constant 0 : index
    %25 = vector.load %arg5[%c0_11, %c0_12] : memref<4x1024xf32, #tpu.memory_space<vmem>>, vector<4x1024xf32>
    tpu.vector_store %arg5[%c0_11, %c0_12], %24 {strides = array<i32>} : memref<4x1024xf32, #tpu.memory_space<vmem>>, vector<4x1024xf32>,
    return
  }
  func.func @transform_0(%arg0: i32) -> (i32, i32) {
    %c0_i32 = arith.constant 0 : i32
    %c0_i32_0 = arith.constant 0 : i32
    return %arg0, %c0_i32 : i32, i32
  }
  func.func @transform_1(%arg0: i32) -> (i32, i32) {
    %c0_i32 = arith.constant 0 : i32
    %c0_i32_0 = arith.constant 0 : i32
    return %arg0, %c0_i32 : i32, i32
  }
  func.func @transform_2(%arg0: i32) -> (i32, i32) {
    %c0_i32 = arith.constant 0 : i32
    %c0_i32_0 = arith.constant 0 : i32
    %c0_i32_1 = arith.constant 0 : i32
    return %c0_i32, %c0_i32_0 : i32, i32
  }
  func.func @transform_3(%arg0: i32) -> (i32, i32) {
    %c0_i32 = arith.constant 0 : i32
    %c0_i32_0 = arith.constant 0 : i32
    %c0_i32_1 = arith.constant 0 : i32
    return %c0_i32, %c0_i32_0 : i32, i32
  }
  func.func @transform_4(%arg0: i32) -> (i32, i32) {
    %c0_i32 = arith.constant 0 : i32
    %c0_i32_0 = arith.constant 0 : i32
    return %arg0, %c0_i32 : i32, i32
  }
}

module attributes {stable_mosaic.version = 11 : i64} {
  func.func @kernel(%arg0: i32, %arg1: memref<2x64x16xf32, #tpu.memory_space<vmem>>, %arg2: memref<16x48xf32, #tpu.memory_space<vmem>>, %arg3: memref<1x48xf32, #tpu.memory_space<vmem>>, %arg4: memref<48x48xf32, #tpu.memory_space<vmem>>, %arg5: memref<1x48xf32, #tpu.memory_space<vmem>>, %arg6: memref<48x16xf32, #tpu.memory_space<vmem>>, %arg7: memref<48x16xf32, #tpu.memory_space<vmem>>, %arg8: memref<1x16xf32, #tpu.memory_space<vmem>>, %arg9: memref<1x1xf32, #tpu.memory_space<vmem>>, %arg10: memref<1x1xf32, #tpu.memory_space<vmem>>, %arg11: memref<1x1xf32, #tpu.memory_space<vmem>>, %arg12: memref<2x64x16xf32, #tpu.memory_space<vmem>>) attributes {dimension_semantics = [#tpu.dimension_semantics<parallel>], iteration_bounds = array<i64: 2>, scalar_prefetch = 0 : i64, scratch_operands = 0 : i64, tpu.core_type = #tpu.core_type<tc>, window_params = [{transform_indices = @transform_0, window_bounds = array<i64: 2, 64, 16>}, {pipeline_mode = #tpu.pipeline_mode<synchronous>, transform_indices = @transform_1, window_bounds = array<i64: 16, 48>}, {pipeline_mode = #tpu.pipeline_mode<synchronous>, transform_indices = @transform_2, window_bounds = array<i64: 1, 48>}, {pipeline_mode = #tpu.pipeline_mode<synchronous>, transform_indices = @transform_3, window_bounds = array<i64: 48, 48>}, {pipeline_mode = #tpu.pipeline_mode<synchronous>, transform_indices = @transform_4, window_bounds = array<i64: 1, 48>}, {pipeline_mode = #tpu.pipeline_mode<synchronous>, transform_indices = @transform_5, window_bounds = array<i64: 48, 16>}, {pipeline_mode = #tpu.pipeline_mode<synchronous>, transform_indices = @transform_6, window_bounds = array<i64: 48, 16>}, {pipeline_mode = #tpu.pipeline_mode<synchronous>, transform_indices = @transform_7, window_bounds = array<i64: 1, 16>}, {pipeline_mode = #tpu.pipeline_mode<synchronous>, transform_indices = @transform_8, window_bounds = array<i64: 1, 1>}, {pipeline_mode = #tpu.pipeline_mode<synchronous>, transform_indices = @transform_9, window_bounds = array<i64: 1, 1>}, {pipeline_mode = #tpu.pipeline_mode<synchronous>, transform_indices = @transform_10, window_bounds = array<i64: 1, 1>}, {transform_indices = @transform_11, window_bounds = array<i64: 2, 64, 16>}]} {
    %c0 = arith.constant 0 : index
    %c0_0 = arith.constant 0 : index
    %c0_1 = arith.constant 0 : index
    %0 = vector.load %arg1[%c0, %c0_0, %c0_1] : memref<2x64x16xf32, #tpu.memory_space<vmem>>, vector<2x64x16xf32>
    %1 = vector.shape_cast %0 : vector<2x64x16xf32> to vector<128x16xf32>
    %c0_2 = arith.constant 0 : index
    %c0_3 = arith.constant 0 : index
    %2 = vector.load %arg2[%c0_2, %c0_3] : memref<16x48xf32, #tpu.memory_space<vmem>>, vector<16x48xf32>
    %cst = arith.constant dense<0.000000e+00> : vector<128x48xf32>
    %3 = tpu.matmul %1, %2, %cst {dimension_numbers = #tpu.dot_dimension_numbers<[1], [0], [0], [1], [0, 0, 1, 1], [], []>} : vector<128x16xf32>, vector<16x48xf32>, vector<128x48xf32> -> vector<128x48xf32>
    %c0_4 = arith.constant 0 : index
    %c0_5 = arith.constant 0 : index
    %4 = vector.load %arg3[%c0_4, %c0_5] : memref<1x48xf32, #tpu.memory_space<vmem>>, vector<1x48xf32>
    %5 = vector.broadcast %4 : vector<1x48xf32> to vector<128x48xf32>
    %6 = arith.addf %3, %5 : vector<128x48xf32>
    %c0_6 = arith.constant 0 : index
    %c0_7 = arith.constant 0 : index
    %7 = vector.load %arg9[%c0_6, %c0_7] : memref<1x1xf32, #tpu.memory_space<vmem>>, vector<1x1xf32>
    %cst_8 = arith.constant 0.000000e+00 : f32
    %8 = vector.broadcast %cst_8 : f32 to vector<128x48xf32>
    %9 = arith.cmpf oge, %6, %8 : vector<128x48xf32>
    %10 = vector.broadcast %7 : vector<1x1xf32> to vector<128x48xf32>
    %11 = arith.mulf %10, %6 : vector<128x48xf32>
    %12 = arith.select %9, %6, %11 : vector<128x48xi1>, vector<128x48xf32>
    %13 = vector.extract_strided_slice %12 {offsets = [0, 0], sizes = [64, 48], strides = [1, 1]} : vector<128x48xf32> to vector<64x48xf32>
    %14 = vector.extract_strided_slice %12 {offsets = [64, 0], sizes = [64, 48], strides = [1, 1]} : vector<128x48xf32> to vector<64x48xf32>
    %15 = arith.addf %13, %14 : vector<64x48xf32>
    %cst_9 = arith.constant 5.000000e-01 : f32
    %16 = vector.broadcast %cst_9 : f32 to vector<64x48xf32>
    %17 = arith.mulf %15, %16 : vector<64x48xf32>
    %c0_10 = arith.constant 0 : index
    %c0_11 = arith.constant 0 : index
    %18 = vector.load %arg4[%c0_10, %c0_11] : memref<48x48xf32, #tpu.memory_space<vmem>>, vector<48x48xf32>
    %cst_12 = arith.constant dense<0.000000e+00> : vector<64x48xf32>
    %19 = tpu.matmul %17, %18, %cst_12 {dimension_numbers = #tpu.dot_dimension_numbers<[1], [0], [0], [1], [0, 0, 1, 1], [], []>} : vector<64x48xf32>, vector<48x48xf32>, vector<64x48xf32> -> vector<64x48xf32>
    %c0_13 = arith.constant 0 : index
    %c0_14 = arith.constant 0 : index
    %20 = vector.load %arg5[%c0_13, %c0_14] : memref<1x48xf32, #tpu.memory_space<vmem>>, vector<1x48xf32>
    %21 = vector.broadcast %20 : vector<1x48xf32> to vector<64x48xf32>
    %22 = arith.addf %19, %21 : vector<64x48xf32>
    %c0_15 = arith.constant 0 : index
    %c0_16 = arith.constant 0 : index
    %23 = vector.load %arg10[%c0_15, %c0_16] : memref<1x1xf32, #tpu.memory_space<vmem>>, vector<1x1xf32>
    %cst_17 = arith.constant 0.000000e+00 : f32
    %24 = vector.broadcast %cst_17 : f32 to vector<64x48xf32>
    %25 = arith.cmpf oge, %22, %24 : vector<64x48xf32>
    %26 = vector.broadcast %23 : vector<1x1xf32> to vector<64x48xf32>
    %27 = arith.mulf %26, %22 : vector<64x48xf32>
    %28 = arith.select %25, %22, %27 : vector<64x48xi1>, vector<64x48xf32>
    %c0_18 = arith.constant 0 : index
    %c0_19 = arith.constant 0 : index
    %29 = vector.load %arg7[%c0_18, %c0_19] : memref<48x16xf32, #tpu.memory_space<vmem>>, vector<48x16xf32>
    %cst_20 = arith.constant dense<0.000000e+00> : vector<64x16xf32>
    %30 = tpu.matmul %28, %29, %cst_20 {dimension_numbers = #tpu.dot_dimension_numbers<[1], [0], [0], [1], [0, 0, 1, 1], [], []>} : vector<64x48xf32>, vector<48x16xf32>, vector<64x16xf32> -> vector<64x16xf32>
    %c0_21 = arith.constant 0 : index
    %c0_22 = arith.constant 0 : index
    %31 = vector.load %arg8[%c0_21, %c0_22] : memref<1x16xf32, #tpu.memory_space<vmem>>, vector<1x16xf32>
    %32 = vector.broadcast %31 : vector<1x16xf32> to vector<64x16xf32>
    %33 = arith.addf %30, %32 : vector<64x16xf32>
    %c0_23 = arith.constant 0 : index
    %c0_24 = arith.constant 0 : index
    %34 = vector.load %arg6[%c0_23, %c0_24] : memref<48x16xf32, #tpu.memory_space<vmem>>, vector<48x16xf32>
    %cst_25 = arith.constant dense<0.000000e+00> : vector<128x16xf32>
    %35 = tpu.matmul %12, %34, %cst_25 {dimension_numbers = #tpu.dot_dimension_numbers<[1], [0], [0], [1], [0, 0, 1, 1], [], []>} : vector<128x48xf32>, vector<48x16xf32>, vector<128x16xf32> -> vector<128x16xf32>
    %36 = vector.shape_cast %35 : vector<128x16xf32> to vector<2x64x16xf32>
    %37 = vector.shape_cast %33 : vector<64x16xf32> to vector<1x64x16xf32>
    %38 = vector.broadcast %37 : vector<1x64x16xf32> to vector<2x64x16xf32>
    %39 = arith.addf %36, %38 : vector<2x64x16xf32>
    %c0_26 = arith.constant 0 : index
    %c0_27 = arith.constant 0 : index
    %40 = vector.load %arg11[%c0_26, %c0_27] : memref<1x1xf32, #tpu.memory_space<vmem>>, vector<1x1xf32>
    %cst_28 = arith.constant 0.000000e+00 : f32
    %41 = vector.broadcast %cst_28 : f32 to vector<2x64x16xf32>
    %42 = arith.cmpf oge, %39, %41 : vector<2x64x16xf32>
    %43 = vector.shape_cast %40 : vector<1x1xf32> to vector<1x1x1xf32>
    %44 = vector.broadcast %43 : vector<1x1x1xf32> to vector<2x64x16xf32>
    %45 = arith.mulf %44, %39 : vector<2x64x16xf32>
    %46 = arith.select %42, %39, %45 : vector<2x64x16xi1>, vector<2x64x16xf32>
    %c0_29 = arith.constant 0 : index
    %c0_30 = arith.constant 0 : index
    %c0_31 = arith.constant 0 : index
    %47 = vector.load %arg12[%c0_29, %c0_30, %c0_31] : memref<2x64x16xf32, #tpu.memory_space<vmem>>, vector<2x64x16xf32>
    tpu.vector_store %arg12[%c0_29, %c0_30, %c0_31], %46 {strides = array<i32>} : memref<2x64x16xf32, #tpu.memory_space<vmem>>, vector<2x64x16xf32>,
    return
  }
  func.func @transform_0(%arg0: i32) -> (i32, i32, i32) {
    %c0_i32 = arith.constant 0 : i32
    %c0_i32_0 = arith.constant 0 : i32
    %c0_i32_1 = arith.constant 0 : i32
    return %c0_i32, %arg0, %c0_i32_0 : i32, i32, i32
  }
  func.func @transform_1(%arg0: i32) -> (i32, i32) {
    %c0_i32 = arith.constant 0 : i32
    %c0_i32_0 = arith.constant 0 : i32
    %c0_i32_1 = arith.constant 0 : i32
    return %c0_i32, %c0_i32_0 : i32, i32
  }
  func.func @transform_2(%arg0: i32) -> (i32, i32) {
    %c0_i32 = arith.constant 0 : i32
    %c0_i32_0 = arith.constant 0 : i32
    %c0_i32_1 = arith.constant 0 : i32
    return %c0_i32, %c0_i32_0 : i32, i32
  }
  func.func @transform_3(%arg0: i32) -> (i32, i32) {
    %c0_i32 = arith.constant 0 : i32
    %c0_i32_0 = arith.constant 0 : i32
    %c0_i32_1 = arith.constant 0 : i32
    return %c0_i32, %c0_i32_0 : i32, i32
  }
  func.func @transform_4(%arg0: i32) -> (i32, i32) {
    %c0_i32 = arith.constant 0 : i32
    %c0_i32_0 = arith.constant 0 : i32
    %c0_i32_1 = arith.constant 0 : i32
    return %c0_i32, %c0_i32_0 : i32, i32
  }
  func.func @transform_5(%arg0: i32) -> (i32, i32) {
    %c0_i32 = arith.constant 0 : i32
    %c0_i32_0 = arith.constant 0 : i32
    %c0_i32_1 = arith.constant 0 : i32
    return %c0_i32, %c0_i32_0 : i32, i32
  }
  func.func @transform_6(%arg0: i32) -> (i32, i32) {
    %c0_i32 = arith.constant 0 : i32
    %c0_i32_0 = arith.constant 0 : i32
    %c0_i32_1 = arith.constant 0 : i32
    return %c0_i32, %c0_i32_0 : i32, i32
  }
  func.func @transform_7(%arg0: i32) -> (i32, i32) {
    %c0_i32 = arith.constant 0 : i32
    %c0_i32_0 = arith.constant 0 : i32
    %c0_i32_1 = arith.constant 0 : i32
    return %c0_i32, %c0_i32_0 : i32, i32
  }
  func.func @transform_8(%arg0: i32) -> (i32, i32) {
    %c0_i32 = arith.constant 0 : i32
    %c0_i32_0 = arith.constant 0 : i32
    %c0_i32_1 = arith.constant 0 : i32
    return %c0_i32, %c0_i32_0 : i32, i32
  }
  func.func @transform_9(%arg0: i32) -> (i32, i32) {
    %c0_i32 = arith.constant 0 : i32
    %c0_i32_0 = arith.constant 0 : i32
    %c0_i32_1 = arith.constant 0 : i32
    return %c0_i32, %c0_i32_0 : i32, i32
  }
  func.func @transform_10(%arg0: i32) -> (i32, i32) {
    %c0_i32 = arith.constant 0 : i32
    %c0_i32_0 = arith.constant 0 : i32
    %c0_i32_1 = arith.constant 0 : i32
    return %c0_i32, %c0_i32_0 : i32, i32
  }
  func.func @transform_11(%arg0: i32) -> (i32, i32, i32) {
    %c0_i32 = arith.constant 0 : i32
    %c0_i32_0 = arith.constant 0 : i32
    %c0_i32_1 = arith.constant 0 : i32
    return %c0_i32, %arg0, %c0_i32_0 : i32, i32, i32
  }
}

module attributes {stable_mosaic.version = 11 : i64} {
  func.func @kernel(%arg0: i32, %arg1: memref<2x16x64xf32, #tpu.memory_space<vmem>>, %arg2: memref<16x16xf32, #tpu.memory_space<vmem>>, %arg3: memref<16x1xf32, #tpu.memory_space<vmem>>, %arg4: memref<1x1xf32, #tpu.memory_space<vmem>>, %arg5: memref<2x16x64xf32, #tpu.memory_space<vmem>>) attributes {dimension_semantics = [#tpu.dimension_semantics<parallel>], iteration_bounds = array<i64: 2>, scalar_prefetch = 0 : i64, scratch_operands = 0 : i64, tpu.core_type = #tpu.core_type<tc>, window_params = [{transform_indices = @transform_0, window_bounds = array<i64: 2, 16, 64>}, {pipeline_mode = #tpu.pipeline_mode<synchronous>, transform_indices = @transform_1, window_bounds = array<i64: 16, 16>}, {pipeline_mode = #tpu.pipeline_mode<synchronous>, transform_indices = @transform_2, window_bounds = array<i64: 16, 1>}, {pipeline_mode = #tpu.pipeline_mode<synchronous>, transform_indices = @transform_3, window_bounds = array<i64: 1, 1>}, {transform_indices = @transform_4, window_bounds = array<i64: 2, 16, 64>}]} {
    %c0 = arith.constant 0 : index
    %c0_0 = arith.constant 0 : index
    %0 = vector.load %arg2[%c0, %c0_0] : memref<16x16xf32, #tpu.memory_space<vmem>>, vector<16x16xf32>
    %c0_1 = arith.constant 0 : index
    %c0_2 = arith.constant 0 : index
    %1 = vector.load %arg3[%c0_1, %c0_2] : memref<16x1xf32, #tpu.memory_space<vmem>>, vector<16x1xf32>
    %c0_3 = arith.constant 0 : index
    %c0_4 = arith.constant 0 : index
    %2 = vector.load %arg4[%c0_3, %c0_4] : memref<1x1xf32, #tpu.memory_space<vmem>>, vector<1x1xf32>
    %c0_5 = arith.constant 0 : index
    %c0_6 = arith.constant 0 : index
    %c0_7 = arith.constant 0 : index
    %3 = vector.load %arg1[%c0_5, %c0_6, %c0_7] : memref<2x16x64xf32, #tpu.memory_space<vmem>>, vector<1x16x64xf32>
    %4 = vector.shape_cast %3 : vector<1x16x64xf32> to vector<16x64xf32>
    %cst = arith.constant 0.000000e+00 : f32
    %5 = vector.broadcast %cst : f32 to vector<16x64xf32>
    %6 = arith.cmpf oge, %4, %5 : vector<16x64xf32>
    %7 = vector.broadcast %2 : vector<1x1xf32> to vector<16x64xf32>
    %8 = arith.mulf %7, %4 : vector<16x64xf32>
    %9 = arith.select %6, %4, %8 : vector<16x64xi1>, vector<16x64xf32>
    %cst_8 = arith.constant dense<0.000000e+00> : vector<16x64xf32>
    %10 = tpu.matmul %0, %9, %cst_8 {dimension_numbers = #tpu.dot_dimension_numbers<[1], [0], [0], [1], [0, 0, 1, 1], [], []>} : vector<16x16xf32>, vector<16x64xf32>, vector<16x64xf32> -> vector<16x64xf32>
    %11 = vector.broadcast %1 : vector<16x1xf32> to vector<16x64xf32>
    %12 = arith.addf %10, %11 : vector<16x64xf32>
    %c0_9 = arith.constant 0 : index
    %c0_10 = arith.constant 0 : index
    %c0_11 = arith.constant 0 : index
    %13 = vector.load %arg5[%c0_9, %c0_10, %c0_11] : memref<2x16x64xf32, #tpu.memory_space<vmem>>, vector<1x16x64xf32>
    %14 = vector.shape_cast %13 : vector<1x16x64xf32> to vector<16x64xf32>
    %15 = vector.shape_cast %12 : vector<16x64xf32> to vector<1x16x64xf32>
    tpu.vector_store %arg5[%c0_9, %c0_10, %c0_11], %15 {strides = array<i32>} : memref<2x16x64xf32, #tpu.memory_space<vmem>>, vector<1x16x64xf32>,
    %c1 = arith.constant 1 : index
    %c0_12 = arith.constant 0 : index
    %c0_13 = arith.constant 0 : index
    %16 = vector.load %arg1[%c1, %c0_12, %c0_13] : memref<2x16x64xf32, #tpu.memory_space<vmem>>, vector<1x16x64xf32>
    %17 = vector.shape_cast %16 : vector<1x16x64xf32> to vector<16x64xf32>
    %cst_14 = arith.constant 0.000000e+00 : f32
    %18 = vector.broadcast %cst_14 : f32 to vector<16x64xf32>
    %19 = arith.cmpf oge, %17, %18 : vector<16x64xf32>
    %20 = vector.broadcast %2 : vector<1x1xf32> to vector<16x64xf32>
    %21 = arith.mulf %20, %17 : vector<16x64xf32>
    %22 = arith.select %19, %17, %21 : vector<16x64xi1>, vector<16x64xf32>
    %cst_15 = arith.constant dense<0.000000e+00> : vector<16x64xf32>
    %23 = tpu.matmul %0, %22, %cst_15 {dimension_numbers = #tpu.dot_dimension_numbers<[1], [0], [0], [1], [0, 0, 1, 1], [], []>} : vector<16x16xf32>, vector<16x64xf32>, vector<16x64xf32> -> vector<16x64xf32>
    %24 = vector.broadcast %1 : vector<16x1xf32> to vector<16x64xf32>
    %25 = arith.addf %23, %24 : vector<16x64xf32>
    %c1_16 = arith.constant 1 : index
    %c0_17 = arith.constant 0 : index
    %c0_18 = arith.constant 0 : index
    %26 = vector.load %arg5[%c1_16, %c0_17, %c0_18] : memref<2x16x64xf32, #tpu.memory_space<vmem>>, vector<1x16x64xf32>
    %27 = vector.shape_cast %26 : vector<1x16x64xf32> to vector<16x64xf32>
    %28 = vector.shape_cast %25 : vector<16x64xf32> to vector<1x16x64xf32>
    tpu.vector_store %arg5[%c1_16, %c0_17, %c0_18], %28 {strides = array<i32>} : memref<2x16x64xf32, #tpu.memory_space<vmem>>, vector<1x16x64xf32>,
    return
  }
  func.func @transform_0(%arg0: i32) -> (i32, i32, i32) {
    %c0_i32 = arith.constant 0 : i32
    %c0_i32_0 = arith.constant 0 : i32
    %c0_i32_1 = arith.constant 0 : i32
    return %arg0, %c0_i32, %c0_i32_0 : i32, i32, i32
  }
  func.func @transform_1(%arg0: i32) -> (i32, i32) {
    %c0_i32 = arith.constant 0 : i32
    %c0_i32_0 = arith.constant 0 : i32
    %c0_i32_1 = arith.constant 0 : i32
    return %c0_i32, %c0_i32_0 : i32, i32
  }
  func.func @transform_2(%arg0: i32) -> (i32, i32) {
    %c0_i32 = arith.constant 0 : i32
    %c0_i32_0 = arith.constant 0 : i32
    %c0_i32_1 = arith.constant 0 : i32
    return %c0_i32, %c0_i32_0 : i32, i32
  }
  func.func @transform_3(%arg0: i32) -> (i32, i32) {
    %c0_i32 = arith.constant 0 : i32
    %c0_i32_0 = arith.constant 0 : i32
    %c0_i32_1 = arith.constant 0 : i32
    return %c0_i32, %c0_i32_0 : i32, i32
  }
  func.func @transform_4(%arg0: i32) -> (i32, i32, i32) {
    %c0_i32 = arith.constant 0 : i32
    %c0_i32_0 = arith.constant 0 : i32
    %c0_i32_1 = arith.constant 0 : i32
    return %arg0, %c0_i32, %c0_i32_0 : i32, i32, i32
  }
}

</mosaic_0001>

<llo_original>
// kernel: _lambda_.15
$region0: #{_lambda_.15}
  #allocation0 [shape = 'u32[]', space=smem, size = 0x4, offset = 0x4, fixed_abs, tag = 'smem constant byte address 0x4 - core index']
  #allocation1 [shape = 'u32[144,128]{1,0:T(1,128)}', space=vmem, size = 0x12000, scoped, tag = 'internal scratch']
  %s0 = inlined_call_operand.vmem [shape: f32[256,16], index: 0, kind: input, shape index: {}]
  %s1 = inlined_call_operand.vmem [shape: f32[16,128], index: 1, kind: input, shape index: {}]
  %s2 = inlined_call_operand.vmem [shape: f32[1,128], index: 2, kind: input, shape index: {}]
  %s3 = inlined_call_operand.vmem [shape: f32[256,128], index: 3, kind: output, shape index: {}]
  %s4 = sld [smem:[#allocation0]]
  $region45: #{_lambda_.15} parent=0
    _
  %s6 = ssub.s32 1, %s4
  %s7 = scalar_select 0, %s6, %s4
  loop: start=0, step=1, limit=4
  $region2: #{_lambda_.15} parent=0 // loop_pre_header
    _
  $region3: #{_lambda_.15} parent=0 // loop_header
    %s9 = sphi 0, %s13
    %p10 = scmp.ge.s32.totalorder %s9, 4
    %s19 = sphi 0, %s21
    %s22 = sphi 0, %s19
    %s23 = sphi 0, %s22
    %s39 = sphi 0, %s23
    %s43 = sphi 0, %s43
    %s45 = sphi 0, %s43
    %s46 = sphi 0, %s45
    %s60 = sphi 0, %s46
    %s64 = sphi 0, %s64
    %s66 = sphi 0, %s64
    %s67 = sphi 0, %s66
    %s81 = sphi 0, %s67
    %s87 = sphi 0, %s89
    %s90 = sphi 0, %s87
    %s91 = sphi 0, %s90
    %s107 = sphi 0, %s91
  $region4: #{_lambda_.15} parent=0 // loop_header_branch
    %12 = sbr.rel (%p10) target = $region8
  $region5: #{_lambda_.15} parent=0 // loop_body
    %s14 = ssub.s32 %s9, 1
    %s15 = ssub.s32 %s9, 2
    %s16 = sadd.s32 %s9, 1
    %s17 = ssub.s32 %s9, %s16
    %p18 = scmp.eq.s32.totalorder %s17, 0
    %s20 = sadd.s32 %s19, 1
    %s21 = scalar_select %p18, %s19, %s20
    %p24 = pneg %p18
    %p25 = scmp.eq.s32.totalorder %s9, 1
    %p26 = por %p24, %p25
    %p27 = scmp.ne.s32.totalorder %s19, %s22
    %p28 = scmp.eq.s32.totalorder %s9, 0
    %p29 = por %p27, %p28
    %p30 = scmp.ne.s32.totalorder %s19, %s22
    %p31 = scmp.eq.s32.totalorder %s14, 1
    %p32 = por %p30, %p31
    %p33 = scmp.ne.s32.totalorder %s22, %s23
    %p34 = scmp.eq.s32.totalorder %s14, 0
    %p35 = por %p33, %p34
    %p36 = scmp.ne.s32.totalorder %s22, %s23
    %p37 = scmp.eq.s32.totalorder %s15, 1
    %p38 = por %p36, %p37
    %p40 = scmp.ne.s32.totalorder %s23, %s39
    %p41 = scmp.eq.s32.totalorder %s15, 0
    %p42 = por %p40, %p41
    %s44 = sadd.s32 %s43, 1
    %p47 = scmp.eq.s32.totalorder %s9, 1
    %p48 = scmp.ne.s32.totalorder %s43, %s45
    %p49 = scmp.eq.s32.totalorder %s9, 0
    %p50 = por %p48, %p49
    %p51 = scmp.ne.s32.totalorder %s43, %s45
    %p52 = scmp.eq.s32.totalorder %s14, 1
    %p53 = por %p51, %p52
    %p54 = scmp.ne.s32.totalorder %s45, %s46
    %p55 = scmp.eq.s32.totalorder %s14, 0
    %p56 = por %p54, %p55
    %p57 = scmp.ne.s32.totalorder %s45, %s46
    %p58 = scmp.eq.s32.totalorder %s15, 1
    %p59 = por %p57, %p58
    %p61 = scmp.ne.s32.totalorder %s46, %s60
    %p62 = scmp.eq.s32.totalorder %s15, 0
    %p63 = por %p61, %p62
    %s65 = sadd.s32 %s64, 1
    %p68 = scmp.eq.s32.totalorder %s9, 1
    %p69 = scmp.ne.s32.totalorder %s64, %s66
    %p70 = scmp.eq.s32.totalorder %s9, 0
    %p71 = por %p69, %p70
    %p72 = scmp.ne.s32.totalorder %s64, %s66
    %p73 = scmp.eq.s32.totalorder %s14, 1
    %p74 = por %p72, %p73
    %p75 = scmp.ne.s32.totalorder %s66, %s67
    %p76 = scmp.eq.s32.totalorder %s14, 0
    %p77 = por %p75, %p76
    %p78 = scmp.ne.s32.totalorder %s66, %s67
    %p79 = scmp.eq.s32.totalorder %s15, 1
    %p80 = por %p78, %p79
    %p82 = scmp.ne.s32.totalorder %s67, %s81
    %p83 = scmp.eq.s32.totalorder %s15, 0
    %p84 = por %p82, %p83
    %s85 = ssub.s32 %s9, %s16
    %p86 = scmp.eq.s32.totalorder %s85, 0
    %s88 = sadd.s32 %s87, 1
    %s89 = scalar_select %p86, %s87, %s88
    %p92 = pneg %p86
    %p93 = scmp.eq.s32.totalorder %s9, 1
    %p94 = por %p92, %p93
    %p95 = scmp.ne.s32.totalorder %s87, %s90
    %p96 = scmp.eq.s32.totalorder %s9, 0
    %p97 = por %p95, %p96
    %p98 = scmp.ne.s32.totalorder %s87, %s90
    %p99 = scmp.eq.s32.totalorder %s14, 1
    %p100 = por %p98, %p99
    %p101 = scmp.ne.s32.totalorder %s90, %s91
    %p102 = scmp.eq.s32.totalorder %s14, 0
    %p103 = por %p101, %p102
    %p104 = scmp.ne.s32.totalorder %s90, %s91
    %p105 = scmp.eq.s32.totalorder %s15, 1
    %p106 = por %p104, %p105
    %p108 = scmp.ne.s32.totalorder %s91, %s107
    %p109 = scmp.eq.s32.totalorder %s15, 0
    %p110 = por %p108, %p109
    %p111 = scmp.le.s32.totalorder 1, %s9
    %p112 = scmp.lt.s32.totalorder %s9, 3
    %p113 = pnand %p111, %p112
    %p114 = pneg %p113
    // Predicated region
    $region9: #{_lambda_.15} parent=5 // pred_check
      _
    $region10: #{_lambda_.15} parent=5 // pred_check_branch
      %116 = sbr.rel (%p113) target = $region12
    $region11: #{_lambda_.15} parent=5 // pred_region
      %s117 = ssub.s32 %s9, 1
      // Predicated region
      $region13: #{_lambda_.15} parent=11 // pred_check
        %p118 = pneg %p56
      $region14: #{_lambda_.15} parent=11 // pred_check_branch
        %120 = sbr.rel (%p118) target = $region16
      $region15: #{_lambda_.15} parent=11 // pred_region
        _
      $region16: #{_lambda_.15} parent=11 // pred_fallthru
        _
      // Predicated region
      $region17: #{_lambda_.15} parent=11 // pred_check
        %p121 = pneg %p77
      $region18: #{_lambda_.15} parent=11 // pred_check_branch
        %123 = sbr.rel (%p121) target = $region20
      $region19: #{_lambda_.15} parent=11 // pred_region
        _
      $region20: #{_lambda_.15} parent=11 // pred_fallthru
        _
    $region12: #{_lambda_.15} parent=5 // pred_fallthru
      _
    %p124 = scmp.lt.s32.totalorder %s9, 2
    // Predicated region
    $region21: #{_lambda_.15} parent=5 // pred_check
      %p125 = pneg %p124
    $region22: #{_lambda_.15} parent=5 // pred_check_branch
      %127 = sbr.rel (%p125) target = $region24
    $region23: #{_lambda_.15} parent=5 // pred_region
      // Predicated region
      $region25: #{_lambda_.15} parent=23 // pred_check
        %p128 = pneg %p29
      $region26: #{_lambda_.15} parent=23 // pred_check_branch
        %130 = sbr.rel (%p128) target = $region28
      $region27: #{_lambda_.15} parent=23 // pred_region
        %s131 = smul.u32 16, %s9
        %p132 = scmp.lt.s32.totalorder %s131, 31
        %s133 = scalar_select %p132, %s131, 31
        %s134 = smul.addr %s133, 8
        %s135 = scalar_lea.vmem %s0, %s134
        %s136 = smul.u32 16, %s9
      $region28: #{_lambda_.15} parent=23 // pred_fallthru
        _
    $region24: #{_lambda_.15} parent=5 // pred_fallthru
      _
    %p137 = scmp.le.s32.totalorder 1, %s9
    %p138 = scmp.lt.s32.totalorder %s9, 3
    %p139 = pnand %p137, %p138
    %p140 = pneg %p139
    // Predicated region
    $region29: #{_lambda_.15} parent=5 // pred_check
      _
    $region30: #{_lambda_.15} parent=5 // pred_check_branch
      %142 = sbr.rel (%p139) target = $region32
    $region31: #{_lambda_.15} parent=5 // pred_region
      %s143 = ssub.s32 %s9, 1
      %s144 = smul.u32 16, %s14
      %p145 = scmp.lt.s32.totalorder %s144, 31
      %s146 = scalar_select %p145, %s144, 31
      %s147 = smul.addr %s146, 8
      %s148 = scalar_lea.vmem %s0, %s147
      %p149 = pneg %p35
      %p150 = pneg %p32
      %p151 = pneg %p56
      %p152 = pneg %p53
      %p153 = pneg %p77
      %p154 = pneg %p74
      %p155 = pneg %p103
      %p156 = pneg %p100
      %s157 = smul.u32 16, %s14
      %p158 = scmp.lt.s32.totalorder %s157, 31
      %s159 = scalar_select %p158, %s157, 31
      %s160 = smul.addr %s159, 8
      %s161 = scalar_lea.vmem %s3, %s160
      %s162 = smul.u32 16, %s14
      %p163 = scmp.lt.s32.totalorder %s162, 31
      %s164 = scalar_select %p163, %s162, 31
      %s165 = smul.addr %s164, 8
      %s166 = scalar_lea.vmem %s0, %s165
      %s167 = smul.u32 16, %s14
      %s168 = smul.u32 16, %s14
      %p169 = scmp.lt.s32.totalorder %s168, 31
      %s170 = scalar_select %p169, %s168, 31
      %s171 = smul.addr %s170, 8
      %s172 = scalar_lea.vmem %s3, %s171
      %s173 = smul.u32 16, %s14
      %v174 = vld [vmem:[%s166] sm:$0xff]
      %v175 = vld [vmem:[%s166 + $0x8] sm:$0xff]
      %v176 = vld [vmem:[%s166 + $0x10] sm:$0xff]
      %v177 = vld [vmem:[%s166 + $0x18] sm:$0xff]
      %v178 = vld [vmem:[%s166 + $0x20] sm:$0xff]
      %v179 = vld [vmem:[%s166 + $0x28] sm:$0xff]
      %v180 = vld [vmem:[%s166 + $0x30] sm:$0xff]
      %v181 = vld [vmem:[%s166 + $0x38] sm:$0xff]
      %v182 = vld [vmem:[%s166 + $0x40] sm:$0xff]
      %v183 = vld [vmem:[%s166 + $0x48] sm:$0xff]
      %v184 = vld [vmem:[%s166 + $0x50] sm:$0xff]
      %v185 = vld [vmem:[%s166 + $0x58] sm:$0xff]
      %v186 = vld [vmem:[%s166 + $0x60] sm:$0xff]
      %v187 = vld [vmem:[%s166 + $0x68] sm:$0xff]
      %v188 = vld [vmem:[%s166 + $0x70] sm:$0xff]
      %v189 = vld [vmem:[%s166 + $0x78] sm:$0xff]
      %v190 = vld [vmem:[%s1] sm:$0xff]
      %v191 = vld [vmem:[%s1 + $0x8] sm:$0xff]
      %v192 = vld [vmem:[%s2] sm:$0x1]
      %v194 = vlaneseq
      %v195 = vshrl.u32 %v194, 7
      %v196 = vsub.s32 0, %v195
      %v197 = vrot.slane %v192, %v196
      %vm199 = vcmask 130048
      %v201 = vsel %vm199, %v174, 0
      %v204 = vsel %vm199, %v175, 0
      %v207 = vsel %vm199, %v176, 0
      %v210 = vsel %vm199, %v177, 0
      %v213 = vsel %vm199, %v178, 0
      %v216 = vsel %vm199, %v179, 0
      %v219 = vsel %vm199, %v180, 0
      %v222 = vsel %vm199, %v181, 0
      %v225 = vsel %vm199, %v182, 0
      %v228 = vsel %vm199, %v183, 0
      %v231 = vsel %vm199, %v184, 0
      %v234 = vsel %vm199, %v185, 0
      %v237 = vsel %vm199, %v186, 0
      %v240 = vsel %vm199, %v187, 0
      %v243 = vsel %vm199, %v188, 0
      %v246 = vsel %vm199, %v189, 0
      %248 = vmatprep.subr.mxu0 0.0
      %249 = vmatpush1.msra.mxu0 0.0
      %250 = vmatprep.subr.mxu0 0.0
      %251 = vmatpush1.msra.mxu0 0.0
      %252 = vmatprep.subr.mxu0 0.0
      %253 = vmatpush1.msra.mxu0 0.0
      %254 = vmatprep.subr.mxu0 0.0
      %255 = vmatpush1.msra.mxu0 0.0
      %256 = vmatprep.subr.mxu0 0.0
      %257 = vmatpush1.msra.mxu0 0.0
      %258 = vmatprep.subr.mxu0 0.0
      %259 = vmatpush1.msra.mxu0 0.0
      %260 = vmatprep.subr.mxu0 0.0
      %261 = vmatpush1.msra.mxu0 0.0
      %262 = vmatprep.subr.mxu0 0.0
      %263 = vmatpush1.msra.mxu0 0.0
      %264 = vmatprep.subr.mxu0 0.0
      %265 = vmatpush1.msra.mxu0 0.0
      %266 = vmatprep.subr.mxu0 0.0
      %267 = vmatpush1.msra.mxu0 0.0
      %268 = vmatprep.subr.mxu0 0.0
      %269 = vmatpush1.msra.mxu0 0.0
      %270 = vmatprep.subr.mxu0 0.0
      %271 = vmatpush1.msra.mxu0 0.0
      %272 = vmatprep.subr.mxu0 0.0
      %273 = vmatpush1.msra.mxu0 0.0
      %274 = vmatprep.subr.mxu0 0.0
      %275 = vmatpush1.msra.mxu0 0.0
      %276 = vmatprep.subr.mxu0 0.0
      %277 = vmatpush1.msra.mxu0 %v191
      %278 = vmatprep.subr.mxu0 0.0
      %279 = vmatpush1.msra.mxu0 %v190
      %280 = vmatprep.subr.mxu0 0.0
      %281 = vmatpush2.msra.mxu0 0.0
      %282 = vmatprep.subr.mxu0 0.0
      %283 = vmatpush2.msra.mxu0 0.0
      %284 = vmatprep.subr.mxu0 0.0
      %285 = vmatpush2.msra.mxu0 0.0
      %286 = vmatprep.subr.mxu0 0.0
      %287 = vmatpush2.msra.mxu0 0.0
      %288 = vmatprep.subr.mxu0 0.0
      %289 = vmatpush2.msra.mxu0 0.0
      %290 = vmatprep.subr.mxu0 0.0
      %291 = vmatpush2.msra.mxu0 0.0
      %292 = vmatprep.subr.mxu0 0.0
      %293 = vmatpush2.msra.mxu0 0.0
      %294 = vmatprep.subr.mxu0 0.0
      %295 = vmatpush2.msra.mxu0 0.0
      %296 = vmatprep.subr.mxu0 0.0
      %297 = vmatpush2.msra.mxu0 0.0
      %298 = vmatprep.subr.mxu0 0.0
      %299 = vmatpush2.msra.mxu0 0.0
      %300 = vmatprep.subr.mxu0 0.0
      %301 = vmatpush2.msra.mxu0 0.0
      %302 = vmatprep.subr.mxu0 0.0
      %303 = vmatpush2.msra.mxu0 0.0
      %304 = vmatprep.subr.mxu0 0.0
      %305 = vmatpush2.msra.mxu0 0.0
      %306 = vmatprep.subr.mxu0 0.0
      %307 = vmatpush2.msra.mxu0 0.0
      %308 = vmatprep.subr.mxu0 0.0
      %309 = vmatpush2.msra.mxu0 0.0
      %310 = vmatprep.subr.mxu0 0.0
      %311 = vmatpush2.msra.mxu0 0.0
      %312 = vmatprep.mubr.f32.mxu0 0.0
      %313 = vmatmul.mubr.f32.gmra.mxu0 %v201
      %v314 = vpop.f32.mrf.mxu0
      %v315 = vadd.f32 %v197, %v314
      %v316 = vpop.f32.mrf.mxu0
      %317 = vmatprep.mubr.f32.mxu0 0.0
      %318 = vmatmul.mubr.f32.gmra.mxu0 %v204
      %v319 = vpop.f32.mrf.mxu0
      %v320 = vadd.f32 %v197, %v319
      %v321 = vpop.f32.mrf.mxu0
      %322 = vmatprep.mubr.f32.mxu0 0.0
      %323 = vmatmul.mubr.f32.gmra.mxu0 %v207
      %v324 = vpop.f32.mrf.mxu0
      %v325 = vadd.f32 %v197, %v324
      %v326 = vpop.f32.mrf.mxu0
      %327 = vmatprep.mubr.f32.mxu0 0.0
      %328 = vmatmul.mubr.f32.gmra.mxu0 %v210
      %v329 = vpop.f32.mrf.mxu0
      %v330 = vadd.f32 %v197, %v329
      %v331 = vpop.f32.mrf.mxu0
      %332 = vmatprep.mubr.f32.mxu0 0.0
      %333 = vmatmul.mubr.f32.gmra.mxu0 %v213
      %v334 = vpop.f32.mrf.mxu0
      %v335 = vadd.f32 %v197, %v334
      %v336 = vpop.f32.mrf.mxu0
      %337 = vmatprep.mubr.f32.mxu0 0.0
      %338 = vmatmul.mubr.f32.gmra.mxu0 %v216
      %v339 = vpop.f32.mrf.mxu0
      %v340 = vadd.f32 %v197, %v339
      %v341 = vpop.f32.mrf.mxu0
      %342 = vmatprep.mubr.f32.mxu0 0.0
      %343 = vmatmul.mubr.f32.gmra.mxu0 %v219
      %v344 = vpop.f32.mrf.mxu0
      %v345 = vadd.f32 %v197, %v344
      %v346 = vpop.f32.mrf.mxu0
      %347 = vmatprep.mubr.f32.mxu0 0.0
      %348 = vmatmul.mubr.f32.gmra.mxu0 %v222
      %v349 = vpop.f32.mrf.mxu0
      %v350 = vadd.f32 %v197, %v349
      %v351 = vpop.f32.mrf.mxu0
      %352 = vmatprep.mubr.f32.mxu0 0.0
      %353 = vmatmul.mubr.f32.gmra.mxu0 %v225
      %v354 = vpop.f32.mrf.mxu0
      %v355 = vadd.f32 %v197, %v354
      %v356 = vpop.f32.mrf.mxu0
      %357 = vmatprep.mubr.f32.mxu0 0.0
      %358 = vmatmul.mubr.f32.gmra.mxu0 %v228
      %v359 = vpop.f32.mrf.mxu0
      %v360 = vadd.f32 %v197, %v359
      %v361 = vpop.f32.mrf.mxu0
      %362 = vmatprep.mubr.f32.mxu0 0.0
      %363 = vmatmul.mubr.f32.gmra.mxu0 %v231
      %v364 = vpop.f32.mrf.mxu0
      %v365 = vadd.f32 %v197, %v364
      %v366 = vpop.f32.mrf.mxu0
      %367 = vmatprep.mubr.f32.mxu0 0.0
      %368 = vmatmul.mubr.f32.gmra.mxu0 %v234
      %v369 = vpop.f32.mrf.mxu0
      %v370 = vadd.f32 %v197, %v369
      %v371 = vpop.f32.mrf.mxu0
      %372 = vmatprep.mubr.f32.mxu0 0.0
      %373 = vmatmul.mubr.f32.gmra.mxu0 %v237
      %v374 = vpop.f32.mrf.mxu0
      %v375 = vadd.f32 %v197, %v374
      %v376 = vpop.f32.mrf.mxu0
      %377 = vmatprep.mubr.f32.mxu0 0.0
      %378 = vmatmul.mubr.f32.gmra.mxu0 %v240
      %v379 = vpop.f32.mrf.mxu0
      %v380 = vadd.f32 %v197, %v379
      %v381 = vpop.f32.mrf.mxu0
      %382 = vmatprep.mubr.f32.mxu0 0.0
      %383 = vmatmul.mubr.f32.gmra.mxu0 %v243
      %v384 = vpop.f32.mrf.mxu0
      %v385 = vadd.f32 %v197, %v384
      %v386 = vpop.f32.mrf.mxu0
      %387 = vmatprep.mubr.f32.mxu0 0.0
      %388 = vmatmul.mubr.f32.gmra.mxu0 %v246
      %v389 = vpop.f32.mrf.mxu0
      %v390 = vadd.f32 %v197, %v389
      %v391 = vpop.f32.mrf.mxu0
      %392 = vdwg.mxu0
      %393 = vst [vmem:[%s172] sm:$0xff] %v315
      %394 = vst [vmem:[%s172 + $0x8] sm:$0xff] %v320
      %395 = vst [vmem:[%s172 + $0x10] sm:$0xff] %v325
      %396 = vst [vmem:[%s172 + $0x18] sm:$0xff] %v330
      %397 = vst [vmem:[%s172 + $0x20] sm:$0xff] %v335
      %398 = vst [vmem:[%s172 + $0x28] sm:$0xff] %v340
      %399 = vst [vmem:[%s172 + $0x30] sm:$0xff] %v345
      %400 = vst [vmem:[%s172 + $0x38] sm:$0xff] %v350
      %401 = vst [vmem:[%s172 + $0x40] sm:$0xff] %v355
      %402 = vst [vmem:[%s172 + $0x48] sm:$0xff] %v360
      %403 = vst [vmem:[%s172 + $0x50] sm:$0xff] %v365
      %404 = vst [vmem:[%s172 + $0x58] sm:$0xff] %v370
      %405 = vst [vmem:[%s172 + $0x60] sm:$0xff] %v375
      %406 = vst [vmem:[%s172 + $0x68] sm:$0xff] %v380
      %407 = vst [vmem:[%s172 + $0x70] sm:$0xff] %v385
      %408 = vst [vmem:[%s172 + $0x78] sm:$0xff] %v390
      %s409 = smul.u32 16, %s14
      %p410 = scmp.lt.s32.totalorder %s409, 31
      %s411 = scalar_select %p410, %s409, 31
      %s412 = smul.addr %s411, 8
      %s413 = scalar_lea.vmem %s3, %s412
      // Predicated region
      $region33: #{_lambda_.15} parent=31 // pred_check
        %p414 = pneg %p100
      $region34: #{_lambda_.15} parent=31 // pred_check_branch
        %416 = sbr.rel (%p414) target = $region36
      $region35: #{_lambda_.15} parent=31 // pred_region
        %s417 = smul.u32 16, %s14
      $region36: #{_lambda_.15} parent=31 // pred_fallthru
        _
    $region32: #{_lambda_.15} parent=5 // pred_fallthru
      _
    %p418 = scmp.le.s32.totalorder 2, %s9
    // Predicated region
    $region37: #{_lambda_.15} parent=5 // pred_check
      %p419 = pneg %p418
    $region38: #{_lambda_.15} parent=5 // pred_check_branch
      %421 = sbr.rel (%p419) target = $region40
    $region39: #{_lambda_.15} parent=5 // pred_region
      %s422 = ssub.s32 %s9, 2
      // Predicated region
      $region41: #{_lambda_.15} parent=39 // pred_check
        %p423 = pneg %p106
      $region42: #{_lambda_.15} parent=39 // pred_check_branch
        %425 = sbr.rel (%p423) target = $region44
      $region43: #{_lambda_.15} parent=39 // pred_region
        %s426 = smul.u32 16, %s15
        %p427 = scmp.lt.s32.totalorder %s426, 31
        %s428 = scalar_select %p427, %s426, 31
        %s429 = smul.addr %s428, 8
        %s430 = scalar_lea.vmem %s3, %s429
      $region44: #{_lambda_.15} parent=39 // pred_fallthru
        _
    $region40: #{_lambda_.15} parent=5 // pred_fallthru
      _
  $region6: #{_lambda_.15} parent=0 // loop_footer
    %s13 = sadd.s32 1, %s9
  $region7: #{_lambda_.15} parent=0 // loop_footer_branch
    %8 = sbr.rel target = $region3
  $region8: #{_lambda_.15} parent=0 // loop_exit
    _

// kernel: _lambda_.17
$region0: #{_lambda_.17}
  #allocation0 [shape = 'u32[]', space=smem, size = 0x4, offset = 0x4, fixed_abs, tag = 'smem constant byte address 0x4 - core index']
  #allocation1 [shape = 'u32[144,128]{1,0:T(1,128)}', space=vmem, size = 0x12000, scoped, tag = 'internal scratch']
  %s0 = inlined_call_operand.vmem [shape: f32[8,32,32], index: 0, kind: input, shape index: {}, may-alias: {0,1}]
  %s1 = inlined_call_operand.vmem [shape: f32[8,32,32], index: 1, kind: input, shape index: {}, may-alias: {0,1}]
  %s2 = inlined_call_operand.vmem [shape: f32[32,128], index: 2, kind: input, shape index: {}]
  %s3 = inlined_call_operand.vmem [shape: f32[1,128], index: 3, kind: input, shape index: {}]
  %s4 = inlined_call_operand.vmem [shape: f32[8,32,128], index: 4, kind: output, shape index: {}]
  %s5 = sld [smem:[#allocation0]]
  $region49: #{_lambda_.17} parent=0
    _
  %s7 = ssub.s32 1, %s5
  %s8 = scalar_select 0, %s7, %s5
  loop: start=0, step=1, limit=10
  $region2: #{_lambda_.17} parent=0 // loop_pre_header
    _
  $region3: #{_lambda_.17} parent=0 // loop_header
    %s10 = sphi 0, %s14
    %p11 = scmp.ge.s32.totalorder %s10, 10
    %s17 = sphi 0, %s29
    %s18 = sphi 0, %s25
    %s19 = sphi 0, %s17
    %s20 = sphi 0, %s18
    %s21 = sphi 0, %s19
    %s22 = sphi 0, %s20
    %s34 = sphi 0, %s36
    %s37 = sphi 0, %s34
    %s38 = sphi 0, %s37
    %s54 = sphi 0, %s38
    %s64 = sphi 0, %s66
    %s67 = sphi 0, %s64
    %s68 = sphi 0, %s67
    %s84 = sphi 0, %s68
    %s88 = sphi 0, %s88
    %s90 = sphi 0, %s88
    %s91 = sphi 0, %s90
    %s105 = sphi 0, %s91
    %s109 = sphi 0, %s109
    %s111 = sphi 0, %s109
    %s112 = sphi 0, %s111
    %s126 = sphi 0, %s112
    %s134 = sphi 0, %s136
    %s137 = sphi 0, %s134
    %s138 = sphi 0, %s137
    %s154 = sphi 0, %s138
  $region4: #{_lambda_.17} parent=0 // loop_header_branch
    %13 = sbr.rel (%p11) target = $region8
  $region5: #{_lambda_.17} parent=0 // loop_body
    %s15 = ssub.s32 %s10, 1
    %s16 = ssub.s32 %s10, 2
    %s23 = sadd.s32 1, %s18
    %p24 = scmp.ge.s32.totalorder %s23, 1
    %s25 = scalar_select %p24, 0, %s23
    %s26 = sadd.s32 1, %s17
    %s27 = scalar_select %p24, %s26, %s17
    %p28 = scmp.ge.s32.totalorder %s27, 8
    %s29 = scalar_select %p28, 0, %s27
    %s30 = ssub.s32 %s17, %s29
    %s31 = ssub.s32 %s18, %s25
    %s32 = sor.u32 %s30, %s31
    %p33 = scmp.eq.s32.totalorder %s32, 0
    %s35 = sadd.s32 %s34, 1
    %s36 = scalar_select %p33, %s34, %s35
    %p39 = pneg %p33
    %p40 = scmp.eq.s32.totalorder %s10, 7
    %p41 = por %p39, %p40
    %p42 = scmp.ne.s32.totalorder %s34, %s37
    %p43 = scmp.eq.s32.totalorder %s10, 0
    %p44 = por %p42, %p43
    %p45 = scmp.ne.s32.totalorder %s34, %s37
    %p46 = scmp.eq.s32.totalorder %s15, 7
    %p47 = por %p45, %p46
    %p48 = scmp.ne.s32.totalorder %s37, %s38
    %p49 = scmp.eq.s32.totalorder %s15, 0
    %p50 = por %p48, %p49
    %p51 = scmp.ne.s32.totalorder %s37, %s38
    %p52 = scmp.eq.s32.totalorder %s16, 7
    %p53 = por %p51, %p52
    %p55 = scmp.ne.s32.totalorder %s38, %s54
    %p56 = scmp.eq.s32.totalorder %s16, 0
    %p57 = por %p55, %p56
    %s58 = ssub.s32 7, %s17
    %s59 = ssub.s32 7, %s29
    %s60 = ssub.s32 %s58, %s59
    %s61 = ssub.s32 %s18, %s25
    %s62 = sor.u32 %s60, %s61
    %p63 = scmp.eq.s32.totalorder %s62, 0
    %s65 = sadd.s32 %s64, 1
    %s66 = scalar_select %p63, %s64, %s65
    %p69 = pneg %p63
    %p70 = scmp.eq.s32.totalorder %s10, 7
    %p71 = por %p69, %p70
    %p72 = scmp.ne.s32.totalorder %s64, %s67
    %p73 = scmp.eq.s32.totalorder %s10, 0
    %p74 = por %p72, %p73
    %p75 = scmp.ne.s32.totalorder %s64, %s67
    %p76 = scmp.eq.s32.totalorder %s15, 7
    %p77 = por %p75, %p76
    %p78 = scmp.ne.s32.totalorder %s67, %s68
    %p79 = scmp.eq.s32.totalorder %s15, 0
    %p80 = por %p78, %p79
    %p81 = scmp.ne.s32.totalorder %s67, %s68
    %p82 = scmp.eq.s32.totalorder %s16, 7
    %p83 = por %p81, %p82
    %p85 = scmp.ne.s32.totalorder %s68, %s84
    %p86 = scmp.eq.s32.totalorder %s16, 0
    %p87 = por %p85, %p86
    %s89 = sadd.s32 %s88, 1
    %p92 = scmp.eq.s32.totalorder %s10, 7
    %p93 = scmp.ne.s32.totalorder %s88, %s90
    %p94 = scmp.eq.s32.totalorder %s10, 0
    %p95 = por %p93, %p94
    %p96 = scmp.ne.s32.totalorder %s88, %s90
    %p97 = scmp.eq.s32.totalorder %s15, 7
    %p98 = por %p96, %p97
    %p99 = scmp.ne.s32.totalorder %s90, %s91
    %p100 = scmp.eq.s32.totalorder %s15, 0
    %p101 = por %p99, %p100
    %p102 = scmp.ne.s32.totalorder %s90, %s91
    %p103 = scmp.eq.s32.totalorder %s16, 7
    %p104 = por %p102, %p103
    %p106 = scmp.ne.s32.totalorder %s91, %s105
    %p107 = scmp.eq.s32.totalorder %s16, 0
    %p108 = por %p106, %p107
    %s110 = sadd.s32 %s109, 1
    %p113 = scmp.eq.s32.totalorder %s10, 7
    %p114 = scmp.ne.s32.totalorder %s109, %s111
    %p115 = scmp.eq.s32.totalorder %s10, 0
    %p116 = por %p114, %p115
    %p117 = scmp.ne.s32.totalorder %s109, %s111
    %p118 = scmp.eq.s32.totalorder %s15, 7
    %p119 = por %p117, %p118
    %p120 = scmp.ne.s32.totalorder %s111, %s112
    %p121 = scmp.eq.s32.totalorder %s15, 0
    %p122 = por %p120, %p121
    %p123 = scmp.ne.s32.totalorder %s111, %s112
    %p124 = scmp.eq.s32.totalorder %s16, 7
    %p125 = por %p123, %p124
    %p127 = scmp.ne.s32.totalorder %s112, %s126
    %p128 = scmp.eq.s32.totalorder %s16, 0
    %p129 = por %p127, %p128
    %s130 = ssub.s32 %s17, %s29
    %s131 = ssub.s32 %s18, %s25
    %s132 = sor.u32 %s130, %s131
    %p133 = scmp.eq.s32.totalorder %s132, 0
    %s135 = sadd.s32 %s134, 1
    %s136 = scalar_select %p133, %s134, %s135
    %p139 = pneg %p133
    %p140 = scmp.eq.s32.totalorder %s10, 7
    %p141 = por %p139, %p140
    %p142 = scmp.ne.s32.totalorder %s134, %s137
    %p143 = scmp.eq.s32.totalorder %s10, 0
    %p144 = por %p142, %p143
    %p145 = scmp.ne.s32.totalorder %s134, %s137
    %p146 = scmp.eq.s32.totalorder %s15, 7
    %p147 = por %p145, %p146
    %p148 = scmp.ne.s32.totalorder %s137, %s138
    %p149 = scmp.eq.s32.totalorder %s15, 0
    %p150 = por %p148, %p149
    %p151 = scmp.ne.s32.totalorder %s137, %s138
    %p152 = scmp.eq.s32.totalorder %s16, 7
    %p153 = por %p151, %p152
    %p155 = scmp.ne.s32.totalorder %s138, %s154
    %p156 = scmp.eq.s32.totalorder %s16, 0
    %p157 = por %p155, %p156
    %p158 = scmp.le.s32.totalorder 1, %s10
    %p159 = scmp.lt.s32.totalorder %s10, 9
    %p160 = pnand %p158, %p159
    %p161 = pneg %p160
    // Predicated region
    $region9: #{_lambda_.17} parent=5 // pred_check
      _
    $region10: #{_lambda_.17} parent=5 // pred_check_branch
      %163 = sbr.rel (%p160) target = $region12
    $region11: #{_lambda_.17} parent=5 // pred_region
      %s164 = ssub.s32 %s10, 1
      // Predicated region
      $region13: #{_lambda_.17} parent=11 // pred_check
        %p165 = pneg %p101
      $region14: #{_lambda_.17} parent=11 // pred_check_branch
        %167 = sbr.rel (%p165) target = $region16
      $region15: #{_lambda_.17} parent=11 // pred_region
        _
      $region16: #{_lambda_.17} parent=11 // pred_fallthru
        _
      // Predicated region
      $region17: #{_lambda_.17} parent=11 // pred_check
        %p168 = pneg %p122
      $region18: #{_lambda_.17} parent=11 // pred_check_branch
        %170 = sbr.rel (%p168) target = $region20
      $region19: #{_lambda_.17} parent=11 // pred_region
        _
      $region20: #{_lambda_.17} parent=11 // pred_fallthru
        _
    $region12: #{_lambda_.17} parent=5 // pred_fallthru
      _
    %p171 = scmp.lt.s32.totalorder %s10, 8
    // Predicated region
    $region21: #{_lambda_.17} parent=5 // pred_check
      %p172 = pneg %p171
    $region22: #{_lambda_.17} parent=5 // pred_check_branch
      %174 = sbr.rel (%p172) target = $region24
    $region23: #{_lambda_.17} parent=5 // pred_region
      // Predicated region
      $region25: #{_lambda_.17} parent=23 // pred_check
        %p175 = pneg %p44
      $region26: #{_lambda_.17} parent=23 // pred_check_branch
        %177 = sbr.rel (%p175) target = $region28
      $region27: #{_lambda_.17} parent=23 // pred_region
        %s178 = smul.u32 4, %s18
        %p179 = scmp.lt.s32.totalorder %s17, 7
        %s180 = scalar_select %p179, %s17, 7
        %p181 = scmp.lt.s32.totalorder %s178, 3
        %s182 = scalar_select %p181, %s178, 3
        %s183 = smul.addr %s180, 4
        %s184 = sadd.s32 %s182, %s183
        %s185 = smul.addr %s184, 8
        %s186 = scalar_lea.vmem %s0, %s185
        %s187 = smul.u32 4, %s18
      $region28: #{_lambda_.17} parent=23 // pred_fallthru
        _
      // Predicated region
      $region29: #{_lambda_.17} parent=23 // pred_check
        %p188 = pneg %p74
      $region30: #{_lambda_.17} parent=23 // pred_check_branch
        %190 = sbr.rel (%p188) target = $region32
      $region31: #{_lambda_.17} parent=23 // pred_region
        %s191 = ssub.s32 7, %s17
        %s192 = smul.u32 4, %s18
        %p193 = scmp.lt.s32.totalorder %s191, 7
        %s194 = scalar_select %p193, %s191, 7
        %p195 = scmp.lt.s32.totalorder %s192, 3
        %s196 = scalar_select %p195, %s192, 3
        %s197 = smul.addr %s194, 4
        %s198 = sadd.s32 %s196, %s197
        %s199 = smul.addr %s198, 8
        %s200 = scalar_lea.vmem %s1, %s199
        %s201 = ssub.s32 7, %s17
        %s202 = smul.u32 4, %s18
      $region32: #{_lambda_.17} parent=23 // pred_fallthru
        _
    $region24: #{_lambda_.17} parent=5 // pred_fallthru
      _
    %p203 = scmp.le.s32.totalorder 1, %s10
    %p204 = scmp.lt.s32.totalorder %s10, 9
    %p205 = pnand %p203, %p204
    %p206 = pneg %p205
    // Predicated region
    $region33: #{_lambda_.17} parent=5 // pred_check
      _
    $region34: #{_lambda_.17} parent=5 // pred_check_branch
      %208 = sbr.rel (%p205) target = $region36
    $region35: #{_lambda_.17} parent=5 // pred_region
      %s209 = ssub.s32 %s10, 1
      %s210 = smul.u32 4, %s20
      %p211 = scmp.lt.s32.totalorder %s19, 7
      %s212 = scalar_select %p211, %s19, 7
      %p213 = scmp.lt.s32.totalorder %s210, 3
      %s214 = scalar_select %p213, %s210, 3
      %s215 = smul.addr %s212, 4
      %s216 = sadd.s32 %s214, %s215
      %s217 = smul.addr %s216, 8
      %s218 = scalar_lea.vmem %s0, %s217
      %p219 = pneg %p50
      %p220 = pneg %p47
      %s221 = ssub.s32 7, %s19
      %s222 = smul.u32 4, %s20
      %p223 = scmp.lt.s32.totalorder %s221, 7
      %s224 = scalar_select %p223, %s221, 7
      %p225 = scmp.lt.s32.totalorder %s222, 3
      %s226 = scalar_select %p225, %s222, 3
      %s227 = smul.addr %s224, 4
      %s228 = sadd.s32 %s226, %s227
      %s229 = smul.addr %s228, 8
      %s230 = scalar_lea.vmem %s1, %s229
      %p231 = pneg %p80
      %p232 = pneg %p77
      %p233 = pneg %p101
      %p234 = pneg %p98
      %p235 = pneg %p122
      %p236 = pneg %p119
      %p237 = pneg %p150
      %p238 = pneg %p147
      %s239 = smul.u32 4, %s20
      %p240 = scmp.lt.s32.totalorder %s19, 7
      %s241 = scalar_select %p240, %s19, 7
      %p242 = scmp.lt.s32.totalorder %s239, 3
      %s243 = scalar_select %p242, %s239, 3
      %s244 = smul.addr %s241, 4
      %s245 = sadd.s32 %s243, %s244
      %s246 = smul.addr %s245, 8
      %s247 = scalar_lea.vmem %s4, %s246
      %s248 = smul.u32 4, %s20
      %p249 = scmp.lt.s32.totalorder %s19, 7
      %s250 = scalar_select %p249, %s19, 7
      %p251 = scmp.lt.s32.totalorder %s248, 3
      %s252 = scalar_select %p251, %s248, 3
      %s253 = smul.addr %s250, 4
      %s254 = sadd.s32 %s252, %s253
      %s255 = smul.addr %s254, 8
      %s256 = scalar_lea.vmem %s0, %s255
      %s257 = smul.u32 4, %s20
      %s258 = ssub.s32 7, %s19
      %s259 = smul.u32 4, %s20
      %p260 = scmp.lt.s32.totalorder %s258, 7
      %s261 = scalar_select %p260, %s258, 7
      %p262 = scmp.lt.s32.totalorder %s259, 3
      %s263 = scalar_select %p262, %s259, 3
      %s264 = smul.addr %s261, 4
      %s265 = sadd.s32 %s263, %s264
      %s266 = smul.addr %s265, 8
      %s267 = scalar_lea.vmem %s1, %s266
      %s268 = ssub.s32 7, %s19
      %s269 = smul.u32 4, %s20
      %s270 = smul.u32 4, %s20
      %p271 = scmp.lt.s32.totalorder %s19, 7
      %s272 = scalar_select %p271, %s19, 7
      %p273 = scmp.lt.s32.totalorder %s270, 3
      %s274 = scalar_select %p273, %s270, 3
      %s275 = smul.addr %s272, 4
      %s276 = sadd.s32 %s274, %s275
      %s277 = smul.addr %s276, 8
      %s278 = scalar_lea.vmem %s4, %s277
      %s279 = smul.u32 4, %s20
      %v280 = vld [vmem:[%s256] sm:$0xff]
      %v281 = vld [vmem:[%s256 + $0x8] sm:$0xff]
      %v282 = vld [vmem:[%s256 + $0x10] sm:$0xff]
      %v283 = vld [vmem:[%s256 + $0x18] sm:$0xff]
      %v284 = vld [vmem:[%s267] sm:$0xff]
      %v285 = vld [vmem:[%s267 + $0x8] sm:$0xff]
      %v286 = vld [vmem:[%s267 + $0x10] sm:$0xff]
      %v287 = vld [vmem:[%s267 + $0x18] sm:$0xff]
      %vm288 = vcmask 130048
      %v289 = vsel %vm288, %v280, %v284
      %v290 = vsel %vm288, %v281, %v285
      %v291 = vsel %vm288, %v282, %v286
      %v292 = vsel %vm288, %v283, %v287
      %v293 = vld [vmem:[%s2] sm:$0xff]
      %v294 = vld [vmem:[%s2 + $0x8] sm:$0xff]
      %v295 = vld [vmem:[%s2 + $0x10] sm:$0xff]
      %v296 = vld [vmem:[%s2 + $0x18] sm:$0xff]
      %v297 = vld [vmem:[%s3] sm:$0x1]
      %v299 = vlaneseq
      %v300 = vshrl.u32 %v299, 7
      %v301 = vsub.s32 0, %v300
      %v302 = vrot.slane %v297, %v301
      %vm304 = vcmask 261120
      %v306 = vsel %vm304, %v289, 0
      %v309 = vsel %vm304, %v290, 0
      %v312 = vsel %vm304, %v291, 0
      %v315 = vsel %vm304, %v292, 0
      %317 = vmatprep.subr.mxu0 0.0
      %318 = vmatpush1.msra.mxu0 0.0
      %319 = vmatprep.subr.mxu0 0.0
      %320 = vmatpush1.msra.mxu0 0.0
      %321 = vmatprep.subr.mxu0 0.0
      %322 = vmatpush1.msra.mxu0 0.0
      %323 = vmatprep.subr.mxu0 0.0
      %324 = vmatpush1.msra.mxu0 0.0
      %325 = vmatprep.subr.mxu0 0.0
      %326 = vmatpush1.msra.mxu0 0.0
      %327 = vmatprep.subr.mxu0 0.0
      %328 = vmatpush1.msra.mxu0 0.0
      %329 = vmatprep.subr.mxu0 0.0
      %330 = vmatpush1.msra.mxu0 0.0
      %331 = vmatprep.subr.mxu0 0.0
      %332 = vmatpush1.msra.mxu0 0.0
      %333 = vmatprep.subr.mxu0 0.0
      %334 = vmatpush1.msra.mxu0 0.0
      %335 = vmatprep.subr.mxu0 0.0
      %336 = vmatpush1.msra.mxu0 0.0
      %337 = vmatprep.subr.mxu0 0.0
      %338 = vmatpush1.msra.mxu0 0.0
      %339 = vmatprep.subr.mxu0 0.0
      %340 = vmatpush1.msra.mxu0 0.0
      %341 = vmatprep.subr.mxu0 0.0
      %342 = vmatpush1.msra.mxu0 %v296
      %343 = vmatprep.subr.mxu0 0.0
      %344 = vmatpush1.msra.mxu0 %v295
      %345 = vmatprep.subr.mxu0 0.0
      %346 = vmatpush1.msra.mxu0 %v294
      %347 = vmatprep.subr.mxu0 0.0
      %348 = vmatpush1.msra.mxu0 %v293
      %349 = vmatprep.subr.mxu0 0.0
      %350 = vmatpush2.msra.mxu0 0.0
      %351 = vmatprep.subr.mxu0 0.0
      %352 = vmatpush2.msra.mxu0 0.0
      %353 = vmatprep.subr.mxu0 0.0
      %354 = vmatpush2.msra.mxu0 0.0
      %355 = vmatprep.subr.mxu0 0.0
      %356 = vmatpush2.msra.mxu0 0.0
      %357 = vmatprep.subr.mxu0 0.0
      %358 = vmatpush2.msra.mxu0 0.0
      %359 = vmatprep.subr.mxu0 0.0
      %360 = vmatpush2.msra.mxu0 0.0
      %361 = vmatprep.subr.mxu0 0.0
      %362 = vmatpush2.msra.mxu0 0.0
      %363 = vmatprep.subr.mxu0 0.0
      %364 = vmatpush2.msra.mxu0 0.0
      %365 = vmatprep.subr.mxu0 0.0
      %366 = vmatpush2.msra.mxu0 0.0
      %367 = vmatprep.subr.mxu0 0.0
      %368 = vmatpush2.msra.mxu0 0.0
      %369 = vmatprep.subr.mxu0 0.0
      %370 = vmatpush2.msra.mxu0 0.0
      %371 = vmatprep.subr.mxu0 0.0
      %372 = vmatpush2.msra.mxu0 0.0
      %373 = vmatprep.subr.mxu0 0.0
      %374 = vmatpush2.msra.mxu0 0.0
      %375 = vmatprep.subr.mxu0 0.0
      %376 = vmatpush2.msra.mxu0 0.0
      %377 = vmatprep.subr.mxu0 0.0
      %378 = vmatpush2.msra.mxu0 0.0
      %379 = vmatprep.subr.mxu0 0.0
      %380 = vmatpush2.msra.mxu0 0.0
      %381 = vmatprep.mubr.f32.mxu0 0.0
      %382 = vmatmul.mubr.f32.gmra.mxu0 %v306
      %v383 = vpop.f32.mrf.mxu0
      %v384 = vadd.f32 %v302, %v383
      %v385 = vpop.f32.mrf.mxu0
      %386 = vmatprep.mubr.f32.mxu0 0.0
      %387 = vmatmul.mubr.f32.gmra.mxu0 %v309
      %v388 = vpop.f32.mrf.mxu0
      %v389 = vadd.f32 %v302, %v388
      %v390 = vpop.f32.mrf.mxu0
      %391 = vmatprep.mubr.f32.mxu0 0.0
      %392 = vmatmul.mubr.f32.gmra.mxu0 %v312
      %v393 = vpop.f32.mrf.mxu0
      %v394 = vadd.f32 %v302, %v393
      %v395 = vpop.f32.mrf.mxu0
      %396 = vmatprep.mubr.f32.mxu0 0.0
      %397 = vmatmul.mubr.f32.gmra.mxu0 %v315
      %v398 = vpop.f32.mrf.mxu0
      %v399 = vadd.f32 %v302, %v398
      %v400 = vpop.f32.mrf.mxu0
      %401 = vdwg.mxu0
      %402 = vst [vmem:[%s278] sm:$0xff] %v384
      %403 = vst [vmem:[%s278 + $0x8] sm:$0xff] %v389
      %404 = vst [vmem:[%s278 + $0x10] sm:$0xff] %v394
      %405 = vst [vmem:[%s278 + $0x18] sm:$0xff] %v399
      %s406 = smul.u32 4, %s20
      %p407 = scmp.lt.s32.totalorder %s19, 7
      %s408 = scalar_select %p407, %s19, 7
      %p409 = scmp.lt.s32.totalorder %s406, 3
      %s410 = scalar_select %p409, %s406, 3
      %s411 = smul.addr %s408, 4
      %s412 = sadd.s32 %s410, %s411
      %s413 = smul.addr %s412, 8
      %s414 = scalar_lea.vmem %s4, %s413
      // Predicated region
      $region37: #{_lambda_.17} parent=35 // pred_check
        %p415 = pneg %p147
      $region38: #{_lambda_.17} parent=35 // pred_check_branch
        %417 = sbr.rel (%p415) target = $region40
      $region39: #{_lambda_.17} parent=35 // pred_region
        %s418 = smul.u32 4, %s20
      $region40: #{_lambda_.17} parent=35 // pred_fallthru
        _
    $region36: #{_lambda_.17} parent=5 // pred_fallthru
      _
    %p419 = scmp.le.s32.totalorder 2, %s10
    // Predicated region
    $region41: #{_lambda_.17} parent=5 // pred_check
      %p420 = pneg %p419
    $region42: #{_lambda_.17} parent=5 // pred_check_branch
      %422 = sbr.rel (%p420) target = $region44
    $region43: #{_lambda_.17} parent=5 // pred_region
      %s423 = ssub.s32 %s10, 2
      // Predicated region
      $region45: #{_lambda_.17} parent=43 // pred_check
        %p424 = pneg %p153
      $region46: #{_lambda_.17} parent=43 // pred_check_branch
        %426 = sbr.rel (%p424) target = $region48
      $region47: #{_lambda_.17} parent=43 // pred_region
        %s427 = smul.u32 4, %s22
        %p428 = scmp.lt.s32.totalorder %s21, 7
        %s429 = scalar_select %p428, %s21, 7
        %p430 = scmp.lt.s32.totalorder %s427, 3
        %s431 = scalar_select %p430, %s427, 3
        %s432 = smul.addr %s429, 4
        %s433 = sadd.s32 %s431, %s432
        %s434 = smul.addr %s433, 8
        %s435 = scalar_lea.vmem %s4, %s434
      $region48: #{_lambda_.17} parent=43 // pred_fallthru
        _
    $region44: #{_lambda_.17} parent=5 // pred_fallthru
      _
  $region6: #{_lambda_.17} parent=0 // loop_footer
    %s14 = sadd.s32 1, %s10
  $region7: #{_lambda_.17} parent=0 // loop_footer_branch
    %9 = sbr.rel target = $region3
  $region8: #{_lambda_.17} parent=0 // loop_exit
    _

// kernel: _lambda_.19
$region0: #{_lambda_.19}
  #allocation0 [shape = 'u32[]', space=smem, size = 0x4, offset = 0x4, fixed_abs, tag = 'smem constant byte address 0x4 - core index']
  #allocation1 [shape = 'u32[144,128]{1,0:T(1,128)}', space=vmem, size = 0x12000, scoped, tag = 'internal scratch']
  %s0 = inlined_call_operand.vmem [shape: f32[8,32,32], index: 0, kind: input, shape index: {}, may-alias: {0,1}]
  %s1 = inlined_call_operand.vmem [shape: f32[8,32,32], index: 1, kind: input, shape index: {}, may-alias: {0,1}]
  %s2 = inlined_call_operand.vmem [shape: f32[32,16], index: 2, kind: input, shape index: {}]
  %s3 = inlined_call_operand.vmem [shape: f32[1,16], index: 3, kind: input, shape index: {}]
  %s4 = inlined_call_operand.vmem [shape: f32[8,32,16], index: 4, kind: output, shape index: {}]
  %s5 = sld [smem:[#allocation0]]
  $region49: #{_lambda_.19} parent=0
    _
  %s7 = ssub.s32 1, %s5
  %s8 = scalar_select 0, %s7, %s5
  loop: start=0, step=1, limit=10
  $region2: #{_lambda_.19} parent=0 // loop_pre_header
    _
  $region3: #{_lambda_.19} parent=0 // loop_header
    %s10 = sphi 0, %s14
    %p11 = scmp.ge.s32.totalorder %s10, 10
    %s17 = sphi 0, %s29
    %s18 = sphi 0, %s25
    %s19 = sphi 0, %s17
    %s20 = sphi 0, %s18
    %s21 = sphi 0, %s19
    %s22 = sphi 0, %s20
    %s34 = sphi 0, %s36
    %s37 = sphi 0, %s34
    %s38 = sphi 0, %s37
    %s54 = sphi 0, %s38
    %s64 = sphi 0, %s66
    %s67 = sphi 0, %s64
    %s68 = sphi 0, %s67
    %s84 = sphi 0, %s68
    %s88 = sphi 0, %s88
    %s90 = sphi 0, %s88
    %s91 = sphi 0, %s90
    %s105 = sphi 0, %s91
    %s109 = sphi 0, %s109
    %s111 = sphi 0, %s109
    %s112 = sphi 0, %s111
    %s126 = sphi 0, %s112
    %s134 = sphi 0, %s136
    %s137 = sphi 0, %s134
    %s138 = sphi 0, %s137
    %s154 = sphi 0, %s138
  $region4: #{_lambda_.19} parent=0 // loop_header_branch
    %13 = sbr.rel (%p11) target = $region8
  $region5: #{_lambda_.19} parent=0 // loop_body
    %s15 = ssub.s32 %s10, 1
    %s16 = ssub.s32 %s10, 2
    %s23 = sadd.s32 1, %s18
    %p24 = scmp.ge.s32.totalorder %s23, 1
    %s25 = scalar_select %p24, 0, %s23
    %s26 = sadd.s32 1, %s17
    %s27 = scalar_select %p24, %s26, %s17
    %p28 = scmp.ge.s32.totalorder %s27, 8
    %s29 = scalar_select %p28, 0, %s27
    %s30 = ssub.s32 %s17, %s29
    %s31 = ssub.s32 %s18, %s25
    %s32 = sor.u32 %s30, %s31
    %p33 = scmp.eq.s32.totalorder %s32, 0
    %s35 = sadd.s32 %s34, 1
    %s36 = scalar_select %p33, %s34, %s35
    %p39 = pneg %p33
    %p40 = scmp.eq.s32.totalorder %s10, 7
    %p41 = por %p39, %p40
    %p42 = scmp.ne.s32.totalorder %s34, %s37
    %p43 = scmp.eq.s32.totalorder %s10, 0
    %p44 = por %p42, %p43
    %p45 = scmp.ne.s32.totalorder %s34, %s37
    %p46 = scmp.eq.s32.totalorder %s15, 7
    %p47 = por %p45, %p46
    %p48 = scmp.ne.s32.totalorder %s37, %s38
    %p49 = scmp.eq.s32.totalorder %s15, 0
    %p50 = por %p48, %p49
    %p51 = scmp.ne.s32.totalorder %s37, %s38
    %p52 = scmp.eq.s32.totalorder %s16, 7
    %p53 = por %p51, %p52
    %p55 = scmp.ne.s32.totalorder %s38, %s54
    %p56 = scmp.eq.s32.totalorder %s16, 0
    %p57 = por %p55, %p56
    %s58 = ssub.s32 7, %s17
    %s59 = ssub.s32 7, %s29
    %s60 = ssub.s32 %s58, %s59
    %s61 = ssub.s32 %s18, %s25
    %s62 = sor.u32 %s60, %s61
    %p63 = scmp.eq.s32.totalorder %s62, 0
    %s65 = sadd.s32 %s64, 1
    %s66 = scalar_select %p63, %s64, %s65
    %p69 = pneg %p63
    %p70 = scmp.eq.s32.totalorder %s10, 7
    %p71 = por %p69, %p70
    %p72 = scmp.ne.s32.totalorder %s64, %s67
    %p73 = scmp.eq.s32.totalorder %s10, 0
    %p74 = por %p72, %p73
    %p75 = scmp.ne.s32.totalorder %s64, %s67
    %p76 = scmp.eq.s32.totalorder %s15, 7
    %p77 = por %p75, %p76
    %p78 = scmp.ne.s32.totalorder %s67, %s68
    %p79 = scmp.eq.s32.totalorder %s15, 0
    %p80 = por %p78, %p79
    %p81 = scmp.ne.s32.totalorder %s67, %s68
    %p82 = scmp.eq.s32.totalorder %s16, 7
    %p83 = por %p81, %p82
    %p85 = scmp.ne.s32.totalorder %s68, %s84
    %p86 = scmp.eq.s32.totalorder %s16, 0
    %p87 = por %p85, %p86
    %s89 = sadd.s32 %s88, 1
    %p92 = scmp.eq.s32.totalorder %s10, 7
    %p93 = scmp.ne.s32.totalorder %s88, %s90
    %p94 = scmp.eq.s32.totalorder %s10, 0
    %p95 = por %p93, %p94
    %p96 = scmp.ne.s32.totalorder %s88, %s90
    %p97 = scmp.eq.s32.totalorder %s15, 7
    %p98 = por %p96, %p97
    %p99 = scmp.ne.s32.totalorder %s90, %s91
    %p100 = scmp.eq.s32.totalorder %s15, 0
    %p101 = por %p99, %p100
    %p102 = scmp.ne.s32.totalorder %s90, %s91
    %p103 = scmp.eq.s32.totalorder %s16, 7
    %p104 = por %p102, %p103
    %p106 = scmp.ne.s32.totalorder %s91, %s105
    %p107 = scmp.eq.s32.totalorder %s16, 0
    %p108 = por %p106, %p107
    %s110 = sadd.s32 %s109, 1
    %p113 = scmp.eq.s32.totalorder %s10, 7
    %p114 = scmp.ne.s32.totalorder %s109, %s111
    %p115 = scmp.eq.s32.totalorder %s10, 0
    %p116 = por %p114, %p115
    %p117 = scmp.ne.s32.totalorder %s109, %s111
    %p118 = scmp.eq.s32.totalorder %s15, 7
    %p119 = por %p117, %p118
    %p120 = scmp.ne.s32.totalorder %s111, %s112
    %p121 = scmp.eq.s32.totalorder %s15, 0
    %p122 = por %p120, %p121
    %p123 = scmp.ne.s32.totalorder %s111, %s112
    %p124 = scmp.eq.s32.totalorder %s16, 7
    %p125 = por %p123, %p124
    %p127 = scmp.ne.s32.totalorder %s112, %s126
    %p128 = scmp.eq.s32.totalorder %s16, 0
    %p129 = por %p127, %p128
    %s130 = ssub.s32 %s17, %s29
    %s131 = ssub.s32 %s18, %s25
    %s132 = sor.u32 %s130, %s131
    %p133 = scmp.eq.s32.totalorder %s132, 0
    %s135 = sadd.s32 %s134, 1
    %s136 = scalar_select %p133, %s134, %s135
    %p139 = pneg %p133
    %p140 = scmp.eq.s32.totalorder %s10, 7
    %p141 = por %p139, %p140
    %p142 = scmp.ne.s32.totalorder %s134, %s137
    %p143 = scmp.eq.s32.totalorder %s10, 0
    %p144 = por %p142, %p143
    %p145 = scmp.ne.s32.totalorder %s134, %s137
    %p146 = scmp.eq.s32.totalorder %s15, 7
    %p147 = por %p145, %p146
    %p148 = scmp.ne.s32.totalorder %s137, %s138
    %p149 = scmp.eq.s32.totalorder %s15, 0
    %p150 = por %p148, %p149
    %p151 = scmp.ne.s32.totalorder %s137, %s138
    %p152 = scmp.eq.s32.totalorder %s16, 7
    %p153 = por %p151, %p152
    %p155 = scmp.ne.s32.totalorder %s138, %s154
    %p156 = scmp.eq.s32.totalorder %s16, 0
    %p157 = por %p155, %p156
    %p158 = scmp.le.s32.totalorder 1, %s10
    %p159 = scmp.lt.s32.totalorder %s10, 9
    %p160 = pnand %p158, %p159
    %p161 = pneg %p160
    // Predicated region
    $region9: #{_lambda_.19} parent=5 // pred_check
      _
    $region10: #{_lambda_.19} parent=5 // pred_check_branch
      %163 = sbr.rel (%p160) target = $region12
    $region11: #{_lambda_.19} parent=5 // pred_region
      %s164 = ssub.s32 %s10, 1
      // Predicated region
      $region13: #{_lambda_.19} parent=11 // pred_check
        %p165 = pneg %p101
      $region14: #{_lambda_.19} parent=11 // pred_check_branch
        %167 = sbr.rel (%p165) target = $region16
      $region15: #{_lambda_.19} parent=11 // pred_region
        _
      $region16: #{_lambda_.19} parent=11 // pred_fallthru
        _
      // Predicated region
      $region17: #{_lambda_.19} parent=11 // pred_check
        %p168 = pneg %p122
      $region18: #{_lambda_.19} parent=11 // pred_check_branch
        %170 = sbr.rel (%p168) target = $region20
      $region19: #{_lambda_.19} parent=11 // pred_region
        _
      $region20: #{_lambda_.19} parent=11 // pred_fallthru
        _
    $region12: #{_lambda_.19} parent=5 // pred_fallthru
      _
    %p171 = scmp.lt.s32.totalorder %s10, 8
    // Predicated region
    $region21: #{_lambda_.19} parent=5 // pred_check
      %p172 = pneg %p171
    $region22: #{_lambda_.19} parent=5 // pred_check_branch
      %174 = sbr.rel (%p172) target = $region24
    $region23: #{_lambda_.19} parent=5 // pred_region
      // Predicated region
      $region25: #{_lambda_.19} parent=23 // pred_check
        %p175 = pneg %p44
      $region26: #{_lambda_.19} parent=23 // pred_check_branch
        %177 = sbr.rel (%p175) target = $region28
      $region27: #{_lambda_.19} parent=23 // pred_region
        %s178 = smul.u32 4, %s18
        %p179 = scmp.lt.s32.totalorder %s17, 7
        %s180 = scalar_select %p179, %s17, 7
        %p181 = scmp.lt.s32.totalorder %s178, 3
        %s182 = scalar_select %p181, %s178, 3
        %s183 = smul.addr %s180, 4
        %s184 = sadd.s32 %s182, %s183
        %s185 = smul.addr %s184, 8
        %s186 = scalar_lea.vmem %s0, %s185
        %s187 = smul.u32 4, %s18
      $region28: #{_lambda_.19} parent=23 // pred_fallthru
        _
      // Predicated region
      $region29: #{_lambda_.19} parent=23 // pred_check
        %p188 = pneg %p74
      $region30: #{_lambda_.19} parent=23 // pred_check_branch
        %190 = sbr.rel (%p188) target = $region32
      $region31: #{_lambda_.19} parent=23 // pred_region
        %s191 = ssub.s32 7, %s17
        %s192 = smul.u32 4, %s18
        %p193 = scmp.lt.s32.totalorder %s191, 7
        %s194 = scalar_select %p193, %s191, 7
        %p195 = scmp.lt.s32.totalorder %s192, 3
        %s196 = scalar_select %p195, %s192, 3
        %s197 = smul.addr %s194, 4
        %s198 = sadd.s32 %s196, %s197
        %s199 = smul.addr %s198, 8
        %s200 = scalar_lea.vmem %s1, %s199
        %s201 = ssub.s32 7, %s17
        %s202 = smul.u32 4, %s18
      $region32: #{_lambda_.19} parent=23 // pred_fallthru
        _
    $region24: #{_lambda_.19} parent=5 // pred_fallthru
      _
    %p203 = scmp.le.s32.totalorder 1, %s10
    %p204 = scmp.lt.s32.totalorder %s10, 9
    %p205 = pnand %p203, %p204
    %p206 = pneg %p205
    // Predicated region
    $region33: #{_lambda_.19} parent=5 // pred_check
      _
    $region34: #{_lambda_.19} parent=5 // pred_check_branch
      %208 = sbr.rel (%p205) target = $region36
    $region35: #{_lambda_.19} parent=5 // pred_region
      %s209 = ssub.s32 %s10, 1
      %s210 = smul.u32 4, %s20
      %p211 = scmp.lt.s32.totalorder %s19, 7
      %s212 = scalar_select %p211, %s19, 7
      %p213 = scmp.lt.s32.totalorder %s210, 3
      %s214 = scalar_select %p213, %s210, 3
      %s215 = smul.addr %s212, 4
      %s216 = sadd.s32 %s214, %s215
      %s217 = smul.addr %s216, 8
      %s218 = scalar_lea.vmem %s0, %s217
      %p219 = pneg %p50
      %p220 = pneg %p47
      %s221 = ssub.s32 7, %s19
      %s222 = smul.u32 4, %s20
      %p223 = scmp.lt.s32.totalorder %s221, 7
      %s224 = scalar_select %p223, %s221, 7
      %p225 = scmp.lt.s32.totalorder %s222, 3
      %s226 = scalar_select %p225, %s222, 3
      %s227 = smul.addr %s224, 4
      %s228 = sadd.s32 %s226, %s227
      %s229 = smul.addr %s228, 8
      %s230 = scalar_lea.vmem %s1, %s229
      %p231 = pneg %p80
      %p232 = pneg %p77
      %p233 = pneg %p101
      %p234 = pneg %p98
      %p235 = pneg %p122
      %p236 = pneg %p119
      %p237 = pneg %p150
      %p238 = pneg %p147
      %s239 = smul.u32 4, %s20
      %p240 = scmp.lt.s32.totalorder %s19, 7
      %s241 = scalar_select %p240, %s19, 7
      %p242 = scmp.lt.s32.totalorder %s239, 3
      %s243 = scalar_select %p242, %s239, 3
      %s244 = smul.addr %s241, 4
      %s245 = sadd.s32 %s243, %s244
      %s246 = smul.addr %s245, 8
      %s247 = scalar_lea.vmem %s4, %s246
      %s248 = smul.u32 4, %s20
      %p249 = scmp.lt.s32.totalorder %s19, 7
      %s250 = scalar_select %p249, %s19, 7
      %p251 = scmp.lt.s32.totalorder %s248, 3
      %s252 = scalar_select %p251, %s248, 3
      %s253 = smul.addr %s250, 4
      %s254 = sadd.s32 %s252, %s253
      %s255 = smul.addr %s254, 8
      %s256 = scalar_lea.vmem %s0, %s255
      %s257 = smul.u32 4, %s20
      %s258 = ssub.s32 7, %s19
      %s259 = smul.u32 4, %s20
      %p260 = scmp.lt.s32.totalorder %s258, 7
      %s261 = scalar_select %p260, %s258, 7
      %p262 = scmp.lt.s32.totalorder %s259, 3
      %s263 = scalar_select %p262, %s259, 3
      %s264 = smul.addr %s261, 4
      %s265 = sadd.s32 %s263, %s264
      %s266 = smul.addr %s265, 8
      %s267 = scalar_lea.vmem %s1, %s266
      %s268 = ssub.s32 7, %s19
      %s269 = smul.u32 4, %s20
      %s270 = smul.u32 4, %s20
      %p271 = scmp.lt.s32.totalorder %s19, 7
      %s272 = scalar_select %p271, %s19, 7
      %p273 = scmp.lt.s32.totalorder %s270, 3
      %s274 = scalar_select %p273, %s270, 3
      %s275 = smul.addr %s272, 4
      %s276 = sadd.s32 %s274, %s275
      %s277 = smul.addr %s276, 8
      %s278 = scalar_lea.vmem %s4, %s277
      %s279 = smul.u32 4, %s20
      %v280 = vld [vmem:[%s256] sm:$0xff]
      %v281 = vld [vmem:[%s256 + $0x8] sm:$0xff]
      %v282 = vld [vmem:[%s256 + $0x10] sm:$0xff]
      %v283 = vld [vmem:[%s256 + $0x18] sm:$0xff]
      %v284 = vld [vmem:[%s267] sm:$0xff]
      %v285 = vld [vmem:[%s267 + $0x8] sm:$0xff]
      %v286 = vld [vmem:[%s267 + $0x10] sm:$0xff]
      %v287 = vld [vmem:[%s267 + $0x18] sm:$0xff]
      %vm288 = vcmask 130048
      %v289 = vsel %vm288, %v280, %v284
      %v290 = vsel %vm288, %v281, %v285
      %v291 = vsel %vm288, %v282, %v286
      %v292 = vsel %vm288, %v283, %v287
      %v293 = vld [vmem:[%s2] sm:$0xff]
      %v294 = vld [vmem:[%s2 + $0x8] sm:$0xff]
      %v295 = vld [vmem:[%s2 + $0x10] sm:$0xff]
      %v296 = vld [vmem:[%s2 + $0x18] sm:$0xff]
      %v297 = vld [vmem:[%s3] sm:$0x1]
      %v299 = vlaneseq
      %v300 = vshrl.u32 %v299, 7
      %v301 = vsub.s32 0, %v300
      %v302 = vrot.slane %v297, %v301
      %vm304 = vcmask 261120
      %v306 = vsel %vm304, %v289, 0
      %v309 = vsel %vm304, %v290, 0
      %v312 = vsel %vm304, %v291, 0
      %v315 = vsel %vm304, %v292, 0
      %317 = vmatprep.subr.mxu0 0.0
      %318 = vmatpush1.msra.mxu0 0.0
      %319 = vmatprep.subr.mxu0 0.0
      %320 = vmatpush1.msra.mxu0 0.0
      %321 = vmatprep.subr.mxu0 0.0
      %322 = vmatpush1.msra.mxu0 0.0
      %323 = vmatprep.subr.mxu0 0.0
      %324 = vmatpush1.msra.mxu0 0.0
      %325 = vmatprep.subr.mxu0 0.0
      %326 = vmatpush1.msra.mxu0 0.0
      %327 = vmatprep.subr.mxu0 0.0
      %328 = vmatpush1.msra.mxu0 0.0
      %329 = vmatprep.subr.mxu0 0.0
      %330 = vmatpush1.msra.mxu0 0.0
      %331 = vmatprep.subr.mxu0 0.0
      %332 = vmatpush1.msra.mxu0 0.0
      %333 = vmatprep.subr.mxu0 0.0
      %334 = vmatpush1.msra.mxu0 0.0
      %335 = vmatprep.subr.mxu0 0.0
      %336 = vmatpush1.msra.mxu0 0.0
      %337 = vmatprep.subr.mxu0 0.0
      %338 = vmatpush1.msra.mxu0 0.0
      %339 = vmatprep.subr.mxu0 0.0
      %340 = vmatpush1.msra.mxu0 0.0
      %341 = vmatprep.subr.mxu0 0.0
      %342 = vmatpush1.msra.mxu0 %v296
      %343 = vmatprep.subr.mxu0 0.0
      %344 = vmatpush1.msra.mxu0 %v295
      %345 = vmatprep.subr.mxu0 0.0
      %346 = vmatpush1.msra.mxu0 %v294
      %347 = vmatprep.subr.mxu0 0.0
      %348 = vmatpush1.msra.mxu0 %v293
      %349 = vmatprep.subr.mxu0 0.0
      %350 = vmatpush2.msra.mxu0 0.0
      %351 = vmatprep.subr.mxu0 0.0
      %352 = vmatpush2.msra.mxu0 0.0
      %353 = vmatprep.subr.mxu0 0.0
      %354 = vmatpush2.msra.mxu0 0.0
      %355 = vmatprep.subr.mxu0 0.0
      %356 = vmatpush2.msra.mxu0 0.0
      %357 = vmatprep.subr.mxu0 0.0
      %358 = vmatpush2.msra.mxu0 0.0
      %359 = vmatprep.subr.mxu0 0.0
      %360 = vmatpush2.msra.mxu0 0.0
      %361 = vmatprep.subr.mxu0 0.0
      %362 = vmatpush2.msra.mxu0 0.0
      %363 = vmatprep.subr.mxu0 0.0
      %364 = vmatpush2.msra.mxu0 0.0
      %365 = vmatprep.subr.mxu0 0.0
      %366 = vmatpush2.msra.mxu0 0.0
      %367 = vmatprep.subr.mxu0 0.0
      %368 = vmatpush2.msra.mxu0 0.0
      %369 = vmatprep.subr.mxu0 0.0
      %370 = vmatpush2.msra.mxu0 0.0
      %371 = vmatprep.subr.mxu0 0.0
      %372 = vmatpush2.msra.mxu0 0.0
      %373 = vmatprep.subr.mxu0 0.0
      %374 = vmatpush2.msra.mxu0 0.0
      %375 = vmatprep.subr.mxu0 0.0
      %376 = vmatpush2.msra.mxu0 0.0
      %377 = vmatprep.subr.mxu0 0.0
      %378 = vmatpush2.msra.mxu0 0.0
      %379 = vmatprep.subr.mxu0 0.0
      %380 = vmatpush2.msra.mxu0 0.0
      %381 = vmatprep.mubr.f32.mxu0 0.0
      %382 = vmatmul.mubr.f32.gmra.mxu0 %v306
      %v383 = vpop.f32.mrf.mxu0
      %v384 = vadd.f32 %v302, %v383
      %v385 = vpop.f32.mrf.mxu0
      %386 = vmatprep.mubr.f32.mxu0 0.0
      %387 = vmatmul.mubr.f32.gmra.mxu0 %v309
      %v388 = vpop.f32.mrf.mxu0
      %v389 = vadd.f32 %v302, %v388
      %v390 = vpop.f32.mrf.mxu0
      %391 = vmatprep.mubr.f32.mxu0 0.0
      %392 = vmatmul.mubr.f32.gmra.mxu0 %v312
      %v393 = vpop.f32.mrf.mxu0
      %v394 = vadd.f32 %v302, %v393
      %v395 = vpop.f32.mrf.mxu0
      %396 = vmatprep.mubr.f32.mxu0 0.0
      %397 = vmatmul.mubr.f32.gmra.mxu0 %v315
      %v398 = vpop.f32.mrf.mxu0
      %v399 = vadd.f32 %v302, %v398
      %v400 = vpop.f32.mrf.mxu0
      %401 = vdwg.mxu0
      %402 = vst.msk [vmem:[%s278] sm:$0xff] %vm288, %v384
      %403 = vst.msk [vmem:[%s278 + $0x8] sm:$0xff] %vm288, %v389
      %404 = vst.msk [vmem:[%s278 + $0x10] sm:$0xff] %vm288, %v394
      %405 = vst.msk [vmem:[%s278 + $0x18] sm:$0xff] %vm288, %v399
      %s406 = smul.u32 4, %s20
      %p407 = scmp.lt.s32.totalorder %s19, 7
      %s408 = scalar_select %p407, %s19, 7
      %p409 = scmp.lt.s32.totalorder %s406, 3
      %s410 = scalar_select %p409, %s406, 3
      %s411 = smul.addr %s408, 4
      %s412 = sadd.s32 %s410, %s411
      %s413 = smul.addr %s412, 8
      %s414 = scalar_lea.vmem %s4, %s413
      // Predicated region
      $region37: #{_lambda_.19} parent=35 // pred_check
        %p415 = pneg %p147
      $region38: #{_lambda_.19} parent=35 // pred_check_branch
        %417 = sbr.rel (%p415) target = $region40
      $region39: #{_lambda_.19} parent=35 // pred_region
        %s418 = smul.u32 4, %s20
      $region40: #{_lambda_.19} parent=35 // pred_fallthru
        _
    $region36: #{_lambda_.19} parent=5 // pred_fallthru
      _
    %p419 = scmp.le.s32.totalorder 2, %s10
    // Predicated region
    $region41: #{_lambda_.19} parent=5 // pred_check
      %p420 = pneg %p419
    $region42: #{_lambda_.19} parent=5 // pred_check_branch
      %422 = sbr.rel (%p420) target = $region44
    $region43: #{_lambda_.19} parent=5 // pred_region
      %s423 = ssub.s32 %s10, 2
      // Predicated region
      $region45: #{_lambda_.19} parent=43 // pred_check
        %p424 = pneg %p153
      $region46: #{_lambda_.19} parent=43 // pred_check_branch
        %426 = sbr.rel (%p424) target = $region48
      $region47: #{_lambda_.19} parent=43 // pred_region
        %s427 = smul.u32 4, %s22
        %p428 = scmp.lt.s32.totalorder %s21, 7
        %s429 = scalar_select %p428, %s21, 7
        %p430 = scmp.lt.s32.totalorder %s427, 3
        %s431 = scalar_select %p430, %s427, 3
        %s432 = smul.addr %s429, 4
        %s433 = sadd.s32 %s431, %s432
        %s434 = smul.addr %s433, 8
        %s435 = scalar_lea.vmem %s4, %s434
      $region48: #{_lambda_.19} parent=43 // pred_fallthru
        _
    $region44: #{_lambda_.19} parent=5 // pred_fallthru
      _
  $region6: #{_lambda_.19} parent=0 // loop_footer
    %s14 = sadd.s32 1, %s10
  $region7: #{_lambda_.19} parent=0 // loop_footer_branch
    %9 = sbr.rel target = $region3
  $region8: #{_lambda_.19} parent=0 // loop_exit
    _

// kernel: _lambda_.16
$region0: #{_lambda_.16}
  #allocation0 [shape = 'u32[]', space=smem, size = 0x4, offset = 0x4, fixed_abs, tag = 'smem constant byte address 0x4 - core index']
  #allocation1 [shape = 'u32[144,128]{1,0:T(1,128)}', space=vmem, size = 0x12000, scoped, tag = 'internal scratch']
  #allocation2 [shape = 'f32[32,32]{1,0:T(8,128)}', space=vmem, size = 0x4000, scoped, tag = 'scratch operand']
  #allocation3 [shape = 'f32[32,32]{1,0:T(8,128)}', space=vmem, size = 0x4000, scoped, tag = 'scratch operand']
  %s0 = inlined_call_operand.vmem [shape: f32[8,32,128], index: 0, kind: input, shape index: {}]
  %s1 = inlined_call_operand.vmem [shape: f32[32,128], index: 1, kind: input, shape index: {}]
  %s2 = inlined_call_operand.vmem [shape: f32[8,32,32], index: 2, kind: output, shape index: {}]
  %s3 = sld [smem:[#allocation0]]
  $region18: #{_lambda_.16} parent=0
    _
  %s5 = ssub.s32 1, %s3
  %s6 = scalar_select 0, %s5, %s3
  // Predicated region
  $region2: #{_lambda_.16} parent=0 // pred_check
    _
  $region3: #{_lambda_.16} parent=0 // pred_check_branch
    %8 = sbr.rel (0) target = $region5
  $region4: #{_lambda_.16} parent=0 // pred_region
    _
  $region5: #{_lambda_.16} parent=0 // pred_fallthru
    _
  // Predicated region
  $region6: #{_lambda_.16} parent=0 // pred_check
    _
  $region7: #{_lambda_.16} parent=0 // pred_check_branch
    %10 = sbr.rel (0) target = $region9
  $region8: #{_lambda_.16} parent=0 // pred_region
    _
  $region9: #{_lambda_.16} parent=0 // pred_fallthru
    _
  %vm11 = vcmask 261120
  %12 = vst.msk [vmem:[#allocation2] sm:$0xff] %vm11, 0.0
  %13 = vst.msk [vmem:[#allocation2 + $0x8] sm:$0xff] %vm11, 0.0
  %14 = vst.msk [vmem:[#allocation2 + $0x10] sm:$0xff] %vm11, 0.0
  %15 = vst.msk [vmem:[#allocation2 + $0x18] sm:$0xff] %vm11, 0.0
  %16 = vst.msk [vmem:[#allocation3] sm:$0xff] %vm11, 0.0
  %17 = vst.msk [vmem:[#allocation3 + $0x8] sm:$0xff] %vm11, 0.0
  %18 = vst.msk [vmem:[#allocation3 + $0x10] sm:$0xff] %vm11, 0.0
  %19 = vst.msk [vmem:[#allocation3 + $0x18] sm:$0xff] %vm11, 0.0
  %v20 = vld [vmem:[#allocation2] sm:$0xff]
  %v21 = vld [vmem:[#allocation2 + $0x8] sm:$0xff]
  %v22 = vld [vmem:[#allocation2 + $0x10] sm:$0xff]
  %v23 = vld [vmem:[#allocation2 + $0x18] sm:$0xff]
  %v24 = vld [vmem:[#allocation3] sm:$0xff]
  %v25 = vld [vmem:[#allocation3 + $0x8] sm:$0xff]
  %v26 = vld [vmem:[#allocation3 + $0x10] sm:$0xff]
  %v27 = vld [vmem:[#allocation3 + $0x18] sm:$0xff]
  %v28 = vld [vmem:[%s0] sm:$0xff]
  %v29 = vld [vmem:[%s0 + $0x8] sm:$0xff]
  %v30 = vld [vmem:[%s0 + $0x10] sm:$0xff]
  %v31 = vld [vmem:[%s0 + $0x18] sm:$0xff]
  %s32 = scalar_lea.vmem %s0, 224
  %v33 = vld [vmem:[%s32] sm:$0xff]
  %v34 = vld [vmem:[%s32 + $0x8] sm:$0xff]
  %v35 = vld [vmem:[%s32 + $0x10] sm:$0xff]
  %v36 = vld [vmem:[%s32 + $0x18] sm:$0xff]
  %vm37 = vcmask 523264
  %v38 = vsel %vm37, %v28, %v33
  %v39 = vsel %vm37, %v29, %v34
  %v40 = vsel %vm37, %v30, %v35
  %v41 = vsel %vm37, %v31, %v36
  %v42 = vld [vmem:[%s1] sm:$0xff]
  %v43 = vld [vmem:[%s1 + $0x8] sm:$0xff]
  %v44 = vld [vmem:[%s1 + $0x10] sm:$0xff]
  %v45 = vld [vmem:[%s1 + $0x18] sm:$0xff]
  %v47 = vsel %vm11, %v20, 0
  %v50 = vsel %vm11, %v21, 0
  %v53 = vsel %vm11, %v22, 0
  %v56 = vsel %vm11, %v23, 0
  %58 = vmatprep.subr.mxu0 0.0
  %59 = vmatpush1.msra.mxu0 0.0
  %60 = vmatprep.subr.mxu0 0.0
  %61 = vmatpush1.msra.mxu0 0.0
  %62 = vmatprep.subr.mxu0 0.0
  %63 = vmatpush1.msra.mxu0 0.0
  %64 = vmatprep.subr.mxu0 0.0
  %65 = vmatpush1.msra.mxu0 0.0
  %66 = vmatprep.subr.mxu0 0.0
  %67 = vmatpush1.msra.mxu0 0.0
  %68 = vmatprep.subr.mxu0 0.0
  %69 = vmatpush1.msra.mxu0 0.0
  %70 = vmatprep.subr.mxu0 0.0
  %71 = vmatpush1.msra.mxu0 0.0
  %72 = vmatprep.subr.mxu0 0.0
  %73 = vmatpush1.msra.mxu0 0.0
  %74 = vmatprep.subr.mxu0 0.0
  %75 = vmatpush1.msra.mxu0 0.0
  %76 = vmatprep.subr.mxu0 0.0
  %77 = vmatpush1.msra.mxu0 0.0
  %78 = vmatprep.subr.mxu0 0.0
  %79 = vmatpush1.msra.mxu0 0.0
  %80 = vmatprep.subr.mxu0 0.0
  %81 = vmatpush1.msra.mxu0 0.0
  %82 = vmatprep.subr.mxu0 0.0
  %83 = vmatpush1.msra.mxu0 %v45
  %84 = vmatprep.subr.mxu0 0.0
  %85 = vmatpush1.msra.mxu0 %v44
  %86 = vmatprep.subr.mxu0 0.0
  %87 = vmatpush1.msra.mxu0 %v43
  %88 = vmatprep.subr.mxu0 0.0
  %89 = vmatpush1.msra.mxu0 %v42
  %90 = vmatprep.subr.mxu0 0.0
  %91 = vmatpush2.msra.mxu0 0.0
  %92 = vmatprep.subr.mxu0 0.0
  %93 = vmatpush2.msra.mxu0 0.0
  %94 = vmatprep.subr.mxu0 0.0
  %95 = vmatpush2.msra.mxu0 0.0
  %96 = vmatprep.subr.mxu0 0.0
  %97 = vmatpush2.msra.mxu0 0.0
  %98 = vmatprep.subr.mxu0 0.0
  %99 = vmatpush2.msra.mxu0 0.0
  %100 = vmatprep.subr.mxu0 0.0
  %101 = vmatpush2.msra.mxu0 0.0
  %102 = vmatprep.subr.mxu0 0.0
  %103 = vmatpush2.msra.mxu0 0.0
  %104 = vmatprep.subr.mxu0 0.0
  %105 = vmatpush2.msra.mxu0 0.0
  %106 = vmatprep.subr.mxu0 0.0
  %107 = vmatpush2.msra.mxu0 0.0
  %108 = vmatprep.subr.mxu0 0.0
  %109 = vmatpush2.msra.mxu0 0.0
  %110 = vmatprep.subr.mxu0 0.0
  %111 = vmatpush2.msra.mxu0 0.0
  %112 = vmatprep.subr.mxu0 0.0
  %113 = vmatpush2.msra.mxu0 0.0
  %114 = vmatprep.subr.mxu0 0.0
  %115 = vmatpush2.msra.mxu0 0.0
  %116 = vmatprep.subr.mxu0 0.0
  %117 = vmatpush2.msra.mxu0 0.0
  %118 = vmatprep.subr.mxu0 0.0
  %119 = vmatpush2.msra.mxu0 0.0
  %120 = vmatprep.subr.mxu0 0.0
  %121 = vmatpush2.msra.mxu0 0.0
  %122 = vmatprep.mubr.f32.mxu0 0.0
  %123 = vmatmul.mubr.f32.gmra.mxu0 %v47
  %v124 = vpop.f32.mrf.mxu0
  %v125 = vadd.f32 0.0, %v124
  %v126 = vpop.f32.mrf.mxu0
  %127 = vmatprep.mubr.f32.mxu0 0.0
  %128 = vmatmul.mubr.f32.gmra.mxu0 %v50
  %v129 = vpop.f32.mrf.mxu0
  %v130 = vadd.f32 0.0, %v129
  %v131 = vpop.f32.mrf.mxu0
  %132 = vmatprep.mubr.f32.mxu0 0.0
  %133 = vmatmul.mubr.f32.gmra.mxu0 %v53
  %v134 = vpop.f32.mrf.mxu0
  %v135 = vadd.f32 0.0, %v134
  %v136 = vpop.f32.mrf.mxu0
  %137 = vmatprep.mubr.f32.mxu0 0.0
  %138 = vmatmul.mubr.f32.gmra.mxu0 %v56
  %v139 = vpop.f32.mrf.mxu0
  %v140 = vadd.f32 0.0, %v139
  %v141 = vpop.f32.mrf.mxu0
  %142 = vdwg.mxu0
  %v143 = vadd.f32 %v38, %v125
  %v144 = vadd.f32 %v39, %v130
  %v145 = vadd.f32 %v40, %v135
  %v146 = vadd.f32 %v41, %v140
  %v147 = vxor.u32 %v143, 2147483648
  %v148 = vxor.u32 %v144, 2147483648
  %v149 = vxor.u32 %v145, 2147483648
  %v150 = vxor.u32 %v146, 2147483648
  %v151 = vmul.f32 %v147, 1.442695
  %v152 = vpow.pop %v151
  %v153 = vmul.f32 %v148, 1.442695
  %v154 = vpow.pop %v153
  %v155 = vmul.f32 %v149, 1.442695
  %v156 = vpow.pop %v155
  %v157 = vmul.f32 %v150, 1.442695
  %v158 = vpow.pop %v157
  %v159 = vadd.f32 %v152, 1.0
  %v160 = vadd.f32 %v154, 1.0
  %v161 = vadd.f32 %v156, 1.0
  %v162 = vadd.f32 %v158, 1.0
  %v163 = vrcp.pop %v159
  %v164 = vmul.f32 1.0, %v163
  %v165 = vrcp.pop %v160
  %v166 = vmul.f32 1.0, %v165
  %v167 = vrcp.pop %v161
  %v168 = vmul.f32 1.0, %v167
  %v169 = vrcp.pop %v162
  %v170 = vmul.f32 1.0, %v169
  %v171 = vtanh.pop %v143
  %v172 = vtanh.pop %v144
  %v173 = vtanh.pop %v145
  %v174 = vtanh.pop %v146
  %179 = vrot.lane.b32.xlu0 %v24, 16
  %v180 = vpop.permute.xlu0 %179
  %181 = vrot.lane.b32.xlu0 %v25, 16
  %v182 = vpop.permute.xlu0 %181
  %183 = vrot.lane.b32.xlu0 %v26, 16
  %v184 = vpop.permute.xlu0 %183
  %185 = vrot.lane.b32.xlu0 %v27, 16
  %v186 = vpop.permute.xlu0 %185
  %v191 = vmul.f32 %v164, %v180
  %v192 = vmul.f32 %v166, %v182
  %v193 = vmul.f32 %v168, %v184
  %v194 = vmul.f32 %v170, %v186
  %199 = vrot.lane.b32.xlu0 %v171, 96
  %v200 = vpop.permute.xlu0 %199
  %201 = vrot.lane.b32.xlu0 %v172, 96
  %v202 = vpop.permute.xlu0 %201
  %203 = vrot.lane.b32.xlu0 %v173, 96
  %v204 = vpop.permute.xlu0 %203
  %205 = vrot.lane.b32.xlu0 %v174, 96
  %v206 = vpop.permute.xlu0 %205
  %v211 = vmul.f32 %v164, %v200
  %v212 = vmul.f32 %v166, %v202
  %v213 = vmul.f32 %v168, %v204
  %v214 = vmul.f32 %v170, %v206
  %219 = vrot.lane.b32.xlu0 %v211, 16
  %v220 = vpop.permute.xlu0 %219
  %221 = vrot.lane.b32.xlu0 %v212, 16
  %v222 = vpop.permute.xlu0 %221
  %223 = vrot.lane.b32.xlu0 %v213, 16
  %v224 = vpop.permute.xlu0 %223
  %225 = vrot.lane.b32.xlu0 %v214, 16
  %v226 = vpop.permute.xlu0 %225
  %v231 = vadd.f32 %v191, %v220
  %v232 = vadd.f32 %v192, %v222
  %v233 = vadd.f32 %v193, %v224
  %v234 = vadd.f32 %v194, %v226
  %235 = vrot.lane.b32.xlu0 %v24, 64
  %v236 = vpop.permute.xlu0 %235
  %237 = vrot.lane.b32.xlu0 %v25, 64
  %v238 = vpop.permute.xlu0 %237
  %239 = vrot.lane.b32.xlu0 %v26, 64
  %v240 = vpop.permute.xlu0 %239
  %241 = vrot.lane.b32.xlu0 %v27, 64
  %v242 = vpop.permute.xlu0 %241
  %v247 = vmul.f32 %v164, %v236
  %v248 = vmul.f32 %v166, %v238
  %v249 = vmul.f32 %v168, %v240
  %v250 = vmul.f32 %v170, %v242
  %v251 = vadd.f32 %v247, %v220
  %v252 = vadd.f32 %v248, %v222
  %v253 = vadd.f32 %v249, %v224
  %v254 = vadd.f32 %v250, %v226
  %259 = vrot.lane.b32.xlu0 %v231, 112
  %v260 = vpop.permute.xlu0 %259
  %261 = vrot.lane.b32.xlu0 %v232, 112
  %v262 = vpop.permute.xlu0 %261
  %263 = vrot.lane.b32.xlu0 %v233, 112
  %v264 = vpop.permute.xlu0 %263
  %265 = vrot.lane.b32.xlu0 %v234, 112
  %v266 = vpop.permute.xlu0 %265
  %275 = vrot.lane.b32.xlu0 %v251, 64
  %v276 = vpop.permute.xlu0 %275
  %277 = vrot.lane.b32.xlu0 %v252, 64
  %v278 = vpop.permute.xlu0 %277
  %279 = vrot.lane.b32.xlu0 %v253, 64
  %v280 = vpop.permute.xlu0 %279
  %281 = vrot.lane.b32.xlu0 %v254, 64
  %v282 = vpop.permute.xlu0 %281
  %vm287 = vcmask 130048
  %v288 = vsel %vm287, %v260, %v276
  %v289 = vsel %vm287, %v262, %v278
  %v290 = vsel %vm287, %v264, %v280
  %v291 = vsel %vm287, %v266, %v282
  %296 = vrot.lane.b32.xlu0 %v164, 80
  %v297 = vpop.permute.xlu0 %296
  %298 = vrot.lane.b32.xlu0 %v166, 80
  %v299 = vpop.permute.xlu0 %298
  %300 = vrot.lane.b32.xlu0 %v168, 80
  %v301 = vpop.permute.xlu0 %300
  %302 = vrot.lane.b32.xlu0 %v170, 80
  %v303 = vpop.permute.xlu0 %302
  %308 = vrot.lane.b32.xlu0 %v164, 32
  %v309 = vpop.permute.xlu0 %308
  %310 = vrot.lane.b32.xlu0 %v166, 32
  %v311 = vpop.permute.xlu0 %310
  %312 = vrot.lane.b32.xlu0 %v168, 32
  %v313 = vpop.permute.xlu0 %312
  %314 = vrot.lane.b32.xlu0 %v170, 32
  %v315 = vpop.permute.xlu0 %314
  %v320 = vsel %vm287, %v297, %v309
  %v321 = vsel %vm287, %v299, %v311
  %v322 = vsel %vm287, %v301, %v313
  %v323 = vsel %vm287, %v303, %v315
  %v324 = vtanh.pop %v288
  %v325 = vtanh.pop %v289
  %v326 = vtanh.pop %v290
  %v327 = vtanh.pop %v291
  %v328 = vmul.f32 %v320, %v324
  %v329 = vmul.f32 %v321, %v325
  %v330 = vmul.f32 %v322, %v326
  %v331 = vmul.f32 %v323, %v327
  %332 = vst.msk [vmem:[#allocation3] sm:$0xff] %vm11, %v288
  %333 = vst.msk [vmem:[#allocation3 + $0x8] sm:$0xff] %vm11, %v289
  %334 = vst.msk [vmem:[#allocation3 + $0x10] sm:$0xff] %vm11, %v290
  %335 = vst.msk [vmem:[#allocation3 + $0x18] sm:$0xff] %vm11, %v291
  %336 = vst.msk [vmem:[#allocation2] sm:$0xff] %vm11, %v328
  %337 = vst.msk [vmem:[#allocation2 + $0x8] sm:$0xff] %vm11, %v329
  %338 = vst.msk [vmem:[#allocation2 + $0x10] sm:$0xff] %vm11, %v330
  %339 = vst.msk [vmem:[#allocation2 + $0x18] sm:$0xff] %vm11, %v331
  %340 = vst.msk [vmem:[%s2] sm:$0xff] %vm11, %v328
  %341 = vst.msk [vmem:[%s2 + $0x8] sm:$0xff] %vm11, %v329
  %342 = vst.msk [vmem:[%s2 + $0x10] sm:$0xff] %vm11, %v330
  %343 = vst.msk [vmem:[%s2 + $0x18] sm:$0xff] %vm11, %v331
  %v344 = vld [vmem:[#allocation2] sm:$0xff]
  %v345 = vld [vmem:[#allocation2 + $0x8] sm:$0xff]
  %v346 = vld [vmem:[#allocation2 + $0x10] sm:$0xff]
  %v347 = vld [vmem:[#allocation2 + $0x18] sm:$0xff]
  %v348 = vld [vmem:[#allocation3] sm:$0xff]
  %v349 = vld [vmem:[#allocation3 + $0x8] sm:$0xff]
  %v350 = vld [vmem:[#allocation3 + $0x10] sm:$0xff]
  %v351 = vld [vmem:[#allocation3 + $0x18] sm:$0xff]
  %s352 = scalar_lea.vmem %s0, 32
  %v353 = vld [vmem:[%s352] sm:$0xff]
  %v354 = vld [vmem:[%s352 + $0x8] sm:$0xff]
  %v355 = vld [vmem:[%s352 + $0x10] sm:$0xff]
  %v356 = vld [vmem:[%s352 + $0x18] sm:$0xff]
  %s357 = scalar_lea.vmem %s0, 192
  %v358 = vld [vmem:[%s357] sm:$0xff]
  %v359 = vld [vmem:[%s357 + $0x8] sm:$0xff]
  %v360 = vld [vmem:[%s357 + $0x10] sm:$0xff]
  %v361 = vld [vmem:[%s357 + $0x18] sm:$0xff]
  %v362 = vsel %vm37, %v353, %v358
  %v363 = vsel %vm37, %v354, %v359
  %v364 = vsel %vm37, %v355, %v360
  %v365 = vsel %vm37, %v356, %v361
  %v366 = vld [vmem:[%s1] sm:$0xff]
  %v367 = vld [vmem:[%s1 + $0x8] sm:$0xff]
  %v368 = vld [vmem:[%s1 + $0x10] sm:$0xff]
  %v369 = vld [vmem:[%s1 + $0x18] sm:$0xff]
  %v371 = vsel %vm11, %v344, 0
  %v374 = vsel %vm11, %v345, 0
  %v377 = vsel %vm11, %v346, 0
  %v380 = vsel %vm11, %v347, 0
  %382 = vmatprep.subr.mxu0 0.0
  %383 = vmatpush1.msra.mxu0 0.0
  %384 = vmatprep.subr.mxu0 0.0
  %385 = vmatpush1.msra.mxu0 0.0
  %386 = vmatprep.subr.mxu0 0.0
  %387 = vmatpush1.msra.mxu0 0.0
  %388 = vmatprep.subr.mxu0 0.0
  %389 = vmatpush1.msra.mxu0 0.0
  %390 = vmatprep.subr.mxu0 0.0
  %391 = vmatpush1.msra.mxu0 0.0
  %392 = vmatprep.subr.mxu0 0.0
  %393 = vmatpush1.msra.mxu0 0.0
  %394 = vmatprep.subr.mxu0 0.0
  %395 = vmatpush1.msra.mxu0 0.0
  %396 = vmatprep.subr.mxu0 0.0
  %397 = vmatpush1.msra.mxu0 0.0
  %398 = vmatprep.subr.mxu0 0.0
  %399 = vmatpush1.msra.mxu0 0.0
  %400 = vmatprep.subr.mxu0 0.0
  %401 = vmatpush1.msra.mxu0 0.0
  %402 = vmatprep.subr.mxu0 0.0
  %403 = vmatpush1.msra.mxu0 0.0
  %404 = vmatprep.subr.mxu0 0.0
  %405 = vmatpush1.msra.mxu0 0.0
  %406 = vmatprep.subr.mxu0 0.0
  %407 = vmatpush1.msra.mxu0 %v369
  %408 = vmatprep.subr.mxu0 0.0
  %409 = vmatpush1.msra.mxu0 %v368
  %410 = vmatprep.subr.mxu0 0.0
  %411 = vmatpush1.msra.mxu0 %v367
  %412 = vmatprep.subr.mxu0 0.0
  %413 = vmatpush1.msra.mxu0 %v366
  %414 = vmatprep.subr.mxu0 0.0
  %415 = vmatpush2.msra.mxu0 0.0
  %416 = vmatprep.subr.mxu0 0.0
  %417 = vmatpush2.msra.mxu0 0.0
  %418 = vmatprep.subr.mxu0 0.0
  %419 = vmatpush2.msra.mxu0 0.0
  %420 = vmatprep.subr.mxu0 0.0
  %421 = vmatpush2.msra.mxu0 0.0
  %422 = vmatprep.subr.mxu0 0.0
  %423 = vmatpush2.msra.mxu0 0.0
  %424 = vmatprep.subr.mxu0 0.0
  %425 = vmatpush2.msra.mxu0 0.0
  %426 = vmatprep.subr.mxu0 0.0
  %427 = vmatpush2.msra.mxu0 0.0
  %428 = vmatprep.subr.mxu0 0.0
  %429 = vmatpush2.msra.mxu0 0.0
  %430 = vmatprep.subr.mxu0 0.0
  %431 = vmatpush2.msra.mxu0 0.0
  %432 = vmatprep.subr.mxu0 0.0
  %433 = vmatpush2.msra.mxu0 0.0
  %434 = vmatprep.subr.mxu0 0.0
  %435 = vmatpush2.msra.mxu0 0.0
  %436 = vmatprep.subr.mxu0 0.0
  %437 = vmatpush2.msra.mxu0 0.0
  %438 = vmatprep.subr.mxu0 0.0
  %439 = vmatpush2.msra.mxu0 0.0
  %440 = vmatprep.subr.mxu0 0.0
  %441 = vmatpush2.msra.mxu0 0.0
  %442 = vmatprep.subr.mxu0 0.0
  %443 = vmatpush2.msra.mxu0 0.0
  %444 = vmatprep.subr.mxu0 0.0
  %445 = vmatpush2.msra.mxu0 0.0
  %446 = vmatprep.mubr.f32.mxu0 0.0
  %447 = vmatmul.mubr.f32.gmra.mxu0 %v371
  %v448 = vpop.f32.mrf.mxu0
  %v449 = vadd.f32 0.0, %v448
  %v450 = vpop.f32.mrf.mxu0
  %451 = vmatprep.mubr.f32.mxu0 0.0
  %452 = vmatmul.mubr.f32.gmra.mxu0 %v374
  %v453 = vpop.f32.mrf.mxu0
  %v454 = vadd.f32 0.0, %v453
  %v455 = vpop.f32.mrf.mxu0
  %456 = vmatprep.mubr.f32.mxu0 0.0
  %457 = vmatmul.mubr.f32.gmra.mxu0 %v377
  %v458 = vpop.f32.mrf.mxu0
  %v459 = vadd.f32 0.0, %v458
  %v460 = vpop.f32.mrf.mxu0
  %461 = vmatprep.mubr.f32.mxu0 0.0
  %462 = vmatmul.mubr.f32.gmra.mxu0 %v380
  %v463 = vpop.f32.mrf.mxu0
  %v464 = vadd.f32 0.0, %v463
  %v465 = vpop.f32.mrf.mxu0
  %466 = vdwg.mxu0
  %v467 = vadd.f32 %v362, %v449
  %v468 = vadd.f32 %v363, %v454
  %v469 = vadd.f32 %v364, %v459
  %v470 = vadd.f32 %v365, %v464
  %v471 = vxor.u32 %v467, 2147483648
  %v472 = vxor.u32 %v468, 2147483648
  %v473 = vxor.u32 %v469, 2147483648
  %v474 = vxor.u32 %v470, 2147483648
  %v475 = vmul.f32 %v471, 1.442695
  %v476 = vpow.pop %v475
  %v477 = vmul.f32 %v472, 1.442695
  %v478 = vpow.pop %v477
  %v479 = vmul.f32 %v473, 1.442695
  %v480 = vpow.pop %v479
  %v481 = vmul.f32 %v474, 1.442695
  %v482 = vpow.pop %v481
  %v483 = vadd.f32 %v476, 1.0
  %v484 = vadd.f32 %v478, 1.0
  %v485 = vadd.f32 %v480, 1.0
  %v486 = vadd.f32 %v482, 1.0
  %v487 = vrcp.pop %v483
  %v488 = vmul.f32 1.0, %v487
  %v489 = vrcp.pop %v484
  %v490 = vmul.f32 1.0, %v489
  %v491 = vrcp.pop %v485
  %v492 = vmul.f32 1.0, %v491
  %v493 = vrcp.pop %v486
  %v494 = vmul.f32 1.0, %v493
  %v495 = vtanh.pop %v467
  %v496 = vtanh.pop %v468
  %v497 = vtanh.pop %v469
  %v498 = vtanh.pop %v470
  %503 = vrot.lane.b32.xlu0 %v348, 16
  %v504 = vpop.permute.xlu0 %503
  %505 = vrot.lane.b32.xlu0 %v349, 16
  %v506 = vpop.permute.xlu0 %505
  %507 = vrot.lane.b32.xlu0 %v350, 16
  %v508 = vpop.permute.xlu0 %507
  %509 = vrot.lane.b32.xlu0 %v351, 16
  %v510 = vpop.permute.xlu0 %509
  %v515 = vmul.f32 %v488, %v504
  %v516 = vmul.f32 %v490, %v506
  %v517 = vmul.f32 %v492, %v508
  %v518 = vmul.f32 %v494, %v510
  %523 = vrot.lane.b32.xlu0 %v495, 96
  %v524 = vpop.permute.xlu0 %523
  %525 = vrot.lane.b32.xlu0 %v496, 96
  %v526 = vpop.permute.xlu0 %525
  %527 = vrot.lane.b32.xlu0 %v497, 96
  %v528 = vpop.permute.xlu0 %527
  %529 = vrot.lane.b32.xlu0 %v498, 96
  %v530 = vpop.permute.xlu0 %529
  %v535 = vmul.f32 %v488, %v524
  %v536 = vmul.f32 %v490, %v526
  %v537 = vmul.f32 %v492, %v528
  %v538 = vmul.f32 %v494, %v530
  %543 = vrot.lane.b32.xlu0 %v535, 16
  %v544 = vpop.permute.xlu0 %543
  %545 = vrot.lane.b32.xlu0 %v536, 16
  %v546 = vpop.permute.xlu0 %545
  %547 = vrot.lane.b32.xlu0 %v537, 16
  %v548 = vpop.permute.xlu0 %547
  %549 = vrot.lane.b32.xlu0 %v538, 16
  %v550 = vpop.permute.xlu0 %549
  %v555 = vadd.f32 %v515, %v544
  %v556 = vadd.f32 %v516, %v546
  %v557 = vadd.f32 %v517, %v548
  %v558 = vadd.f32 %v518, %v550
  %559 = vrot.lane.b32.xlu0 %v348, 64
  %v560 = vpop.permute.xlu0 %559
  %561 = vrot.lane.b32.xlu0 %v349, 64
  %v562 = vpop.permute.xlu0 %561
  %563 = vrot.lane.b32.xlu0 %v350, 64
  %v564 = vpop.permute.xlu0 %563
  %565 = vrot.lane.b32.xlu0 %v351, 64
  %v566 = vpop.permute.xlu0 %565
  %v571 = vmul.f32 %v488, %v560
  %v572 = vmul.f32 %v490, %v562
  %v573 = vmul.f32 %v492, %v564
  %v574 = vmul.f32 %v494, %v566
  %v575 = vadd.f32 %v571, %v544
  %v576 = vadd.f32 %v572, %v546
  %v577 = vadd.f32 %v573, %v548
  %v578 = vadd.f32 %v574, %v550
  %583 = vrot.lane.b32.xlu0 %v555, 112
  %v584 = vpop.permute.xlu0 %583
  %585 = vrot.lane.b32.xlu0 %v556, 112
  %v586 = vpop.permute.xlu0 %585
  %587 = vrot.lane.b32.xlu0 %v557, 112
  %v588 = vpop.permute.xlu0 %587
  %589 = vrot.lane.b32.xlu0 %v558, 112
  %v590 = vpop.permute.xlu0 %589
  %599 = vrot.lane.b32.xlu0 %v575, 64
  %v600 = vpop.permute.xlu0 %599
  %601 = vrot.lane.b32.xlu0 %v576, 64
  %v602 = vpop.permute.xlu0 %601
  %603 = vrot.lane.b32.xlu0 %v577, 64
  %v604 = vpop.permute.xlu0 %603
  %605 = vrot.lane.b32.xlu0 %v578, 64
  %v606 = vpop.permute.xlu0 %605
  %v611 = vsel %vm287, %v584, %v600
  %v612 = vsel %vm287, %v586, %v602
  %v613 = vsel %vm287, %v588, %v604
  %v614 = vsel %vm287, %v590, %v606
  %619 = vrot.lane.b32.xlu0 %v488, 80
  %v620 = vpop.permute.xlu0 %619
  %621 = vrot.lane.b32.xlu0 %v490, 80
  %v622 = vpop.permute.xlu0 %621
  %623 = vrot.lane.b32.xlu0 %v492, 80
  %v624 = vpop.permute.xlu0 %623
  %625 = vrot.lane.b32.xlu0 %v494, 80
  %v626 = vpop.permute.xlu0 %625
  %631 = vrot.lane.b32.xlu0 %v488, 32
  %v632 = vpop.permute.xlu0 %631
  %633 = vrot.lane.b32.xlu0 %v490, 32
  %v634 = vpop.permute.xlu0 %633
  %635 = vrot.lane.b32.xlu0 %v492, 32
  %v636 = vpop.permute.xlu0 %635
  %637 = vrot.lane.b32.xlu0 %v494, 32
  %v638 = vpop.permute.xlu0 %637
  %v643 = vsel %vm287, %v620, %v632
  %v644 = vsel %vm287, %v622, %v634
  %v645 = vsel %vm287, %v624, %v636
  %v646 = vsel %vm287, %v626, %v638
  %v647 = vtanh.pop %v611
  %v648 = vtanh.pop %v612
  %v649 = vtanh.pop %v613
  %v650 = vtanh.pop %v614
  %v651 = vmul.f32 %v643, %v647
  %v652 = vmul.f32 %v644, %v648
  %v653 = vmul.f32 %v645, %v649
  %v654 = vmul.f32 %v646, %v650
  %655 = vst.msk [vmem:[#allocation3] sm:$0xff] %vm11, %v611
  %656 = vst.msk [vmem:[#allocation3 + $0x8] sm:$0xff] %vm11, %v612
  %657 = vst.msk [vmem:[#allocation3 + $0x10] sm:$0xff] %vm11, %v613
  %658 = vst.msk [vmem:[#allocation3 + $0x18] sm:$0xff] %vm11, %v614
  %659 = vst.msk [vmem:[#allocation2] sm:$0xff] %vm11, %v651
  %660 = vst.msk [vmem:[#allocation2 + $0x8] sm:$0xff] %vm11, %v652
  %661 = vst.msk [vmem:[#allocation2 + $0x10] sm:$0xff] %vm11, %v653
  %662 = vst.msk [vmem:[#allocation2 + $0x18] sm:$0xff] %vm11, %v654
  %s663 = scalar_lea.vmem %s2, 32
  %664 = vst.msk [vmem:[%s663] sm:$0xff] %vm11, %v651
  %665 = vst.msk [vmem:[%s663 + $0x8] sm:$0xff] %vm11, %v652
  %666 = vst.msk [vmem:[%s663 + $0x10] sm:$0xff] %vm11, %v653
  %667 = vst.msk [vmem:[%s663 + $0x18] sm:$0xff] %vm11, %v654
  %v668 = vld [vmem:[#allocation2] sm:$0xff]
  %v669 = vld [vmem:[#allocation2 + $0x8] sm:$0xff]
  %v670 = vld [vmem:[#allocation2 + $0x10] sm:$0xff]
  %v671 = vld [vmem:[#allocation2 + $0x18] sm:$0xff]
  %v672 = vld [vmem:[#allocation3] sm:$0xff]
  %v673 = vld [vmem:[#allocation3 + $0x8] sm:$0xff]
  %v674 = vld [vmem:[#allocation3 + $0x10] sm:$0xff]
  %v675 = vld [vmem:[#allocation3 + $0x18] sm:$0xff]
  %s676 = scalar_lea.vmem %s0, 64
  %v677 = vld [vmem:[%s676] sm:$0xff]
  %v678 = vld [vmem:[%s676 + $0x8] sm:$0xff]
  %v679 = vld [vmem:[%s676 + $0x10] sm:$0xff]
  %v680 = vld [vmem:[%s676 + $0x18] sm:$0xff]
  %s681 = scalar_lea.vmem %s0, 160
  %v682 = vld [vmem:[%s681] sm:$0xff]
  %v683 = vld [vmem:[%s681 + $0x8] sm:$0xff]
  %v684 = vld [vmem:[%s681 + $0x10] sm:$0xff]
  %v685 = vld [vmem:[%s681 + $0x18] sm:$0xff]
  %v686 = vsel %vm37, %v677, %v682
  %v687 = vsel %vm37, %v678, %v683
  %v688 = vsel %vm37, %v679, %v684
  %v689 = vsel %vm37, %v680, %v685
  %v690 = vld [vmem:[%s1] sm:$0xff]
  %v691 = vld [vmem:[%s1 + $0x8] sm:$0xff]
  %v692 = vld [vmem:[%s1 + $0x10] sm:$0xff]
  %v693 = vld [vmem:[%s1 + $0x18] sm:$0xff]
  %v695 = vsel %vm11, %v668, 0
  %v698 = vsel %vm11, %v669, 0
  %v701 = vsel %vm11, %v670, 0
  %v704 = vsel %vm11, %v671, 0
  %706 = vmatprep.subr.mxu0 0.0
  %707 = vmatpush1.msra.mxu0 0.0
  %708 = vmatprep.subr.mxu0 0.0
  %709 = vmatpush1.msra.mxu0 0.0
  %710 = vmatprep.subr.mxu0 0.0
  %711 = vmatpush1.msra.mxu0 0.0
  %712 = vmatprep.subr.mxu0 0.0
  %713 = vmatpush1.msra.mxu0 0.0
  %714 = vmatprep.subr.mxu0 0.0
  %715 = vmatpush1.msra.mxu0 0.0
  %716 = vmatprep.subr.mxu0 0.0
  %717 = vmatpush1.msra.mxu0 0.0
  %718 = vmatprep.subr.mxu0 0.0
  %719 = vmatpush1.msra.mxu0 0.0
  %720 = vmatprep.subr.mxu0 0.0
  %721 = vmatpush1.msra.mxu0 0.0
  %722 = vmatprep.subr.mxu0 0.0
  %723 = vmatpush1.msra.mxu0 0.0
  %724 = vmatprep.subr.mxu0 0.0
  %725 = vmatpush1.msra.mxu0 0.0
  %726 = vmatprep.subr.mxu0 0.0
  %727 = vmatpush1.msra.mxu0 0.0
  %728 = vmatprep.subr.mxu0 0.0
  %729 = vmatpush1.msra.mxu0 0.0
  %730 = vmatprep.subr.mxu0 0.0
  %731 = vmatpush1.msra.mxu0 %v693
  %732 = vmatprep.subr.mxu0 0.0
  %733 = vmatpush1.msra.mxu0 %v692
  %734 = vmatprep.subr.mxu0 0.0
  %735 = vmatpush1.msra.mxu0 %v691
  %736 = vmatprep.subr.mxu0 0.0
  %737 = vmatpush1.msra.mxu0 %v690
  %738 = vmatprep.subr.mxu0 0.0
  %739 = vmatpush2.msra.mxu0 0.0
  %740 = vmatprep.subr.mxu0 0.0
  %741 = vmatpush2.msra.mxu0 0.0
  %742 = vmatprep.subr.mxu0 0.0
  %743 = vmatpush2.msra.mxu0 0.0
  %744 = vmatprep.subr.mxu0 0.0
  %745 = vmatpush2.msra.mxu0 0.0
  %746 = vmatprep.subr.mxu0 0.0
  %747 = vmatpush2.msra.mxu0 0.0
  %748 = vmatprep.subr.mxu0 0.0
  %749 = vmatpush2.msra.mxu0 0.0
  %750 = vmatprep.subr.mxu0 0.0
  %751 = vmatpush2.msra.mxu0 0.0
  %752 = vmatprep.subr.mxu0 0.0
  %753 = vmatpush2.msra.mxu0 0.0
  %754 = vmatprep.subr.mxu0 0.0
  %755 = vmatpush2.msra.mxu0 0.0
  %756 = vmatprep.subr.mxu0 0.0
  %757 = vmatpush2.msra.mxu0 0.0
  %758 = vmatprep.subr.mxu0 0.0
  %759 = vmatpush2.msra.mxu0 0.0
  %760 = vmatprep.subr.mxu0 0.0
  %761 = vmatpush2.msra.mxu0 0.0
  %762 = vmatprep.subr.mxu0 0.0
  %763 = vmatpush2.msra.mxu0 0.0
  %764 = vmatprep.subr.mxu0 0.0
  %765 = vmatpush2.msra.mxu0 0.0
  %766 = vmatprep.subr.mxu0 0.0
  %767 = vmatpush2.msra.mxu0 0.0
  %768 = vmatprep.subr.mxu0 0.0
  %769 = vmatpush2.msra.mxu0 0.0
  %770 = vmatprep.mubr.f32.mxu0 0.0
  %771 = vmatmul.mubr.f32.gmra.mxu0 %v695
  %v772 = vpop.f32.mrf.mxu0
  %v773 = vadd.f32 0.0, %v772
  %v774 = vpop.f32.mrf.mxu0
  %775 = vmatprep.mubr.f32.mxu0 0.0
  %776 = vmatmul.mubr.f32.gmra.mxu0 %v698
  %v777 = vpop.f32.mrf.mxu0
  %v778 = vadd.f32 0.0, %v777
  %v779 = vpop.f32.mrf.mxu0
  %780 = vmatprep.mubr.f32.mxu0 0.0
  %781 = vmatmul.mubr.f32.gmra.mxu0 %v701
  %v782 = vpop.f32.mrf.mxu0
  %v783 = vadd.f32 0.0, %v782
  %v784 = vpop.f32.mrf.mxu0
  %785 = vmatprep.mubr.f32.mxu0 0.0
  %786 = vmatmul.mubr.f32.gmra.mxu0 %v704
  %v787 = vpop.f32.mrf.mxu0
  %v788 = vadd.f32 0.0, %v787
  %v789 = vpop.f32.mrf.mxu0
  %790 = vdwg.mxu0
  %v791 = vadd.f32 %v686, %v773
  %v792 = vadd.f32 %v687, %v778
  %v793 = vadd.f32 %v688, %v783
  %v794 = vadd.f32 %v689, %v788
  %v795 = vxor.u32 %v791, 2147483648
  %v796 = vxor.u32 %v792, 2147483648
  %v797 = vxor.u32 %v793, 2147483648
  %v798 = vxor.u32 %v794, 2147483648
  %v799 = vmul.f32 %v795, 1.442695
  %v800 = vpow.pop %v799
  %v801 = vmul.f32 %v796, 1.442695
  %v802 = vpow.pop %v801
  %v803 = vmul.f32 %v797, 1.442695
  %v804 = vpow.pop %v803
  %v805 = vmul.f32 %v798, 1.442695
  %v806 = vpow.pop %v805
  %v807 = vadd.f32 %v800, 1.0
  %v808 = vadd.f32 %v802, 1.0
  %v809 = vadd.f32 %v804, 1.0
  %v810 = vadd.f32 %v806, 1.0
  %v811 = vrcp.pop %v807
  %v812 = vmul.f32 1.0, %v811
  %v813 = vrcp.pop %v808
  %v814 = vmul.f32 1.0, %v813
  %v815 = vrcp.pop %v809
  %v816 = vmul.f32 1.0, %v815
  %v817 = vrcp.pop %v810
  %v818 = vmul.f32 1.0, %v817
  %v819 = vtanh.pop %v791
  %v820 = vtanh.pop %v792
  %v821 = vtanh.pop %v793
  %v822 = vtanh.pop %v794
  %827 = vrot.lane.b32.xlu0 %v672, 16
  %v828 = vpop.permute.xlu0 %827
  %829 = vrot.lane.b32.xlu0 %v673, 16
  %v830 = vpop.permute.xlu0 %829
  %831 = vrot.lane.b32.xlu0 %v674, 16
  %v832 = vpop.permute.xlu0 %831
  %833 = vrot.lane.b32.xlu0 %v675, 16
  %v834 = vpop.permute.xlu0 %833
  %v839 = vmul.f32 %v812, %v828
  %v840 = vmul.f32 %v814, %v830
  %v841 = vmul.f32 %v816, %v832
  %v842 = vmul.f32 %v818, %v834
  %847 = vrot.lane.b32.xlu0 %v819, 96
  %v848 = vpop.permute.xlu0 %847
  %849 = vrot.lane.b32.xlu0 %v820, 96
  %v850 = vpop.permute.xlu0 %849
  %851 = vrot.lane.b32.xlu0 %v821, 96
  %v852 = vpop.permute.xlu0 %851
  %853 = vrot.lane.b32.xlu0 %v822, 96
  %v854 = vpop.permute.xlu0 %853
  %v859 = vmul.f32 %v812, %v848
  %v860 = vmul.f32 %v814, %v850
  %v861 = vmul.f32 %v816, %v852
  %v862 = vmul.f32 %v818, %v854
  %867 = vrot.lane.b32.xlu0 %v859, 16
  %v868 = vpop.permute.xlu0 %867
  %869 = vrot.lane.b32.xlu0 %v860, 16
  %v870 = vpop.permute.xlu0 %869
  %871 = vrot.lane.b32.xlu0 %v861, 16
  %v872 = vpop.permute.xlu0 %871
  %873 = vrot.lane.b32.xlu0 %v862, 16
  %v874 = vpop.permute.xlu0 %873
  %v879 = vadd.f32 %v839, %v868
  %v880 = vadd.f32 %v840, %v870
  %v881 = vadd.f32 %v841, %v872
  %v882 = vadd.f32 %v842, %v874
  %883 = vrot.lane.b32.xlu0 %v672, 64
  %v884 = vpop.permute.xlu0 %883
  %885 = vrot.lane.b32.xlu0 %v673, 64
  %v886 = vpop.permute.xlu0 %885
  %887 = vrot.lane.b32.xlu0 %v674, 64
  %v888 = vpop.permute.xlu0 %887
  %889 = vrot.lane.b32.xlu0 %v675, 64
  %v890 = vpop.permute.xlu0 %889
  %v895 = vmul.f32 %v812, %v884
  %v896 = vmul.f32 %v814, %v886
  %v897 = vmul.f32 %v816, %v888
  %v898 = vmul.f32 %v818, %v890
  %v899 = vadd.f32 %v895, %v868
  %v900 = vadd.f32 %v896, %v870
  %v901 = vadd.f32 %v897, %v872
  %v902 = vadd.f32 %v898, %v874
  %907 = vrot.lane.b32.xlu0 %v879, 112
  %v908 = vpop.permute.xlu0 %907
  %909 = vrot.lane.b32.xlu0 %v880, 112
  %v910 = vpop.permute.xlu0 %909
  %911 = vrot.lane.b32.xlu0 %v881, 112
  %v912 = vpop.permute.xlu0 %911
  %913 = vrot.lane.b32.xlu0 %v882, 112
  %v914 = vpop.permute.xlu0 %913
  %923 = vrot.lane.b32.xlu0 %v899, 64
  %v924 = vpop.permute.xlu0 %923
  %925 = vrot.lane.b32.xlu0 %v900, 64
  %v926 = vpop.permute.xlu0 %925
  %927 = vrot.lane.b32.xlu0 %v901, 64
  %v928 = vpop.permute.xlu0 %927
  %929 = vrot.lane.b32.xlu0 %v902, 64
  %v930 = vpop.permute.xlu0 %929
  %v935 = vsel %vm287, %v908, %v924
  %v936 = vsel %vm287, %v910, %v926
  %v937 = vsel %vm287, %v912, %v928
  %v938 = vsel %vm287, %v914, %v930
  %943 = vrot.lane.b32.xlu0 %v812, 80
  %v944 = vpop.permute.xlu0 %943
  %945 = vrot.lane.b32.xlu0 %v814, 80
  %v946 = vpop.permute.xlu0 %945
  %947 = vrot.lane.b32.xlu0 %v816, 80
  %v948 = vpop.permute.xlu0 %947
  %949 = vrot.lane.b32.xlu0 %v818, 80
  %v950 = vpop.permute.xlu0 %949
  %955 = vrot.lane.b32.xlu0 %v812, 32
  %v956 = vpop.permute.xlu0 %955
  %957 = vrot.lane.b32.xlu0 %v814, 32
  %v958 = vpop.permute.xlu0 %957
  %959 = vrot.lane.b32.xlu0 %v816, 32
  %v960 = vpop.permute.xlu0 %959
  %961 = vrot.lane.b32.xlu0 %v818, 32
  %v962 = vpop.permute.xlu0 %961
  %v967 = vsel %vm287, %v944, %v956
  %v968 = vsel %vm287, %v946, %v958
  %v969 = vsel %vm287, %v948, %v960
  %v970 = vsel %vm287, %v950, %v962
  %v971 = vtanh.pop %v935
  %v972 = vtanh.pop %v936
  %v973 = vtanh.pop %v937
  %v974 = vtanh.pop %v938
  %v975 = vmul.f32 %v967, %v971
  %v976 = vmul.f32 %v968, %v972
  %v977 = vmul.f32 %v969, %v973
  %v978 = vmul.f32 %v970, %v974
  %979 = vst.msk [vmem:[#allocation3] sm:$0xff] %vm11, %v935
  %980 = vst.msk [vmem:[#allocation3 + $0x8] sm:$0xff] %vm11, %v936
  %981 = vst.msk [vmem:[#allocation3 + $0x10] sm:$0xff] %vm11, %v937
  %982 = vst.msk [vmem:[#allocation3 + $0x18] sm:$0xff] %vm11, %v938
  %983 = vst.msk [vmem:[#allocation2] sm:$0xff] %vm11, %v975
  %984 = vst.msk [vmem:[#allocation2 + $0x8] sm:$0xff] %vm11, %v976
  %985 = vst.msk [vmem:[#allocation2 + $0x10] sm:$0xff] %vm11, %v977
  %986 = vst.msk [vmem:[#allocation2 + $0x18] sm:$0xff] %vm11, %v978
  %s987 = scalar_lea.vmem %s2, 64
  %988 = vst.msk [vmem:[%s987] sm:$0xff] %vm11, %v975
  %989 = vst.msk [vmem:[%s987 + $0x8] sm:$0xff] %vm11, %v976
  %990 = vst.msk [vmem:[%s987 + $0x10] sm:$0xff] %vm11, %v977
  %991 = vst.msk [vmem:[%s987 + $0x18] sm:$0xff] %vm11, %v978
  %v992 = vld [vmem:[#allocation2] sm:$0xff]
  %v993 = vld [vmem:[#allocation2 + $0x8] sm:$0xff]
  %v994 = vld [vmem:[#allocation2 + $0x10] sm:$0xff]
  %v995 = vld [vmem:[#allocation2 + $0x18] sm:$0xff]
  %v996 = vld [vmem:[#allocation3] sm:$0xff]
  %v997 = vld [vmem:[#allocation3 + $0x8] sm:$0xff]
  %v998 = vld [vmem:[#allocation3 + $0x10] sm:$0xff]
  %v999 = vld [vmem:[#allocation3 + $0x18] sm:$0xff]
  %s1000 = scalar_lea.vmem %s0, 96
  %v1001 = vld [vmem:[%s1000] sm:$0xff]
  %v1002 = vld [vmem:[%s1000 + $0x8] sm:$0xff]
  %v1003 = vld [vmem:[%s1000 + $0x10] sm:$0xff]
  %v1004 = vld [vmem:[%s1000 + $0x18] sm:$0xff]
  %s1005 = scalar_lea.vmem %s0, 128
  %v1006 = vld [vmem:[%s1005] sm:$0xff]
  %v1007 = vld [vmem:[%s1005 + $0x8] sm:$0xff]
  %v1008 = vld [vmem:[%s1005 + $0x10] sm:$0xff]
  %v1009 = vld [vmem:[%s1005 + $0x18] sm:$0xff]
  %v1010 = vsel %vm37, %v1001, %v1006
  %v1011 = vsel %vm37, %v1002, %v1007
  %v1012 = vsel %vm37, %v1003, %v1008
  %v1013 = vsel %vm37, %v1004, %v1009
  %v1014 = vld [vmem:[%s1] sm:$0xff]
  %v1015 = vld [vmem:[%s1 + $0x8] sm:$0xff]
  %v1016 = vld [vmem:[%s1 + $0x10] sm:$0xff]
  %v1017 = vld [vmem:[%s1 + $0x18] sm:$0xff]
  %v1019 = vsel %vm11, %v992, 0
  %v1022 = vsel %vm11, %v993, 0
  %v1025 = vsel %vm11, %v994, 0
  %v1028 = vsel %vm11, %v995, 0
  %1030 = vmatprep.subr.mxu0 0.0
  %1031 = vmatpush1.msra.mxu0 0.0
  %1032 = vmatprep.subr.mxu0 0.0
  %1033 = vmatpush1.msra.mxu0 0.0
  %1034 = vmatprep.subr.mxu0 0.0
  %1035 = vmatpush1.msra.mxu0 0.0
  %1036 = vmatprep.subr.mxu0 0.0
  %1037 = vmatpush1.msra.mxu0 0.0
  %1038 = vmatprep.subr.mxu0 0.0
  %1039 = vmatpush1.msra.mxu0 0.0
  %1040 = vmatprep.subr.mxu0 0.0
  %1041 = vmatpush1.msra.mxu0 0.0
  %1042 = vmatprep.subr.mxu0 0.0
  %1043 = vmatpush1.msra.mxu0 0.0
  %1044 = vmatprep.subr.mxu0 0.0
  %1045 = vmatpush1.msra.mxu0 0.0
  %1046 = vmatprep.subr.mxu0 0.0
  %1047 = vmatpush1.msra.mxu0 0.0
  %1048 = vmatprep.subr.mxu0 0.0
  %1049 = vmatpush1.msra.mxu0 0.0
  %1050 = vmatprep.subr.mxu0 0.0
  %1051 = vmatpush1.msra.mxu0 0.0
  %1052 = vmatprep.subr.mxu0 0.0
  %1053 = vmatpush1.msra.mxu0 0.0
  %1054 = vmatprep.subr.mxu0 0.0
  %1055 = vmatpush1.msra.mxu0 %v1017
  %1056 = vmatprep.subr.mxu0 0.0
  %1057 = vmatpush1.msra.mxu0 %v1016
  %1058 = vmatprep.subr.mxu0 0.0
  %1059 = vmatpush1.msra.mxu0 %v1015
  %1060 = vmatprep.subr.mxu0 0.0
  %1061 = vmatpush1.msra.mxu0 %v1014
  %1062 = vmatprep.subr.mxu0 0.0
  %1063 = vmatpush2.msra.mxu0 0.0
  %1064 = vmatprep.subr.mxu0 0.0
  %1065 = vmatpush2.msra.mxu0 0.0
  %1066 = vmatprep.subr.mxu0 0.0
  %1067 = vmatpush2.msra.mxu0 0.0
  %1068 = vmatprep.subr.mxu0 0.0
  %1069 = vmatpush2.msra.mxu0 0.0
  %1070 = vmatprep.subr.mxu0 0.0
  %1071 = vmatpush2.msra.mxu0 0.0
  %1072 = vmatprep.subr.mxu0 0.0
  %1073 = vmatpush2.msra.mxu0 0.0
  %1074 = vmatprep.subr.mxu0 0.0
  %1075 = vmatpush2.msra.mxu0 0.0
  %1076 = vmatprep.subr.mxu0 0.0
  %1077 = vmatpush2.msra.mxu0 0.0
  %1078 = vmatprep.subr.mxu0 0.0
  %1079 = vmatpush2.msra.mxu0 0.0
  %1080 = vmatprep.subr.mxu0 0.0
  %1081 = vmatpush2.msra.mxu0 0.0
  %1082 = vmatprep.subr.mxu0 0.0
  %1083 = vmatpush2.msra.mxu0 0.0
  %1084 = vmatprep.subr.mxu0 0.0
  %1085 = vmatpush2.msra.mxu0 0.0
  %1086 = vmatprep.subr.mxu0 0.0
  %1087 = vmatpush2.msra.mxu0 0.0
  %1088 = vmatprep.subr.mxu0 0.0
  %1089 = vmatpush2.msra.mxu0 0.0
  %1090 = vmatprep.subr.mxu0 0.0
  %1091 = vmatpush2.msra.mxu0 0.0
  %1092 = vmatprep.subr.mxu0 0.0
  %1093 = vmatpush2.msra.mxu0 0.0
  %1094 = vmatprep.mubr.f32.mxu0 0.0
  %1095 = vmatmul.mubr.f32.gmra.mxu0 %v1019
  %v1096 = vpop.f32.mrf.mxu0
  %v1097 = vadd.f32 0.0, %v1096
  %v1098 = vpop.f32.mrf.mxu0
  %1099 = vmatprep.mubr.f32.mxu0 0.0
  %1100 = vmatmul.mubr.f32.gmra.mxu0 %v1022
  %v1101 = vpop.f32.mrf.mxu0
  %v1102 = vadd.f32 0.0, %v1101
  %v1103 = vpop.f32.mrf.mxu0
  %1104 = vmatprep.mubr.f32.mxu0 0.0
  %1105 = vmatmul.mubr.f32.gmra.mxu0 %v1025
  %v1106 = vpop.f32.mrf.mxu0
  %v1107 = vadd.f32 0.0, %v1106
  %v1108 = vpop.f32.mrf.mxu0
  %1109 = vmatprep.mubr.f32.mxu0 0.0
  %1110 = vmatmul.mubr.f32.gmra.mxu0 %v1028
  %v1111 = vpop.f32.mrf.mxu0
  %v1112 = vadd.f32 0.0, %v1111
  %v1113 = vpop.f32.mrf.mxu0
  %1114 = vdwg.mxu0
  %v1115 = vadd.f32 %v1010, %v1097
  %v1116 = vadd.f32 %v1011, %v1102
  %v1117 = vadd.f32 %v1012, %v1107
  %v1118 = vadd.f32 %v1013, %v1112
  %v1119 = vxor.u32 %v1115, 2147483648
  %v1120 = vxor.u32 %v1116, 2147483648
  %v1121 = vxor.u32 %v1117, 2147483648
  %v1122 = vxor.u32 %v1118, 2147483648
  %v1123 = vmul.f32 %v1119, 1.442695
  %v1124 = vpow.pop %v1123
  %v1125 = vmul.f32 %v1120, 1.442695
  %v1126 = vpow.pop %v1125
  %v1127 = vmul.f32 %v1121, 1.442695
  %v1128 = vpow.pop %v1127
  %v1129 = vmul.f32 %v1122, 1.442695
  %v1130 = vpow.pop %v1129
  %v1131 = vadd.f32 %v1124, 1.0
  %v1132 = vadd.f32 %v1126, 1.0
  %v1133 = vadd.f32 %v1128, 1.0
  %v1134 = vadd.f32 %v1130, 1.0
  %v1135 = vrcp.pop %v1131
  %v1136 = vmul.f32 1.0, %v1135
  %v1137 = vrcp.pop %v1132
  %v1138 = vmul.f32 1.0, %v1137
  %v1139 = vrcp.pop %v1133
  %v1140 = vmul.f32 1.0, %v1139
  %v1141 = vrcp.pop %v1134
  %v1142 = vmul.f32 1.0, %v1141
  %v1143 = vtanh.pop %v1115
  %v1144 = vtanh.pop %v1116
  %v1145 = vtanh.pop %v1117
  %v1146 = vtanh.pop %v1118
  %1151 = vrot.lane.b32.xlu0 %v996, 16
  %v1152 = vpop.permute.xlu0 %1151
  %1153 = vrot.lane.b32.xlu0 %v997, 16
  %v1154 = vpop.permute.xlu0 %1153
  %1155 = vrot.lane.b32.xlu0 %v998, 16
  %v1156 = vpop.permute.xlu0 %1155
  %1157 = vrot.lane.b32.xlu0 %v999, 16
  %v1158 = vpop.permute.xlu0 %1157
  %v1163 = vmul.f32 %v1136, %v1152
  %v1164 = vmul.f32 %v1138, %v1154
  %v1165 = vmul.f32 %v1140, %v1156
  %v1166 = vmul.f32 %v1142, %v1158
  %1171 = vrot.lane.b32.xlu0 %v1143, 96
  %v1172 = vpop.permute.xlu0 %1171
  %1173 = vrot.lane.b32.xlu0 %v1144, 96
  %v1174 = vpop.permute.xlu0 %1173
  %1175 = vrot.lane.b32.xlu0 %v1145, 96
  %v1176 = vpop.permute.xlu0 %1175
  %1177 = vrot.lane.b32.xlu0 %v1146, 96
  %v1178 = vpop.permute.xlu0 %1177
  %v1183 = vmul.f32 %v1136, %v1172
  %v1184 = vmul.f32 %v1138, %v1174
  %v1185 = vmul.f32 %v1140, %v1176
  %v1186 = vmul.f32 %v1142, %v1178
  %1191 = vrot.lane.b32.xlu0 %v1183, 16
  %v1192 = vpop.permute.xlu0 %1191
  %1193 = vrot.lane.b32.xlu0 %v1184, 16
  %v1194 = vpop.permute.xlu0 %1193
  %1195 = vrot.lane.b32.xlu0 %v1185, 16
  %v1196 = vpop.permute.xlu0 %1195
  %1197 = vrot.lane.b32.xlu0 %v1186, 16
  %v1198 = vpop.permute.xlu0 %1197
  %v1203 = vadd.f32 %v1163, %v1192
  %v1204 = vadd.f32 %v1164, %v1194
  %v1205 = vadd.f32 %v1165, %v1196
  %v1206 = vadd.f32 %v1166, %v1198
  %1207 = vrot.lane.b32.xlu0 %v996, 64
  %v1208 = vpop.permute.xlu0 %1207
  %1209 = vrot.lane.b32.xlu0 %v997, 64
  %v1210 = vpop.permute.xlu0 %1209
  %1211 = vrot.lane.b32.xlu0 %v998, 64
  %v1212 = vpop.permute.xlu0 %1211
  %1213 = vrot.lane.b32.xlu0 %v999, 64
  %v1214 = vpop.permute.xlu0 %1213
  %v1219 = vmul.f32 %v1136, %v1208
  %v1220 = vmul.f32 %v1138, %v1210
  %v1221 = vmul.f32 %v1140, %v1212
  %v1222 = vmul.f32 %v1142, %v1214
  %v1223 = vadd.f32 %v1219, %v1192
  %v1224 = vadd.f32 %v1220, %v1194
  %v1225 = vadd.f32 %v1221, %v1196
  %v1226 = vadd.f32 %v1222, %v1198
  %1231 = vrot.lane.b32.xlu0 %v1203, 112
  %v1232 = vpop.permute.xlu0 %1231
  %1233 = vrot.lane.b32.xlu0 %v1204, 112
  %v1234 = vpop.permute.xlu0 %1233
  %1235 = vrot.lane.b32.xlu0 %v1205, 112
  %v1236 = vpop.permute.xlu0 %1235
  %1237 = vrot.lane.b32.xlu0 %v1206, 112
  %v1238 = vpop.permute.xlu0 %1237
  %1247 = vrot.lane.b32.xlu0 %v1223, 64
  %v1248 = vpop.permute.xlu0 %1247
  %1249 = vrot.lane.b32.xlu0 %v1224, 64
  %v1250 = vpop.permute.xlu0 %1249
  %1251 = vrot.lane.b32.xlu0 %v1225, 64
  %v1252 = vpop.permute.xlu0 %1251
  %1253 = vrot.lane.b32.xlu0 %v1226, 64
  %v1254 = vpop.permute.xlu0 %1253
  %v1259 = vsel %vm287, %v1232, %v1248
  %v1260 = vsel %vm287, %v1234, %v1250
  %v1261 = vsel %vm287, %v1236, %v1252
  %v1262 = vsel %vm287, %v1238, %v1254
  %1267 = vrot.lane.b32.xlu0 %v1136, 80
  %v1268 = vpop.permute.xlu0 %1267
  %1269 = vrot.lane.b32.xlu0 %v1138, 80
  %v1270 = vpop.permute.xlu0 %1269
  %1271 = vrot.lane.b32.xlu0 %v1140, 80
  %v1272 = vpop.permute.xlu0 %1271
  %1273 = vrot.lane.b32.xlu0 %v1142, 80
  %v1274 = vpop.permute.xlu0 %1273
  %1279 = vrot.lane.b32.xlu0 %v1136, 32
  %v1280 = vpop.permute.xlu0 %1279
  %1281 = vrot.lane.b32.xlu0 %v1138, 32
  %v1282 = vpop.permute.xlu0 %1281
  %1283 = vrot.lane.b32.xlu0 %v1140, 32
  %v1284 = vpop.permute.xlu0 %1283
  %1285 = vrot.lane.b32.xlu0 %v1142, 32
  %v1286 = vpop.permute.xlu0 %1285
  %v1291 = vsel %vm287, %v1268, %v1280
  %v1292 = vsel %vm287, %v1270, %v1282
  %v1293 = vsel %vm287, %v1272, %v1284
  %v1294 = vsel %vm287, %v1274, %v1286
  %v1295 = vtanh.pop %v1259
  %v1296 = vtanh.pop %v1260
  %v1297 = vtanh.pop %v1261
  %v1298 = vtanh.pop %v1262
  %v1299 = vmul.f32 %v1291, %v1295
  %v1300 = vmul.f32 %v1292, %v1296
  %v1301 = vmul.f32 %v1293, %v1297
  %v1302 = vmul.f32 %v1294, %v1298
  %1303 = vst.msk [vmem:[#allocation3] sm:$0xff] %vm11, %v1259
  %1304 = vst.msk [vmem:[#allocation3 + $0x8] sm:$0xff] %vm11, %v1260
  %1305 = vst.msk [vmem:[#allocation3 + $0x10] sm:$0xff] %vm11, %v1261
  %1306 = vst.msk [vmem:[#allocation3 + $0x18] sm:$0xff] %vm11, %v1262
  %1307 = vst.msk [vmem:[#allocation2] sm:$0xff] %vm11, %v1299
  %1308 = vst.msk [vmem:[#allocation2 + $0x8] sm:$0xff] %vm11, %v1300
  %1309 = vst.msk [vmem:[#allocation2 + $0x10] sm:$0xff] %vm11, %v1301
  %1310 = vst.msk [vmem:[#allocation2 + $0x18] sm:$0xff] %vm11, %v1302
  %s1311 = scalar_lea.vmem %s2, 96
  %1312 = vst.msk [vmem:[%s1311] sm:$0xff] %vm11, %v1299
  %1313 = vst.msk [vmem:[%s1311 + $0x8] sm:$0xff] %vm11, %v1300
  %1314 = vst.msk [vmem:[%s1311 + $0x10] sm:$0xff] %vm11, %v1301
  %1315 = vst.msk [vmem:[%s1311 + $0x18] sm:$0xff] %vm11, %v1302
  %v1316 = vld [vmem:[#allocation2] sm:$0xff]
  %v1317 = vld [vmem:[#allocation2 + $0x8] sm:$0xff]
  %v1318 = vld [vmem:[#allocation2 + $0x10] sm:$0xff]
  %v1319 = vld [vmem:[#allocation2 + $0x18] sm:$0xff]
  %v1320 = vld [vmem:[#allocation3] sm:$0xff]
  %v1321 = vld [vmem:[#allocation3 + $0x8] sm:$0xff]
  %v1322 = vld [vmem:[#allocation3 + $0x10] sm:$0xff]
  %v1323 = vld [vmem:[#allocation3 + $0x18] sm:$0xff]
  %v1324 = vld [vmem:[%s1005] sm:$0xff]
  %v1325 = vld [vmem:[%s1005 + $0x8] sm:$0xff]
  %v1326 = vld [vmem:[%s1005 + $0x10] sm:$0xff]
  %v1327 = vld [vmem:[%s1005 + $0x18] sm:$0xff]
  %v1328 = vld [vmem:[%s1000] sm:$0xff]
  %v1329 = vld [vmem:[%s1000 + $0x8] sm:$0xff]
  %v1330 = vld [vmem:[%s1000 + $0x10] sm:$0xff]
  %v1331 = vld [vmem:[%s1000 + $0x18] sm:$0xff]
  %v1332 = vsel %vm37, %v1324, %v1328
  %v1333 = vsel %vm37, %v1325, %v1329
  %v1334 = vsel %vm37, %v1326, %v1330
  %v1335 = vsel %vm37, %v1327, %v1331
  %v1336 = vld [vmem:[%s1] sm:$0xff]
  %v1337 = vld [vmem:[%s1 + $0x8] sm:$0xff]
  %v1338 = vld [vmem:[%s1 + $0x10] sm:$0xff]
  %v1339 = vld [vmem:[%s1 + $0x18] sm:$0xff]
  %v1341 = vsel %vm11, %v1316, 0
  %v1344 = vsel %vm11, %v1317, 0
  %v1347 = vsel %vm11, %v1318, 0
  %v1350 = vsel %vm11, %v1319, 0
  %1352 = vmatprep.subr.mxu0 0.0
  %1353 = vmatpush1.msra.mxu0 0.0
  %1354 = vmatprep.subr.mxu0 0.0
  %1355 = vmatpush1.msra.mxu0 0.0
  %1356 = vmatprep.subr.mxu0 0.0
  %1357 = vmatpush1.msra.mxu0 0.0
  %1358 = vmatprep.subr.mxu0 0.0
  %1359 = vmatpush1.msra.mxu0 0.0
  %1360 = vmatprep.subr.mxu0 0.0
  %1361 = vmatpush1.msra.mxu0 0.0
  %1362 = vmatprep.subr.mxu0 0.0
  %1363 = vmatpush1.msra.mxu0 0.0
  %1364 = vmatprep.subr.mxu0 0.0
  %1365 = vmatpush1.msra.mxu0 0.0
  %1366 = vmatprep.subr.mxu0 0.0
  %1367 = vmatpush1.msra.mxu0 0.0
  %1368 = vmatprep.subr.mxu0 0.0
  %1369 = vmatpush1.msra.mxu0 0.0
  %1370 = vmatprep.subr.mxu0 0.0
  %1371 = vmatpush1.msra.mxu0 0.0
  %1372 = vmatprep.subr.mxu0 0.0
  %1373 = vmatpush1.msra.mxu0 0.0
  %1374 = vmatprep.subr.mxu0 0.0
  %1375 = vmatpush1.msra.mxu0 0.0
  %1376 = vmatprep.subr.mxu0 0.0
  %1377 = vmatpush1.msra.mxu0 %v1339
  %1378 = vmatprep.subr.mxu0 0.0
  %1379 = vmatpush1.msra.mxu0 %v1338
  %1380 = vmatprep.subr.mxu0 0.0
  %1381 = vmatpush1.msra.mxu0 %v1337
  %1382 = vmatprep.subr.mxu0 0.0
  %1383 = vmatpush1.msra.mxu0 %v1336
  %1384 = vmatprep.subr.mxu0 0.0
  %1385 = vmatpush2.msra.mxu0 0.0
  %1386 = vmatprep.subr.mxu0 0.0
  %1387 = vmatpush2.msra.mxu0 0.0
  %1388 = vmatprep.subr.mxu0 0.0
  %1389 = vmatpush2.msra.mxu0 0.0
  %1390 = vmatprep.subr.mxu0 0.0
  %1391 = vmatpush2.msra.mxu0 0.0
  %1392 = vmatprep.subr.mxu0 0.0
  %1393 = vmatpush2.msra.mxu0 0.0
  %1394 = vmatprep.subr.mxu0 0.0
  %1395 = vmatpush2.msra.mxu0 0.0
  %1396 = vmatprep.subr.mxu0 0.0
  %1397 = vmatpush2.msra.mxu0 0.0
  %1398 = vmatprep.subr.mxu0 0.0
  %1399 = vmatpush2.msra.mxu0 0.0
  %1400 = vmatprep.subr.mxu0 0.0
  %1401 = vmatpush2.msra.mxu0 0.0
  %1402 = vmatprep.subr.mxu0 0.0
  %1403 = vmatpush2.msra.mxu0 0.0
  %1404 = vmatprep.subr.mxu0 0.0
  %1405 = vmatpush2.msra.mxu0 0.0
  %1406 = vmatprep.subr.mxu0 0.0
  %1407 = vmatpush2.msra.mxu0 0.0
  %1408 = vmatprep.subr.mxu0 0.0
  %1409 = vmatpush2.msra.mxu0 0.0
  %1410 = vmatprep.subr.mxu0 0.0
  %1411 = vmatpush2.msra.mxu0 0.0
  %1412 = vmatprep.subr.mxu0 0.0
  %1413 = vmatpush2.msra.mxu0 0.0
  %1414 = vmatprep.subr.mxu0 0.0
  %1415 = vmatpush2.msra.mxu0 0.0
  %1416 = vmatprep.mubr.f32.mxu0 0.0
  %1417 = vmatmul.mubr.f32.gmra.mxu0 %v1341
  %v1418 = vpop.f32.mrf.mxu0
  %v1419 = vadd.f32 0.0, %v1418
  %v1420 = vpop.f32.mrf.mxu0
  %1421 = vmatprep.mubr.f32.mxu0 0.0
  %1422 = vmatmul.mubr.f32.gmra.mxu0 %v1344
  %v1423 = vpop.f32.mrf.mxu0
  %v1424 = vadd.f32 0.0, %v1423
  %v1425 = vpop.f32.mrf.mxu0
  %1426 = vmatprep.mubr.f32.mxu0 0.0
  %1427 = vmatmul.mubr.f32.gmra.mxu0 %v1347
  %v1428 = vpop.f32.mrf.mxu0
  %v1429 = vadd.f32 0.0, %v1428
  %v1430 = vpop.f32.mrf.mxu0
  %1431 = vmatprep.mubr.f32.mxu0 0.0
  %1432 = vmatmul.mubr.f32.gmra.mxu0 %v1350
  %v1433 = vpop.f32.mrf.mxu0
  %v1434 = vadd.f32 0.0, %v1433
  %v1435 = vpop.f32.mrf.mxu0
  %1436 = vdwg.mxu0
  %v1437 = vadd.f32 %v1332, %v1419
  %v1438 = vadd.f32 %v1333, %v1424
  %v1439 = vadd.f32 %v1334, %v1429
  %v1440 = vadd.f32 %v1335, %v1434
  %v1441 = vxor.u32 %v1437, 2147483648
  %v1442 = vxor.u32 %v1438, 2147483648
  %v1443 = vxor.u32 %v1439, 2147483648
  %v1444 = vxor.u32 %v1440, 2147483648
  %v1445 = vmul.f32 %v1441, 1.442695
  %v1446 = vpow.pop %v1445
  %v1447 = vmul.f32 %v1442, 1.442695
  %v1448 = vpow.pop %v1447
  %v1449 = vmul.f32 %v1443, 1.442695
  %v1450 = vpow.pop %v1449
  %v1451 = vmul.f32 %v1444, 1.442695
  %v1452 = vpow.pop %v1451
  %v1453 = vadd.f32 %v1446, 1.0
  %v1454 = vadd.f32 %v1448, 1.0
  %v1455 = vadd.f32 %v1450, 1.0
  %v1456 = vadd.f32 %v1452, 1.0
  %v1457 = vrcp.pop %v1453
  %v1458 = vmul.f32 1.0, %v1457
  %v1459 = vrcp.pop %v1454
  %v1460 = vmul.f32 1.0, %v1459
  %v1461 = vrcp.pop %v1455
  %v1462 = vmul.f32 1.0, %v1461
  %v1463 = vrcp.pop %v1456
  %v1464 = vmul.f32 1.0, %v1463
  %v1465 = vtanh.pop %v1437
  %v1466 = vtanh.pop %v1438
  %v1467 = vtanh.pop %v1439
  %v1468 = vtanh.pop %v1440
  %1473 = vrot.lane.b32.xlu0 %v1320, 16
  %v1474 = vpop.permute.xlu0 %1473
  %1475 = vrot.lane.b32.xlu0 %v1321, 16
  %v1476 = vpop.permute.xlu0 %1475
  %1477 = vrot.lane.b32.xlu0 %v1322, 16
  %v1478 = vpop.permute.xlu0 %1477
  %1479 = vrot.lane.b32.xlu0 %v1323, 16
  %v1480 = vpop.permute.xlu0 %1479
  %v1485 = vmul.f32 %v1458, %v1474
  %v1486 = vmul.f32 %v1460, %v1476
  %v1487 = vmul.f32 %v1462, %v1478
  %v1488 = vmul.f32 %v1464, %v1480
  %1493 = vrot.lane.b32.xlu0 %v1465, 96
  %v1494 = vpop.permute.xlu0 %1493
  %1495 = vrot.lane.b32.xlu0 %v1466, 96
  %v1496 = vpop.permute.xlu0 %1495
  %1497 = vrot.lane.b32.xlu0 %v1467, 96
  %v1498 = vpop.permute.xlu0 %1497
  %1499 = vrot.lane.b32.xlu0 %v1468, 96
  %v1500 = vpop.permute.xlu0 %1499
  %v1505 = vmul.f32 %v1458, %v1494
  %v1506 = vmul.f32 %v1460, %v1496
  %v1507 = vmul.f32 %v1462, %v1498
  %v1508 = vmul.f32 %v1464, %v1500
  %1513 = vrot.lane.b32.xlu0 %v1505, 16
  %v1514 = vpop.permute.xlu0 %1513
  %1515 = vrot.lane.b32.xlu0 %v1506, 16
  %v1516 = vpop.permute.xlu0 %1515
  %1517 = vrot.lane.b32.xlu0 %v1507, 16
  %v1518 = vpop.permute.xlu0 %1517
  %1519 = vrot.lane.b32.xlu0 %v1508, 16
  %v1520 = vpop.permute.xlu0 %1519
  %v1525 = vadd.f32 %v1485, %v1514
  %v1526 = vadd.f32 %v1486, %v1516
  %v1527 = vadd.f32 %v1487, %v1518
  %v1528 = vadd.f32 %v1488, %v1520
  %1529 = vrot.lane.b32.xlu0 %v1320, 64
  %v1530 = vpop.permute.xlu0 %1529
  %1531 = vrot.lane.b32.xlu0 %v1321, 64
  %v1532 = vpop.permute.xlu0 %1531
  %1533 = vrot.lane.b32.xlu0 %v1322, 64
  %v1534 = vpop.permute.xlu0 %1533
  %1535 = vrot.lane.b32.xlu0 %v1323, 64
  %v1536 = vpop.permute.xlu0 %1535
  %v1541 = vmul.f32 %v1458, %v1530
  %v1542 = vmul.f32 %v1460, %v1532
  %v1543 = vmul.f32 %v1462, %v1534
  %v1544 = vmul.f32 %v1464, %v1536
  %v1545 = vadd.f32 %v1541, %v1514
  %v1546 = vadd.f32 %v1542, %v1516
  %v1547 = vadd.f32 %v1543, %v1518
  %v1548 = vadd.f32 %v1544, %v1520
  %1553 = vrot.lane.b32.xlu0 %v1525, 112
  %v1554 = vpop.permute.xlu0 %1553
  %1555 = vrot.lane.b32.xlu0 %v1526, 112
  %v1556 = vpop.permute.xlu0 %1555
  %1557 = vrot.lane.b32.xlu0 %v1527, 112
  %v1558 = vpop.permute.xlu0 %1557
  %1559 = vrot.lane.b32.xlu0 %v1528, 112
  %v1560 = vpop.permute.xlu0 %1559
  %1569 = vrot.lane.b32.xlu0 %v1545, 64
  %v1570 = vpop.permute.xlu0 %1569
  %1571 = vrot.lane.b32.xlu0 %v1546, 64
  %v1572 = vpop.permute.xlu0 %1571
  %1573 = vrot.lane.b32.xlu0 %v1547, 64
  %v1574 = vpop.permute.xlu0 %1573
  %1575 = vrot.lane.b32.xlu0 %v1548, 64
  %v1576 = vpop.permute.xlu0 %1575
  %v1581 = vsel %vm287, %v1554, %v1570
  %v1582 = vsel %vm287, %v1556, %v1572
  %v1583 = vsel %vm287, %v1558, %v1574
  %v1584 = vsel %vm287, %v1560, %v1576
  %1589 = vrot.lane.b32.xlu0 %v1458, 80
  %v1590 = vpop.permute.xlu0 %1589
  %1591 = vrot.lane.b32.xlu0 %v1460, 80
  %v1592 = vpop.permute.xlu0 %1591
  %1593 = vrot.lane.b32.xlu0 %v1462, 80
  %v1594 = vpop.permute.xlu0 %1593
  %1595 = vrot.lane.b32.xlu0 %v1464, 80
  %v1596 = vpop.permute.xlu0 %1595
  %1601 = vrot.lane.b32.xlu0 %v1458, 32
  %v1602 = vpop.permute.xlu0 %1601
  %1603 = vrot.lane.b32.xlu0 %v1460, 32
  %v1604 = vpop.permute.xlu0 %1603
  %1605 = vrot.lane.b32.xlu0 %v1462, 32
  %v1606 = vpop.permute.xlu0 %1605
  %1607 = vrot.lane.b32.xlu0 %v1464, 32
  %v1608 = vpop.permute.xlu0 %1607
  %v1613 = vsel %vm287, %v1590, %v1602
  %v1614 = vsel %vm287, %v1592, %v1604
  %v1615 = vsel %vm287, %v1594, %v1606
  %v1616 = vsel %vm287, %v1596, %v1608
  %v1617 = vtanh.pop %v1581
  %v1618 = vtanh.pop %v1582
  %v1619 = vtanh.pop %v1583
  %v1620 = vtanh.pop %v1584
  %v1621 = vmul.f32 %v1613, %v1617
  %v1622 = vmul.f32 %v1614, %v1618
  %v1623 = vmul.f32 %v1615, %v1619
  %v1624 = vmul.f32 %v1616, %v1620
  %1625 = vst.msk [vmem:[#allocation3] sm:$0xff] %vm11, %v1581
  %1626 = vst.msk [vmem:[#allocation3 + $0x8] sm:$0xff] %vm11, %v1582
  %1627 = vst.msk [vmem:[#allocation3 + $0x10] sm:$0xff] %vm11, %v1583
  %1628 = vst.msk [vmem:[#allocation3 + $0x18] sm:$0xff] %vm11, %v1584
  %1629 = vst.msk [vmem:[#allocation2] sm:$0xff] %vm11, %v1621
  %1630 = vst.msk [vmem:[#allocation2 + $0x8] sm:$0xff] %vm11, %v1622
  %1631 = vst.msk [vmem:[#allocation2 + $0x10] sm:$0xff] %vm11, %v1623
  %1632 = vst.msk [vmem:[#allocation2 + $0x18] sm:$0xff] %vm11, %v1624
  %s1633 = scalar_lea.vmem %s2, 128
  %1634 = vst.msk [vmem:[%s1633] sm:$0xff] %vm11, %v1621
  %1635 = vst.msk [vmem:[%s1633 + $0x8] sm:$0xff] %vm11, %v1622
  %1636 = vst.msk [vmem:[%s1633 + $0x10] sm:$0xff] %vm11, %v1623
  %1637 = vst.msk [vmem:[%s1633 + $0x18] sm:$0xff] %vm11, %v1624
  %v1638 = vld [vmem:[#allocation2] sm:$0xff]
  %v1639 = vld [vmem:[#allocation2 + $0x8] sm:$0xff]
  %v1640 = vld [vmem:[#allocation2 + $0x10] sm:$0xff]
  %v1641 = vld [vmem:[#allocation2 + $0x18] sm:$0xff]
  %v1642 = vld [vmem:[#allocation3] sm:$0xff]
  %v1643 = vld [vmem:[#allocation3 + $0x8] sm:$0xff]
  %v1644 = vld [vmem:[#allocation3 + $0x10] sm:$0xff]
  %v1645 = vld [vmem:[#allocation3 + $0x18] sm:$0xff]
  %v1646 = vld [vmem:[%s681] sm:$0xff]
  %v1647 = vld [vmem:[%s681 + $0x8] sm:$0xff]
  %v1648 = vld [vmem:[%s681 + $0x10] sm:$0xff]
  %v1649 = vld [vmem:[%s681 + $0x18] sm:$0xff]
  %v1650 = vld [vmem:[%s676] sm:$0xff]
  %v1651 = vld [vmem:[%s676 + $0x8] sm:$0xff]
  %v1652 = vld [vmem:[%s676 + $0x10] sm:$0xff]
  %v1653 = vld [vmem:[%s676 + $0x18] sm:$0xff]
  %v1654 = vsel %vm37, %v1646, %v1650
  %v1655 = vsel %vm37, %v1647, %v1651
  %v1656 = vsel %vm37, %v1648, %v1652
  %v1657 = vsel %vm37, %v1649, %v1653
  %v1658 = vld [vmem:[%s1] sm:$0xff]
  %v1659 = vld [vmem:[%s1 + $0x8] sm:$0xff]
  %v1660 = vld [vmem:[%s1 + $0x10] sm:$0xff]
  %v1661 = vld [vmem:[%s1 + $0x18] sm:$0xff]
  %v1663 = vsel %vm11, %v1638, 0
  %v1666 = vsel %vm11, %v1639, 0
  %v1669 = vsel %vm11, %v1640, 0
  %v1672 = vsel %vm11, %v1641, 0
  %1674 = vmatprep.subr.mxu0 0.0
  %1675 = vmatpush1.msra.mxu0 0.0
  %1676 = vmatprep.subr.mxu0 0.0
  %1677 = vmatpush1.msra.mxu0 0.0
  %1678 = vmatprep.subr.mxu0 0.0
  %1679 = vmatpush1.msra.mxu0 0.0
  %1680 = vmatprep.subr.mxu0 0.0
  %1681 = vmatpush1.msra.mxu0 0.0
  %1682 = vmatprep.subr.mxu0 0.0
  %1683 = vmatpush1.msra.mxu0 0.0
  %1684 = vmatprep.subr.mxu0 0.0
  %1685 = vmatpush1.msra.mxu0 0.0
  %1686 = vmatprep.subr.mxu0 0.0
  %1687 = vmatpush1.msra.mxu0 0.0
  %1688 = vmatprep.subr.mxu0 0.0
  %1689 = vmatpush1.msra.mxu0 0.0
  %1690 = vmatprep.subr.mxu0 0.0
  %1691 = vmatpush1.msra.mxu0 0.0
  %1692 = vmatprep.subr.mxu0 0.0
  %1693 = vmatpush1.msra.mxu0 0.0
  %1694 = vmatprep.subr.mxu0 0.0
  %1695 = vmatpush1.msra.mxu0 0.0
  %1696 = vmatprep.subr.mxu0 0.0
  %1697 = vmatpush1.msra.mxu0 0.0
  %1698 = vmatprep.subr.mxu0 0.0
  %1699 = vmatpush1.msra.mxu0 %v1661
  %1700 = vmatprep.subr.mxu0 0.0
  %1701 = vmatpush1.msra.mxu0 %v1660
  %1702 = vmatprep.subr.mxu0 0.0
  %1703 = vmatpush1.msra.mxu0 %v1659
  %1704 = vmatprep.subr.mxu0 0.0
  %1705 = vmatpush1.msra.mxu0 %v1658
  %1706 = vmatprep.subr.mxu0 0.0
  %1707 = vmatpush2.msra.mxu0 0.0
  %1708 = vmatprep.subr.mxu0 0.0
  %1709 = vmatpush2.msra.mxu0 0.0
  %1710 = vmatprep.subr.mxu0 0.0
  %1711 = vmatpush2.msra.mxu0 0.0
  %1712 = vmatprep.subr.mxu0 0.0
  %1713 = vmatpush2.msra.mxu0 0.0
  %1714 = vmatprep.subr.mxu0 0.0
  %1715 = vmatpush2.msra.mxu0 0.0
  %1716 = vmatprep.subr.mxu0 0.0
  %1717 = vmatpush2.msra.mxu0 0.0
  %1718 = vmatprep.subr.mxu0 0.0
  %1719 = vmatpush2.msra.mxu0 0.0
  %1720 = vmatprep.subr.mxu0 0.0
  %1721 = vmatpush2.msra.mxu0 0.0
  %1722 = vmatprep.subr.mxu0 0.0
  %1723 = vmatpush2.msra.mxu0 0.0
  %1724 = vmatprep.subr.mxu0 0.0
  %1725 = vmatpush2.msra.mxu0 0.0
  %1726 = vmatprep.subr.mxu0 0.0
  %1727 = vmatpush2.msra.mxu0 0.0
  %1728 = vmatprep.subr.mxu0 0.0
  %1729 = vmatpush2.msra.mxu0 0.0
  %1730 = vmatprep.subr.mxu0 0.0
  %1731 = vmatpush2.msra.mxu0 0.0
  %1732 = vmatprep.subr.mxu0 0.0
  %1733 = vmatpush2.msra.mxu0 0.0
  %1734 = vmatprep.subr.mxu0 0.0
  %1735 = vmatpush2.msra.mxu0 0.0
  %1736 = vmatprep.subr.mxu0 0.0
  %1737 = vmatpush2.msra.mxu0 0.0
  %1738 = vmatprep.mubr.f32.mxu0 0.0
  %1739 = vmatmul.mubr.f32.gmra.mxu0 %v1663
  %v1740 = vpop.f32.mrf.mxu0
  %v1741 = vadd.f32 0.0, %v1740
  %v1742 = vpop.f32.mrf.mxu0
  %1743 = vmatprep.mubr.f32.mxu0 0.0
  %1744 = vmatmul.mubr.f32.gmra.mxu0 %v1666
  %v1745 = vpop.f32.mrf.mxu0
  %v1746 = vadd.f32 0.0, %v1745
  %v1747 = vpop.f32.mrf.mxu0
  %1748 = vmatprep.mubr.f32.mxu0 0.0
  %1749 = vmatmul.mubr.f32.gmra.mxu0 %v1669
  %v1750 = vpop.f32.mrf.mxu0
  %v1751 = vadd.f32 0.0, %v1750
  %v1752 = vpop.f32.mrf.mxu0
  %1753 = vmatprep.mubr.f32.mxu0 0.0
  %1754 = vmatmul.mubr.f32.gmra.mxu0 %v1672
  %v1755 = vpop.f32.mrf.mxu0
  %v1756 = vadd.f32 0.0, %v1755
  %v1757 = vpop.f32.mrf.mxu0
  %1758 = vdwg.mxu0
  %v1759 = vadd.f32 %v1654, %v1741
  %v1760 = vadd.f32 %v1655, %v1746
  %v1761 = vadd.f32 %v1656, %v1751
  %v1762 = vadd.f32 %v1657, %v1756
  %v1763 = vxor.u32 %v1759, 2147483648
  %v1764 = vxor.u32 %v1760, 2147483648
  %v1765 = vxor.u32 %v1761, 2147483648
  %v1766 = vxor.u32 %v1762, 2147483648
  %v1767 = vmul.f32 %v1763, 1.442695
  %v1768 = vpow.pop %v1767
  %v1769 = vmul.f32 %v1764, 1.442695
  %v1770 = vpow.pop %v1769
  %v1771 = vmul.f32 %v1765, 1.442695
  %v1772 = vpow.pop %v1771
  %v1773 = vmul.f32 %v1766, 1.442695
  %v1774 = vpow.pop %v1773
  %v1775 = vadd.f32 %v1768, 1.0
  %v1776 = vadd.f32 %v1770, 1.0
  %v1777 = vadd.f32 %v1772, 1.0
  %v1778 = vadd.f32 %v1774, 1.0
  %v1779 = vrcp.pop %v1775
  %v1780 = vmul.f32 1.0, %v1779
  %v1781 = vrcp.pop %v1776
  %v1782 = vmul.f32 1.0, %v1781
  %v1783 = vrcp.pop %v1777
  %v1784 = vmul.f32 1.0, %v1783
  %v1785 = vrcp.pop %v1778
  %v1786 = vmul.f32 1.0, %v1785
  %v1787 = vtanh.pop %v1759
  %v1788 = vtanh.pop %v1760
  %v1789 = vtanh.pop %v1761
  %v1790 = vtanh.pop %v1762
  %1795 = vrot.lane.b32.xlu0 %v1642, 16
  %v1796 = vpop.permute.xlu0 %1795
  %1797 = vrot.lane.b32.xlu0 %v1643, 16
  %v1798 = vpop.permute.xlu0 %1797
  %1799 = vrot.lane.b32.xlu0 %v1644, 16
  %v1800 = vpop.permute.xlu0 %1799
  %1801 = vrot.lane.b32.xlu0 %v1645, 16
  %v1802 = vpop.permute.xlu0 %1801
  %v1807 = vmul.f32 %v1780, %v1796
  %v1808 = vmul.f32 %v1782, %v1798
  %v1809 = vmul.f32 %v1784, %v1800
  %v1810 = vmul.f32 %v1786, %v1802
  %1815 = vrot.lane.b32.xlu0 %v1787, 96
  %v1816 = vpop.permute.xlu0 %1815
  %1817 = vrot.lane.b32.xlu0 %v1788, 96
  %v1818 = vpop.permute.xlu0 %1817
  %1819 = vrot.lane.b32.xlu0 %v1789, 96
  %v1820 = vpop.permute.xlu0 %1819
  %1821 = vrot.lane.b32.xlu0 %v1790, 96
  %v1822 = vpop.permute.xlu0 %1821
  %v1827 = vmul.f32 %v1780, %v1816
  %v1828 = vmul.f32 %v1782, %v1818
  %v1829 = vmul.f32 %v1784, %v1820
  %v1830 = vmul.f32 %v1786, %v1822
  %1835 = vrot.lane.b32.xlu0 %v1827, 16
  %v1836 = vpop.permute.xlu0 %1835
  %1837 = vrot.lane.b32.xlu0 %v1828, 16
  %v1838 = vpop.permute.xlu0 %1837
  %1839 = vrot.lane.b32.xlu0 %v1829, 16
  %v1840 = vpop.permute.xlu0 %1839
  %1841 = vrot.lane.b32.xlu0 %v1830, 16
  %v1842 = vpop.permute.xlu0 %1841
  %v1847 = vadd.f32 %v1807, %v1836
  %v1848 = vadd.f32 %v1808, %v1838
  %v1849 = vadd.f32 %v1809, %v1840
  %v1850 = vadd.f32 %v1810, %v1842
  %1851 = vrot.lane.b32.xlu0 %v1642, 64
  %v1852 = vpop.permute.xlu0 %1851
  %1853 = vrot.lane.b32.xlu0 %v1643, 64
  %v1854 = vpop.permute.xlu0 %1853
  %1855 = vrot.lane.b32.xlu0 %v1644, 64
  %v1856 = vpop.permute.xlu0 %1855
  %1857 = vrot.lane.b32.xlu0 %v1645, 64
  %v1858 = vpop.permute.xlu0 %1857
  %v1863 = vmul.f32 %v1780, %v1852
  %v1864 = vmul.f32 %v1782, %v1854
  %v1865 = vmul.f32 %v1784, %v1856
  %v1866 = vmul.f32 %v1786, %v1858
  %v1867 = vadd.f32 %v1863, %v1836
  %v1868 = vadd.f32 %v1864, %v1838
  %v1869 = vadd.f32 %v1865, %v1840
  %v1870 = vadd.f32 %v1866, %v1842
  %1875 = vrot.lane.b32.xlu0 %v1847, 112
  %v1876 = vpop.permute.xlu0 %1875
  %1877 = vrot.lane.b32.xlu0 %v1848, 112
  %v1878 = vpop.permute.xlu0 %1877
  %1879 = vrot.lane.b32.xlu0 %v1849, 112
  %v1880 = vpop.permute.xlu0 %1879
  %1881 = vrot.lane.b32.xlu0 %v1850, 112
  %v1882 = vpop.permute.xlu0 %1881
  %1891 = vrot.lane.b32.xlu0 %v1867, 64
  %v1892 = vpop.permute.xlu0 %1891
  %1893 = vrot.lane.b32.xlu0 %v1868, 64
  %v1894 = vpop.permute.xlu0 %1893
  %1895 = vrot.lane.b32.xlu0 %v1869, 64
  %v1896 = vpop.permute.xlu0 %1895
  %1897 = vrot.lane.b32.xlu0 %v1870, 64
  %v1898 = vpop.permute.xlu0 %1897
  %v1903 = vsel %vm287, %v1876, %v1892
  %v1904 = vsel %vm287, %v1878, %v1894
  %v1905 = vsel %vm287, %v1880, %v1896
  %v1906 = vsel %vm287, %v1882, %v1898
  %1911 = vrot.lane.b32.xlu0 %v1780, 80
  %v1912 = vpop.permute.xlu0 %1911
  %1913 = vrot.lane.b32.xlu0 %v1782, 80
  %v1914 = vpop.permute.xlu0 %1913
  %1915 = vrot.lane.b32.xlu0 %v1784, 80
  %v1916 = vpop.permute.xlu0 %1915
  %1917 = vrot.lane.b32.xlu0 %v1786, 80
  %v1918 = vpop.permute.xlu0 %1917
  %1923 = vrot.lane.b32.xlu0 %v1780, 32
  %v1924 = vpop.permute.xlu0 %1923
  %1925 = vrot.lane.b32.xlu0 %v1782, 32
  %v1926 = vpop.permute.xlu0 %1925
  %1927 = vrot.lane.b32.xlu0 %v1784, 32
  %v1928 = vpop.permute.xlu0 %1927
  %1929 = vrot.lane.b32.xlu0 %v1786, 32
  %v1930 = vpop.permute.xlu0 %1929
  %v1935 = vsel %vm287, %v1912, %v1924
  %v1936 = vsel %vm287, %v1914, %v1926
  %v1937 = vsel %vm287, %v1916, %v1928
  %v1938 = vsel %vm287, %v1918, %v1930
  %v1939 = vtanh.pop %v1903
  %v1940 = vtanh.pop %v1904
  %v1941 = vtanh.pop %v1905
  %v1942 = vtanh.pop %v1906
  %v1943 = vmul.f32 %v1935, %v1939
  %v1944 = vmul.f32 %v1936, %v1940
  %v1945 = vmul.f32 %v1937, %v1941
  %v1946 = vmul.f32 %v1938, %v1942
  %1947 = vst.msk [vmem:[#allocation3] sm:$0xff] %vm11, %v1903
  %1948 = vst.msk [vmem:[#allocation3 + $0x8] sm:$0xff] %vm11, %v1904
  %1949 = vst.msk [vmem:[#allocation3 + $0x10] sm:$0xff] %vm11, %v1905
  %1950 = vst.msk [vmem:[#allocation3 + $0x18] sm:$0xff] %vm11, %v1906
  %1951 = vst.msk [vmem:[#allocation2] sm:$0xff] %vm11, %v1943
  %1952 = vst.msk [vmem:[#allocation2 + $0x8] sm:$0xff] %vm11, %v1944
  %1953 = vst.msk [vmem:[#allocation2 + $0x10] sm:$0xff] %vm11, %v1945
  %1954 = vst.msk [vmem:[#allocation2 + $0x18] sm:$0xff] %vm11, %v1946
  %s1955 = scalar_lea.vmem %s2, 160
  %1956 = vst.msk [vmem:[%s1955] sm:$0xff] %vm11, %v1943
  %1957 = vst.msk [vmem:[%s1955 + $0x8] sm:$0xff] %vm11, %v1944
  %1958 = vst.msk [vmem:[%s1955 + $0x10] sm:$0xff] %vm11, %v1945
  %1959 = vst.msk [vmem:[%s1955 + $0x18] sm:$0xff] %vm11, %v1946
  %v1960 = vld [vmem:[#allocation2] sm:$0xff]
  %v1961 = vld [vmem:[#allocation2 + $0x8] sm:$0xff]
  %v1962 = vld [vmem:[#allocation2 + $0x10] sm:$0xff]
  %v1963 = vld [vmem:[#allocation2 + $0x18] sm:$0xff]
  %v1964 = vld [vmem:[#allocation3] sm:$0xff]
  %v1965 = vld [vmem:[#allocation3 + $0x8] sm:$0xff]
  %v1966 = vld [vmem:[#allocation3 + $0x10] sm:$0xff]
  %v1967 = vld [vmem:[#allocation3 + $0x18] sm:$0xff]
  %v1968 = vld [vmem:[%s357] sm:$0xff]
  %v1969 = vld [vmem:[%s357 + $0x8] sm:$0xff]
  %v1970 = vld [vmem:[%s357 + $0x10] sm:$0xff]
  %v1971 = vld [vmem:[%s357 + $0x18] sm:$0xff]
  %v1972 = vld [vmem:[%s352] sm:$0xff]
  %v1973 = vld [vmem:[%s352 + $0x8] sm:$0xff]
  %v1974 = vld [vmem:[%s352 + $0x10] sm:$0xff]
  %v1975 = vld [vmem:[%s352 + $0x18] sm:$0xff]
  %v1976 = vsel %vm37, %v1968, %v1972
  %v1977 = vsel %vm37, %v1969, %v1973
  %v1978 = vsel %vm37, %v1970, %v1974
  %v1979 = vsel %vm37, %v1971, %v1975
  %v1980 = vld [vmem:[%s1] sm:$0xff]
  %v1981 = vld [vmem:[%s1 + $0x8] sm:$0xff]
  %v1982 = vld [vmem:[%s1 + $0x10] sm:$0xff]
  %v1983 = vld [vmem:[%s1 + $0x18] sm:$0xff]
  %v1985 = vsel %vm11, %v1960, 0
  %v1988 = vsel %vm11, %v1961, 0
  %v1991 = vsel %vm11, %v1962, 0
  %v1994 = vsel %vm11, %v1963, 0
  %1996 = vmatprep.subr.mxu0 0.0
  %1997 = vmatpush1.msra.mxu0 0.0
  %1998 = vmatprep.subr.mxu0 0.0
  %1999 = vmatpush1.msra.mxu0 0.0
  %2000 = vmatprep.subr.mxu0 0.0
  %2001 = vmatpush1.msra.mxu0 0.0
  %2002 = vmatprep.subr.mxu0 0.0
  %2003 = vmatpush1.msra.mxu0 0.0
  %2004 = vmatprep.subr.mxu0 0.0
  %2005 = vmatpush1.msra.mxu0 0.0
  %2006 = vmatprep.subr.mxu0 0.0
  %2007 = vmatpush1.msra.mxu0 0.0
  %2008 = vmatprep.subr.mxu0 0.0
  %2009 = vmatpush1.msra.mxu0 0.0
  %2010 = vmatprep.subr.mxu0 0.0
  %2011 = vmatpush1.msra.mxu0 0.0
  %2012 = vmatprep.subr.mxu0 0.0
  %2013 = vmatpush1.msra.mxu0 0.0
  %2014 = vmatprep.subr.mxu0 0.0
  %2015 = vmatpush1.msra.mxu0 0.0
  %2016 = vmatprep.subr.mxu0 0.0
  %2017 = vmatpush1.msra.mxu0 0.0
  %2018 = vmatprep.subr.mxu0 0.0
  %2019 = vmatpush1.msra.mxu0 0.0
  %2020 = vmatprep.subr.mxu0 0.0
  %2021 = vmatpush1.msra.mxu0 %v1983
  %2022 = vmatprep.subr.mxu0 0.0
  %2023 = vmatpush1.msra.mxu0 %v1982
  %2024 = vmatprep.subr.mxu0 0.0
  %2025 = vmatpush1.msra.mxu0 %v1981
  %2026 = vmatprep.subr.mxu0 0.0
  %2027 = vmatpush1.msra.mxu0 %v1980
  %2028 = vmatprep.subr.mxu0 0.0
  %2029 = vmatpush2.msra.mxu0 0.0
  %2030 = vmatprep.subr.mxu0 0.0
  %2031 = vmatpush2.msra.mxu0 0.0
  %2032 = vmatprep.subr.mxu0 0.0
  %2033 = vmatpush2.msra.mxu0 0.0
  %2034 = vmatprep.subr.mxu0 0.0
  %2035 = vmatpush2.msra.mxu0 0.0
  %2036 = vmatprep.subr.mxu0 0.0
  %2037 = vmatpush2.msra.mxu0 0.0
  %2038 = vmatprep.subr.mxu0 0.0
  %2039 = vmatpush2.msra.mxu0 0.0
  %2040 = vmatprep.subr.mxu0 0.0
  %2041 = vmatpush2.msra.mxu0 0.0
  %2042 = vmatprep.subr.mxu0 0.0
  %2043 = vmatpush2.msra.mxu0 0.0
  %2044 = vmatprep.subr.mxu0 0.0
  %2045 = vmatpush2.msra.mxu0 0.0
  %2046 = vmatprep.subr.mxu0 0.0
  %2047 = vmatpush2.msra.mxu0 0.0
  %2048 = vmatprep.subr.mxu0 0.0
  %2049 = vmatpush2.msra.mxu0 0.0
  %2050 = vmatprep.subr.mxu0 0.0
  %2051 = vmatpush2.msra.mxu0 0.0
  %2052 = vmatprep.subr.mxu0 0.0
  %2053 = vmatpush2.msra.mxu0 0.0
  %2054 = vmatprep.subr.mxu0 0.0
  %2055 = vmatpush2.msra.mxu0 0.0
  %2056 = vmatprep.subr.mxu0 0.0
  %2057 = vmatpush2.msra.mxu0 0.0
  %2058 = vmatprep.subr.mxu0 0.0
  %2059 = vmatpush2.msra.mxu0 0.0
  %2060 = vmatprep.mubr.f32.mxu0 0.0
  %2061 = vmatmul.mubr.f32.gmra.mxu0 %v1985
  %v2062 = vpop.f32.mrf.mxu0
  %v2063 = vadd.f32 0.0, %v2062
  %v2064 = vpop.f32.mrf.mxu0
  %2065 = vmatprep.mubr.f32.mxu0 0.0
  %2066 = vmatmul.mubr.f32.gmra.mxu0 %v1988
  %v2067 = vpop.f32.mrf.mxu0
  %v2068 = vadd.f32 0.0, %v2067
  %v2069 = vpop.f32.mrf.mxu0
  %2070 = vmatprep.mubr.f32.mxu0 0.0
  %2071 = vmatmul.mubr.f32.gmra.mxu0 %v1991
  %v2072 = vpop.f32.mrf.mxu0
  %v2073 = vadd.f32 0.0, %v2072
  %v2074 = vpop.f32.mrf.mxu0
  %2075 = vmatprep.mubr.f32.mxu0 0.0
  %2076 = vmatmul.mubr.f32.gmra.mxu0 %v1994
  %v2077 = vpop.f32.mrf.mxu0
  %v2078 = vadd.f32 0.0, %v2077
  %v2079 = vpop.f32.mrf.mxu0
  %2080 = vdwg.mxu0
  %v2081 = vadd.f32 %v1976, %v2063
  %v2082 = vadd.f32 %v1977, %v2068
  %v2083 = vadd.f32 %v1978, %v2073
  %v2084 = vadd.f32 %v1979, %v2078
  %v2085 = vxor.u32 %v2081, 2147483648
  %v2086 = vxor.u32 %v2082, 2147483648
  %v2087 = vxor.u32 %v2083, 2147483648
  %v2088 = vxor.u32 %v2084, 2147483648
  %v2089 = vmul.f32 %v2085, 1.442695
  %v2090 = vpow.pop %v2089
  %v2091 = vmul.f32 %v2086, 1.442695
  %v2092 = vpow.pop %v2091
  %v2093 = vmul.f32 %v2087, 1.442695
  %v2094 = vpow.pop %v2093
  %v2095 = vmul.f32 %v2088, 1.442695
  %v2096 = vpow.pop %v2095
  %v2097 = vadd.f32 %v2090, 1.0
  %v2098 = vadd.f32 %v2092, 1.0
  %v2099 = vadd.f32 %v2094, 1.0
  %v2100 = vadd.f32 %v2096, 1.0
  %v2101 = vrcp.pop %v2097
  %v2102 = vmul.f32 1.0, %v2101
  %v2103 = vrcp.pop %v2098
  %v2104 = vmul.f32 1.0, %v2103
  %v2105 = vrcp.pop %v2099
  %v2106 = vmul.f32 1.0, %v2105
  %v2107 = vrcp.pop %v2100
  %v2108 = vmul.f32 1.0, %v2107
  %v2109 = vtanh.pop %v2081
  %v2110 = vtanh.pop %v2082
  %v2111 = vtanh.pop %v2083
  %v2112 = vtanh.pop %v2084
  %2117 = vrot.lane.b32.xlu0 %v1964, 16
  %v2118 = vpop.permute.xlu0 %2117
  %2119 = vrot.lane.b32.xlu0 %v1965, 16
  %v2120 = vpop.permute.xlu0 %2119
  %2121 = vrot.lane.b32.xlu0 %v1966, 16
  %v2122 = vpop.permute.xlu0 %2121
  %2123 = vrot.lane.b32.xlu0 %v1967, 16
  %v2124 = vpop.permute.xlu0 %2123
  %v2129 = vmul.f32 %v2102, %v2118
  %v2130 = vmul.f32 %v2104, %v2120
  %v2131 = vmul.f32 %v2106, %v2122
  %v2132 = vmul.f32 %v2108, %v2124
  %2137 = vrot.lane.b32.xlu0 %v2109, 96
  %v2138 = vpop.permute.xlu0 %2137
  %2139 = vrot.lane.b32.xlu0 %v2110, 96
  %v2140 = vpop.permute.xlu0 %2139
  %2141 = vrot.lane.b32.xlu0 %v2111, 96
  %v2142 = vpop.permute.xlu0 %2141
  %2143 = vrot.lane.b32.xlu0 %v2112, 96
  %v2144 = vpop.permute.xlu0 %2143
  %v2149 = vmul.f32 %v2102, %v2138
  %v2150 = vmul.f32 %v2104, %v2140
  %v2151 = vmul.f32 %v2106, %v2142
  %v2152 = vmul.f32 %v2108, %v2144
  %2157 = vrot.lane.b32.xlu0 %v2149, 16
  %v2158 = vpop.permute.xlu0 %2157
  %2159 = vrot.lane.b32.xlu0 %v2150, 16
  %v2160 = vpop.permute.xlu0 %2159
  %2161 = vrot.lane.b32.xlu0 %v2151, 16
  %v2162 = vpop.permute.xlu0 %2161
  %2163 = vrot.lane.b32.xlu0 %v2152, 16
  %v2164 = vpop.permute.xlu0 %2163
  %v2169 = vadd.f32 %v2129, %v2158
  %v2170 = vadd.f32 %v2130, %v2160
  %v2171 = vadd.f32 %v2131, %v2162
  %v2172 = vadd.f32 %v2132, %v2164
  %2173 = vrot.lane.b32.xlu0 %v1964, 64
  %v2174 = vpop.permute.xlu0 %2173
  %2175 = vrot.lane.b32.xlu0 %v1965, 64
  %v2176 = vpop.permute.xlu0 %2175
  %2177 = vrot.lane.b32.xlu0 %v1966, 64
  %v2178 = vpop.permute.xlu0 %2177
  %2179 = vrot.lane.b32.xlu0 %v1967, 64
  %v2180 = vpop.permute.xlu0 %2179
  %v2185 = vmul.f32 %v2102, %v2174
  %v2186 = vmul.f32 %v2104, %v2176
  %v2187 = vmul.f32 %v2106, %v2178
  %v2188 = vmul.f32 %v2108, %v2180
  %v2189 = vadd.f32 %v2185, %v2158
  %v2190 = vadd.f32 %v2186, %v2160
  %v2191 = vadd.f32 %v2187, %v2162
  %v2192 = vadd.f32 %v2188, %v2164
  %2197 = vrot.lane.b32.xlu0 %v2169, 112
  %v2198 = vpop.permute.xlu0 %2197
  %2199 = vrot.lane.b32.xlu0 %v2170, 112
  %v2200 = vpop.permute.xlu0 %2199
  %2201 = vrot.lane.b32.xlu0 %v2171, 112
  %v2202 = vpop.permute.xlu0 %2201
  %2203 = vrot.lane.b32.xlu0 %v2172, 112
  %v2204 = vpop.permute.xlu0 %2203
  %2213 = vrot.lane.b32.xlu0 %v2189, 64
  %v2214 = vpop.permute.xlu0 %2213
  %2215 = vrot.lane.b32.xlu0 %v2190, 64
  %v2216 = vpop.permute.xlu0 %2215
  %2217 = vrot.lane.b32.xlu0 %v2191, 64
  %v2218 = vpop.permute.xlu0 %2217
  %2219 = vrot.lane.b32.xlu0 %v2192, 64
  %v2220 = vpop.permute.xlu0 %2219
  %v2225 = vsel %vm287, %v2198, %v2214
  %v2226 = vsel %vm287, %v2200, %v2216
  %v2227 = vsel %vm287, %v2202, %v2218
  %v2228 = vsel %vm287, %v2204, %v2220
  %2233 = vrot.lane.b32.xlu0 %v2102, 80
  %v2234 = vpop.permute.xlu0 %2233
  %2235 = vrot.lane.b32.xlu0 %v2104, 80
  %v2236 = vpop.permute.xlu0 %2235
  %2237 = vrot.lane.b32.xlu0 %v2106, 80
  %v2238 = vpop.permute.xlu0 %2237
  %2239 = vrot.lane.b32.xlu0 %v2108, 80
  %v2240 = vpop.permute.xlu0 %2239
  %2245 = vrot.lane.b32.xlu0 %v2102, 32
  %v2246 = vpop.permute.xlu0 %2245
  %2247 = vrot.lane.b32.xlu0 %v2104, 32
  %v2248 = vpop.permute.xlu0 %2247
  %2249 = vrot.lane.b32.xlu0 %v2106, 32
  %v2250 = vpop.permute.xlu0 %2249
  %2251 = vrot.lane.b32.xlu0 %v2108, 32
  %v2252 = vpop.permute.xlu0 %2251
  %v2257 = vsel %vm287, %v2234, %v2246
  %v2258 = vsel %vm287, %v2236, %v2248
  %v2259 = vsel %vm287, %v2238, %v2250
  %v2260 = vsel %vm287, %v2240, %v2252
  %v2261 = vtanh.pop %v2225
  %v2262 = vtanh.pop %v2226
  %v2263 = vtanh.pop %v2227
  %v2264 = vtanh.pop %v2228
  %v2265 = vmul.f32 %v2257, %v2261
  %v2266 = vmul.f32 %v2258, %v2262
  %v2267 = vmul.f32 %v2259, %v2263
  %v2268 = vmul.f32 %v2260, %v2264
  %2269 = vst.msk [vmem:[#allocation3] sm:$0xff] %vm11, %v2225
  %2270 = vst.msk [vmem:[#allocation3 + $0x8] sm:$0xff] %vm11, %v2226
  %2271 = vst.msk [vmem:[#allocation3 + $0x10] sm:$0xff] %vm11, %v2227
  %2272 = vst.msk [vmem:[#allocation3 + $0x18] sm:$0xff] %vm11, %v2228
  %2273 = vst.msk [vmem:[#allocation2] sm:$0xff] %vm11, %v2265
  %2274 = vst.msk [vmem:[#allocation2 + $0x8] sm:$0xff] %vm11, %v2266
  %2275 = vst.msk [vmem:[#allocation2 + $0x10] sm:$0xff] %vm11, %v2267
  %2276 = vst.msk [vmem:[#allocation2 + $0x18] sm:$0xff] %vm11, %v2268
  %s2277 = scalar_lea.vmem %s2, 192
  %2278 = vst.msk [vmem:[%s2277] sm:$0xff] %vm11, %v2265
  %2279 = vst.msk [vmem:[%s2277 + $0x8] sm:$0xff] %vm11, %v2266
  %2280 = vst.msk [vmem:[%s2277 + $0x10] sm:$0xff] %vm11, %v2267
  %2281 = vst.msk [vmem:[%s2277 + $0x18] sm:$0xff] %vm11, %v2268
  %v2282 = vld [vmem:[#allocation2] sm:$0xff]
  %v2283 = vld [vmem:[#allocation2 + $0x8] sm:$0xff]
  %v2284 = vld [vmem:[#allocation2 + $0x10] sm:$0xff]
  %v2285 = vld [vmem:[#allocation2 + $0x18] sm:$0xff]
  %v2286 = vld [vmem:[#allocation3] sm:$0xff]
  %v2287 = vld [vmem:[#allocation3 + $0x8] sm:$0xff]
  %v2288 = vld [vmem:[#allocation3 + $0x10] sm:$0xff]
  %v2289 = vld [vmem:[#allocation3 + $0x18] sm:$0xff]
  %v2290 = vld [vmem:[%s32] sm:$0xff]
  %v2291 = vld [vmem:[%s32 + $0x8] sm:$0xff]
  %v2292 = vld [vmem:[%s32 + $0x10] sm:$0xff]
  %v2293 = vld [vmem:[%s32 + $0x18] sm:$0xff]
  %v2294 = vld [vmem:[%s0] sm:$0xff]
  %v2295 = vld [vmem:[%s0 + $0x8] sm:$0xff]
  %v2296 = vld [vmem:[%s0 + $0x10] sm:$0xff]
  %v2297 = vld [vmem:[%s0 + $0x18] sm:$0xff]
  %v2298 = vsel %vm37, %v2290, %v2294
  %v2299 = vsel %vm37, %v2291, %v2295
  %v2300 = vsel %vm37, %v2292, %v2296
  %v2301 = vsel %vm37, %v2293, %v2297
  %v2302 = vld [vmem:[%s1] sm:$0xff]
  %v2303 = vld [vmem:[%s1 + $0x8] sm:$0xff]
  %v2304 = vld [vmem:[%s1 + $0x10] sm:$0xff]
  %v2305 = vld [vmem:[%s1 + $0x18] sm:$0xff]
  %v2307 = vsel %vm11, %v2282, 0
  %v2310 = vsel %vm11, %v2283, 0
  %v2313 = vsel %vm11, %v2284, 0
  %v2316 = vsel %vm11, %v2285, 0
  %2318 = vmatprep.subr.mxu0 0.0
  %2319 = vmatpush1.msra.mxu0 0.0
  %2320 = vmatprep.subr.mxu0 0.0
  %2321 = vmatpush1.msra.mxu0 0.0
  %2322 = vmatprep.subr.mxu0 0.0
  %2323 = vmatpush1.msra.mxu0 0.0
  %2324 = vmatprep.subr.mxu0 0.0
  %2325 = vmatpush1.msra.mxu0 0.0
  %2326 = vmatprep.subr.mxu0 0.0
  %2327 = vmatpush1.msra.mxu0 0.0
  %2328 = vmatprep.subr.mxu0 0.0
  %2329 = vmatpush1.msra.mxu0 0.0
  %2330 = vmatprep.subr.mxu0 0.0
  %2331 = vmatpush1.msra.mxu0 0.0
  %2332 = vmatprep.subr.mxu0 0.0
  %2333 = vmatpush1.msra.mxu0 0.0
  %2334 = vmatprep.subr.mxu0 0.0
  %2335 = vmatpush1.msra.mxu0 0.0
  %2336 = vmatprep.subr.mxu0 0.0
  %2337 = vmatpush1.msra.mxu0 0.0
  %2338 = vmatprep.subr.mxu0 0.0
  %2339 = vmatpush1.msra.mxu0 0.0
  %2340 = vmatprep.subr.mxu0 0.0
  %2341 = vmatpush1.msra.mxu0 0.0
  %2342 = vmatprep.subr.mxu0 0.0
  %2343 = vmatpush1.msra.mxu0 %v2305
  %2344 = vmatprep.subr.mxu0 0.0
  %2345 = vmatpush1.msra.mxu0 %v2304
  %2346 = vmatprep.subr.mxu0 0.0
  %2347 = vmatpush1.msra.mxu0 %v2303
  %2348 = vmatprep.subr.mxu0 0.0
  %2349 = vmatpush1.msra.mxu0 %v2302
  %2350 = vmatprep.subr.mxu0 0.0
  %2351 = vmatpush2.msra.mxu0 0.0
  %2352 = vmatprep.subr.mxu0 0.0
  %2353 = vmatpush2.msra.mxu0 0.0
  %2354 = vmatprep.subr.mxu0 0.0
  %2355 = vmatpush2.msra.mxu0 0.0
  %2356 = vmatprep.subr.mxu0 0.0
  %2357 = vmatpush2.msra.mxu0 0.0
  %2358 = vmatprep.subr.mxu0 0.0
  %2359 = vmatpush2.msra.mxu0 0.0
  %2360 = vmatprep.subr.mxu0 0.0
  %2361 = vmatpush2.msra.mxu0 0.0
  %2362 = vmatprep.subr.mxu0 0.0
  %2363 = vmatpush2.msra.mxu0 0.0
  %2364 = vmatprep.subr.mxu0 0.0
  %2365 = vmatpush2.msra.mxu0 0.0
  %2366 = vmatprep.subr.mxu0 0.0
  %2367 = vmatpush2.msra.mxu0 0.0
  %2368 = vmatprep.subr.mxu0 0.0
  %2369 = vmatpush2.msra.mxu0 0.0
  %2370 = vmatprep.subr.mxu0 0.0
  %2371 = vmatpush2.msra.mxu0 0.0
  %2372 = vmatprep.subr.mxu0 0.0
  %2373 = vmatpush2.msra.mxu0 0.0
  %2374 = vmatprep.subr.mxu0 0.0
  %2375 = vmatpush2.msra.mxu0 0.0
  %2376 = vmatprep.subr.mxu0 0.0
  %2377 = vmatpush2.msra.mxu0 0.0
  %2378 = vmatprep.subr.mxu0 0.0
  %2379 = vmatpush2.msra.mxu0 0.0
  %2380 = vmatprep.subr.mxu0 0.0
  %2381 = vmatpush2.msra.mxu0 0.0
  %2382 = vmatprep.mubr.f32.mxu0 0.0
  %2383 = vmatmul.mubr.f32.gmra.mxu0 %v2307
  %v2384 = vpop.f32.mrf.mxu0
  %v2385 = vadd.f32 0.0, %v2384
  %v2386 = vpop.f32.mrf.mxu0
  %2387 = vmatprep.mubr.f32.mxu0 0.0
  %2388 = vmatmul.mubr.f32.gmra.mxu0 %v2310
  %v2389 = vpop.f32.mrf.mxu0
  %v2390 = vadd.f32 0.0, %v2389
  %v2391 = vpop.f32.mrf.mxu0
  %2392 = vmatprep.mubr.f32.mxu0 0.0
  %2393 = vmatmul.mubr.f32.gmra.mxu0 %v2313
  %v2394 = vpop.f32.mrf.mxu0
  %v2395 = vadd.f32 0.0, %v2394
  %v2396 = vpop.f32.mrf.mxu0
  %2397 = vmatprep.mubr.f32.mxu0 0.0
  %2398 = vmatmul.mubr.f32.gmra.mxu0 %v2316
  %v2399 = vpop.f32.mrf.mxu0
  %v2400 = vadd.f32 0.0, %v2399
  %v2401 = vpop.f32.mrf.mxu0
  %2402 = vdwg.mxu0
  %v2403 = vadd.f32 %v2298, %v2385
  %v2404 = vadd.f32 %v2299, %v2390
  %v2405 = vadd.f32 %v2300, %v2395
  %v2406 = vadd.f32 %v2301, %v2400
  %v2407 = vxor.u32 %v2403, 2147483648
  %v2408 = vxor.u32 %v2404, 2147483648
  %v2409 = vxor.u32 %v2405, 2147483648
  %v2410 = vxor.u32 %v2406, 2147483648
  %v2411 = vmul.f32 %v2407, 1.442695
  %v2412 = vpow.pop %v2411
  %v2413 = vmul.f32 %v2408, 1.442695
  %v2414 = vpow.pop %v2413
  %v2415 = vmul.f32 %v2409, 1.442695
  %v2416 = vpow.pop %v2415
  %v2417 = vmul.f32 %v2410, 1.442695
  %v2418 = vpow.pop %v2417
  %v2419 = vadd.f32 %v2412, 1.0
  %v2420 = vadd.f32 %v2414, 1.0
  %v2421 = vadd.f32 %v2416, 1.0
  %v2422 = vadd.f32 %v2418, 1.0
  %v2423 = vrcp.pop %v2419
  %v2424 = vmul.f32 1.0, %v2423
  %v2425 = vrcp.pop %v2420
  %v2426 = vmul.f32 1.0, %v2425
  %v2427 = vrcp.pop %v2421
  %v2428 = vmul.f32 1.0, %v2427
  %v2429 = vrcp.pop %v2422
  %v2430 = vmul.f32 1.0, %v2429
  %v2431 = vtanh.pop %v2403
  %v2432 = vtanh.pop %v2404
  %v2433 = vtanh.pop %v2405
  %v2434 = vtanh.pop %v2406
  %2439 = vrot.lane.b32.xlu0 %v2286, 16
  %v2440 = vpop.permute.xlu0 %2439
  %2441 = vrot.lane.b32.xlu0 %v2287, 16
  %v2442 = vpop.permute.xlu0 %2441
  %2443 = vrot.lane.b32.xlu0 %v2288, 16
  %v2444 = vpop.permute.xlu0 %2443
  %2445 = vrot.lane.b32.xlu0 %v2289, 16
  %v2446 = vpop.permute.xlu0 %2445
  %v2451 = vmul.f32 %v2424, %v2440
  %v2452 = vmul.f32 %v2426, %v2442
  %v2453 = vmul.f32 %v2428, %v2444
  %v2454 = vmul.f32 %v2430, %v2446
  %2459 = vrot.lane.b32.xlu0 %v2431, 96
  %v2460 = vpop.permute.xlu0 %2459
  %2461 = vrot.lane.b32.xlu0 %v2432, 96
  %v2462 = vpop.permute.xlu0 %2461
  %2463 = vrot.lane.b32.xlu0 %v2433, 96
  %v2464 = vpop.permute.xlu0 %2463
  %2465 = vrot.lane.b32.xlu0 %v2434, 96
  %v2466 = vpop.permute.xlu0 %2465
  %v2471 = vmul.f32 %v2424, %v2460
  %v2472 = vmul.f32 %v2426, %v2462
  %v2473 = vmul.f32 %v2428, %v2464
  %v2474 = vmul.f32 %v2430, %v2466
  %2479 = vrot.lane.b32.xlu0 %v2471, 16
  %v2480 = vpop.permute.xlu0 %2479
  %2481 = vrot.lane.b32.xlu0 %v2472, 16
  %v2482 = vpop.permute.xlu0 %2481
  %2483 = vrot.lane.b32.xlu0 %v2473, 16
  %v2484 = vpop.permute.xlu0 %2483
  %2485 = vrot.lane.b32.xlu0 %v2474, 16
  %v2486 = vpop.permute.xlu0 %2485
  %v2491 = vadd.f32 %v2451, %v2480
  %v2492 = vadd.f32 %v2452, %v2482
  %v2493 = vadd.f32 %v2453, %v2484
  %v2494 = vadd.f32 %v2454, %v2486
  %2495 = vrot.lane.b32.xlu0 %v2286, 64
  %v2496 = vpop.permute.xlu0 %2495
  %2497 = vrot.lane.b32.xlu0 %v2287, 64
  %v2498 = vpop.permute.xlu0 %2497
  %2499 = vrot.lane.b32.xlu0 %v2288, 64
  %v2500 = vpop.permute.xlu0 %2499
  %2501 = vrot.lane.b32.xlu0 %v2289, 64
  %v2502 = vpop.permute.xlu0 %2501
  %v2507 = vmul.f32 %v2424, %v2496
  %v2508 = vmul.f32 %v2426, %v2498
  %v2509 = vmul.f32 %v2428, %v2500
  %v2510 = vmul.f32 %v2430, %v2502
  %v2511 = vadd.f32 %v2507, %v2480
  %v2512 = vadd.f32 %v2508, %v2482
  %v2513 = vadd.f32 %v2509, %v2484
  %v2514 = vadd.f32 %v2510, %v2486
  %2519 = vrot.lane.b32.xlu0 %v2491, 112
  %v2520 = vpop.permute.xlu0 %2519
  %2521 = vrot.lane.b32.xlu0 %v2492, 112
  %v2522 = vpop.permute.xlu0 %2521
  %2523 = vrot.lane.b32.xlu0 %v2493, 112
  %v2524 = vpop.permute.xlu0 %2523
  %2525 = vrot.lane.b32.xlu0 %v2494, 112
  %v2526 = vpop.permute.xlu0 %2525
  %2535 = vrot.lane.b32.xlu0 %v2511, 64
  %v2536 = vpop.permute.xlu0 %2535
  %2537 = vrot.lane.b32.xlu0 %v2512, 64
  %v2538 = vpop.permute.xlu0 %2537
  %2539 = vrot.lane.b32.xlu0 %v2513, 64
  %v2540 = vpop.permute.xlu0 %2539
  %2541 = vrot.lane.b32.xlu0 %v2514, 64
  %v2542 = vpop.permute.xlu0 %2541
  %v2547 = vsel %vm287, %v2520, %v2536
  %v2548 = vsel %vm287, %v2522, %v2538
  %v2549 = vsel %vm287, %v2524, %v2540
  %v2550 = vsel %vm287, %v2526, %v2542
  %2555 = vrot.lane.b32.xlu0 %v2424, 80
  %v2556 = vpop.permute.xlu0 %2555
  %2557 = vrot.lane.b32.xlu0 %v2426, 80
  %v2558 = vpop.permute.xlu0 %2557
  %2559 = vrot.lane.b32.xlu0 %v2428, 80
  %v2560 = vpop.permute.xlu0 %2559
  %2561 = vrot.lane.b32.xlu0 %v2430, 80
  %v2562 = vpop.permute.xlu0 %2561
  %2567 = vrot.lane.b32.xlu0 %v2424, 32
  %v2568 = vpop.permute.xlu0 %2567
  %2569 = vrot.lane.b32.xlu0 %v2426, 32
  %v2570 = vpop.permute.xlu0 %2569
  %2571 = vrot.lane.b32.xlu0 %v2428, 32
  %v2572 = vpop.permute.xlu0 %2571
  %2573 = vrot.lane.b32.xlu0 %v2430, 32
  %v2574 = vpop.permute.xlu0 %2573
  %v2579 = vsel %vm287, %v2556, %v2568
  %v2580 = vsel %vm287, %v2558, %v2570
  %v2581 = vsel %vm287, %v2560, %v2572
  %v2582 = vsel %vm287, %v2562, %v2574
  %v2583 = vtanh.pop %v2547
  %v2584 = vtanh.pop %v2548
  %v2585 = vtanh.pop %v2549
  %v2586 = vtanh.pop %v2550
  %v2587 = vmul.f32 %v2579, %v2583
  %v2588 = vmul.f32 %v2580, %v2584
  %v2589 = vmul.f32 %v2581, %v2585
  %v2590 = vmul.f32 %v2582, %v2586
  %2591 = vst.msk [vmem:[#allocation3] sm:$0xff] %vm11, %v2547
  %2592 = vst.msk [vmem:[#allocation3 + $0x8] sm:$0xff] %vm11, %v2548
  %2593 = vst.msk [vmem:[#allocation3 + $0x10] sm:$0xff] %vm11, %v2549
  %2594 = vst.msk [vmem:[#allocation3 + $0x18] sm:$0xff] %vm11, %v2550
  %2595 = vst.msk [vmem:[#allocation2] sm:$0xff] %vm11, %v2587
  %2596 = vst.msk [vmem:[#allocation2 + $0x8] sm:$0xff] %vm11, %v2588
  %2597 = vst.msk [vmem:[#allocation2 + $0x10] sm:$0xff] %vm11, %v2589
  %2598 = vst.msk [vmem:[#allocation2 + $0x18] sm:$0xff] %vm11, %v2590
  %s2599 = scalar_lea.vmem %s2, 224
  %2600 = vst.msk [vmem:[%s2599] sm:$0xff] %vm11, %v2587
  %2601 = vst.msk [vmem:[%s2599 + $0x8] sm:$0xff] %vm11, %v2588
  %2602 = vst.msk [vmem:[%s2599 + $0x10] sm:$0xff] %vm11, %v2589
  %2603 = vst.msk [vmem:[%s2599 + $0x18] sm:$0xff] %vm11, %v2590
  // Predicated region
  $region10: #{_lambda_.16} parent=0 // pred_check
    _
  $region11: #{_lambda_.16} parent=0 // pred_check_branch
    %2605 = sbr.rel (0) target = $region13
  $region12: #{_lambda_.16} parent=0 // pred_region
    _
  $region13: #{_lambda_.16} parent=0 // pred_fallthru
    _
  // Predicated region
  $region14: #{_lambda_.16} parent=0 // pred_check
    _
  $region15: #{_lambda_.16} parent=0 // pred_check_branch
    %2607 = sbr.rel (0) target = $region17
  $region16: #{_lambda_.16} parent=0 // pred_region
    _
  $region17: #{_lambda_.16} parent=0 // pred_fallthru
    _

// kernel: _lambda_.20
$region0: #{_lambda_.20}
  #allocation0 [shape = 'u32[]', space=smem, size = 0x4, offset = 0x4, fixed_abs, tag = 'smem constant byte address 0x4 - core index']
  #allocation1 [shape = 'u32[144,128]{1,0:T(1,128)}', space=vmem, size = 0x12000, scoped, tag = 'internal scratch']
  %s0 = inlined_call_operand.vmem [shape: f32[4,1024], index: 0, kind: input, shape index: {}]
  %s1 = inlined_call_operand.vmem [shape: f32[4,1024], index: 1, kind: input, shape index: {}, may-alias: {1,4}]
  %s2 = inlined_call_operand.vmem [shape: f32[1,1024], index: 2, kind: input, shape index: {}]
  %s3 = inlined_call_operand.vmem [shape: f32[1,1024], index: 3, kind: input, shape index: {}]
  %s4 = inlined_call_operand.vmem [shape: f32[4,1024], index: 4, kind: output, shape index: {}, may-alias: {1,4}]
  %s5 = sld [smem:[#allocation0]]
  $region26: #{_lambda_.20} parent=0
    _
  %s7 = ssub.s32 1, %s5
  %s8 = scalar_select 0, %s7, %s5
  // Predicated region
  $region2: #{_lambda_.20} parent=0 // pred_check
    _
  $region3: #{_lambda_.20} parent=0 // pred_check_branch
    %10 = sbr.rel (0) target = $region5
  $region4: #{_lambda_.20} parent=0 // pred_region
    _
  $region5: #{_lambda_.20} parent=0 // pred_fallthru
    _
  // Predicated region
  $region6: #{_lambda_.20} parent=0 // pred_check
    _
  $region7: #{_lambda_.20} parent=0 // pred_check_branch
    %12 = sbr.rel (0) target = $region9
  $region8: #{_lambda_.20} parent=0 // pred_region
    _
  $region9: #{_lambda_.20} parent=0 // pred_fallthru
    _
  // Predicated region
  $region10: #{_lambda_.20} parent=0 // pred_check
    _
  $region11: #{_lambda_.20} parent=0 // pred_check_branch
    %14 = sbr.rel (0) target = $region13
  $region12: #{_lambda_.20} parent=0 // pred_region
    _
  $region13: #{_lambda_.20} parent=0 // pred_fallthru
    _
  // Predicated region
  $region14: #{_lambda_.20} parent=0 // pred_check
    _
  $region15: #{_lambda_.20} parent=0 // pred_check_branch
    %16 = sbr.rel (0) target = $region17
  $region16: #{_lambda_.20} parent=0 // pred_region
    _
  $region17: #{_lambda_.20} parent=0 // pred_fallthru
    _
  %v17 = vld [vmem:[%s0] sm:$0xff]
  %v18 = vld [vmem:[%s0 + $0x8] sm:$0xff]
  %v19 = vld [vmem:[%s0 + $0x10] sm:$0xff]
  %v20 = vld [vmem:[%s0 + $0x18] sm:$0xff]
  %v25 = vcombine.high %v17, %v17
  %v26 = vcombine.high %v18, %v18
  %v27 = vcombine.high %v19, %v19
  %v28 = vcombine.high %v20, %v20
  %vm33 = vcmask 1043456
  %v34 = vsel %vm33, %v17, 0.0
  %v35 = vsel %vm33, %v25, 0.0
  %v36 = vadd.f32 %v34, %v35
  %v37 = vsel %vm33, %v18, 0.0
  %v38 = vadd.f32 %v36, %v37
  %v39 = vsel %vm33, %v26, 0.0
  %v40 = vadd.f32 %v38, %v39
  %v41 = vsel %vm33, %v19, 0.0
  %v42 = vadd.f32 %v40, %v41
  %v43 = vsel %vm33, %v27, 0.0
  %v44 = vadd.f32 %v42, %v43
  %v45 = vsel %vm33, %v20, 0.0
  %v46 = vadd.f32 %v44, %v45
  %v47 = vsel %vm33, %v28, 0.0
  %v48 = vadd.f32 %v46, %v47
  %49 = vadd.xlane.f32.xlu0 %v48
  %v50 = vpop.xlane.xlu0 %49
  %v51 = vrcp.pop 1024.0
  %v52 = vmul.f32 %v50, %v51
  %v55 = vunpack.c.l.s4 839922192
  %v56 = vunpack.c.0.s8 %v55
  %v57 = vlaneseq
  %v58 = vshrl.u32 %v57, 7
  %v59 = vsub.s32 %v56, %v58
  %v60 = vrot.slane %v52, %v59
  %v62 = vsub.f32 %v17, %v60
  %v63 = vsub.f32 %v18, %v60
  %v64 = vsub.f32 %v19, %v60
  %v65 = vsub.f32 %v20, %v60
  %v66 = vmul.f32 %v62, %v62
  %v67 = vmul.f32 %v63, %v63
  %v68 = vmul.f32 %v64, %v64
  %v69 = vmul.f32 %v65, %v65
  %v74 = vcombine.high %v66, %v66
  %v75 = vcombine.high %v67, %v67
  %v76 = vcombine.high %v68, %v68
  %v77 = vcombine.high %v69, %v69
  %v82 = vsel %vm33, %v66, 0.0
  %v83 = vsel %vm33, %v74, 0.0
  %v84 = vadd.f32 %v82, %v83
  %v85 = vsel %vm33, %v67, 0.0
  %v86 = vadd.f32 %v84, %v85
  %v87 = vsel %vm33, %v75, 0.0
  %v88 = vadd.f32 %v86, %v87
  %v89 = vsel %vm33, %v68, 0.0
  %v90 = vadd.f32 %v88, %v89
  %v91 = vsel %vm33, %v76, 0.0
  %v92 = vadd.f32 %v90, %v91
  %v93 = vsel %vm33, %v69, 0.0
  %v94 = vadd.f32 %v92, %v93
  %v95 = vsel %vm33, %v77, 0.0
  %v96 = vadd.f32 %v94, %v95
  %97 = vadd.xlane.f32.xlu0 %v96
  %v98 = vpop.xlane.xlu0 %97
  %v99 = vmul.f32 %v98, %v51
  %v100 = vld [vmem:[%s1] sm:$0xff]
  %v101 = vld [vmem:[%s1 + $0x8] sm:$0xff]
  %v102 = vld [vmem:[%s1 + $0x10] sm:$0xff]
  %v103 = vld [vmem:[%s1 + $0x18] sm:$0xff]
  %v104 = vadd.f32 %v99, 1e-08
  %v105 = vrsqrt.pop %v104
  %v108 = vunpack.c.l.s4 839922192
  %v109 = vunpack.c.0.s8 %v108
  %v110 = vlaneseq
  %v111 = vshrl.u32 %v110, 7
  %v112 = vsub.s32 %v109, %v111
  %v113 = vrot.slane %v105, %v112
  %v115 = vmul.f32 %v62, %v113
  %v116 = vmul.f32 %v63, %v113
  %v117 = vmul.f32 %v64, %v113
  %v118 = vmul.f32 %v65, %v113
  %v119 = vld [vmem:[%s2] sm:$0xff]
  %v121 = vlaneseq
  %v122 = vshrl.u32 %v121, 7
  %v123 = vsub.s32 0, %v122
  %v124 = vrot.slane %v119, %v123
  %v125 = vlaneseq
  %v126 = vshrl.u32 %v125, 7
  %v127 = vsub.s32 1, %v126
  %v128 = vrot.slane %v119, %v127
  %v129 = vlaneseq
  %v130 = vshrl.u32 %v129, 7
  %v131 = vsub.s32 2, %v130
  %v132 = vrot.slane %v119, %v131
  %v133 = vlaneseq
  %v134 = vshrl.u32 %v133, 7
  %v135 = vsub.s32 3, %v134
  %v136 = vrot.slane %v119, %v135
  %v137 = vlaneseq
  %v138 = vshrl.u32 %v137, 7
  %v139 = vsub.s32 4, %v138
  %v140 = vrot.slane %v119, %v139
  %v141 = vlaneseq
  %v142 = vshrl.u32 %v141, 7
  %v143 = vsub.s32 5, %v142
  %v144 = vrot.slane %v119, %v143
  %v145 = vlaneseq
  %v146 = vshrl.u32 %v145, 7
  %v147 = vsub.s32 6, %v146
  %v148 = vrot.slane %v119, %v147
  %v149 = vlaneseq
  %v150 = vshrl.u32 %v149, 7
  %v151 = vsub.s32 7, %v150
  %v152 = vrot.slane %v119, %v151
  %v153 = vcombine.low %v124, %v128
  %v154 = vcombine.low %v132, %v136
  %v155 = vcombine.low %v140, %v144
  %v156 = vcombine.low %v148, %v152
  %v161 = vmul.f32 %v115, %v153
  %v162 = vmul.f32 %v116, %v154
  %v163 = vmul.f32 %v117, %v155
  %v164 = vmul.f32 %v118, %v156
  %v165 = vadd.f32 %v100, %v161
  %v166 = vadd.f32 %v101, %v162
  %v167 = vadd.f32 %v102, %v163
  %v168 = vadd.f32 %v103, %v164
  %v169 = vld [vmem:[%s3] sm:$0xff]
  %v171 = vlaneseq
  %v172 = vshrl.u32 %v171, 7
  %v173 = vsub.s32 0, %v172
  %v174 = vrot.slane %v169, %v173
  %v175 = vlaneseq
  %v176 = vshrl.u32 %v175, 7
  %v177 = vsub.s32 1, %v176
  %v178 = vrot.slane %v169, %v177
  %v179 = vlaneseq
  %v180 = vshrl.u32 %v179, 7
  %v181 = vsub.s32 2, %v180
  %v182 = vrot.slane %v169, %v181
  %v183 = vlaneseq
  %v184 = vshrl.u32 %v183, 7
  %v185 = vsub.s32 3, %v184
  %v186 = vrot.slane %v169, %v185
  %v187 = vlaneseq
  %v188 = vshrl.u32 %v187, 7
  %v189 = vsub.s32 4, %v188
  %v190 = vrot.slane %v169, %v189
  %v191 = vlaneseq
  %v192 = vshrl.u32 %v191, 7
  %v193 = vsub.s32 5, %v192
  %v194 = vrot.slane %v169, %v193
  %v195 = vlaneseq
  %v196 = vshrl.u32 %v195, 7
  %v197 = vsub.s32 6, %v196
  %v198 = vrot.slane %v169, %v197
  %v199 = vlaneseq
  %v200 = vshrl.u32 %v199, 7
  %v201 = vsub.s32 7, %v200
  %v202 = vrot.slane %v169, %v201
  %v203 = vcombine.low %v174, %v178
  %v204 = vcombine.low %v182, %v186
  %v205 = vcombine.low %v190, %v194
  %v206 = vcombine.low %v198, %v202
  %v211 = vadd.f32 %v165, %v203
  %v212 = vadd.f32 %v166, %v204
  %v213 = vadd.f32 %v167, %v205
  %v214 = vadd.f32 %v168, %v206
  %215 = vst [vmem:[%s4] sm:$0xff] %v211
  %216 = vst [vmem:[%s4 + $0x8] sm:$0xff] %v212
  %217 = vst [vmem:[%s4 + $0x10] sm:$0xff] %v213
  %218 = vst [vmem:[%s4 + $0x18] sm:$0xff] %v214
  // Predicated region
  $region18: #{_lambda_.20} parent=0 // pred_check
    _
  $region19: #{_lambda_.20} parent=0 // pred_check_branch
    %220 = sbr.rel (0) target = $region21
  $region20: #{_lambda_.20} parent=0 // pred_region
    _
  $region21: #{_lambda_.20} parent=0 // pred_fallthru
    _
  // Predicated region
  $region22: #{_lambda_.20} parent=0 // pred_check
    _
  $region23: #{_lambda_.20} parent=0 // pred_check_branch
    %222 = sbr.rel (0) target = $region25
  $region24: #{_lambda_.20} parent=0 // pred_region
    _
  $region25: #{_lambda_.20} parent=0 // pred_fallthru
    _

// kernel: _lambda_.29
$region0: #{_lambda_.29}
  #allocation0 [shape = 'u32[]', space=smem, size = 0x4, offset = 0x4, fixed_abs, tag = 'smem constant byte address 0x4 - core index']
  #allocation1 [shape = 'u32[144,128]{1,0:T(1,128)}', space=vmem, size = 0x12000, scoped, tag = 'internal scratch']
  #allocation2 [shape = 'f32[1,1]{1,0:T(1,128)S(1)}', space=vmem, size = 0x200, scoped, tag = 'scoped memory for _lambda_.29']
  %s0 = inlined_call_operand.vmem [shape: f32[4,16,64], index: 0, kind: input, shape index: {}]
  %s1 = inlined_call_operand.vmem [shape: f32[16,16], index: 1, kind: input, shape index: {}]
  %s2 = inlined_call_operand.vmem [shape: f32[16,1], index: 2, kind: input, shape index: {}]
  %s3 = inlined_call_operand.<no memory space> [shape: f32[1,1], index: 3, kind: input, shape index: {}]
  %s4 = inlined_call_operand.vmem [shape: f32[4,16,64], index: 4, kind: output, shape index: {}]
  %s5 = sld [smem:[#allocation0]]
  $region49: #{_lambda_.29} parent=0
    _
  %s7 = ssub.s32 1, %s5
  %s8 = scalar_select 0, %s7, %s5
  %v9 = vstv %s3
  %10 = vst [vmem:[#allocation2] sm:$0x1] %v9
  loop: start=0, step=1, limit=4
  $region2: #{_lambda_.29} parent=0 // loop_pre_header
    _
  $region3: #{_lambda_.29} parent=0 // loop_header
    %s12 = sphi 0, %s16
    %p13 = scmp.ge.s32.totalorder %s12, 4
    %s22 = sphi 0, %s24
    %s25 = sphi 0, %s22
    %s26 = sphi 0, %s25
    %s42 = sphi 0, %s26
    %s46 = sphi 0, %s46
    %s48 = sphi 0, %s46
    %s49 = sphi 0, %s48
    %s63 = sphi 0, %s49
    %s67 = sphi 0, %s67
    %s69 = sphi 0, %s67
    %s70 = sphi 0, %s69
    %s84 = sphi 0, %s70
    %s88 = sphi 0, %s88
    %s90 = sphi 0, %s88
    %s91 = sphi 0, %s90
    %s105 = sphi 0, %s91
    %s111 = sphi 0, %s113
    %s114 = sphi 0, %s111
    %s115 = sphi 0, %s114
    %s131 = sphi 0, %s115
  $region4: #{_lambda_.29} parent=0 // loop_header_branch
    %15 = sbr.rel (%p13) target = $region8
  $region5: #{_lambda_.29} parent=0 // loop_body
    %s17 = ssub.s32 %s12, 1
    %s18 = ssub.s32 %s12, 2
    %s19 = sadd.s32 %s12, 1
    %s20 = ssub.s32 %s12, %s19
    %p21 = scmp.eq.s32.totalorder %s20, 0
    %s23 = sadd.s32 %s22, 1
    %s24 = scalar_select %p21, %s22, %s23
    %p27 = pneg %p21
    %p28 = scmp.eq.s32.totalorder %s12, 1
    %p29 = por %p27, %p28
    %p30 = scmp.ne.s32.totalorder %s22, %s25
    %p31 = scmp.eq.s32.totalorder %s12, 0
    %p32 = por %p30, %p31
    %p33 = scmp.ne.s32.totalorder %s22, %s25
    %p34 = scmp.eq.s32.totalorder %s17, 1
    %p35 = por %p33, %p34
    %p36 = scmp.ne.s32.totalorder %s25, %s26
    %p37 = scmp.eq.s32.totalorder %s17, 0
    %p38 = por %p36, %p37
    %p39 = scmp.ne.s32.totalorder %s25, %s26
    %p40 = scmp.eq.s32.totalorder %s18, 1
    %p41 = por %p39, %p40
    %p43 = scmp.ne.s32.totalorder %s26, %s42
    %p44 = scmp.eq.s32.totalorder %s18, 0
    %p45 = por %p43, %p44
    %s47 = sadd.s32 %s46, 1
    %p50 = scmp.eq.s32.totalorder %s12, 1
    %p51 = scmp.ne.s32.totalorder %s46, %s48
    %p52 = scmp.eq.s32.totalorder %s12, 0
    %p53 = por %p51, %p52
    %p54 = scmp.ne.s32.totalorder %s46, %s48
    %p55 = scmp.eq.s32.totalorder %s17, 1
    %p56 = por %p54, %p55
    %p57 = scmp.ne.s32.totalorder %s48, %s49
    %p58 = scmp.eq.s32.totalorder %s17, 0
    %p59 = por %p57, %p58
    %p60 = scmp.ne.s32.totalorder %s48, %s49
    %p61 = scmp.eq.s32.totalorder %s18, 1
    %p62 = por %p60, %p61
    %p64 = scmp.ne.s32.totalorder %s49, %s63
    %p65 = scmp.eq.s32.totalorder %s18, 0
    %p66 = por %p64, %p65
    %s68 = sadd.s32 %s67, 1
    %p71 = scmp.eq.s32.totalorder %s12, 1
    %p72 = scmp.ne.s32.totalorder %s67, %s69
    %p73 = scmp.eq.s32.totalorder %s12, 0
    %p74 = por %p72, %p73
    %p75 = scmp.ne.s32.totalorder %s67, %s69
    %p76 = scmp.eq.s32.totalorder %s17, 1
    %p77 = por %p75, %p76
    %p78 = scmp.ne.s32.totalorder %s69, %s70
    %p79 = scmp.eq.s32.totalorder %s17, 0
    %p80 = por %p78, %p79
    %p81 = scmp.ne.s32.totalorder %s69, %s70
    %p82 = scmp.eq.s32.totalorder %s18, 1
    %p83 = por %p81, %p82
    %p85 = scmp.ne.s32.totalorder %s70, %s84
    %p86 = scmp.eq.s32.totalorder %s18, 0
    %p87 = por %p85, %p86
    %s89 = sadd.s32 %s88, 1
    %p92 = scmp.eq.s32.totalorder %s12, 1
    %p93 = scmp.ne.s32.totalorder %s88, %s90
    %p94 = scmp.eq.s32.totalorder %s12, 0
    %p95 = por %p93, %p94
    %p96 = scmp.ne.s32.totalorder %s88, %s90
    %p97 = scmp.eq.s32.totalorder %s17, 1
    %p98 = por %p96, %p97
    %p99 = scmp.ne.s32.totalorder %s90, %s91
    %p100 = scmp.eq.s32.totalorder %s17, 0
    %p101 = por %p99, %p100
    %p102 = scmp.ne.s32.totalorder %s90, %s91
    %p103 = scmp.eq.s32.totalorder %s18, 1
    %p104 = por %p102, %p103
    %p106 = scmp.ne.s32.totalorder %s91, %s105
    %p107 = scmp.eq.s32.totalorder %s18, 0
    %p108 = por %p106, %p107
    %s109 = ssub.s32 %s12, %s19
    %p110 = scmp.eq.s32.totalorder %s109, 0
    %s112 = sadd.s32 %s111, 1
    %s113 = scalar_select %p110, %s111, %s112
    %p116 = pneg %p110
    %p117 = scmp.eq.s32.totalorder %s12, 1
    %p118 = por %p116, %p117
    %p119 = scmp.ne.s32.totalorder %s111, %s114
    %p120 = scmp.eq.s32.totalorder %s12, 0
    %p121 = por %p119, %p120
    %p122 = scmp.ne.s32.totalorder %s111, %s114
    %p123 = scmp.eq.s32.totalorder %s17, 1
    %p124 = por %p122, %p123
    %p125 = scmp.ne.s32.totalorder %s114, %s115
    %p126 = scmp.eq.s32.totalorder %s17, 0
    %p127 = por %p125, %p126
    %p128 = scmp.ne.s32.totalorder %s114, %s115
    %p129 = scmp.eq.s32.totalorder %s18, 1
    %p130 = por %p128, %p129
    %p132 = scmp.ne.s32.totalorder %s115, %s131
    %p133 = scmp.eq.s32.totalorder %s18, 0
    %p134 = por %p132, %p133
    %p135 = scmp.le.s32.totalorder 1, %s12
    %p136 = scmp.lt.s32.totalorder %s12, 3
    %p137 = pnand %p135, %p136
    %p138 = pneg %p137
    // Predicated region
    $region9: #{_lambda_.29} parent=5 // pred_check
      _
    $region10: #{_lambda_.29} parent=5 // pred_check_branch
      %140 = sbr.rel (%p137) target = $region12
    $region11: #{_lambda_.29} parent=5 // pred_region
      %s141 = ssub.s32 %s12, 1
      // Predicated region
      $region13: #{_lambda_.29} parent=11 // pred_check
        %p142 = pneg %p59
      $region14: #{_lambda_.29} parent=11 // pred_check_branch
        %144 = sbr.rel (%p142) target = $region16
      $region15: #{_lambda_.29} parent=11 // pred_region
        _
      $region16: #{_lambda_.29} parent=11 // pred_fallthru
        _
      // Predicated region
      $region17: #{_lambda_.29} parent=11 // pred_check
        %p145 = pneg %p80
      $region18: #{_lambda_.29} parent=11 // pred_check_branch
        %147 = sbr.rel (%p145) target = $region20
      $region19: #{_lambda_.29} parent=11 // pred_region
        _
      $region20: #{_lambda_.29} parent=11 // pred_fallthru
        _
      // Predicated region
      $region21: #{_lambda_.29} parent=11 // pred_check
        %p148 = pneg %p101
      $region22: #{_lambda_.29} parent=11 // pred_check_branch
        %150 = sbr.rel (%p148) target = $region24
      $region23: #{_lambda_.29} parent=11 // pred_region
        _
      $region24: #{_lambda_.29} parent=11 // pred_fallthru
        _
    $region12: #{_lambda_.29} parent=5 // pred_fallthru
      _
    %p151 = scmp.lt.s32.totalorder %s12, 2
    // Predicated region
    $region25: #{_lambda_.29} parent=5 // pred_check
      %p152 = pneg %p151
    $region26: #{_lambda_.29} parent=5 // pred_check_branch
      %154 = sbr.rel (%p152) target = $region28
    $region27: #{_lambda_.29} parent=5 // pred_region
      // Predicated region
      $region29: #{_lambda_.29} parent=27 // pred_check
        %p155 = pneg %p32
      $region30: #{_lambda_.29} parent=27 // pred_check_branch
        %157 = sbr.rel (%p155) target = $region32
      $region31: #{_lambda_.29} parent=27 // pred_region
        %s158 = smul.u32 2, %s12
        %p159 = scmp.lt.s32.totalorder %s158, 3
        %s160 = scalar_select %p159, %s158, 3
        %s161 = smul.addr %s160, 2
        %s162 = smul.addr %s161, 8
        %s163 = scalar_lea.vmem %s0, %s162
        %s164 = smul.u32 2, %s12
      $region32: #{_lambda_.29} parent=27 // pred_fallthru
        _
    $region28: #{_lambda_.29} parent=5 // pred_fallthru
      _
    %p165 = scmp.le.s32.totalorder 1, %s12
    %p166 = scmp.lt.s32.totalorder %s12, 3
    %p167 = pnand %p165, %p166
    %p168 = pneg %p167
    // Predicated region
    $region33: #{_lambda_.29} parent=5 // pred_check
      _
    $region34: #{_lambda_.29} parent=5 // pred_check_branch
      %170 = sbr.rel (%p167) target = $region36
    $region35: #{_lambda_.29} parent=5 // pred_region
      %s171 = ssub.s32 %s12, 1
      %s172 = smul.u32 2, %s17
      %p173 = scmp.lt.s32.totalorder %s172, 3
      %s174 = scalar_select %p173, %s172, 3
      %s175 = smul.addr %s174, 2
      %s176 = smul.addr %s175, 8
      %s177 = scalar_lea.vmem %s0, %s176
      %p178 = pneg %p38
      %p179 = pneg %p35
      %p180 = pneg %p59
      %p181 = pneg %p56
      %p182 = pneg %p80
      %p183 = pneg %p77
      %p184 = pneg %p101
      %p185 = pneg %p98
      %p186 = pneg %p127
      %p187 = pneg %p124
      %s188 = smul.u32 2, %s17
      %p189 = scmp.lt.s32.totalorder %s188, 3
      %s190 = scalar_select %p189, %s188, 3
      %s191 = smul.addr %s190, 2
      %s192 = smul.addr %s191, 8
      %s193 = scalar_lea.vmem %s4, %s192
      %s194 = smul.u32 2, %s17
      %p195 = scmp.lt.s32.totalorder %s194, 3
      %s196 = scalar_select %p195, %s194, 3
      %s197 = smul.addr %s196, 2
      %s198 = smul.addr %s197, 8
      %s199 = scalar_lea.vmem %s0, %s198
      %s200 = smul.u32 2, %s17
      %s201 = smul.u32 2, %s17
      %p202 = scmp.lt.s32.totalorder %s201, 3
      %s203 = scalar_select %p202, %s201, 3
      %s204 = smul.addr %s203, 2
      %s205 = smul.addr %s204, 8
      %s206 = scalar_lea.vmem %s4, %s205
      %s207 = smul.u32 2, %s17
      %v208 = vld [vmem:[%s1] sm:$0xff]
      %v209 = vld [vmem:[%s1 + $0x8] sm:$0xff]
      %v210 = vld [vmem:[%s2] sm:$0xff]
      %v211 = vld [vmem:[%s2 + $0x8] sm:$0xff]
      %v212 = vld [vmem:[#allocation2] sm:$0x1]
      %v213 = vld [vmem:[%s199] sm:$0xff]
      %v214 = vld [vmem:[%s199 + $0x8] sm:$0xff]
      %vm215 = vcmp.ge.f32.partialorder %v213, 0.0
      %vm216 = vcmp.ge.f32.partialorder %v214, 0.0
      %v218 = vlaneseq
      %v219 = vshrl.u32 %v218, 7
      %v220 = vsub.s32 0, %v219
      %v221 = vrot.slane %v212, %v220
      %222 = vset.pattern.permute.xlu0 0
      %223 = vperm.xlu0 %222, %v221
      %v224 = vpop.permute.xlu0 %223
      %v226 = vmul.f32 %v224, %v213
      %v227 = vmul.f32 %v224, %v214
      %v228 = vsel %vm215, %v213, %v226
      %v229 = vsel %vm216, %v214, %v227
      %231 = vset.pattern.permute.xlu0 0
      %232 = vperm.xlu0 %231, %v210
      %v233 = vpop.permute.xlu0 %232
      %236 = vset.pattern.permute.xlu0 0
      %237 = vperm.xlu0 %236, %v211
      %v238 = vpop.permute.xlu0 %237
      %vm240 = vcmask 130048
      %v242 = vsel %vm240, %v208, 0
      %v245 = vsel %vm240, %v209, 0
      %247 = vmatprep.subr.mxu0 0.0
      %248 = vmatpush1.msra.mxu0 0.0
      %249 = vmatprep.subr.mxu0 0.0
      %250 = vmatpush1.msra.mxu0 0.0
      %251 = vmatprep.subr.mxu0 0.0
      %252 = vmatpush1.msra.mxu0 0.0
      %253 = vmatprep.subr.mxu0 0.0
      %254 = vmatpush1.msra.mxu0 0.0
      %255 = vmatprep.subr.mxu0 0.0
      %256 = vmatpush1.msra.mxu0 0.0
      %257 = vmatprep.subr.mxu0 0.0
      %258 = vmatpush1.msra.mxu0 0.0
      %259 = vmatprep.subr.mxu0 0.0
      %260 = vmatpush1.msra.mxu0 0.0
      %261 = vmatprep.subr.mxu0 0.0
      %262 = vmatpush1.msra.mxu0 0.0
      %263 = vmatprep.subr.mxu0 0.0
      %264 = vmatpush1.msra.mxu0 0.0
      %265 = vmatprep.subr.mxu0 0.0
      %266 = vmatpush1.msra.mxu0 0.0
      %267 = vmatprep.subr.mxu0 0.0
      %268 = vmatpush1.msra.mxu0 0.0
      %269 = vmatprep.subr.mxu0 0.0
      %270 = vmatpush1.msra.mxu0 0.0
      %271 = vmatprep.subr.mxu0 0.0
      %272 = vmatpush1.msra.mxu0 0.0
      %273 = vmatprep.subr.mxu0 0.0
      %274 = vmatpush1.msra.mxu0 0.0
      %275 = vmatprep.subr.mxu0 0.0
      %276 = vmatpush1.msra.mxu0 %v229
      %277 = vmatprep.subr.mxu0 0.0
      %278 = vmatpush1.msra.mxu0 %v228
      %279 = vmatprep.subr.mxu0 0.0
      %280 = vmatpush2.msra.mxu0 0.0
      %281 = vmatprep.subr.mxu0 0.0
      %282 = vmatpush2.msra.mxu0 0.0
      %283 = vmatprep.subr.mxu0 0.0
      %284 = vmatpush2.msra.mxu0 0.0
      %285 = vmatprep.subr.mxu0 0.0
      %286 = vmatpush2.msra.mxu0 0.0
      %287 = vmatprep.subr.mxu0 0.0
      %288 = vmatpush2.msra.mxu0 0.0
      %289 = vmatprep.subr.mxu0 0.0
      %290 = vmatpush2.msra.mxu0 0.0
      %291 = vmatprep.subr.mxu0 0.0
      %292 = vmatpush2.msra.mxu0 0.0
      %293 = vmatprep.subr.mxu0 0.0
      %294 = vmatpush2.msra.mxu0 0.0
      %295 = vmatprep.subr.mxu0 0.0
      %296 = vmatpush2.msra.mxu0 0.0
      %297 = vmatprep.subr.mxu0 0.0
      %298 = vmatpush2.msra.mxu0 0.0
      %299 = vmatprep.subr.mxu0 0.0
      %300 = vmatpush2.msra.mxu0 0.0
      %301 = vmatprep.subr.mxu0 0.0
      %302 = vmatpush2.msra.mxu0 0.0
      %303 = vmatprep.subr.mxu0 0.0
      %304 = vmatpush2.msra.mxu0 0.0
      %305 = vmatprep.subr.mxu0 0.0
      %306 = vmatpush2.msra.mxu0 0.0
      %307 = vmatprep.subr.mxu0 0.0
      %308 = vmatpush2.msra.mxu0 0.0
      %309 = vmatprep.subr.mxu0 0.0
      %310 = vmatpush2.msra.mxu0 0.0
      %311 = vmatprep.mubr.f32.mxu0 0.0
      %312 = vmatmul.mubr.f32.gmra.mxu0 %v242
      %v313 = vpop.f32.mrf.mxu0
      %v314 = vadd.f32 %v233, %v313
      %v315 = vpop.f32.mrf.mxu0
      %316 = vmatprep.mubr.f32.mxu0 0.0
      %317 = vmatmul.mubr.f32.gmra.mxu0 %v245
      %v318 = vpop.f32.mrf.mxu0
      %v319 = vadd.f32 %v238, %v318
      %v320 = vpop.f32.mrf.mxu0
      %321 = vdwg.mxu0
      %vm322 = vcmask 523264
      %323 = vst.msk [vmem:[%s206] sm:$0xff] %vm322, %v314
      %324 = vst.msk [vmem:[%s206 + $0x8] sm:$0xff] %vm322, %v319
      %s325 = scalar_lea.vmem %s199, 16
      %v326 = vld [vmem:[%s325] sm:$0xff]
      %v327 = vld [vmem:[%s325 + $0x8] sm:$0xff]
      %vm328 = vcmp.ge.f32.partialorder %v326, 0.0
      %vm329 = vcmp.ge.f32.partialorder %v327, 0.0
      %v330 = vmul.f32 %v224, %v326
      %v331 = vmul.f32 %v224, %v327
      %v332 = vsel %vm328, %v326, %v330
      %v333 = vsel %vm329, %v327, %v331
      %334 = vmatprep.subr.mxu0 0.0
      %335 = vmatpush1.msra.mxu0 0.0
      %336 = vmatprep.subr.mxu0 0.0
      %337 = vmatpush1.msra.mxu0 0.0
      %338 = vmatprep.subr.mxu0 0.0
      %339 = vmatpush1.msra.mxu0 0.0
      %340 = vmatprep.subr.mxu0 0.0
      %341 = vmatpush1.msra.mxu0 0.0
      %342 = vmatprep.subr.mxu0 0.0
      %343 = vmatpush1.msra.mxu0 0.0
      %344 = vmatprep.subr.mxu0 0.0
      %345 = vmatpush1.msra.mxu0 0.0
      %346 = vmatprep.subr.mxu0 0.0
      %347 = vmatpush1.msra.mxu0 0.0
      %348 = vmatprep.subr.mxu0 0.0
      %349 = vmatpush1.msra.mxu0 0.0
      %350 = vmatprep.subr.mxu0 0.0
      %351 = vmatpush1.msra.mxu0 0.0
      %352 = vmatprep.subr.mxu0 0.0
      %353 = vmatpush1.msra.mxu0 0.0
      %354 = vmatprep.subr.mxu0 0.0
      %355 = vmatpush1.msra.mxu0 0.0
      %356 = vmatprep.subr.mxu0 0.0
      %357 = vmatpush1.msra.mxu0 0.0
      %358 = vmatprep.subr.mxu0 0.0
      %359 = vmatpush1.msra.mxu0 0.0
      %360 = vmatprep.subr.mxu0 0.0
      %361 = vmatpush1.msra.mxu0 0.0
      %362 = vmatprep.subr.mxu0 0.0
      %363 = vmatpush1.msra.mxu0 %v333
      %364 = vmatprep.subr.mxu0 0.0
      %365 = vmatpush1.msra.mxu0 %v332
      %366 = vmatprep.subr.mxu0 0.0
      %367 = vmatpush2.msra.mxu0 0.0
      %368 = vmatprep.subr.mxu0 0.0
      %369 = vmatpush2.msra.mxu0 0.0
      %370 = vmatprep.subr.mxu0 0.0
      %371 = vmatpush2.msra.mxu0 0.0
      %372 = vmatprep.subr.mxu0 0.0
      %373 = vmatpush2.msra.mxu0 0.0
      %374 = vmatprep.subr.mxu0 0.0
      %375 = vmatpush2.msra.mxu0 0.0
      %376 = vmatprep.subr.mxu0 0.0
      %377 = vmatpush2.msra.mxu0 0.0
      %378 = vmatprep.subr.mxu0 0.0
      %379 = vmatpush2.msra.mxu0 0.0
      %380 = vmatprep.subr.mxu0 0.0
      %381 = vmatpush2.msra.mxu0 0.0
      %382 = vmatprep.subr.mxu0 0.0
      %383 = vmatpush2.msra.mxu0 0.0
      %384 = vmatprep.subr.mxu0 0.0
      %385 = vmatpush2.msra.mxu0 0.0
      %386 = vmatprep.subr.mxu0 0.0
      %387 = vmatpush2.msra.mxu0 0.0
      %388 = vmatprep.subr.mxu0 0.0
      %389 = vmatpush2.msra.mxu0 0.0
      %390 = vmatprep.subr.mxu0 0.0
      %391 = vmatpush2.msra.mxu0 0.0
      %392 = vmatprep.subr.mxu0 0.0
      %393 = vmatpush2.msra.mxu0 0.0
      %394 = vmatprep.subr.mxu0 0.0
      %395 = vmatpush2.msra.mxu0 0.0
      %396 = vmatprep.subr.mxu0 0.0
      %397 = vmatpush2.msra.mxu0 0.0
      %398 = vmatprep.mubr.f32.mxu0 0.0
      %399 = vmatmul.mubr.f32.gmra.mxu0 %v242
      %v400 = vpop.f32.mrf.mxu0
      %v401 = vadd.f32 %v233, %v400
      %v402 = vpop.f32.mrf.mxu0
      %403 = vmatprep.mubr.f32.mxu0 0.0
      %404 = vmatmul.mubr.f32.gmra.mxu0 %v245
      %v405 = vpop.f32.mrf.mxu0
      %v406 = vadd.f32 %v238, %v405
      %v407 = vpop.f32.mrf.mxu0
      %408 = vdwg.mxu0
      %s409 = scalar_lea.vmem %s206, 16
      %410 = vst.msk [vmem:[%s409] sm:$0xff] %vm322, %v401
      %411 = vst.msk [vmem:[%s409 + $0x8] sm:$0xff] %vm322, %v406
      %s412 = smul.u32 2, %s17
      %p413 = scmp.lt.s32.totalorder %s412, 3
      %s414 = scalar_select %p413, %s412, 3
      %s415 = smul.addr %s414, 2
      %s416 = smul.addr %s415, 8
      %s417 = scalar_lea.vmem %s4, %s416
      // Predicated region
      $region37: #{_lambda_.29} parent=35 // pred_check
        %p418 = pneg %p124
      $region38: #{_lambda_.29} parent=35 // pred_check_branch
        %420 = sbr.rel (%p418) target = $region40
      $region39: #{_lambda_.29} parent=35 // pred_region
        %s421 = smul.u32 2, %s17
      $region40: #{_lambda_.29} parent=35 // pred_fallthru
        _
    $region36: #{_lambda_.29} parent=5 // pred_fallthru
      _
    %p422 = scmp.le.s32.totalorder 2, %s12
    // Predicated region
    $region41: #{_lambda_.29} parent=5 // pred_check
      %p423 = pneg %p422
    $region42: #{_lambda_.29} parent=5 // pred_check_branch
      %425 = sbr.rel (%p423) target = $region44
    $region43: #{_lambda_.29} parent=5 // pred_region
      %s426 = ssub.s32 %s12, 2
      // Predicated region
      $region45: #{_lambda_.29} parent=43 // pred_check
        %p427 = pneg %p130
      $region46: #{_lambda_.29} parent=43 // pred_check_branch
        %429 = sbr.rel (%p427) target = $region48
      $region47: #{_lambda_.29} parent=43 // pred_region
        %s430 = smul.u32 2, %s18
        %p431 = scmp.lt.s32.totalorder %s430, 3
        %s432 = scalar_select %p431, %s430, 3
        %s433 = smul.addr %s432, 2
        %s434 = smul.addr %s433, 8
        %s435 = scalar_lea.vmem %s4, %s434
      $region48: #{_lambda_.29} parent=43 // pred_fallthru
        _
    $region44: #{_lambda_.29} parent=5 // pred_fallthru
      _
  $region6: #{_lambda_.29} parent=0 // loop_footer
    %s16 = sadd.s32 1, %s12
  $region7: #{_lambda_.29} parent=0 // loop_footer_branch
    %11 = sbr.rel target = $region3
  $region8: #{_lambda_.29} parent=0 // loop_exit
    _

// kernel: _lambda_.27
$region0: #{_lambda_.27}
  #allocation0 [shape = 'u32[]', space=smem, size = 0x4, offset = 0x4, fixed_abs, tag = 'smem constant byte address 0x4 - core index']
  #allocation1 [shape = 'u32[144,128]{1,0:T(1,128)}', space=vmem, size = 0x12000, scoped, tag = 'internal scratch']
  #allocation2 [shape = 'f32[1,1]{1,0:T(1,128)S(1)}', space=vmem, size = 0x200, scoped, tag = 'scoped memory for _lambda_.27']
  #allocation3 [shape = 'f32[1,1]{1,0:T(1,128)S(1)}', space=vmem, size = 0x200, scoped, tag = 'scoped memory for _lambda_.27']
  #allocation4 [shape = 'f32[1,1]{1,0:T(1,128)S(1)}', space=vmem, size = 0x200, scoped, tag = 'scoped memory for _lambda_.27']
  %s0 = inlined_call_operand.vmem [shape: f32[2,128,16], index: 0, kind: input, shape index: {}]
  %s1 = inlined_call_operand.vmem [shape: f32[16,48], index: 1, kind: input, shape index: {}]
  %s2 = inlined_call_operand.vmem [shape: f32[1,48], index: 2, kind: input, shape index: {}]
  %s3 = inlined_call_operand.vmem [shape: f32[48,48], index: 3, kind: input, shape index: {}]
  %s4 = inlined_call_operand.vmem [shape: f32[1,48], index: 4, kind: input, shape index: {}]
  %s5 = inlined_call_operand.vmem [shape: f32[48,16], index: 5, kind: input, shape index: {}]
  %s6 = inlined_call_operand.vmem [shape: f32[48,16], index: 6, kind: input, shape index: {}]
  %s7 = inlined_call_operand.vmem [shape: f32[1,16], index: 7, kind: input, shape index: {}]
  %s8 = inlined_call_operand.<no memory space> [shape: f32[1,1], index: 8, kind: input, shape index: {}]
  %s9 = inlined_call_operand.<no memory space> [shape: f32[1,1], index: 9, kind: input, shape index: {}]
  %s10 = inlined_call_operand.<no memory space> [shape: f32[1,1], index: 10, kind: input, shape index: {}]
  %s11 = inlined_call_operand.vmem [shape: f32[2,128,16], index: 11, kind: output, shape index: {}]
  %s12 = sld [smem:[#allocation0]]
  $region149: #{_lambda_.27} parent=0
    _
  %s14 = ssub.s32 1, %s12
  %s15 = scalar_select 0, %s14, %s12
  %v16 = vstv %s8
  %17 = vst [vmem:[#allocation2] sm:$0x1] %v16
  %v18 = vstv %s9
  %19 = vst [vmem:[#allocation3] sm:$0x1] %v18
  %v20 = vstv %s10
  %21 = vst [vmem:[#allocation4] sm:$0x1] %v20
  $region1: #{_lambda_.27} parent=0
    #allocation5 [shape = 'u8[131072]{0}', space=vmem, size = 0x20000, scoped, tag = 'input window, operand 0']
    #allocation6 [shape = 'u8[131072]{0}', space=vmem, size = 0x20000, scoped, tag = 'output window, operand 0']
    loop: start=0, step=1, limit=4
    $region2: #{_lambda_.27} parent=1 // loop_pre_header
      _
    $region3: #{_lambda_.27} parent=1 // loop_header
      %s23 = sphi 0, %s27
      %p24 = scmp.ge.s32.totalorder %s23, 4
      %s33 = sphi 0, %s35
      %s36 = sphi 0, %s33
      %s37 = sphi 0, %s36
      %s53 = sphi 0, %s37
      %s57 = sphi 0, %s57
      %s59 = sphi 0, %s57
      %s60 = sphi 0, %s59
      %s74 = sphi 0, %s60
      %s78 = sphi 0, %s78
      %s80 = sphi 0, %s78
      %s81 = sphi 0, %s80
      %s95 = sphi 0, %s81
      %s99 = sphi 0, %s99
      %s101 = sphi 0, %s99
      %s102 = sphi 0, %s101
      %s116 = sphi 0, %s102
      %s120 = sphi 0, %s120
      %s122 = sphi 0, %s120
      %s123 = sphi 0, %s122
      %s137 = sphi 0, %s123
      %s141 = sphi 0, %s141
      %s143 = sphi 0, %s141
      %s144 = sphi 0, %s143
      %s158 = sphi 0, %s144
      %s162 = sphi 0, %s162
      %s164 = sphi 0, %s162
      %s165 = sphi 0, %s164
      %s179 = sphi 0, %s165
      %s183 = sphi 0, %s183
      %s185 = sphi 0, %s183
      %s186 = sphi 0, %s185
      %s200 = sphi 0, %s186
      %s204 = sphi 0, %s204
      %s206 = sphi 0, %s204
      %s207 = sphi 0, %s206
      %s221 = sphi 0, %s207
      %s225 = sphi 0, %s225
      %s227 = sphi 0, %s225
      %s228 = sphi 0, %s227
      %s242 = sphi 0, %s228
      %s246 = sphi 0, %s246
      %s248 = sphi 0, %s246
      %s249 = sphi 0, %s248
      %s263 = sphi 0, %s249
      %s269 = sphi 0, %s271
      %s272 = sphi 0, %s269
      %s273 = sphi 0, %s272
      %s289 = sphi 0, %s273
    $region4: #{_lambda_.27} parent=1 // loop_header_branch
      %26 = sbr.rel (%p24) target = $region8
    $region5: #{_lambda_.27} parent=1 // loop_body
      %s28 = ssub.s32 %s23, 1
      %s29 = ssub.s32 %s23, 2
      %s30 = sadd.s32 %s23, 1
      %s31 = ssub.s32 %s23, %s30
      %p32 = scmp.eq.s32.totalorder %s31, 0
      %s34 = sadd.s32 %s33, 1
      %s35 = scalar_select %p32, %s33, %s34
      %p38 = pneg %p32
      %p39 = scmp.eq.s32.totalorder %s23, 1
      %p40 = por %p38, %p39
      %p41 = scmp.ne.s32.totalorder %s33, %s36
      %p42 = scmp.eq.s32.totalorder %s23, 0
      %p43 = por %p41, %p42
      %p44 = scmp.ne.s32.totalorder %s33, %s36
      %p45 = scmp.eq.s32.totalorder %s28, 1
      %p46 = por %p44, %p45
      %p47 = scmp.ne.s32.totalorder %s36, %s37
      %p48 = scmp.eq.s32.totalorder %s28, 0
      %p49 = por %p47, %p48
      %p50 = scmp.ne.s32.totalorder %s36, %s37
      %p51 = scmp.eq.s32.totalorder %s29, 1
      %p52 = por %p50, %p51
      %p54 = scmp.ne.s32.totalorder %s37, %s53
      %p55 = scmp.eq.s32.totalorder %s29, 0
      %p56 = por %p54, %p55
      %s58 = sadd.s32 %s57, 1
      %p61 = scmp.eq.s32.totalorder %s23, 1
      %p62 = scmp.ne.s32.totalorder %s57, %s59
      %p63 = scmp.eq.s32.totalorder %s23, 0
      %p64 = por %p62, %p63
      %p65 = scmp.ne.s32.totalorder %s57, %s59
      %p66 = scmp.eq.s32.totalorder %s28, 1
      %p67 = por %p65, %p66
      %p68 = scmp.ne.s32.totalorder %s59, %s60
      %p69 = scmp.eq.s32.totalorder %s28, 0
      %p70 = por %p68, %p69
      %p71 = scmp.ne.s32.totalorder %s59, %s60
      %p72 = scmp.eq.s32.totalorder %s29, 1
      %p73 = por %p71, %p72
      %p75 = scmp.ne.s32.totalorder %s60, %s74
      %p76 = scmp.eq.s32.totalorder %s29, 0
      %p77 = por %p75, %p76
      %s79 = sadd.s32 %s78, 1
      %p82 = scmp.eq.s32.totalorder %s23, 1
      %p83 = scmp.ne.s32.totalorder %s78, %s80
      %p84 = scmp.eq.s32.totalorder %s23, 0
      %p85 = por %p83, %p84
      %p86 = scmp.ne.s32.totalorder %s78, %s80
      %p87 = scmp.eq.s32.totalorder %s28, 1
      %p88 = por %p86, %p87
      %p89 = scmp.ne.s32.totalorder %s80, %s81
      %p90 = scmp.eq.s32.totalorder %s28, 0
      %p91 = por %p89, %p90
      %p92 = scmp.ne.s32.totalorder %s80, %s81
      %p93 = scmp.eq.s32.totalorder %s29, 1
      %p94 = por %p92, %p93
      %p96 = scmp.ne.s32.totalorder %s81, %s95
      %p97 = scmp.eq.s32.totalorder %s29, 0
      %p98 = por %p96, %p97
      %s100 = sadd.s32 %s99, 1
      %p103 = scmp.eq.s32.totalorder %s23, 1
      %p104 = scmp.ne.s32.totalorder %s99, %s101
      %p105 = scmp.eq.s32.totalorder %s23, 0
      %p106 = por %p104, %p105
      %p107 = scmp.ne.s32.totalorder %s99, %s101
      %p108 = scmp.eq.s32.totalorder %s28, 1
      %p109 = por %p107, %p108
      %p110 = scmp.ne.s32.totalorder %s101, %s102
      %p111 = scmp.eq.s32.totalorder %s28, 0
      %p112 = por %p110, %p111
      %p113 = scmp.ne.s32.totalorder %s101, %s102
      %p114 = scmp.eq.s32.totalorder %s29, 1
      %p115 = por %p113, %p114
      %p117 = scmp.ne.s32.totalorder %s102, %s116
      %p118 = scmp.eq.s32.totalorder %s29, 0
      %p119 = por %p117, %p118
      %s121 = sadd.s32 %s120, 1
      %p124 = scmp.eq.s32.totalorder %s23, 1
      %p125 = scmp.ne.s32.totalorder %s120, %s122
      %p126 = scmp.eq.s32.totalorder %s23, 0
      %p127 = por %p125, %p126
      %p128 = scmp.ne.s32.totalorder %s120, %s122
      %p129 = scmp.eq.s32.totalorder %s28, 1
      %p130 = por %p128, %p129
      %p131 = scmp.ne.s32.totalorder %s122, %s123
      %p132 = scmp.eq.s32.totalorder %s28, 0
      %p133 = por %p131, %p132
      %p134 = scmp.ne.s32.totalorder %s122, %s123
      %p135 = scmp.eq.s32.totalorder %s29, 1
      %p136 = por %p134, %p135
      %p138 = scmp.ne.s32.totalorder %s123, %s137
      %p139 = scmp.eq.s32.totalorder %s29, 0
      %p140 = por %p138, %p139
      %s142 = sadd.s32 %s141, 1
      %p145 = scmp.eq.s32.totalorder %s23, 1
      %p146 = scmp.ne.s32.totalorder %s141, %s143
      %p147 = scmp.eq.s32.totalorder %s23, 0
      %p148 = por %p146, %p147
      %p149 = scmp.ne.s32.totalorder %s141, %s143
      %p150 = scmp.eq.s32.totalorder %s28, 1
      %p151 = por %p149, %p150
      %p152 = scmp.ne.s32.totalorder %s143, %s144
      %p153 = scmp.eq.s32.totalorder %s28, 0
      %p154 = por %p152, %p153
      %p155 = scmp.ne.s32.totalorder %s143, %s144
      %p156 = scmp.eq.s32.totalorder %s29, 1
      %p157 = por %p155, %p156
      %p159 = scmp.ne.s32.totalorder %s144, %s158
      %p160 = scmp.eq.s32.totalorder %s29, 0
      %p161 = por %p159, %p160
      %s163 = sadd.s32 %s162, 1
      %p166 = scmp.eq.s32.totalorder %s23, 1
      %p167 = scmp.ne.s32.totalorder %s162, %s164
      %p168 = scmp.eq.s32.totalorder %s23, 0
      %p169 = por %p167, %p168
      %p170 = scmp.ne.s32.totalorder %s162, %s164
      %p171 = scmp.eq.s32.totalorder %s28, 1
      %p172 = por %p170, %p171
      %p173 = scmp.ne.s32.totalorder %s164, %s165
      %p174 = scmp.eq.s32.totalorder %s28, 0
      %p175 = por %p173, %p174
      %p176 = scmp.ne.s32.totalorder %s164, %s165
      %p177 = scmp.eq.s32.totalorder %s29, 1
      %p178 = por %p176, %p177
      %p180 = scmp.ne.s32.totalorder %s165, %s179
      %p181 = scmp.eq.s32.totalorder %s29, 0
      %p182 = por %p180, %p181
      %s184 = sadd.s32 %s183, 1
      %p187 = scmp.eq.s32.totalorder %s23, 1
      %p188 = scmp.ne.s32.totalorder %s183, %s185
      %p189 = scmp.eq.s32.totalorder %s23, 0
      %p190 = por %p188, %p189
      %p191 = scmp.ne.s32.totalorder %s183, %s185
      %p192 = scmp.eq.s32.totalorder %s28, 1
      %p193 = por %p191, %p192
      %p194 = scmp.ne.s32.totalorder %s185, %s186
      %p195 = scmp.eq.s32.totalorder %s28, 0
      %p196 = por %p194, %p195
      %p197 = scmp.ne.s32.totalorder %s185, %s186
      %p198 = scmp.eq.s32.totalorder %s29, 1
      %p199 = por %p197, %p198
      %p201 = scmp.ne.s32.totalorder %s186, %s200
      %p202 = scmp.eq.s32.totalorder %s29, 0
      %p203 = por %p201, %p202
      %s205 = sadd.s32 %s204, 1
      %p208 = scmp.eq.s32.totalorder %s23, 1
      %p209 = scmp.ne.s32.totalorder %s204, %s206
      %p210 = scmp.eq.s32.totalorder %s23, 0
      %p211 = por %p209, %p210
      %p212 = scmp.ne.s32.totalorder %s204, %s206
      %p213 = scmp.eq.s32.totalorder %s28, 1
      %p214 = por %p212, %p213
      %p215 = scmp.ne.s32.totalorder %s206, %s207
      %p216 = scmp.eq.s32.totalorder %s28, 0
      %p217 = por %p215, %p216
      %p218 = scmp.ne.s32.totalorder %s206, %s207
      %p219 = scmp.eq.s32.totalorder %s29, 1
      %p220 = por %p218, %p219
      %p222 = scmp.ne.s32.totalorder %s207, %s221
      %p223 = scmp.eq.s32.totalorder %s29, 0
      %p224 = por %p222, %p223
      %s226 = sadd.s32 %s225, 1
      %p229 = scmp.eq.s32.totalorder %s23, 1
      %p230 = scmp.ne.s32.totalorder %s225, %s227
      %p231 = scmp.eq.s32.totalorder %s23, 0
      %p232 = por %p230, %p231
      %p233 = scmp.ne.s32.totalorder %s225, %s227
      %p234 = scmp.eq.s32.totalorder %s28, 1
      %p235 = por %p233, %p234
      %p236 = scmp.ne.s32.totalorder %s227, %s228
      %p237 = scmp.eq.s32.totalorder %s28, 0
      %p238 = por %p236, %p237
      %p239 = scmp.ne.s32.totalorder %s227, %s228
      %p240 = scmp.eq.s32.totalorder %s29, 1
      %p241 = por %p239, %p240
      %p243 = scmp.ne.s32.totalorder %s228, %s242
      %p244 = scmp.eq.s32.totalorder %s29, 0
      %p245 = por %p243, %p244
      %s247 = sadd.s32 %s246, 1
      %p250 = scmp.eq.s32.totalorder %s23, 1
      %p251 = scmp.ne.s32.totalorder %s246, %s248
      %p252 = scmp.eq.s32.totalorder %s23, 0
      %p253 = por %p251, %p252
      %p254 = scmp.ne.s32.totalorder %s246, %s248
      %p255 = scmp.eq.s32.totalorder %s28, 1
      %p256 = por %p254, %p255
      %p257 = scmp.ne.s32.totalorder %s248, %s249
      %p258 = scmp.eq.s32.totalorder %s28, 0
      %p259 = por %p257, %p258
      %p260 = scmp.ne.s32.totalorder %s248, %s249
      %p261 = scmp.eq.s32.totalorder %s29, 1
      %p262 = por %p260, %p261
      %p264 = scmp.ne.s32.totalorder %s249, %s263
      %p265 = scmp.eq.s32.totalorder %s29, 0
      %p266 = por %p264, %p265
      %s267 = ssub.s32 %s23, %s30
      %p268 = scmp.eq.s32.totalorder %s267, 0
      %s270 = sadd.s32 %s269, 1
      %s271 = scalar_select %p268, %s269, %s270
      %p274 = pneg %p268
      %p275 = scmp.eq.s32.totalorder %s23, 1
      %p276 = por %p274, %p275
      %p277 = scmp.ne.s32.totalorder %s269, %s272
      %p278 = scmp.eq.s32.totalorder %s23, 0
      %p279 = por %p277, %p278
      %p280 = scmp.ne.s32.totalorder %s269, %s272
      %p281 = scmp.eq.s32.totalorder %s28, 1
      %p282 = por %p280, %p281
      %p283 = scmp.ne.s32.totalorder %s272, %s273
      %p284 = scmp.eq.s32.totalorder %s28, 0
      %p285 = por %p283, %p284
      %p286 = scmp.ne.s32.totalorder %s272, %s273
      %p287 = scmp.eq.s32.totalorder %s29, 1
      %p288 = por %p286, %p287
      %p290 = scmp.ne.s32.totalorder %s273, %s289
      %p291 = scmp.eq.s32.totalorder %s29, 0
      %p292 = por %p290, %p291
      %p293 = scmp.le.s32.totalorder 1, %s23
      %p294 = scmp.lt.s32.totalorder %s23, 3
      %p295 = pnand %p293, %p294
      %p296 = pneg %p295
      // Predicated region
      $region9: #{_lambda_.27} parent=5 // pred_check
        _
      $region10: #{_lambda_.27} parent=5 // pred_check_branch
        %298 = sbr.rel (%p295) target = $region12
      $region11: #{_lambda_.27} parent=5 // pred_region
        %s299 = ssub.s32 %s23, 1
        // Predicated region
        $region13: #{_lambda_.27} parent=11 // pred_check
          %p300 = pneg %p70
        $region14: #{_lambda_.27} parent=11 // pred_check_branch
          %302 = sbr.rel (%p300) target = $region16
        $region15: #{_lambda_.27} parent=11 // pred_region
          _
        $region16: #{_lambda_.27} parent=11 // pred_fallthru
          _
        // Predicated region
        $region17: #{_lambda_.27} parent=11 // pred_check
          %p303 = pneg %p91
        $region18: #{_lambda_.27} parent=11 // pred_check_branch
          %305 = sbr.rel (%p303) target = $region20
        $region19: #{_lambda_.27} parent=11 // pred_region
          _
        $region20: #{_lambda_.27} parent=11 // pred_fallthru
          _
        // Predicated region
        $region21: #{_lambda_.27} parent=11 // pred_check
          %p306 = pneg %p112
        $region22: #{_lambda_.27} parent=11 // pred_check_branch
          %308 = sbr.rel (%p306) target = $region24
        $region23: #{_lambda_.27} parent=11 // pred_region
          _
        $region24: #{_lambda_.27} parent=11 // pred_fallthru
          _
        // Predicated region
        $region25: #{_lambda_.27} parent=11 // pred_check
          %p309 = pneg %p133
        $region26: #{_lambda_.27} parent=11 // pred_check_branch
          %311 = sbr.rel (%p309) target = $region28
        $region27: #{_lambda_.27} parent=11 // pred_region
          _
        $region28: #{_lambda_.27} parent=11 // pred_fallthru
          _
        // Predicated region
        $region29: #{_lambda_.27} parent=11 // pred_check
          %p312 = pneg %p154
        $region30: #{_lambda_.27} parent=11 // pred_check_branch
          %314 = sbr.rel (%p312) target = $region32
        $region31: #{_lambda_.27} parent=11 // pred_region
          _
        $region32: #{_lambda_.27} parent=11 // pred_fallthru
          _
        // Predicated region
        $region33: #{_lambda_.27} parent=11 // pred_check
          %p315 = pneg %p175
        $region34: #{_lambda_.27} parent=11 // pred_check_branch
          %317 = sbr.rel (%p315) target = $region36
        $region35: #{_lambda_.27} parent=11 // pred_region
          _
        $region36: #{_lambda_.27} parent=11 // pred_fallthru
          _
        // Predicated region
        $region37: #{_lambda_.27} parent=11 // pred_check
          %p318 = pneg %p196
        $region38: #{_lambda_.27} parent=11 // pred_check_branch
          %320 = sbr.rel (%p318) target = $region40
        $region39: #{_lambda_.27} parent=11 // pred_region
          _
        $region40: #{_lambda_.27} parent=11 // pred_fallthru
          _
        // Predicated region
        $region41: #{_lambda_.27} parent=11 // pred_check
          %p321 = pneg %p217
        $region42: #{_lambda_.27} parent=11 // pred_check_branch
          %323 = sbr.rel (%p321) target = $region44
        $region43: #{_lambda_.27} parent=11 // pred_region
          _
        $region44: #{_lambda_.27} parent=11 // pred_fallthru
          _
        // Predicated region
        $region45: #{_lambda_.27} parent=11 // pred_check
          %p324 = pneg %p238
        $region46: #{_lambda_.27} parent=11 // pred_check_branch
          %326 = sbr.rel (%p324) target = $region48
        $region47: #{_lambda_.27} parent=11 // pred_region
          _
        $region48: #{_lambda_.27} parent=11 // pred_fallthru
          _
        // Predicated region
        $region49: #{_lambda_.27} parent=11 // pred_check
          %p327 = pneg %p259
        $region50: #{_lambda_.27} parent=11 // pred_check_branch
          %329 = sbr.rel (%p327) target = $region52
        $region51: #{_lambda_.27} parent=11 // pred_region
          _
        $region52: #{_lambda_.27} parent=11 // pred_fallthru
          _
      $region12: #{_lambda_.27} parent=5 // pred_fallthru
        _
      %p330 = scmp.lt.s32.totalorder %s23, 2
      // Predicated region
      $region53: #{_lambda_.27} parent=5 // pred_check
        %p331 = pneg %p330
      $region54: #{_lambda_.27} parent=5 // pred_check_branch
        %333 = sbr.rel (%p331) target = $region56
      $region55: #{_lambda_.27} parent=5 // pred_region
        // Predicated region
        $region57: #{_lambda_.27} parent=55 // pred_check
          %p334 = pneg %p43
        $region58: #{_lambda_.27} parent=55 // pred_check_branch
          %336 = sbr.rel (%p334) target = $region60
        $region59: #{_lambda_.27} parent=55 // pred_region
          %s337 = sand.u32 %s33, 1
          %s338 = sand.u32 %s33, 1
          %s339 = smul.addr %s338, 128
          %s340 = scalar_lea.vmem [#allocation5], %s339
          %s341 = smul.u32 8, %s23
          %s342 = smul.addr %s341, 8
          %s343 = scalar_lea.vmem %s0, %s342
          // Predicated region
          $region61: #{_lambda_.27} parent=59 // pred_check
            _
          $region62: #{_lambda_.27} parent=59 // pred_check_branch
            %345 = sbr.rel (0) target = $region64
          $region63: #{_lambda_.27} parent=59 // pred_region
            // Predicated region
            $region65: #{_lambda_.27} parent=63 // pred_check
              _
            $region66: #{_lambda_.27} parent=63 // pred_check_branch
              %347 = sbr.rel (0) target = $region68
            $region67: #{_lambda_.27} parent=63 // pred_region
              // Predicated region
              $region80: #{_lambda_.27} parent=67 // pred_check
                _
              $region81: #{_lambda_.27} parent=67 // pred_check_branch
                %393 = sbr.rel (0) target = $region83
              $region82: #{_lambda_.27} parent=67 // pred_region
                loop: start=0, step=1, limit=1
                $region84: #{_lambda_.27} parent=82 // loop_pre_header
                  _
                $region85: #{_lambda_.27} parent=82 // loop_header
                  %s395 = sphi 0, %s399
                  %p396 = scmp.ge.s32.totalorder %s395, 1
                  %s400 = sphi %s343, %s343
                  %s401 = sphi %s340, %s340
                $region86: #{_lambda_.27} parent=82 // loop_header_branch
                  %398 = sbr.rel (%p396) target = $region90
                $region87: #{_lambda_.27} parent=82 // loop_body
                  %v402 = vld [vmem:[%s400] sm:$0xff]
                  %403 = vst [vmem:[%s401] sm:$0xff] %v402
                  %v404 = vld [vmem:[%s400 + $0x8] sm:$0xff]
                  %405 = vst [vmem:[%s401 + $0x8] sm:$0xff] %v404
                  %v406 = vld [vmem:[%s400 + $0x10] sm:$0xff]
                  %407 = vst [vmem:[%s401 + $0x10] sm:$0xff] %v406
                  %v408 = vld [vmem:[%s400 + $0x18] sm:$0xff]
                  %409 = vst [vmem:[%s401 + $0x18] sm:$0xff] %v408
                  %v410 = vld [vmem:[%s400 + $0x20] sm:$0xff]
                  %411 = vst [vmem:[%s401 + $0x20] sm:$0xff] %v410
                  %v412 = vld [vmem:[%s400 + $0x28] sm:$0xff]
                  %413 = vst [vmem:[%s401 + $0x28] sm:$0xff] %v412
                  %v414 = vld [vmem:[%s400 + $0x30] sm:$0xff]
                  %415 = vst [vmem:[%s401 + $0x30] sm:$0xff] %v414
                  %v416 = vld [vmem:[%s400 + $0x38] sm:$0xff]
                  %417 = vst [vmem:[%s401 + $0x38] sm:$0xff] %v416
                  %v418 = vld [vmem:[%s400 + $0x80] sm:$0xff]
                  %419 = vst [vmem:[%s401 + $0x40] sm:$0xff] %v418
                  %v420 = vld [vmem:[%s400 + $0x88] sm:$0xff]
                  %421 = vst [vmem:[%s401 + $0x48] sm:$0xff] %v420
                  %v422 = vld [vmem:[%s400 + $0x90] sm:$0xff]
                  %423 = vst [vmem:[%s401 + $0x50] sm:$0xff] %v422
                  %v424 = vld [vmem:[%s400 + $0x98] sm:$0xff]
                  %425 = vst [vmem:[%s401 + $0x58] sm:$0xff] %v424
                  %v426 = vld [vmem:[%s400 + $0xa0] sm:$0xff]
                  %427 = vst [vmem:[%s401 + $0x60] sm:$0xff] %v426
                  %v428 = vld [vmem:[%s400 + $0xa8] sm:$0xff]
                  %429 = vst [vmem:[%s401 + $0x68] sm:$0xff] %v428
                  %v430 = vld [vmem:[%s400 + $0xb0] sm:$0xff]
                  %431 = vst [vmem:[%s401 + $0x70] sm:$0xff] %v430
                  %v432 = vld [vmem:[%s400 + $0xb8] sm:$0xff]
                  %433 = vst [vmem:[%s401 + $0x78] sm:$0xff] %v432
                $region88: #{_lambda_.27} parent=82 // loop_footer
                  %s399 = sadd.s32 1, %s395
                $region89: #{_lambda_.27} parent=82 // loop_footer_branch
                  %394 = sbr.rel target = $region85
                $region90: #{_lambda_.27} parent=82 // loop_exit
                  _
              $region83: #{_lambda_.27} parent=67 // pred_fallthru
                _
              // Predicated region
              $region91: #{_lambda_.27} parent=67 // pred_check
                _
              $region92: #{_lambda_.27} parent=67 // pred_check_branch
                %435 = sbr.rel target = $region94
              $region93: #{_lambda_.27} parent=67 // pred_region
                _
              $region94: #{_lambda_.27} parent=67 // pred_fallthru
                _
            $region68: #{_lambda_.27} parent=63 // pred_fallthru
              _
            // Predicated region
            $region69: #{_lambda_.27} parent=63 // pred_check
              _
            $region70: #{_lambda_.27} parent=63 // pred_check_branch
              %349 = sbr.rel target = $region72
            $region71: #{_lambda_.27} parent=63 // pred_region
              %s351 = ssub.s32 256, 1
              loop: start=0, step=1, limit=1
              $region73: #{_lambda_.27} parent=71 // loop_pre_header
                _
              $region74: #{_lambda_.27} parent=71 // loop_header
                %s353 = sphi 0, %s357
                %p354 = scmp.ge.s32.totalorder %s353, 1
                %s358 = sphi %s343, %s343
                %s359 = sphi %s340, %s340
              $region75: #{_lambda_.27} parent=71 // loop_header_branch
                %356 = sbr.rel (%p354) target = $region79
              $region76: #{_lambda_.27} parent=71 // loop_body
                %v360 = vld [vmem:[%s358] sm:%s351]
                %361 = vst [vmem:[%s359] sm:%s351] %v360
                %v362 = vld [vmem:[%s358 + $0x8] sm:%s351]
                %363 = vst [vmem:[%s359 + $0x8] sm:%s351] %v362
                %v364 = vld [vmem:[%s358 + $0x10] sm:%s351]
                %365 = vst [vmem:[%s359 + $0x10] sm:%s351] %v364
                %v366 = vld [vmem:[%s358 + $0x18] sm:%s351]
                %367 = vst [vmem:[%s359 + $0x18] sm:%s351] %v366
                %v368 = vld [vmem:[%s358 + $0x20] sm:%s351]
                %369 = vst [vmem:[%s359 + $0x20] sm:%s351] %v368
                %v370 = vld [vmem:[%s358 + $0x28] sm:%s351]
                %371 = vst [vmem:[%s359 + $0x28] sm:%s351] %v370
                %v372 = vld [vmem:[%s358 + $0x30] sm:%s351]
                %373 = vst [vmem:[%s359 + $0x30] sm:%s351] %v372
                %v374 = vld [vmem:[%s358 + $0x38] sm:%s351]
                %375 = vst [vmem:[%s359 + $0x38] sm:%s351] %v374
                %v376 = vld [vmem:[%s358 + $0x80] sm:%s351]
                %377 = vst [vmem:[%s359 + $0x40] sm:%s351] %v376
                %v378 = vld [vmem:[%s358 + $0x88] sm:%s351]
                %379 = vst [vmem:[%s359 + $0x48] sm:%s351] %v378
                %v380 = vld [vmem:[%s358 + $0x90] sm:%s351]
                %381 = vst [vmem:[%s359 + $0x50] sm:%s351] %v380
                %v382 = vld [vmem:[%s358 + $0x98] sm:%s351]
                %383 = vst [vmem:[%s359 + $0x58] sm:%s351] %v382
                %v384 = vld [vmem:[%s358 + $0xa0] sm:%s351]
                %385 = vst [vmem:[%s359 + $0x60] sm:%s351] %v384
                %v386 = vld [vmem:[%s358 + $0xa8] sm:%s351]
                %387 = vst [vmem:[%s359 + $0x68] sm:%s351] %v386
                %v388 = vld [vmem:[%s358 + $0xb0] sm:%s351]
                %389 = vst [vmem:[%s359 + $0x70] sm:%s351] %v388
                %v390 = vld [vmem:[%s358 + $0xb8] sm:%s351]
                %391 = vst [vmem:[%s359 + $0x78] sm:%s351] %v390
              $region77: #{_lambda_.27} parent=71 // loop_footer
                %s357 = sadd.s32 1, %s353
              $region78: #{_lambda_.27} parent=71 // loop_footer_branch
                %352 = sbr.rel target = $region74
              $region79: #{_lambda_.27} parent=71 // loop_exit
                _
            $region72: #{_lambda_.27} parent=63 // pred_fallthru
              _
          $region64: #{_lambda_.27} parent=59 // pred_fallthru
            _
          %436 = vnop
        $region60: #{_lambda_.27} parent=55 // pred_fallthru
          _
      $region56: #{_lambda_.27} parent=5 // pred_fallthru
        _
      %p437 = scmp.le.s32.totalorder 1, %s23
      %p438 = scmp.lt.s32.totalorder %s23, 3
      %p439 = pnand %p437, %p438
      %p440 = pneg %p439
      // Predicated region
      $region95: #{_lambda_.27} parent=5 // pred_check
        _
      $region96: #{_lambda_.27} parent=5 // pred_check_branch
        %442 = sbr.rel (%p439) target = $region98
      $region97: #{_lambda_.27} parent=5 // pred_region
        %s443 = ssub.s32 %s23, 1
        %s444 = sand.u32 %s36, 1
        %s445 = sand.u32 %s36, 1
        %s446 = smul.addr %s445, 128
        %s447 = scalar_lea.vmem [#allocation5], %s446
        // Predicated region
        $region99: #{_lambda_.27} parent=97 // pred_check
          %p448 = pneg %p49
        $region100: #{_lambda_.27} parent=97 // pred_check_branch
          %450 = sbr.rel (%p448) target = $region102
        $region101: #{_lambda_.27} parent=97 // pred_region
          _
        $region102: #{_lambda_.27} parent=97 // pred_fallthru
          _
        %s451 = sand.u32 %s36, 1
        %s452 = sand.u32 %s36, 1
        %s453 = smul.addr %s452, 128
        %s454 = scalar_lea.vmem [#allocation5], %s453
        %p455 = pneg %p49
        %p456 = pneg %p46
        %p457 = pneg %p70
        %p458 = pneg %p67
        %p459 = pneg %p91
        %p460 = pneg %p88
        %p461 = pneg %p112
        %p462 = pneg %p109
        %p463 = pneg %p133
        %p464 = pneg %p130
        %p465 = pneg %p154
        %p466 = pneg %p151
        %p467 = pneg %p175
        %p468 = pneg %p172
        %p469 = pneg %p196
        %p470 = pneg %p193
        %p471 = pneg %p217
        %p472 = pneg %p214
        %p473 = pneg %p238
        %p474 = pneg %p235
        %p475 = pneg %p259
        %p476 = pneg %p256
        %p477 = pneg %p285
        %p478 = pneg %p282
        %s479 = sand.u32 %s272, 1
        %s480 = sand.u32 %s272, 1
        %s481 = smul.addr %s480, 128
        %s482 = scalar_lea.vmem [#allocation6], %s481
        %s483 = smul.u32 8, %s28
        %s484 = smul.u32 8, %s28
        %v485 = vld [vmem:[%s447] sm:$0xff]
        %v486 = vld [vmem:[%s447 + $0x8] sm:$0xff]
        %v487 = vld [vmem:[%s447 + $0x10] sm:$0xff]
        %v488 = vld [vmem:[%s447 + $0x18] sm:$0xff]
        %v489 = vld [vmem:[%s447 + $0x20] sm:$0xff]
        %v490 = vld [vmem:[%s447 + $0x28] sm:$0xff]
        %v491 = vld [vmem:[%s447 + $0x30] sm:$0xff]
        %v492 = vld [vmem:[%s447 + $0x38] sm:$0xff]
        %v493 = vld [vmem:[%s447 + $0x40] sm:$0xff]
        %v494 = vld [vmem:[%s447 + $0x48] sm:$0xff]
        %v495 = vld [vmem:[%s447 + $0x50] sm:$0xff]
        %v496 = vld [vmem:[%s447 + $0x58] sm:$0xff]
        %v497 = vld [vmem:[%s447 + $0x60] sm:$0xff]
        %v498 = vld [vmem:[%s447 + $0x68] sm:$0xff]
        %v499 = vld [vmem:[%s447 + $0x70] sm:$0xff]
        %v500 = vld [vmem:[%s447 + $0x78] sm:$0xff]
        %v501 = vld [vmem:[%s1] sm:$0xff]
        %v502 = vld [vmem:[%s1 + $0x8] sm:$0xff]
        %v503 = vld [vmem:[%s2] sm:$0x1]
        %v505 = vlaneseq
        %v506 = vshrl.u32 %v505, 7
        %v507 = vsub.s32 0, %v506
        %v508 = vrot.slane %v503, %v507
        %vm510 = vcmask 130048
        %v512 = vsel %vm510, %v485, 0
        %v515 = vsel %vm510, %v486, 0
        %v518 = vsel %vm510, %v487, 0
        %v521 = vsel %vm510, %v488, 0
        %v524 = vsel %vm510, %v489, 0
        %v527 = vsel %vm510, %v490, 0
        %v530 = vsel %vm510, %v491, 0
        %v533 = vsel %vm510, %v492, 0
        %v536 = vsel %vm510, %v493, 0
        %v539 = vsel %vm510, %v494, 0
        %v542 = vsel %vm510, %v495, 0
        %v545 = vsel %vm510, %v496, 0
        %v548 = vsel %vm510, %v497, 0
        %v551 = vsel %vm510, %v498, 0
        %v554 = vsel %vm510, %v499, 0
        %v557 = vsel %vm510, %v500, 0
        %559 = vmatprep.subr.mxu0 0.0
        %560 = vmatpush1.msra.mxu0 0.0
        %561 = vmatprep.subr.mxu0 0.0
        %562 = vmatpush1.msra.mxu0 0.0
        %563 = vmatprep.subr.mxu0 0.0
        %564 = vmatpush1.msra.mxu0 0.0
        %565 = vmatprep.subr.mxu0 0.0
        %566 = vmatpush1.msra.mxu0 0.0
        %567 = vmatprep.subr.mxu0 0.0
        %568 = vmatpush1.msra.mxu0 0.0
        %569 = vmatprep.subr.mxu0 0.0
        %570 = vmatpush1.msra.mxu0 0.0
        %571 = vmatprep.subr.mxu0 0.0
        %572 = vmatpush1.msra.mxu0 0.0
        %573 = vmatprep.subr.mxu0 0.0
        %574 = vmatpush1.msra.mxu0 0.0
        %575 = vmatprep.subr.mxu0 0.0
        %576 = vmatpush1.msra.mxu0 0.0
        %577 = vmatprep.subr.mxu0 0.0
        %578 = vmatpush1.msra.mxu0 0.0
        %579 = vmatprep.subr.mxu0 0.0
        %580 = vmatpush1.msra.mxu0 0.0
        %581 = vmatprep.subr.mxu0 0.0
        %582 = vmatpush1.msra.mxu0 0.0
        %583 = vmatprep.subr.mxu0 0.0
        %584 = vmatpush1.msra.mxu0 0.0
        %585 = vmatprep.subr.mxu0 0.0
        %586 = vmatpush1.msra.mxu0 0.0
        %587 = vmatprep.subr.mxu0 0.0
        %588 = vmatpush1.msra.mxu0 %v502
        %589 = vmatprep.subr.mxu0 0.0
        %590 = vmatpush1.msra.mxu0 %v501
        %591 = vmatprep.subr.mxu0 0.0
        %592 = vmatpush2.msra.mxu0 0.0
        %593 = vmatprep.subr.mxu0 0.0
        %594 = vmatpush2.msra.mxu0 0.0
        %595 = vmatprep.subr.mxu0 0.0
        %596 = vmatpush2.msra.mxu0 0.0
        %597 = vmatprep.subr.mxu0 0.0
        %598 = vmatpush2.msra.mxu0 0.0
        %599 = vmatprep.subr.mxu0 0.0
        %600 = vmatpush2.msra.mxu0 0.0
        %601 = vmatprep.subr.mxu0 0.0
        %602 = vmatpush2.msra.mxu0 0.0
        %603 = vmatprep.subr.mxu0 0.0
        %604 = vmatpush2.msra.mxu0 0.0
        %605 = vmatprep.subr.mxu0 0.0
        %606 = vmatpush2.msra.mxu0 0.0
        %607 = vmatprep.subr.mxu0 0.0
        %608 = vmatpush2.msra.mxu0 0.0
        %609 = vmatprep.subr.mxu0 0.0
        %610 = vmatpush2.msra.mxu0 0.0
        %611 = vmatprep.subr.mxu0 0.0
        %612 = vmatpush2.msra.mxu0 0.0
        %613 = vmatprep.subr.mxu0 0.0
        %614 = vmatpush2.msra.mxu0 0.0
        %615 = vmatprep.subr.mxu0 0.0
        %616 = vmatpush2.msra.mxu0 0.0
        %617 = vmatprep.subr.mxu0 0.0
        %618 = vmatpush2.msra.mxu0 0.0
        %619 = vmatprep.subr.mxu0 0.0
        %620 = vmatpush2.msra.mxu0 0.0
        %621 = vmatprep.subr.mxu0 0.0
        %622 = vmatpush2.msra.mxu0 0.0
        %623 = vmatprep.mubr.f32.mxu0 0.0
        %624 = vmatmul.mubr.f32.gmra.mxu0 %v512
        %v625 = vpop.f32.mrf.mxu0
        %v626 = vadd.f32 %v508, %v625
        %v627 = vpop.f32.mrf.mxu0
        %628 = vmatprep.mubr.f32.mxu0 0.0
        %629 = vmatmul.mubr.f32.gmra.mxu0 %v515
        %v630 = vpop.f32.mrf.mxu0
        %v631 = vadd.f32 %v508, %v630
        %v632 = vpop.f32.mrf.mxu0
        %633 = vmatprep.mubr.f32.mxu0 0.0
        %634 = vmatmul.mubr.f32.gmra.mxu0 %v518
        %v635 = vpop.f32.mrf.mxu0
        %v636 = vadd.f32 %v508, %v635
        %v637 = vpop.f32.mrf.mxu0
        %638 = vmatprep.mubr.f32.mxu0 0.0
        %639 = vmatmul.mubr.f32.gmra.mxu0 %v521
        %v640 = vpop.f32.mrf.mxu0
        %v641 = vadd.f32 %v508, %v640
        %v642 = vpop.f32.mrf.mxu0
        %643 = vmatprep.mubr.f32.mxu0 0.0
        %644 = vmatmul.mubr.f32.gmra.mxu0 %v524
        %v645 = vpop.f32.mrf.mxu0
        %v646 = vadd.f32 %v508, %v645
        %v647 = vpop.f32.mrf.mxu0
        %648 = vmatprep.mubr.f32.mxu0 0.0
        %649 = vmatmul.mubr.f32.gmra.mxu0 %v527
        %v650 = vpop.f32.mrf.mxu0
        %v651 = vadd.f32 %v508, %v650
        %v652 = vpop.f32.mrf.mxu0
        %653 = vmatprep.mubr.f32.mxu0 0.0
        %654 = vmatmul.mubr.f32.gmra.mxu0 %v530
        %v655 = vpop.f32.mrf.mxu0
        %v656 = vadd.f32 %v508, %v655
        %v657 = vpop.f32.mrf.mxu0
        %658 = vmatprep.mubr.f32.mxu0 0.0
        %659 = vmatmul.mubr.f32.gmra.mxu0 %v533
        %v660 = vpop.f32.mrf.mxu0
        %v661 = vadd.f32 %v508, %v660
        %v662 = vpop.f32.mrf.mxu0
        %663 = vmatprep.mubr.f32.mxu0 0.0
        %664 = vmatmul.mubr.f32.gmra.mxu0 %v536
        %v665 = vpop.f32.mrf.mxu0
        %v666 = vadd.f32 %v508, %v665
        %v667 = vpop.f32.mrf.mxu0
        %668 = vmatprep.mubr.f32.mxu0 0.0
        %669 = vmatmul.mubr.f32.gmra.mxu0 %v539
        %v670 = vpop.f32.mrf.mxu0
        %v671 = vadd.f32 %v508, %v670
        %v672 = vpop.f32.mrf.mxu0
        %673 = vmatprep.mubr.f32.mxu0 0.0
        %674 = vmatmul.mubr.f32.gmra.mxu0 %v542
        %v675 = vpop.f32.mrf.mxu0
        %v676 = vadd.f32 %v508, %v675
        %v677 = vpop.f32.mrf.mxu0
        %678 = vmatprep.mubr.f32.mxu0 0.0
        %679 = vmatmul.mubr.f32.gmra.mxu0 %v545
        %v680 = vpop.f32.mrf.mxu0
        %v681 = vadd.f32 %v508, %v680
        %v682 = vpop.f32.mrf.mxu0
        %683 = vmatprep.mubr.f32.mxu0 0.0
        %684 = vmatmul.mubr.f32.gmra.mxu0 %v548
        %v685 = vpop.f32.mrf.mxu0
        %v686 = vadd.f32 %v508, %v685
        %v687 = vpop.f32.mrf.mxu0
        %688 = vmatprep.mubr.f32.mxu0 0.0
        %689 = vmatmul.mubr.f32.gmra.mxu0 %v551
        %v690 = vpop.f32.mrf.mxu0
        %v691 = vadd.f32 %v508, %v690
        %v692 = vpop.f32.mrf.mxu0
        %693 = vmatprep.mubr.f32.mxu0 0.0
        %694 = vmatmul.mubr.f32.gmra.mxu0 %v554
        %v695 = vpop.f32.mrf.mxu0
        %v696 = vadd.f32 %v508, %v695
        %v697 = vpop.f32.mrf.mxu0
        %698 = vmatprep.mubr.f32.mxu0 0.0
        %699 = vmatmul.mubr.f32.gmra.mxu0 %v557
        %v700 = vpop.f32.mrf.mxu0
        %v701 = vadd.f32 %v508, %v700
        %v702 = vpop.f32.mrf.mxu0
        %703 = vdwg.mxu0
        %v704 = vld [vmem:[#allocation2] sm:$0x1]
        %vm705 = vcmp.ge.f32.partialorder %v626, 0.0
        %vm706 = vcmp.ge.f32.partialorder %v631, 0.0
        %vm707 = vcmp.ge.f32.partialorder %v636, 0.0
        %vm708 = vcmp.ge.f32.partialorder %v641, 0.0
        %vm709 = vcmp.ge.f32.partialorder %v646, 0.0
        %vm710 = vcmp.ge.f32.partialorder %v651, 0.0
        %vm711 = vcmp.ge.f32.partialorder %v656, 0.0
        %vm712 = vcmp.ge.f32.partialorder %v661, 0.0
        %vm713 = vcmp.ge.f32.partialorder %v666, 0.0
        %vm714 = vcmp.ge.f32.partialorder %v671, 0.0
        %vm715 = vcmp.ge.f32.partialorder %v676, 0.0
        %vm716 = vcmp.ge.f32.partialorder %v681, 0.0
        %vm717 = vcmp.ge.f32.partialorder %v686, 0.0
        %vm718 = vcmp.ge.f32.partialorder %v691, 0.0
        %vm719 = vcmp.ge.f32.partialorder %v696, 0.0
        %vm720 = vcmp.ge.f32.partialorder %v701, 0.0
        %v722 = vlaneseq
        %v723 = vshrl.u32 %v722, 7
        %v724 = vsub.s32 0, %v723
        %v725 = vrot.slane %v704, %v724
        %726 = vset.pattern.permute.xlu0 0
        %727 = vperm.xlu0 %726, %v725
        %v728 = vpop.permute.xlu0 %727
        %v730 = vmul.f32 %v728, %v626
        %v731 = vmul.f32 %v728, %v631
        %v732 = vmul.f32 %v728, %v636
        %v733 = vmul.f32 %v728, %v641
        %v734 = vmul.f32 %v728, %v646
        %v735 = vmul.f32 %v728, %v651
        %v736 = vmul.f32 %v728, %v656
        %v737 = vmul.f32 %v728, %v661
        %v738 = vmul.f32 %v728, %v666
        %v739 = vmul.f32 %v728, %v671
        %v740 = vmul.f32 %v728, %v676
        %v741 = vmul.f32 %v728, %v681
        %v742 = vmul.f32 %v728, %v686
        %v743 = vmul.f32 %v728, %v691
        %v744 = vmul.f32 %v728, %v696
        %v745 = vmul.f32 %v728, %v701
        %v746 = vsel %vm705, %v626, %v730
        %v747 = vsel %vm706, %v631, %v731
        %v748 = vsel %vm707, %v636, %v732
        %v749 = vsel %vm708, %v641, %v733
        %v750 = vsel %vm709, %v646, %v734
        %v751 = vsel %vm710, %v651, %v735
        %v752 = vsel %vm711, %v656, %v736
        %v753 = vsel %vm712, %v661, %v737
        %v754 = vsel %vm713, %v666, %v738
        %v755 = vsel %vm714, %v671, %v739
        %v756 = vsel %vm715, %v676, %v740
        %v757 = vsel %vm716, %v681, %v741
        %v758 = vsel %vm717, %v686, %v742
        %v759 = vsel %vm718, %v691, %v743
        %v760 = vsel %vm719, %v696, %v744
        %v761 = vsel %vm720, %v701, %v745
        %v762 = vadd.f32 %v746, %v754
        %v763 = vadd.f32 %v747, %v755
        %v764 = vadd.f32 %v748, %v756
        %v765 = vadd.f32 %v749, %v757
        %v766 = vadd.f32 %v750, %v758
        %v767 = vadd.f32 %v751, %v759
        %v768 = vadd.f32 %v752, %v760
        %v769 = vadd.f32 %v753, %v761
        %v770 = vmul.f32 %v762, 0.5
        %v771 = vmul.f32 %v763, 0.5
        %v772 = vmul.f32 %v764, 0.5
        %v773 = vmul.f32 %v765, 0.5
        %v774 = vmul.f32 %v766, 0.5
        %v775 = vmul.f32 %v767, 0.5
        %v776 = vmul.f32 %v768, 0.5
        %v777 = vmul.f32 %v769, 0.5
        %v778 = vld [vmem:[%s3] sm:$0xff]
        %v779 = vld [vmem:[%s3 + $0x8] sm:$0xff]
        %v780 = vld [vmem:[%s3 + $0x10] sm:$0xff]
        %v781 = vld [vmem:[%s3 + $0x18] sm:$0xff]
        %v782 = vld [vmem:[%s3 + $0x20] sm:$0xff]
        %v783 = vld [vmem:[%s3 + $0x28] sm:$0xff]
        %v784 = vld [vmem:[%s4] sm:$0x1]
        %v786 = vlaneseq
        %v787 = vshrl.u32 %v786, 7
        %v788 = vsub.s32 0, %v787
        %v789 = vrot.slane %v784, %v788
        %vm791 = vcmask 392192
        %v793 = vsel %vm791, %v770, 0
        %v796 = vsel %vm791, %v771, 0
        %v799 = vsel %vm791, %v772, 0
        %v802 = vsel %vm791, %v773, 0
        %v805 = vsel %vm791, %v774, 0
        %v808 = vsel %vm791, %v775, 0
        %v811 = vsel %vm791, %v776, 0
        %v814 = vsel %vm791, %v777, 0
        %816 = vmatprep.subr.mxu0 0.0
        %817 = vmatpush1.msra.mxu0 0.0
        %818 = vmatprep.subr.mxu0 0.0
        %819 = vmatpush1.msra.mxu0 0.0
        %820 = vmatprep.subr.mxu0 0.0
        %821 = vmatpush1.msra.mxu0 0.0
        %822 = vmatprep.subr.mxu0 0.0
        %823 = vmatpush1.msra.mxu0 0.0
        %824 = vmatprep.subr.mxu0 0.0
        %825 = vmatpush1.msra.mxu0 0.0
        %826 = vmatprep.subr.mxu0 0.0
        %827 = vmatpush1.msra.mxu0 0.0
        %828 = vmatprep.subr.mxu0 0.0
        %829 = vmatpush1.msra.mxu0 0.0
        %830 = vmatprep.subr.mxu0 0.0
        %831 = vmatpush1.msra.mxu0 0.0
        %832 = vmatprep.subr.mxu0 0.0
        %833 = vmatpush1.msra.mxu0 0.0
        %834 = vmatprep.subr.mxu0 0.0
        %835 = vmatpush1.msra.mxu0 0.0
        %836 = vmatprep.subr.mxu0 0.0
        %837 = vmatpush1.msra.mxu0 %v783
        %838 = vmatprep.subr.mxu0 0.0
        %839 = vmatpush1.msra.mxu0 %v782
        %840 = vmatprep.subr.mxu0 0.0
        %841 = vmatpush1.msra.mxu0 %v781
        %842 = vmatprep.subr.mxu0 0.0
        %843 = vmatpush1.msra.mxu0 %v780
        %844 = vmatprep.subr.mxu0 0.0
        %845 = vmatpush1.msra.mxu0 %v779
        %846 = vmatprep.subr.mxu0 0.0
        %847 = vmatpush1.msra.mxu0 %v778
        %848 = vmatprep.subr.mxu0 0.0
        %849 = vmatpush2.msra.mxu0 0.0
        %850 = vmatprep.subr.mxu0 0.0
        %851 = vmatpush2.msra.mxu0 0.0
        %852 = vmatprep.subr.mxu0 0.0
        %853 = vmatpush2.msra.mxu0 0.0
        %854 = vmatprep.subr.mxu0 0.0
        %855 = vmatpush2.msra.mxu0 0.0
        %856 = vmatprep.subr.mxu0 0.0
        %857 = vmatpush2.msra.mxu0 0.0
        %858 = vmatprep.subr.mxu0 0.0
        %859 = vmatpush2.msra.mxu0 0.0
        %860 = vmatprep.subr.mxu0 0.0
        %861 = vmatpush2.msra.mxu0 0.0
        %862 = vmatprep.subr.mxu0 0.0
        %863 = vmatpush2.msra.mxu0 0.0
        %864 = vmatprep.subr.mxu0 0.0
        %865 = vmatpush2.msra.mxu0 0.0
        %866 = vmatprep.subr.mxu0 0.0
        %867 = vmatpush2.msra.mxu0 0.0
        %868 = vmatprep.subr.mxu0 0.0
        %869 = vmatpush2.msra.mxu0 0.0
        %870 = vmatprep.subr.mxu0 0.0
        %871 = vmatpush2.msra.mxu0 0.0
        %872 = vmatprep.subr.mxu0 0.0
        %873 = vmatpush2.msra.mxu0 0.0
        %874 = vmatprep.subr.mxu0 0.0
        %875 = vmatpush2.msra.mxu0 0.0
        %876 = vmatprep.subr.mxu0 0.0
        %877 = vmatpush2.msra.mxu0 0.0
        %878 = vmatprep.subr.mxu0 0.0
        %879 = vmatpush2.msra.mxu0 0.0
        %880 = vmatprep.mubr.f32.mxu0 0.0
        %881 = vmatmul.mubr.f32.gmra.mxu0 %v793
        %v882 = vpop.f32.mrf.mxu0
        %v883 = vadd.f32 %v789, %v882
        %v884 = vpop.f32.mrf.mxu0
        %885 = vmatprep.mubr.f32.mxu0 0.0
        %886 = vmatmul.mubr.f32.gmra.mxu0 %v796
        %v887 = vpop.f32.mrf.mxu0
        %v888 = vadd.f32 %v789, %v887
        %v889 = vpop.f32.mrf.mxu0
        %890 = vmatprep.mubr.f32.mxu0 0.0
        %891 = vmatmul.mubr.f32.gmra.mxu0 %v799
        %v892 = vpop.f32.mrf.mxu0
        %v893 = vadd.f32 %v789, %v892
        %v894 = vpop.f32.mrf.mxu0
        %895 = vmatprep.mubr.f32.mxu0 0.0
        %896 = vmatmul.mubr.f32.gmra.mxu0 %v802
        %v897 = vpop.f32.mrf.mxu0
        %v898 = vadd.f32 %v789, %v897
        %v899 = vpop.f32.mrf.mxu0
        %900 = vmatprep.mubr.f32.mxu0 0.0
        %901 = vmatmul.mubr.f32.gmra.mxu0 %v805
        %v902 = vpop.f32.mrf.mxu0
        %v903 = vadd.f32 %v789, %v902
        %v904 = vpop.f32.mrf.mxu0
        %905 = vmatprep.mubr.f32.mxu0 0.0
        %906 = vmatmul.mubr.f32.gmra.mxu0 %v808
        %v907 = vpop.f32.mrf.mxu0
        %v908 = vadd.f32 %v789, %v907
        %v909 = vpop.f32.mrf.mxu0
        %910 = vmatprep.mubr.f32.mxu0 0.0
        %911 = vmatmul.mubr.f32.gmra.mxu0 %v811
        %v912 = vpop.f32.mrf.mxu0
        %v913 = vadd.f32 %v789, %v912
        %v914 = vpop.f32.mrf.mxu0
        %915 = vmatprep.mubr.f32.mxu0 0.0
        %916 = vmatmul.mubr.f32.gmra.mxu0 %v814
        %v917 = vpop.f32.mrf.mxu0
        %v918 = vadd.f32 %v789, %v917
        %v919 = vpop.f32.mrf.mxu0
        %920 = vdwg.mxu0
        %v921 = vld [vmem:[#allocation3] sm:$0x1]
        %vm922 = vcmp.ge.f32.partialorder %v883, 0.0
        %vm923 = vcmp.ge.f32.partialorder %v888, 0.0
        %vm924 = vcmp.ge.f32.partialorder %v893, 0.0
        %vm925 = vcmp.ge.f32.partialorder %v898, 0.0
        %vm926 = vcmp.ge.f32.partialorder %v903, 0.0
        %vm927 = vcmp.ge.f32.partialorder %v908, 0.0
        %vm928 = vcmp.ge.f32.partialorder %v913, 0.0
        %vm929 = vcmp.ge.f32.partialorder %v918, 0.0
        %v931 = vlaneseq
        %v932 = vshrl.u32 %v931, 7
        %v933 = vsub.s32 0, %v932
        %v934 = vrot.slane %v921, %v933
        %935 = vset.pattern.permute.xlu0 0
        %936 = vperm.xlu0 %935, %v934
        %v937 = vpop.permute.xlu0 %936
        %v939 = vmul.f32 %v937, %v883
        %v940 = vmul.f32 %v937, %v888
        %v941 = vmul.f32 %v937, %v893
        %v942 = vmul.f32 %v937, %v898
        %v943 = vmul.f32 %v937, %v903
        %v944 = vmul.f32 %v937, %v908
        %v945 = vmul.f32 %v937, %v913
        %v946 = vmul.f32 %v937, %v918
        %v947 = vsel %vm922, %v883, %v939
        %v948 = vsel %vm923, %v888, %v940
        %v949 = vsel %vm924, %v893, %v941
        %v950 = vsel %vm925, %v898, %v942
        %v951 = vsel %vm926, %v903, %v943
        %v952 = vsel %vm927, %v908, %v944
        %v953 = vsel %vm928, %v913, %v945
        %v954 = vsel %vm929, %v918, %v946
        %v955 = vld [vmem:[%s6] sm:$0xff]
        %v956 = vld [vmem:[%s6 + $0x8] sm:$0xff]
        %v957 = vld [vmem:[%s6 + $0x10] sm:$0xff]
        %v958 = vld [vmem:[%s6 + $0x18] sm:$0xff]
        %v959 = vld [vmem:[%s6 + $0x20] sm:$0xff]
        %v960 = vld [vmem:[%s6 + $0x28] sm:$0xff]
        %v961 = vld [vmem:[%s7] sm:$0x1]
        %v963 = vlaneseq
        %v964 = vshrl.u32 %v963, 7
        %v965 = vsub.s32 0, %v964
        %v966 = vrot.slane %v961, %v965
        %v969 = vsel %vm791, %v947, 0
        %v972 = vsel %vm791, %v948, 0
        %v975 = vsel %vm791, %v949, 0
        %v978 = vsel %vm791, %v950, 0
        %v981 = vsel %vm791, %v951, 0
        %v984 = vsel %vm791, %v952, 0
        %v987 = vsel %vm791, %v953, 0
        %v990 = vsel %vm791, %v954, 0
        %992 = vmatprep.subr.mxu0 0.0
        %993 = vmatpush1.msra.mxu0 0.0
        %994 = vmatprep.subr.mxu0 0.0
        %995 = vmatpush1.msra.mxu0 0.0
        %996 = vmatprep.subr.mxu0 0.0
        %997 = vmatpush1.msra.mxu0 0.0
        %998 = vmatprep.subr.mxu0 0.0
        %999 = vmatpush1.msra.mxu0 0.0
        %1000 = vmatprep.subr.mxu0 0.0
        %1001 = vmatpush1.msra.mxu0 0.0
        %1002 = vmatprep.subr.mxu0 0.0
        %1003 = vmatpush1.msra.mxu0 0.0
        %1004 = vmatprep.subr.mxu0 0.0
        %1005 = vmatpush1.msra.mxu0 0.0
        %1006 = vmatprep.subr.mxu0 0.0
        %1007 = vmatpush1.msra.mxu0 0.0
        %1008 = vmatprep.subr.mxu0 0.0
        %1009 = vmatpush1.msra.mxu0 0.0
        %1010 = vmatprep.subr.mxu0 0.0
        %1011 = vmatpush1.msra.mxu0 0.0
        %1012 = vmatprep.subr.mxu0 0.0
        %1013 = vmatpush1.msra.mxu0 %v960
        %1014 = vmatprep.subr.mxu0 0.0
        %1015 = vmatpush1.msra.mxu0 %v959
        %1016 = vmatprep.subr.mxu0 0.0
        %1017 = vmatpush1.msra.mxu0 %v958
        %1018 = vmatprep.subr.mxu0 0.0
        %1019 = vmatpush1.msra.mxu0 %v957
        %1020 = vmatprep.subr.mxu0 0.0
        %1021 = vmatpush1.msra.mxu0 %v956
        %1022 = vmatprep.subr.mxu0 0.0
        %1023 = vmatpush1.msra.mxu0 %v955
        %1024 = vmatprep.subr.mxu0 0.0
        %1025 = vmatpush2.msra.mxu0 0.0
        %1026 = vmatprep.subr.mxu0 0.0
        %1027 = vmatpush2.msra.mxu0 0.0
        %1028 = vmatprep.subr.mxu0 0.0
        %1029 = vmatpush2.msra.mxu0 0.0
        %1030 = vmatprep.subr.mxu0 0.0
        %1031 = vmatpush2.msra.mxu0 0.0
        %1032 = vmatprep.subr.mxu0 0.0
        %1033 = vmatpush2.msra.mxu0 0.0
        %1034 = vmatprep.subr.mxu0 0.0
        %1035 = vmatpush2.msra.mxu0 0.0
        %1036 = vmatprep.subr.mxu0 0.0
        %1037 = vmatpush2.msra.mxu0 0.0
        %1038 = vmatprep.subr.mxu0 0.0
        %1039 = vmatpush2.msra.mxu0 0.0
        %1040 = vmatprep.subr.mxu0 0.0
        %1041 = vmatpush2.msra.mxu0 0.0
        %1042 = vmatprep.subr.mxu0 0.0
        %1043 = vmatpush2.msra.mxu0 0.0
        %1044 = vmatprep.subr.mxu0 0.0
        %1045 = vmatpush2.msra.mxu0 0.0
        %1046 = vmatprep.subr.mxu0 0.0
        %1047 = vmatpush2.msra.mxu0 0.0
        %1048 = vmatprep.subr.mxu0 0.0
        %1049 = vmatpush2.msra.mxu0 0.0
        %1050 = vmatprep.subr.mxu0 0.0
        %1051 = vmatpush2.msra.mxu0 0.0
        %1052 = vmatprep.subr.mxu0 0.0
        %1053 = vmatpush2.msra.mxu0 0.0
        %1054 = vmatprep.subr.mxu0 0.0
        %1055 = vmatpush2.msra.mxu0 0.0
        %1056 = vmatprep.mubr.f32.mxu0 0.0
        %1057 = vmatmul.mubr.f32.gmra.mxu0 %v969
        %v1058 = vpop.f32.mrf.mxu0
        %v1059 = vadd.f32 %v966, %v1058
        %v1060 = vpop.f32.mrf.mxu0
        %1061 = vmatprep.mubr.f32.mxu0 0.0
        %1062 = vmatmul.mubr.f32.gmra.mxu0 %v972
        %v1063 = vpop.f32.mrf.mxu0
        %v1064 = vadd.f32 %v966, %v1063
        %v1065 = vpop.f32.mrf.mxu0
        %1066 = vmatprep.mubr.f32.mxu0 0.0
        %1067 = vmatmul.mubr.f32.gmra.mxu0 %v975
        %v1068 = vpop.f32.mrf.mxu0
        %v1069 = vadd.f32 %v966, %v1068
        %v1070 = vpop.f32.mrf.mxu0
        %1071 = vmatprep.mubr.f32.mxu0 0.0
        %1072 = vmatmul.mubr.f32.gmra.mxu0 %v978
        %v1073 = vpop.f32.mrf.mxu0
        %v1074 = vadd.f32 %v966, %v1073
        %v1075 = vpop.f32.mrf.mxu0
        %1076 = vmatprep.mubr.f32.mxu0 0.0
        %1077 = vmatmul.mubr.f32.gmra.mxu0 %v981
        %v1078 = vpop.f32.mrf.mxu0
        %v1079 = vadd.f32 %v966, %v1078
        %v1080 = vpop.f32.mrf.mxu0
        %1081 = vmatprep.mubr.f32.mxu0 0.0
        %1082 = vmatmul.mubr.f32.gmra.mxu0 %v984
        %v1083 = vpop.f32.mrf.mxu0
        %v1084 = vadd.f32 %v966, %v1083
        %v1085 = vpop.f32.mrf.mxu0
        %1086 = vmatprep.mubr.f32.mxu0 0.0
        %1087 = vmatmul.mubr.f32.gmra.mxu0 %v987
        %v1088 = vpop.f32.mrf.mxu0
        %v1089 = vadd.f32 %v966, %v1088
        %v1090 = vpop.f32.mrf.mxu0
        %1091 = vmatprep.mubr.f32.mxu0 0.0
        %1092 = vmatmul.mubr.f32.gmra.mxu0 %v990
        %v1093 = vpop.f32.mrf.mxu0
        %v1094 = vadd.f32 %v966, %v1093
        %v1095 = vpop.f32.mrf.mxu0
        %1096 = vdwg.mxu0
        %v1097 = vld [vmem:[%s5] sm:$0xff]
        %v1098 = vld [vmem:[%s5 + $0x8] sm:$0xff]
        %v1099 = vld [vmem:[%s5 + $0x10] sm:$0xff]
        %v1100 = vld [vmem:[%s5 + $0x18] sm:$0xff]
        %v1101 = vld [vmem:[%s5 + $0x20] sm:$0xff]
        %v1102 = vld [vmem:[%s5 + $0x28] sm:$0xff]
        %v1104 = vsel %vm791, %v746, 0
        %v1107 = vsel %vm791, %v747, 0
        %v1110 = vsel %vm791, %v748, 0
        %v1113 = vsel %vm791, %v749, 0
        %v1116 = vsel %vm791, %v750, 0
        %v1119 = vsel %vm791, %v751, 0
        %v1122 = vsel %vm791, %v752, 0
        %v1125 = vsel %vm791, %v753, 0
        %v1128 = vsel %vm791, %v754, 0
        %v1131 = vsel %vm791, %v755, 0
        %v1134 = vsel %vm791, %v756, 0
        %v1137 = vsel %vm791, %v757, 0
        %v1140 = vsel %vm791, %v758, 0
        %v1143 = vsel %vm791, %v759, 0
        %v1146 = vsel %vm791, %v760, 0
        %v1149 = vsel %vm791, %v761, 0
        %1151 = vmatprep.subr.mxu0 0.0
        %1152 = vmatpush1.msra.mxu0 0.0
        %1153 = vmatprep.subr.mxu0 0.0
        %1154 = vmatpush1.msra.mxu0 0.0
        %1155 = vmatprep.subr.mxu0 0.0
        %1156 = vmatpush1.msra.mxu0 0.0
        %1157 = vmatprep.subr.mxu0 0.0
        %1158 = vmatpush1.msra.mxu0 0.0
        %1159 = vmatprep.subr.mxu0 0.0
        %1160 = vmatpush1.msra.mxu0 0.0
        %1161 = vmatprep.subr.mxu0 0.0
        %1162 = vmatpush1.msra.mxu0 0.0
        %1163 = vmatprep.subr.mxu0 0.0
        %1164 = vmatpush1.msra.mxu0 0.0
        %1165 = vmatprep.subr.mxu0 0.0
        %1166 = vmatpush1.msra.mxu0 0.0
        %1167 = vmatprep.subr.mxu0 0.0
        %1168 = vmatpush1.msra.mxu0 0.0
        %1169 = vmatprep.subr.mxu0 0.0
        %1170 = vmatpush1.msra.mxu0 0.0
        %1171 = vmatprep.subr.mxu0 0.0
        %1172 = vmatpush1.msra.mxu0 %v1102
        %1173 = vmatprep.subr.mxu0 0.0
        %1174 = vmatpush1.msra.mxu0 %v1101
        %1175 = vmatprep.subr.mxu0 0.0
        %1176 = vmatpush1.msra.mxu0 %v1100
        %1177 = vmatprep.subr.mxu0 0.0
        %1178 = vmatpush1.msra.mxu0 %v1099
        %1179 = vmatprep.subr.mxu0 0.0
        %1180 = vmatpush1.msra.mxu0 %v1098
        %1181 = vmatprep.subr.mxu0 0.0
        %1182 = vmatpush1.msra.mxu0 %v1097
        %1183 = vmatprep.subr.mxu0 0.0
        %1184 = vmatpush2.msra.mxu0 0.0
        %1185 = vmatprep.subr.mxu0 0.0
        %1186 = vmatpush2.msra.mxu0 0.0
        %1187 = vmatprep.subr.mxu0 0.0
        %1188 = vmatpush2.msra.mxu0 0.0
        %1189 = vmatprep.subr.mxu0 0.0
        %1190 = vmatpush2.msra.mxu0 0.0
        %1191 = vmatprep.subr.mxu0 0.0
        %1192 = vmatpush2.msra.mxu0 0.0
        %1193 = vmatprep.subr.mxu0 0.0
        %1194 = vmatpush2.msra.mxu0 0.0
        %1195 = vmatprep.subr.mxu0 0.0
        %1196 = vmatpush2.msra.mxu0 0.0
        %1197 = vmatprep.subr.mxu0 0.0
        %1198 = vmatpush2.msra.mxu0 0.0
        %1199 = vmatprep.subr.mxu0 0.0
        %1200 = vmatpush2.msra.mxu0 0.0
        %1201 = vmatprep.subr.mxu0 0.0
        %1202 = vmatpush2.msra.mxu0 0.0
        %1203 = vmatprep.subr.mxu0 0.0
        %1204 = vmatpush2.msra.mxu0 0.0
        %1205 = vmatprep.subr.mxu0 0.0
        %1206 = vmatpush2.msra.mxu0 0.0
        %1207 = vmatprep.subr.mxu0 0.0
        %1208 = vmatpush2.msra.mxu0 0.0
        %1209 = vmatprep.subr.mxu0 0.0
        %1210 = vmatpush2.msra.mxu0 0.0
        %1211 = vmatprep.subr.mxu0 0.0
        %1212 = vmatpush2.msra.mxu0 0.0
        %1213 = vmatprep.subr.mxu0 0.0
        %1214 = vmatpush2.msra.mxu0 0.0
        %1215 = vmatprep.mubr.f32.mxu0 0.0
        %1216 = vmatmul.mubr.f32.gmra.mxu0 %v1104
        %v1217 = vpop.f32.mrf.mxu0
        %v1218 = vadd.f32 0.0, %v1217
        %v1219 = vpop.f32.mrf.mxu0
        %1220 = vmatprep.mubr.f32.mxu0 0.0
        %1221 = vmatmul.mubr.f32.gmra.mxu0 %v1107
        %v1222 = vpop.f32.mrf.mxu0
        %v1223 = vadd.f32 0.0, %v1222
        %v1224 = vpop.f32.mrf.mxu0
        %1225 = vmatprep.mubr.f32.mxu0 0.0
        %1226 = vmatmul.mubr.f32.gmra.mxu0 %v1110
        %v1227 = vpop.f32.mrf.mxu0
        %v1228 = vadd.f32 0.0, %v1227
        %v1229 = vpop.f32.mrf.mxu0
        %1230 = vmatprep.mubr.f32.mxu0 0.0
        %1231 = vmatmul.mubr.f32.gmra.mxu0 %v1113
        %v1232 = vpop.f32.mrf.mxu0
        %v1233 = vadd.f32 0.0, %v1232
        %v1234 = vpop.f32.mrf.mxu0
        %1235 = vmatprep.mubr.f32.mxu0 0.0
        %1236 = vmatmul.mubr.f32.gmra.mxu0 %v1116
        %v1237 = vpop.f32.mrf.mxu0
        %v1238 = vadd.f32 0.0, %v1237
        %v1239 = vpop.f32.mrf.mxu0
        %1240 = vmatprep.mubr.f32.mxu0 0.0
        %1241 = vmatmul.mubr.f32.gmra.mxu0 %v1119
        %v1242 = vpop.f32.mrf.mxu0
        %v1243 = vadd.f32 0.0, %v1242
        %v1244 = vpop.f32.mrf.mxu0
        %1245 = vmatprep.mubr.f32.mxu0 0.0
        %1246 = vmatmul.mubr.f32.gmra.mxu0 %v1122
        %v1247 = vpop.f32.mrf.mxu0
        %v1248 = vadd.f32 0.0, %v1247
        %v1249 = vpop.f32.mrf.mxu0
        %1250 = vmatprep.mubr.f32.mxu0 0.0
        %1251 = vmatmul.mubr.f32.gmra.mxu0 %v1125
        %v1252 = vpop.f32.mrf.mxu0
        %v1253 = vadd.f32 0.0, %v1252
        %v1254 = vpop.f32.mrf.mxu0
        %1255 = vmatprep.mubr.f32.mxu0 0.0
        %1256 = vmatmul.mubr.f32.gmra.mxu0 %v1128
        %v1257 = vpop.f32.mrf.mxu0
        %v1258 = vadd.f32 0.0, %v1257
        %v1259 = vpop.f32.mrf.mxu0
        %1260 = vmatprep.mubr.f32.mxu0 0.0
        %1261 = vmatmul.mubr.f32.gmra.mxu0 %v1131
        %v1262 = vpop.f32.mrf.mxu0
        %v1263 = vadd.f32 0.0, %v1262
        %v1264 = vpop.f32.mrf.mxu0
        %1265 = vmatprep.mubr.f32.mxu0 0.0
        %1266 = vmatmul.mubr.f32.gmra.mxu0 %v1134
        %v1267 = vpop.f32.mrf.mxu0
        %v1268 = vadd.f32 0.0, %v1267
        %v1269 = vpop.f32.mrf.mxu0
        %1270 = vmatprep.mubr.f32.mxu0 0.0
        %1271 = vmatmul.mubr.f32.gmra.mxu0 %v1137
        %v1272 = vpop.f32.mrf.mxu0
        %v1273 = vadd.f32 0.0, %v1272
        %v1274 = vpop.f32.mrf.mxu0
        %1275 = vmatprep.mubr.f32.mxu0 0.0
        %1276 = vmatmul.mubr.f32.gmra.mxu0 %v1140
        %v1277 = vpop.f32.mrf.mxu0
        %v1278 = vadd.f32 0.0, %v1277
        %v1279 = vpop.f32.mrf.mxu0
        %1280 = vmatprep.mubr.f32.mxu0 0.0
        %1281 = vmatmul.mubr.f32.gmra.mxu0 %v1143
        %v1282 = vpop.f32.mrf.mxu0
        %v1283 = vadd.f32 0.0, %v1282
        %v1284 = vpop.f32.mrf.mxu0
        %1285 = vmatprep.mubr.f32.mxu0 0.0
        %1286 = vmatmul.mubr.f32.gmra.mxu0 %v1146
        %v1287 = vpop.f32.mrf.mxu0
        %v1288 = vadd.f32 0.0, %v1287
        %v1289 = vpop.f32.mrf.mxu0
        %1290 = vmatprep.mubr.f32.mxu0 0.0
        %1291 = vmatmul.mubr.f32.gmra.mxu0 %v1149
        %v1292 = vpop.f32.mrf.mxu0
        %v1293 = vadd.f32 0.0, %v1292
        %v1294 = vpop.f32.mrf.mxu0
        %1295 = vdwg.mxu0
        %v1296 = vadd.f32 %v1218, %v1059
        %v1297 = vadd.f32 %v1223, %v1064
        %v1298 = vadd.f32 %v1228, %v1069
        %v1299 = vadd.f32 %v1233, %v1074
        %v1300 = vadd.f32 %v1238, %v1079
        %v1301 = vadd.f32 %v1243, %v1084
        %v1302 = vadd.f32 %v1248, %v1089
        %v1303 = vadd.f32 %v1253, %v1094
        %v1304 = vadd.f32 %v1258, %v1059
        %v1305 = vadd.f32 %v1263, %v1064
        %v1306 = vadd.f32 %v1268, %v1069
        %v1307 = vadd.f32 %v1273, %v1074
        %v1308 = vadd.f32 %v1278, %v1079
        %v1309 = vadd.f32 %v1283, %v1084
        %v1310 = vadd.f32 %v1288, %v1089
        %v1311 = vadd.f32 %v1293, %v1094
        %v1312 = vld [vmem:[#allocation4] sm:$0x1]
        %vm1313 = vcmp.ge.f32.partialorder %v1296, 0.0
        %vm1314 = vcmp.ge.f32.partialorder %v1297, 0.0
        %vm1315 = vcmp.ge.f32.partialorder %v1298, 0.0
        %vm1316 = vcmp.ge.f32.partialorder %v1299, 0.0
        %vm1317 = vcmp.ge.f32.partialorder %v1300, 0.0
        %vm1318 = vcmp.ge.f32.partialorder %v1301, 0.0
        %vm1319 = vcmp.ge.f32.partialorder %v1302, 0.0
        %vm1320 = vcmp.ge.f32.partialorder %v1303, 0.0
        %vm1321 = vcmp.ge.f32.partialorder %v1304, 0.0
        %vm1322 = vcmp.ge.f32.partialorder %v1305, 0.0
        %vm1323 = vcmp.ge.f32.partialorder %v1306, 0.0
        %vm1324 = vcmp.ge.f32.partialorder %v1307, 0.0
        %vm1325 = vcmp.ge.f32.partialorder %v1308, 0.0
        %vm1326 = vcmp.ge.f32.partialorder %v1309, 0.0
        %vm1327 = vcmp.ge.f32.partialorder %v1310, 0.0
        %vm1328 = vcmp.ge.f32.partialorder %v1311, 0.0
        %v1330 = vlaneseq
        %v1331 = vshrl.u32 %v1330, 7
        %v1332 = vsub.s32 0, %v1331
        %v1333 = vrot.slane %v1312, %v1332
        %1334 = vset.pattern.permute.xlu0 0
        %1335 = vperm.xlu0 %1334, %v1333
        %v1336 = vpop.permute.xlu0 %1335
        %v1338 = vmul.f32 %v1336, %v1296
        %v1339 = vmul.f32 %v1336, %v1297
        %v1340 = vmul.f32 %v1336, %v1298
        %v1341 = vmul.f32 %v1336, %v1299
        %v1342 = vmul.f32 %v1336, %v1300
        %v1343 = vmul.f32 %v1336, %v1301
        %v1344 = vmul.f32 %v1336, %v1302
        %v1345 = vmul.f32 %v1336, %v1303
        %v1346 = vmul.f32 %v1336, %v1304
        %v1347 = vmul.f32 %v1336, %v1305
        %v1348 = vmul.f32 %v1336, %v1306
        %v1349 = vmul.f32 %v1336, %v1307
        %v1350 = vmul.f32 %v1336, %v1308
        %v1351 = vmul.f32 %v1336, %v1309
        %v1352 = vmul.f32 %v1336, %v1310
        %v1353 = vmul.f32 %v1336, %v1311
        %v1354 = vsel %vm1313, %v1296, %v1338
        %v1355 = vsel %vm1314, %v1297, %v1339
        %v1356 = vsel %vm1315, %v1298, %v1340
        %v1357 = vsel %vm1316, %v1299, %v1341
        %v1358 = vsel %vm1317, %v1300, %v1342
        %v1359 = vsel %vm1318, %v1301, %v1343
        %v1360 = vsel %vm1319, %v1302, %v1344
        %v1361 = vsel %vm1320, %v1303, %v1345
        %v1362 = vsel %vm1321, %v1304, %v1346
        %v1363 = vsel %vm1322, %v1305, %v1347
        %v1364 = vsel %vm1323, %v1306, %v1348
        %v1365 = vsel %vm1324, %v1307, %v1349
        %v1366 = vsel %vm1325, %v1308, %v1350
        %v1367 = vsel %vm1326, %v1309, %v1351
        %v1368 = vsel %vm1327, %v1310, %v1352
        %v1369 = vsel %vm1328, %v1311, %v1353
        %1370 = vst.msk [vmem:[%s482] sm:$0xff] %vm510, %v1354
        %1371 = vst.msk [vmem:[%s482 + $0x8] sm:$0xff] %vm510, %v1355
        %1372 = vst.msk [vmem:[%s482 + $0x10] sm:$0xff] %vm510, %v1356
        %1373 = vst.msk [vmem:[%s482 + $0x18] sm:$0xff] %vm510, %v1357
        %1374 = vst.msk [vmem:[%s482 + $0x20] sm:$0xff] %vm510, %v1358
        %1375 = vst.msk [vmem:[%s482 + $0x28] sm:$0xff] %vm510, %v1359
        %1376 = vst.msk [vmem:[%s482 + $0x30] sm:$0xff] %vm510, %v1360
        %1377 = vst.msk [vmem:[%s482 + $0x38] sm:$0xff] %vm510, %v1361
        %1378 = vst.msk [vmem:[%s482 + $0x40] sm:$0xff] %vm510, %v1362
        %1379 = vst.msk [vmem:[%s482 + $0x48] sm:$0xff] %vm510, %v1363
        %1380 = vst.msk [vmem:[%s482 + $0x50] sm:$0xff] %vm510, %v1364
        %1381 = vst.msk [vmem:[%s482 + $0x58] sm:$0xff] %vm510, %v1365
        %1382 = vst.msk [vmem:[%s482 + $0x60] sm:$0xff] %vm510, %v1366
        %1383 = vst.msk [vmem:[%s482 + $0x68] sm:$0xff] %vm510, %v1367
        %1384 = vst.msk [vmem:[%s482 + $0x70] sm:$0xff] %vm510, %v1368
        %1385 = vst.msk [vmem:[%s482 + $0x78] sm:$0xff] %vm510, %v1369
        %s1386 = sand.u32 %s272, 1
        %s1387 = sand.u32 %s272, 1
        %s1388 = smul.addr %s1387, 128
        %s1389 = scalar_lea.vmem [#allocation6], %s1388
        // Predicated region
        $region103: #{_lambda_.27} parent=97 // pred_check
          %p1390 = pneg %p282
        $region104: #{_lambda_.27} parent=97 // pred_check_branch
          %1392 = sbr.rel (%p1390) target = $region106
        $region105: #{_lambda_.27} parent=97 // pred_region
          %s1393 = smul.u32 8, %s28
          %s1394 = smul.addr %s1393, 8
          %s1395 = scalar_lea.vmem %s11, %s1394
          // Predicated region
          $region107: #{_lambda_.27} parent=105 // pred_check
            _
          $region108: #{_lambda_.27} parent=105 // pred_check_branch
            %1397 = sbr.rel (0) target = $region110
          $region109: #{_lambda_.27} parent=105 // pred_region
            // Predicated region
            $region111: #{_lambda_.27} parent=109 // pred_check
              _
            $region112: #{_lambda_.27} parent=109 // pred_check_branch
              %1399 = sbr.rel (0) target = $region114
            $region113: #{_lambda_.27} parent=109 // pred_region
              // Predicated region
              $region126: #{_lambda_.27} parent=113 // pred_check
                _
              $region127: #{_lambda_.27} parent=113 // pred_check_branch
                %1445 = sbr.rel (0) target = $region129
              $region128: #{_lambda_.27} parent=113 // pred_region
                loop: start=0, step=1, limit=1
                $region130: #{_lambda_.27} parent=128 // loop_pre_header
                  _
                $region131: #{_lambda_.27} parent=128 // loop_header
                  %s1447 = sphi 0, %s1451
                  %p1448 = scmp.ge.s32.totalorder %s1447, 1
                  %s1452 = sphi %s1389, %s1389
                  %s1453 = sphi %s1395, %s1395
                $region132: #{_lambda_.27} parent=128 // loop_header_branch
                  %1450 = sbr.rel (%p1448) target = $region136
                $region133: #{_lambda_.27} parent=128 // loop_body
                  %v1454 = vld [vmem:[%s1452] sm:$0xff]
                  %1455 = vst [vmem:[%s1453] sm:$0xff] %v1454
                  %v1456 = vld [vmem:[%s1452 + $0x8] sm:$0xff]
                  %1457 = vst [vmem:[%s1453 + $0x8] sm:$0xff] %v1456
                  %v1458 = vld [vmem:[%s1452 + $0x10] sm:$0xff]
                  %1459 = vst [vmem:[%s1453 + $0x10] sm:$0xff] %v1458
                  %v1460 = vld [vmem:[%s1452 + $0x18] sm:$0xff]
                  %1461 = vst [vmem:[%s1453 + $0x18] sm:$0xff] %v1460
                  %v1462 = vld [vmem:[%s1452 + $0x20] sm:$0xff]
                  %1463 = vst [vmem:[%s1453 + $0x20] sm:$0xff] %v1462
                  %v1464 = vld [vmem:[%s1452 + $0x28] sm:$0xff]
                  %1465 = vst [vmem:[%s1453 + $0x28] sm:$0xff] %v1464
                  %v1466 = vld [vmem:[%s1452 + $0x30] sm:$0xff]
                  %1467 = vst [vmem:[%s1453 + $0x30] sm:$0xff] %v1466
                  %v1468 = vld [vmem:[%s1452 + $0x38] sm:$0xff]
                  %1469 = vst [vmem:[%s1453 + $0x38] sm:$0xff] %v1468
                  %v1470 = vld [vmem:[%s1452 + $0x40] sm:$0xff]
                  %1471 = vst [vmem:[%s1453 + $0x80] sm:$0xff] %v1470
                  %v1472 = vld [vmem:[%s1452 + $0x48] sm:$0xff]
                  %1473 = vst [vmem:[%s1453 + $0x88] sm:$0xff] %v1472
                  %v1474 = vld [vmem:[%s1452 + $0x50] sm:$0xff]
                  %1475 = vst [vmem:[%s1453 + $0x90] sm:$0xff] %v1474
                  %v1476 = vld [vmem:[%s1452 + $0x58] sm:$0xff]
                  %1477 = vst [vmem:[%s1453 + $0x98] sm:$0xff] %v1476
                  %v1478 = vld [vmem:[%s1452 + $0x60] sm:$0xff]
                  %1479 = vst [vmem:[%s1453 + $0xa0] sm:$0xff] %v1478
                  %v1480 = vld [vmem:[%s1452 + $0x68] sm:$0xff]
                  %1481 = vst [vmem:[%s1453 + $0xa8] sm:$0xff] %v1480
                  %v1482 = vld [vmem:[%s1452 + $0x70] sm:$0xff]
                  %1483 = vst [vmem:[%s1453 + $0xb0] sm:$0xff] %v1482
                  %v1484 = vld [vmem:[%s1452 + $0x78] sm:$0xff]
                  %1485 = vst [vmem:[%s1453 + $0xb8] sm:$0xff] %v1484
                $region134: #{_lambda_.27} parent=128 // loop_footer
                  %s1451 = sadd.s32 1, %s1447
                $region135: #{_lambda_.27} parent=128 // loop_footer_branch
                  %1446 = sbr.rel target = $region131
                $region136: #{_lambda_.27} parent=128 // loop_exit
                  _
              $region129: #{_lambda_.27} parent=113 // pred_fallthru
                _
              // Predicated region
              $region137: #{_lambda_.27} parent=113 // pred_check
                _
              $region138: #{_lambda_.27} parent=113 // pred_check_branch
                %1487 = sbr.rel target = $region140
              $region139: #{_lambda_.27} parent=113 // pred_region
                _
              $region140: #{_lambda_.27} parent=113 // pred_fallthru
                _
            $region114: #{_lambda_.27} parent=109 // pred_fallthru
              _
            // Predicated region
            $region115: #{_lambda_.27} parent=109 // pred_check
              _
            $region116: #{_lambda_.27} parent=109 // pred_check_branch
              %1401 = sbr.rel target = $region118
            $region117: #{_lambda_.27} parent=109 // pred_region
              %s1403 = ssub.s32 256, 1
              loop: start=0, step=1, limit=1
              $region119: #{_lambda_.27} parent=117 // loop_pre_header
                _
              $region120: #{_lambda_.27} parent=117 // loop_header
                %s1405 = sphi 0, %s1409
                %p1406 = scmp.ge.s32.totalorder %s1405, 1
                %s1410 = sphi %s1389, %s1389
                %s1411 = sphi %s1395, %s1395
              $region121: #{_lambda_.27} parent=117 // loop_header_branch
                %1408 = sbr.rel (%p1406) target = $region125
              $region122: #{_lambda_.27} parent=117 // loop_body
                %v1412 = vld [vmem:[%s1410] sm:%s1403]
                %1413 = vst [vmem:[%s1411] sm:%s1403] %v1412
                %v1414 = vld [vmem:[%s1410 + $0x8] sm:%s1403]
                %1415 = vst [vmem:[%s1411 + $0x8] sm:%s1403] %v1414
                %v1416 = vld [vmem:[%s1410 + $0x10] sm:%s1403]
                %1417 = vst [vmem:[%s1411 + $0x10] sm:%s1403] %v1416
                %v1418 = vld [vmem:[%s1410 + $0x18] sm:%s1403]
                %1419 = vst [vmem:[%s1411 + $0x18] sm:%s1403] %v1418
                %v1420 = vld [vmem:[%s1410 + $0x20] sm:%s1403]
                %1421 = vst [vmem:[%s1411 + $0x20] sm:%s1403] %v1420
                %v1422 = vld [vmem:[%s1410 + $0x28] sm:%s1403]
                %1423 = vst [vmem:[%s1411 + $0x28] sm:%s1403] %v1422
                %v1424 = vld [vmem:[%s1410 + $0x30] sm:%s1403]
                %1425 = vst [vmem:[%s1411 + $0x30] sm:%s1403] %v1424
                %v1426 = vld [vmem:[%s1410 + $0x38] sm:%s1403]
                %1427 = vst [vmem:[%s1411 + $0x38] sm:%s1403] %v1426
                %v1428 = vld [vmem:[%s1410 + $0x40] sm:%s1403]
                %1429 = vst [vmem:[%s1411 + $0x80] sm:%s1403] %v1428
                %v1430 = vld [vmem:[%s1410 + $0x48] sm:%s1403]
                %1431 = vst [vmem:[%s1411 + $0x88] sm:%s1403] %v1430
                %v1432 = vld [vmem:[%s1410 + $0x50] sm:%s1403]
                %1433 = vst [vmem:[%s1411 + $0x90] sm:%s1403] %v1432
                %v1434 = vld [vmem:[%s1410 + $0x58] sm:%s1403]
                %1435 = vst [vmem:[%s1411 + $0x98] sm:%s1403] %v1434
                %v1436 = vld [vmem:[%s1410 + $0x60] sm:%s1403]
                %1437 = vst [vmem:[%s1411 + $0xa0] sm:%s1403] %v1436
                %v1438 = vld [vmem:[%s1410 + $0x68] sm:%s1403]
                %1439 = vst [vmem:[%s1411 + $0xa8] sm:%s1403] %v1438
                %v1440 = vld [vmem:[%s1410 + $0x70] sm:%s1403]
                %1441 = vst [vmem:[%s1411 + $0xb0] sm:%s1403] %v1440
                %v1442 = vld [vmem:[%s1410 + $0x78] sm:%s1403]
                %1443 = vst [vmem:[%s1411 + $0xb8] sm:%s1403] %v1442
              $region123: #{_lambda_.27} parent=117 // loop_footer
                %s1409 = sadd.s32 1, %s1405
              $region124: #{_lambda_.27} parent=117 // loop_footer_branch
                %1404 = sbr.rel target = $region120
              $region125: #{_lambda_.27} parent=117 // loop_exit
                _
            $region118: #{_lambda_.27} parent=109 // pred_fallthru
              _
          $region110: #{_lambda_.27} parent=105 // pred_fallthru
            _
          %1488 = vnop
        $region106: #{_lambda_.27} parent=97 // pred_fallthru
          _
      $region98: #{_lambda_.27} parent=5 // pred_fallthru
        _
      %p1489 = scmp.le.s32.totalorder 2, %s23
      // Predicated region
      $region141: #{_lambda_.27} parent=5 // pred_check
        %p1490 = pneg %p1489
      $region142: #{_lambda_.27} parent=5 // pred_check_branch
        %1492 = sbr.rel (%p1490) target = $region144
      $region143: #{_lambda_.27} parent=5 // pred_region
        %s1493 = ssub.s32 %s23, 2
        // Predicated region
        $region145: #{_lambda_.27} parent=143 // pred_check
          %p1494 = pneg %p288
        $region146: #{_lambda_.27} parent=143 // pred_check_branch
          %1496 = sbr.rel (%p1494) target = $region148
        $region147: #{_lambda_.27} parent=143 // pred_region
          %s1497 = sand.u32 %s273, 1
          %s1498 = sand.u32 %s273, 1
          %s1499 = smul.addr %s1498, 128
          %s1500 = scalar_lea.vmem [#allocation6], %s1499
        $region148: #{_lambda_.27} parent=143 // pred_fallthru
          _
      $region144: #{_lambda_.27} parent=5 // pred_fallthru
        _
    $region6: #{_lambda_.27} parent=1 // loop_footer
      %s27 = sadd.s32 1, %s23
    $region7: #{_lambda_.27} parent=1 // loop_footer_branch
      %22 = sbr.rel target = $region3
    $region8: #{_lambda_.27} parent=1 // loop_exit
      _

</llo_original>
